<compile_context>
chip_gen: v7x
topology: tpu7x:2x2x1
jax: 0.10.0
libtpu: 0.0.40
codegen_flags: <defaults>
</compile_context>

<pallas_src>
import jax
import jax.numpy as jnp
from jax import lax
from jax.experimental import pallas as pl
from jax.experimental.pallas import tpu as pltpu


# ----------------------------- in-kernel helpers -----------------------------

def _cell(xp_t, h, c, whh, H):
    """One LSTM step.  xp_t = x_t @ W_ih + b (precomputed), shape (1, 4H)."""
    gates = jnp.dot(h, whh, preferred_element_type=jnp.float32) + xp_t
    i = jax.nn.sigmoid(gates[:, 0:H])
    f = jax.nn.sigmoid(gates[:, H:2 * H])
    g = jnp.tanh(gates[:, 2 * H:3 * H])
    o = jax.nn.sigmoid(gates[:, 3 * H:4 * H])
    c_new = f * c + i * g
    h_new = o * jnp.tanh(c_new)
    return h_new, c_new


def _bidir_layer(xf, xb, wih_f, whh_f, b_f, wih_b, whh_b, b_b, H):
    """Run the forward and backward LSTMs of one layer, interleaved.

    Returns (out_f, out_b_flipped), each (seq, H).  out_b is returned already
    flipped along time (== torch.flip(out_b, [0]))."""
    seq = xf.shape[0]
    # Hoisted input projections: one (seq, in) @ (in, 4H) matmul per direction.
    xpf = jnp.dot(xf, wih_f, preferred_element_type=jnp.float32) + b_f
    xpb = jnp.dot(xb, wih_b, preferred_element_type=jnp.float32) + b_b

    hf = jnp.zeros((1, H), jnp.float32)
    cf = jnp.zeros((1, H), jnp.float32)
    hb = jnp.zeros((1, H), jnp.float32)
    cb = jnp.zeros((1, H), jnp.float32)

    outs_f, outs_b = [], []
    for t in range(seq):                       # fully unrolled; static indices
        hf, cf = _cell(xpf[t:t + 1, :], hf, cf, whh_f, H)
        hb, cb = _cell(xpb[t:t + 1, :], hb, cb, whh_b, H)
        outs_f.append(hf)
        outs_b.append(hb)

    out_f = jnp.concatenate(outs_f, axis=0)            # (seq, H)
    out_b = jnp.concatenate(outs_b[::-1], axis=0)      # flipped (seq, H)
    return out_f, out_b


# ------------------------------ fused forward kernel --------------------------

def elmo_fused_kernel(mix_ref,
                      embf_ref, embb_ref,
                      wih_f1_ref, whh_f1_ref, b_f1_ref,
                      wih_b1_ref, whh_b1_ref, b_b1_ref,
                      wih_f2_ref, whh_f2_ref, b_f2_ref,
                      wih_b2_ref, whh_b2_ref, b_b2_ref,
                      wih_c_ref, whh_c_ref, b_c_ref,
                      wcls_ref, bcls_ref,
                      logits_ref):
    H = whh_f1_ref.shape[0]
    seq = embf_ref.shape[0]

    # ---- Elmo layer 1 (forward + backward interleaved) ----
    out_f1, out_b1 = _bidir_layer(
        embf_ref[...], embb_ref[...],
        wih_f1_ref[...], whh_f1_ref[...], b_f1_ref[...],
        wih_b1_ref[...], whh_b1_ref[...], b_b1_ref[...], H)

    # ---- Elmo layer 2 (backward branch consumes the flipped out_b1) ----
    out_f2, out_b2 = _bidir_layer(
        out_f1, out_b1,
        wih_f2_ref[...], whh_f2_ref[...], b_f2_ref[...],
        wih_b2_ref[...], whh_b2_ref[...], b_b2_ref[...], H)

    out1 = jnp.concatenate([out_f1, out_b1], axis=1)   # (seq, 2H)
    out2 = jnp.concatenate([out_f2, out_b2], axis=1)   # (seq, 2H)

    # ---- softmax mix of the two ELMo layers (whole sequence at once) ----
    w0 = mix_ref[0]
    w1 = mix_ref[1]
    xmix = w0 * out1 + w1 * out2                       # (seq, 2H)

    # ---- classifier LSTM: hoisted input projection + register-carried state --
    xp_c = jnp.dot(xmix, wih_c_ref[...],
                   preferred_element_type=jnp.float32) + b_c_ref[...]
    whh_c = whh_c_ref[...]
    h = jnp.zeros((1, H), jnp.float32)
    c = jnp.zeros((1, H), jnp.float32)
    for t in range(seq):
        h, c = _cell(xp_c[t:t + 1, :], h, c, whh_c, H)

    # ---- linear head on the final hidden state (== transpose/reshape + cls) --
    logits_ref[...] = (jnp.dot(h, wcls_ref[...],
                               preferred_element_type=jnp.float32)
                       + bcls_ref[...])


def elmo_classifier_forward(params, x, x_f, x_b):
    # x is accepted (like the PyTorch signature) but unused by forward().
    del x
    emb = params["embedding"]
    embeddings_f = emb[x_f]                   # (seq, H) gather — glue in plain JAX
    embeddings_b = emb[x_b]
    mix = jax.nn.softmax(params["mix"])       # nn.Softmax(dim=0) on 2 scalars (glue)

    ncls = params["w_cls"].shape[1]
    args = [mix, embeddings_f, embeddings_b,
            *params["lstm_f1"], *params["lstm_b1"],
            *params["lstm_f2"], *params["lstm_b2"],
            *params["lstm_cls"],
            params["w_cls"], params["b_cls"]]

    logits = pl.pallas_call(
        elmo_fused_kernel,
        out_shape=jax.ShapeDtypeStruct((1, ncls), jnp.float32),
        in_specs=([pl.BlockSpec(memory_space=pltpu.MemorySpace.SMEM)]
                  + [pl.BlockSpec(memory_space=pltpu.MemorySpace.VMEM)]
                  * (len(args) - 1)),
        out_specs=pl.BlockSpec(memory_space=pltpu.MemorySpace.VMEM),
    )(*args)
    return logits[0]


# ------------------------------ pure-JAX reference ----------------------------

def _lstm_ref(x, wih_t, whh_t, b):
    H = whh_t.shape[0]

    def step(carry, x_t):
        h, c = carry
        gates = x_t @ wih_t + h @ whh_t + b[0]
        i = jax.nn.sigmoid(gates[0:H])
        f = jax.nn.sigmoid(gates[H:2 * H])
        g = jnp.tanh(gates[2 * H:3 * H])
        o = jax.nn.sigmoid(gates[3 * H:4 * H])
        c = f * c + i * g
        h = o * jnp.tanh(c)
        return (h, c), h

    (h, _), outs = lax.scan(step, (jnp.zeros(H), jnp.zeros(H)), x)
    return outs, h


def elmo_classifier_ref(params, x, x_f, x_b):
    del x
    emb = params["embedding"]
    out_f1, _ = _lstm_ref(emb[x_f], *params["lstm_f1"])
    out_b1, _ = _lstm_ref(emb[x_b], *params["lstm_b1"])
    out_b1 = jnp.flip(out_b1, axis=0)
    out1 = jnp.concatenate([out_f1, out_b1], axis=1)
    out_f2, _ = _lstm_ref(out_f1, *params["lstm_f2"])
    out_b2, _ = _lstm_ref(out_b1, *params["lstm_b2"])
    out_b2 = jnp.flip(out_b2, axis=0)
    out2 = jnp.concatenate([out_f2, out_b2], axis=1)
    mix = jax.nn.softmax(params["mix"])
    w = mix[0] * out1 + mix[1] * out2
    _, h = _lstm_ref(w, *params["lstm_cls"])
    return h @ params["w_cls"] + params["b_cls"][0]


# ----------------------------------- main --------------------------------------

if __name__ == "__main__":
    SEQ, H, VOCAB, NCLS = 8, 128, 64, 5

    key = jax.random.PRNGKey(0)
    ks = list(jax.random.split(key, 24))

    def rnd(k, shape, scale=0.1):
        return (scale * jax.random.normal(k, shape)).astype(jnp.float32)

    def lstm_params(k, in_size):
        k1, k2, k3 = jax.random.split(k, 3)
        return (rnd(k1, (in_size, 4 * H)),    # W_ih^T
                rnd(k2, (H, 4 * H)),          # W_hh^T
                rnd(k3, (1, 4 * H)))          # b_ih + b_hh (combined)

    params = {
        "embedding": rnd(ks[0], (VOCAB, H), scale=1.0),
        "lstm_f1": lstm_params(ks[1], H),
        "lstm_b1": lstm_params(ks[2], H),
        "lstm_f2": lstm_params(ks[3], H),
        "lstm_b2": lstm_params(ks[4], H),
        "lstm_cls": lstm_params(ks[5], 2 * H),
        "w_cls": rnd(ks[6], (H, NCLS)),
        "b_cls": rnd(ks[7], (1, NCLS)),
        "mix": jax.random.uniform(ks[8], (2,), dtype=jnp.float32),  # torch.rand(2)
    }

    x = jax.random.randint(ks[9], (SEQ,), 0, VOCAB)
    x_f = jax.random.randint(ks[10], (SEQ,), 0, VOCAB)
    x_b = jax.random.randint(ks[11], (SEQ,), 0, VOCAB)

    out = jax.block_until_ready(elmo_classifier_forward(params, x, x_f, x_b))
    ref = jax.block_until_ready(elmo_classifier_ref(params, x, x_f, x_b))

    assert out.shape == (NCLS,), out.shape
    assert jnp.allclose(out, ref, atol=5e-3, rtol=5e-3), (out, ref)
    print("KERNEL_OK")
</pallas_src>

<mosaic_0001>
module attributes {stable_mosaic.version = 11 : i64} {
  func.func @elmo_fused_kernel(%arg0: memref<2xf32, #tpu.memory_space<smem>>, %arg1: memref<8x128xf32, #tpu.memory_space<vmem>>, %arg2: memref<8x128xf32, #tpu.memory_space<vmem>>, %arg3: memref<128x512xf32, #tpu.memory_space<vmem>>, %arg4: memref<128x512xf32, #tpu.memory_space<vmem>>, %arg5: memref<1x512xf32, #tpu.memory_space<vmem>>, %arg6: memref<128x512xf32, #tpu.memory_space<vmem>>, %arg7: memref<128x512xf32, #tpu.memory_space<vmem>>, %arg8: memref<1x512xf32, #tpu.memory_space<vmem>>, %arg9: memref<128x512xf32, #tpu.memory_space<vmem>>, %arg10: memref<128x512xf32, #tpu.memory_space<vmem>>, %arg11: memref<1x512xf32, #tpu.memory_space<vmem>>, %arg12: memref<128x512xf32, #tpu.memory_space<vmem>>, %arg13: memref<128x512xf32, #tpu.memory_space<vmem>>, %arg14: memref<1x512xf32, #tpu.memory_space<vmem>>, %arg15: memref<256x512xf32, #tpu.memory_space<vmem>>, %arg16: memref<128x512xf32, #tpu.memory_space<vmem>>, %arg17: memref<1x512xf32, #tpu.memory_space<vmem>>, %arg18: memref<128x5xf32, #tpu.memory_space<vmem>>, %arg19: memref<1x5xf32, #tpu.memory_space<vmem>>, %arg20: memref<1x5xf32, #tpu.memory_space<vmem>>) attributes {dimension_semantics = [], scalar_prefetch = 0 : i64, scratch_operands = 0 : i64, tpu.core_type = #tpu.core_type<tc>} {
    %c0 = arith.constant 0 : index
    %c0_0 = arith.constant 0 : index
    %0 = vector.load %arg1[%c0, %c0_0] : memref<8x128xf32, #tpu.memory_space<vmem>>, vector<8x128xf32>
    %c0_1 = arith.constant 0 : index
    %c0_2 = arith.constant 0 : index
    %1 = vector.load %arg2[%c0_1, %c0_2] : memref<8x128xf32, #tpu.memory_space<vmem>>, vector<8x128xf32>
    %c0_3 = arith.constant 0 : index
    %c0_4 = arith.constant 0 : index
    %2 = vector.load %arg3[%c0_3, %c0_4] : memref<128x512xf32, #tpu.memory_space<vmem>>, vector<128x512xf32>
    %c0_5 = arith.constant 0 : index
    %c0_6 = arith.constant 0 : index
    %3 = vector.load %arg4[%c0_5, %c0_6] : memref<128x512xf32, #tpu.memory_space<vmem>>, vector<128x512xf32>
    %c0_7 = arith.constant 0 : index
    %c0_8 = arith.constant 0 : index
    %4 = vector.load %arg5[%c0_7, %c0_8] : memref<1x512xf32, #tpu.memory_space<vmem>>, vector<1x512xf32>
    %c0_9 = arith.constant 0 : index
    %c0_10 = arith.constant 0 : index
    %5 = vector.load %arg6[%c0_9, %c0_10] : memref<128x512xf32, #tpu.memory_space<vmem>>, vector<128x512xf32>
    %c0_11 = arith.constant 0 : index
    %c0_12 = arith.constant 0 : index
    %6 = vector.load %arg7[%c0_11, %c0_12] : memref<128x512xf32, #tpu.memory_space<vmem>>, vector<128x512xf32>
    %c0_13 = arith.constant 0 : index
    %c0_14 = arith.constant 0 : index
    %7 = vector.load %arg8[%c0_13, %c0_14] : memref<1x512xf32, #tpu.memory_space<vmem>>, vector<1x512xf32>
    %cst = arith.constant dense<0.000000e+00> : vector<8x512xf32>
    %8 = tpu.matmul %0, %2, %cst {dimension_numbers = #tpu.dot_dimension_numbers<[1], [0], [0], [1], [0, 0, 1, 1], [], []>} : vector<8x128xf32>, vector<128x512xf32>, vector<8x512xf32> -> vector<8x512xf32>
    %9 = vector.broadcast %4 : vector<1x512xf32> to vector<8x512xf32>
    %10 = arith.addf %8, %9 : vector<8x512xf32>
    %cst_15 = arith.constant dense<0.000000e+00> : vector<8x512xf32>
    %11 = tpu.matmul %1, %5, %cst_15 {dimension_numbers = #tpu.dot_dimension_numbers<[1], [0], [0], [1], [0, 0, 1, 1], [], []>} : vector<8x128xf32>, vector<128x512xf32>, vector<8x512xf32> -> vector<8x512xf32>
    %12 = vector.broadcast %7 : vector<1x512xf32> to vector<8x512xf32>
    %13 = arith.addf %11, %12 : vector<8x512xf32>
    %cst_16 = arith.constant 0.000000e+00 : f32
    %14 = vector.broadcast %cst_16 : f32 to vector<1x128xf32>
    %cst_17 = arith.constant 0.000000e+00 : f32
    %15 = vector.broadcast %cst_17 : f32 to vector<1x128xf32>
    %cst_18 = arith.constant 0.000000e+00 : f32
    %16 = vector.broadcast %cst_18 : f32 to vector<1x128xf32>
    %cst_19 = arith.constant 0.000000e+00 : f32
    %17 = vector.broadcast %cst_19 : f32 to vector<1x128xf32>
    %18 = vector.extract_strided_slice %10 {offsets = [0, 0], sizes = [1, 512], strides = [1, 1]} : vector<8x512xf32> to vector<1x512xf32>
    %cst_20 = arith.constant dense<0.000000e+00> : vector<1x512xf32>
    %19 = tpu.matmul %14, %3, %cst_20 {dimension_numbers = #tpu.dot_dimension_numbers<[1], [0], [0], [1], [0, 0, 1, 1], [], []>} : vector<1x128xf32>, vector<128x512xf32>, vector<1x512xf32> -> vector<1x512xf32>
    %20 = arith.addf %19, %18 : vector<1x512xf32>
    %21 = vector.extract_strided_slice %20 {offsets = [0, 0], sizes = [1, 128], strides = [1, 1]} : vector<1x512xf32> to vector<1x128xf32>
    %22 = arith.negf %21 : vector<1x128xf32>
    %23 = math.exp %22 : vector<1x128xf32>
    %cst_21 = arith.constant 1.000000e+00 : f32
    %24 = vector.broadcast %cst_21 : f32 to vector<1x128xf32>
    %25 = arith.addf %24, %23 : vector<1x128xf32>
    %26 = arith.divf %24, %25 : vector<1x128xf32>
    %27 = vector.extract_strided_slice %20 {offsets = [0, 128], sizes = [1, 128], strides = [1, 1]} : vector<1x512xf32> to vector<1x128xf32>
    %28 = arith.negf %27 : vector<1x128xf32>
    %29 = math.exp %28 : vector<1x128xf32>
    %cst_22 = arith.constant 1.000000e+00 : f32
    %30 = vector.broadcast %cst_22 : f32 to vector<1x128xf32>
    %31 = arith.addf %30, %29 : vector<1x128xf32>
    %32 = arith.divf %30, %31 : vector<1x128xf32>
    %33 = vector.extract_strided_slice %20 {offsets = [0, 256], sizes = [1, 128], strides = [1, 1]} : vector<1x512xf32> to vector<1x128xf32>
    %34 = math.tanh %33 : vector<1x128xf32>
    %35 = vector.extract_strided_slice %20 {offsets = [0, 384], sizes = [1, 128], strides = [1, 1]} : vector<1x512xf32> to vector<1x128xf32>
    %36 = arith.negf %35 : vector<1x128xf32>
    %37 = math.exp %36 : vector<1x128xf32>
    %cst_23 = arith.constant 1.000000e+00 : f32
    %38 = vector.broadcast %cst_23 : f32 to vector<1x128xf32>
    %39 = arith.addf %38, %37 : vector<1x128xf32>
    %40 = arith.divf %38, %39 : vector<1x128xf32>
    %41 = arith.mulf %32, %15 : vector<1x128xf32>
    %42 = arith.mulf %26, %34 : vector<1x128xf32>
    %43 = arith.addf %41, %42 : vector<1x128xf32>
    %44 = math.tanh %43 : vector<1x128xf32>
    %45 = arith.mulf %40, %44 : vector<1x128xf32>
    %46 = vector.extract_strided_slice %13 {offsets = [0, 0], sizes = [1, 512], strides = [1, 1]} : vector<8x512xf32> to vector<1x512xf32>
    %cst_24 = arith.constant dense<0.000000e+00> : vector<1x512xf32>
    %47 = tpu.matmul %16, %6, %cst_24 {dimension_numbers = #tpu.dot_dimension_numbers<[1], [0], [0], [1], [0, 0, 1, 1], [], []>} : vector<1x128xf32>, vector<128x512xf32>, vector<1x512xf32> -> vector<1x512xf32>
    %48 = arith.addf %47, %46 : vector<1x512xf32>
    %49 = vector.extract_strided_slice %48 {offsets = [0, 0], sizes = [1, 128], strides = [1, 1]} : vector<1x512xf32> to vector<1x128xf32>
    %50 = arith.negf %49 : vector<1x128xf32>
    %51 = math.exp %50 : vector<1x128xf32>
    %cst_25 = arith.constant 1.000000e+00 : f32
    %52 = vector.broadcast %cst_25 : f32 to vector<1x128xf32>
    %53 = arith.addf %52, %51 : vector<1x128xf32>
    %54 = arith.divf %52, %53 : vector<1x128xf32>
    %55 = vector.extract_strided_slice %48 {offsets = [0, 128], sizes = [1, 128], strides = [1, 1]} : vector<1x512xf32> to vector<1x128xf32>
    %56 = arith.negf %55 : vector<1x128xf32>
    %57 = math.exp %56 : vector<1x128xf32>
    %cst_26 = arith.constant 1.000000e+00 : f32
    %58 = vector.broadcast %cst_26 : f32 to vector<1x128xf32>
    %59 = arith.addf %58, %57 : vector<1x128xf32>
    %60 = arith.divf %58, %59 : vector<1x128xf32>
    %61 = vector.extract_strided_slice %48 {offsets = [0, 256], sizes = [1, 128], strides = [1, 1]} : vector<1x512xf32> to vector<1x128xf32>
    %62 = math.tanh %61 : vector<1x128xf32>
    %63 = vector.extract_strided_slice %48 {offsets = [0, 384], sizes = [1, 128], strides = [1, 1]} : vector<1x512xf32> to vector<1x128xf32>
    %64 = arith.negf %63 : vector<1x128xf32>
    %65 = math.exp %64 : vector<1x128xf32>
    %cst_27 = arith.constant 1.000000e+00 : f32
    %66 = vector.broadcast %cst_27 : f32 to vector<1x128xf32>
    %67 = arith.addf %66, %65 : vector<1x128xf32>
    %68 = arith.divf %66, %67 : vector<1x128xf32>
    %69 = arith.mulf %60, %17 : vector<1x128xf32>
    %70 = arith.mulf %54, %62 : vector<1x128xf32>
    %71 = arith.addf %69, %70 : vector<1x128xf32>
    %72 = math.tanh %71 : vector<1x128xf32>
    %73 = arith.mulf %68, %72 : vector<1x128xf32>
    %74 = vector.extract_strided_slice %10 {offsets = [1, 0], sizes = [1, 512], strides = [1, 1]} : vector<8x512xf32> to vector<1x512xf32>
    %cst_28 = arith.constant dense<0.000000e+00> : vector<1x512xf32>
    %75 = tpu.matmul %45, %3, %cst_28 {dimension_numbers = #tpu.dot_dimension_numbers<[1], [0], [0], [1], [0, 0, 1, 1], [], []>} : vector<1x128xf32>, vector<128x512xf32>, vector<1x512xf32> -> vector<1x512xf32>
    %76 = arith.addf %75, %74 : vector<1x512xf32>
    %77 = vector.extract_strided_slice %76 {offsets = [0, 0], sizes = [1, 128], strides = [1, 1]} : vector<1x512xf32> to vector<1x128xf32>
    %78 = arith.negf %77 : vector<1x128xf32>
    %79 = math.exp %78 : vector<1x128xf32>
    %cst_29 = arith.constant 1.000000e+00 : f32
    %80 = vector.broadcast %cst_29 : f32 to vector<1x128xf32>
    %81 = arith.addf %80, %79 : vector<1x128xf32>
    %82 = arith.divf %80, %81 : vector<1x128xf32>
    %83 = vector.extract_strided_slice %76 {offsets = [0, 128], sizes = [1, 128], strides = [1, 1]} : vector<1x512xf32> to vector<1x128xf32>
    %84 = arith.negf %83 : vector<1x128xf32>
    %85 = math.exp %84 : vector<1x128xf32>
    %cst_30 = arith.constant 1.000000e+00 : f32
    %86 = vector.broadcast %cst_30 : f32 to vector<1x128xf32>
    %87 = arith.addf %86, %85 : vector<1x128xf32>
    %88 = arith.divf %86, %87 : vector<1x128xf32>
    %89 = vector.extract_strided_slice %76 {offsets = [0, 256], sizes = [1, 128], strides = [1, 1]} : vector<1x512xf32> to vector<1x128xf32>
    %90 = math.tanh %89 : vector<1x128xf32>
    %91 = vector.extract_strided_slice %76 {offsets = [0, 384], sizes = [1, 128], strides = [1, 1]} : vector<1x512xf32> to vector<1x128xf32>
    %92 = arith.negf %91 : vector<1x128xf32>
    %93 = math.exp %92 : vector<1x128xf32>
    %cst_31 = arith.constant 1.000000e+00 : f32
    %94 = vector.broadcast %cst_31 : f32 to vector<1x128xf32>
    %95 = arith.addf %94, %93 : vector<1x128xf32>
    %96 = arith.divf %94, %95 : vector<1x128xf32>
    %97 = arith.mulf %88, %43 : vector<1x128xf32>
    %98 = arith.mulf %82, %90 : vector<1x128xf32>
    %99 = arith.addf %97, %98 : vector<1x128xf32>
    %100 = math.tanh %99 : vector<1x128xf32>
    %101 = arith.mulf %96, %100 : vector<1x128xf32>
    %102 = vector.extract_strided_slice %13 {offsets = [1, 0], sizes = [1, 512], strides = [1, 1]} : vector<8x512xf32> to vector<1x512xf32>
    %cst_32 = arith.constant dense<0.000000e+00> : vector<1x512xf32>
    %103 = tpu.matmul %73, %6, %cst_32 {dimension_numbers = #tpu.dot_dimension_numbers<[1], [0], [0], [1], [0, 0, 1, 1], [], []>} : vector<1x128xf32>, vector<128x512xf32>, vector<1x512xf32> -> vector<1x512xf32>
    %104 = arith.addf %103, %102 : vector<1x512xf32>
    %105 = vector.extract_strided_slice %104 {offsets = [0, 0], sizes = [1, 128], strides = [1, 1]} : vector<1x512xf32> to vector<1x128xf32>
    %106 = arith.negf %105 : vector<1x128xf32>
    %107 = math.exp %106 : vector<1x128xf32>
    %cst_33 = arith.constant 1.000000e+00 : f32
    %108 = vector.broadcast %cst_33 : f32 to vector<1x128xf32>
    %109 = arith.addf %108, %107 : vector<1x128xf32>
    %110 = arith.divf %108, %109 : vector<1x128xf32>
    %111 = vector.extract_strided_slice %104 {offsets = [0, 128], sizes = [1, 128], strides = [1, 1]} : vector<1x512xf32> to vector<1x128xf32>
    %112 = arith.negf %111 : vector<1x128xf32>
    %113 = math.exp %112 : vector<1x128xf32>
    %cst_34 = arith.constant 1.000000e+00 : f32
    %114 = vector.broadcast %cst_34 : f32 to vector<1x128xf32>
    %115 = arith.addf %114, %113 : vector<1x128xf32>
    %116 = arith.divf %114, %115 : vector<1x128xf32>
    %117 = vector.extract_strided_slice %104 {offsets = [0, 256], sizes = [1, 128], strides = [1, 1]} : vector<1x512xf32> to vector<1x128xf32>
    %118 = math.tanh %117 : vector<1x128xf32>
    %119 = vector.extract_strided_slice %104 {offsets = [0, 384], sizes = [1, 128], strides = [1, 1]} : vector<1x512xf32> to vector<1x128xf32>
    %120 = arith.negf %119 : vector<1x128xf32>
    %121 = math.exp %120 : vector<1x128xf32>
    %cst_35 = arith.constant 1.000000e+00 : f32
    %122 = vector.broadcast %cst_35 : f32 to vector<1x128xf32>
    %123 = arith.addf %122, %121 : vector<1x128xf32>
    %124 = arith.divf %122, %123 : vector<1x128xf32>
    %125 = arith.mulf %116, %71 : vector<1x128xf32>
    %126 = arith.mulf %110, %118 : vector<1x128xf32>
    %127 = arith.addf %125, %126 : vector<1x128xf32>
    %128 = math.tanh %127 : vector<1x128xf32>
    %129 = arith.mulf %124, %128 : vector<1x128xf32>
    %130 = vector.extract_strided_slice %10 {offsets = [2, 0], sizes = [1, 512], strides = [1, 1]} : vector<8x512xf32> to vector<1x512xf32>
    %cst_36 = arith.constant dense<0.000000e+00> : vector<1x512xf32>
    %131 = tpu.matmul %101, %3, %cst_36 {dimension_numbers = #tpu.dot_dimension_numbers<[1], [0], [0], [1], [0, 0, 1, 1], [], []>} : vector<1x128xf32>, vector<128x512xf32>, vector<1x512xf32> -> vector<1x512xf32>
    %132 = arith.addf %131, %130 : vector<1x512xf32>
    %133 = vector.extract_strided_slice %132 {offsets = [0, 0], sizes = [1, 128], strides = [1, 1]} : vector<1x512xf32> to vector<1x128xf32>
    %134 = arith.negf %133 : vector<1x128xf32>
    %135 = math.exp %134 : vector<1x128xf32>
    %cst_37 = arith.constant 1.000000e+00 : f32
    %136 = vector.broadcast %cst_37 : f32 to vector<1x128xf32>
    %137 = arith.addf %136, %135 : vector<1x128xf32>
    %138 = arith.divf %136, %137 : vector<1x128xf32>
    %139 = vector.extract_strided_slice %132 {offsets = [0, 128], sizes = [1, 128], strides = [1, 1]} : vector<1x512xf32> to vector<1x128xf32>
    %140 = arith.negf %139 : vector<1x128xf32>
    %141 = math.exp %140 : vector<1x128xf32>
    %cst_38 = arith.constant 1.000000e+00 : f32
    %142 = vector.broadcast %cst_38 : f32 to vector<1x128xf32>
    %143 = arith.addf %142, %141 : vector<1x128xf32>
    %144 = arith.divf %142, %143 : vector<1x128xf32>
    %145 = vector.extract_strided_slice %132 {offsets = [0, 256], sizes = [1, 128], strides = [1, 1]} : vector<1x512xf32> to vector<1x128xf32>
    %146 = math.tanh %145 : vector<1x128xf32>
    %147 = vector.extract_strided_slice %132 {offsets = [0, 384], sizes = [1, 128], strides = [1, 1]} : vector<1x512xf32> to vector<1x128xf32>
    %148 = arith.negf %147 : vector<1x128xf32>
    %149 = math.exp %148 : vector<1x128xf32>
    %cst_39 = arith.constant 1.000000e+00 : f32
    %150 = vector.broadcast %cst_39 : f32 to vector<1x128xf32>
    %151 = arith.addf %150, %149 : vector<1x128xf32>
    %152 = arith.divf %150, %151 : vector<1x128xf32>
    %153 = arith.mulf %144, %99 : vector<1x128xf32>
    %154 = arith.mulf %138, %146 : vector<1x128xf32>
    %155 = arith.addf %153, %154 : vector<1x128xf32>
    %156 = math.tanh %155 : vector<1x128xf32>
    %157 = arith.mulf %152, %156 : vector<1x128xf32>
    %158 = vector.extract_strided_slice %13 {offsets = [2, 0], sizes = [1, 512], strides = [1, 1]} : vector<8x512xf32> to vector<1x512xf32>
    %cst_40 = arith.constant dense<0.000000e+00> : vector<1x512xf32>
    %159 = tpu.matmul %129, %6, %cst_40 {dimension_numbers = #tpu.dot_dimension_numbers<[1], [0], [0], [1], [0, 0, 1, 1], [], []>} : vector<1x128xf32>, vector<128x512xf32>, vector<1x512xf32> -> vector<1x512xf32>
    %160 = arith.addf %159, %158 : vector<1x512xf32>
    %161 = vector.extract_strided_slice %160 {offsets = [0, 0], sizes = [1, 128], strides = [1, 1]} : vector<1x512xf32> to vector<1x128xf32>
    %162 = arith.negf %161 : vector<1x128xf32>
    %163 = math.exp %162 : vector<1x128xf32>
    %cst_41 = arith.constant 1.000000e+00 : f32
    %164 = vector.broadcast %cst_41 : f32 to vector<1x128xf32>
    %165 = arith.addf %164, %163 : vector<1x128xf32>
    %166 = arith.divf %164, %165 : vector<1x128xf32>
    %167 = vector.extract_strided_slice %160 {offsets = [0, 128], sizes = [1, 128], strides = [1, 1]} : vector<1x512xf32> to vector<1x128xf32>
    %168 = arith.negf %167 : vector<1x128xf32>
    %169 = math.exp %168 : vector<1x128xf32>
    %cst_42 = arith.constant 1.000000e+00 : f32
    %170 = vector.broadcast %cst_42 : f32 to vector<1x128xf32>
    %171 = arith.addf %170, %169 : vector<1x128xf32>
    %172 = arith.divf %170, %171 : vector<1x128xf32>
    %173 = vector.extract_strided_slice %160 {offsets = [0, 256], sizes = [1, 128], strides = [1, 1]} : vector<1x512xf32> to vector<1x128xf32>
    %174 = math.tanh %173 : vector<1x128xf32>
    %175 = vector.extract_strided_slice %160 {offsets = [0, 384], sizes = [1, 128], strides = [1, 1]} : vector<1x512xf32> to vector<1x128xf32>
    %176 = arith.negf %175 : vector<1x128xf32>
    %177 = math.exp %176 : vector<1x128xf32>
    %cst_43 = arith.constant 1.000000e+00 : f32
    %178 = vector.broadcast %cst_43 : f32 to vector<1x128xf32>
    %179 = arith.addf %178, %177 : vector<1x128xf32>
    %180 = arith.divf %178, %179 : vector<1x128xf32>
    %181 = arith.mulf %172, %127 : vector<1x128xf32>
    %182 = arith.mulf %166, %174 : vector<1x128xf32>
    %183 = arith.addf %181, %182 : vector<1x128xf32>
    %184 = math.tanh %183 : vector<1x128xf32>
    %185 = arith.mulf %180, %184 : vector<1x128xf32>
    %186 = vector.extract_strided_slice %10 {offsets = [3, 0], sizes = [1, 512], strides = [1, 1]} : vector<8x512xf32> to vector<1x512xf32>
    %cst_44 = arith.constant dense<0.000000e+00> : vector<1x512xf32>
    %187 = tpu.matmul %157, %3, %cst_44 {dimension_numbers = #tpu.dot_dimension_numbers<[1], [0], [0], [1], [0, 0, 1, 1], [], []>} : vector<1x128xf32>, vector<128x512xf32>, vector<1x512xf32> -> vector<1x512xf32>
    %188 = arith.addf %187, %186 : vector<1x512xf32>
    %189 = vector.extract_strided_slice %188 {offsets = [0, 0], sizes = [1, 128], strides = [1, 1]} : vector<1x512xf32> to vector<1x128xf32>
    %190 = arith.negf %189 : vector<1x128xf32>
    %191 = math.exp %190 : vector<1x128xf32>
    %cst_45 = arith.constant 1.000000e+00 : f32
    %192 = vector.broadcast %cst_45 : f32 to vector<1x128xf32>
    %193 = arith.addf %192, %191 : vector<1x128xf32>
    %194 = arith.divf %192, %193 : vector<1x128xf32>
    %195 = vector.extract_strided_slice %188 {offsets = [0, 128], sizes = [1, 128], strides = [1, 1]} : vector<1x512xf32> to vector<1x128xf32>
    %196 = arith.negf %195 : vector<1x128xf32>
    %197 = math.exp %196 : vector<1x128xf32>
    %cst_46 = arith.constant 1.000000e+00 : f32
    %198 = vector.broadcast %cst_46 : f32 to vector<1x128xf32>
    %199 = arith.addf %198, %197 : vector<1x128xf32>
    %200 = arith.divf %198, %199 : vector<1x128xf32>
    %201 = vector.extract_strided_slice %188 {offsets = [0, 256], sizes = [1, 128], strides = [1, 1]} : vector<1x512xf32> to vector<1x128xf32>
    %202 = math.tanh %201 : vector<1x128xf32>
    %203 = vector.extract_strided_slice %188 {offsets = [0, 384], sizes = [1, 128], strides = [1, 1]} : vector<1x512xf32> to vector<1x128xf32>
    %204 = arith.negf %203 : vector<1x128xf32>
    %205 = math.exp %204 : vector<1x128xf32>
    %cst_47 = arith.constant 1.000000e+00 : f32
    %206 = vector.broadcast %cst_47 : f32 to vector<1x128xf32>
    %207 = arith.addf %206, %205 : vector<1x128xf32>
    %208 = arith.divf %206, %207 : vector<1x128xf32>
    %209 = arith.mulf %200, %155 : vector<1x128xf32>
    %210 = arith.mulf %194, %202 : vector<1x128xf32>
    %211 = arith.addf %209, %210 : vector<1x128xf32>
    %212 = math.tanh %211 : vector<1x128xf32>
    %213 = arith.mulf %208, %212 : vector<1x128xf32>
    %214 = vector.extract_strided_slice %13 {offsets = [3, 0], sizes = [1, 512], strides = [1, 1]} : vector<8x512xf32> to vector<1x512xf32>
    %cst_48 = arith.constant dense<0.000000e+00> : vector<1x512xf32>
    %215 = tpu.matmul %185, %6, %cst_48 {dimension_numbers = #tpu.dot_dimension_numbers<[1], [0], [0], [1], [0, 0, 1, 1], [], []>} : vector<1x128xf32>, vector<128x512xf32>, vector<1x512xf32> -> vector<1x512xf32>
    %216 = arith.addf %215, %214 : vector<1x512xf32>
    %217 = vector.extract_strided_slice %216 {offsets = [0, 0], sizes = [1, 128], strides = [1, 1]} : vector<1x512xf32> to vector<1x128xf32>
    %218 = arith.negf %217 : vector<1x128xf32>
    %219 = math.exp %218 : vector<1x128xf32>
    %cst_49 = arith.constant 1.000000e+00 : f32
    %220 = vector.broadcast %cst_49 : f32 to vector<1x128xf32>
    %221 = arith.addf %220, %219 : vector<1x128xf32>
    %222 = arith.divf %220, %221 : vector<1x128xf32>
    %223 = vector.extract_strided_slice %216 {offsets = [0, 128], sizes = [1, 128], strides = [1, 1]} : vector<1x512xf32> to vector<1x128xf32>
    %224 = arith.negf %223 : vector<1x128xf32>
    %225 = math.exp %224 : vector<1x128xf32>
    %cst_50 = arith.constant 1.000000e+00 : f32
    %226 = vector.broadcast %cst_50 : f32 to vector<1x128xf32>
    %227 = arith.addf %226, %225 : vector<1x128xf32>
    %228 = arith.divf %226, %227 : vector<1x128xf32>
    %229 = vector.extract_strided_slice %216 {offsets = [0, 256], sizes = [1, 128], strides = [1, 1]} : vector<1x512xf32> to vector<1x128xf32>
    %230 = math.tanh %229 : vector<1x128xf32>
    %231 = vector.extract_strided_slice %216 {offsets = [0, 384], sizes = [1, 128], strides = [1, 1]} : vector<1x512xf32> to vector<1x128xf32>
    %232 = arith.negf %231 : vector<1x128xf32>
    %233 = math.exp %232 : vector<1x128xf32>
    %cst_51 = arith.constant 1.000000e+00 : f32
    %234 = vector.broadcast %cst_51 : f32 to vector<1x128xf32>
    %235 = arith.addf %234, %233 : vector<1x128xf32>
    %236 = arith.divf %234, %235 : vector<1x128xf32>
    %237 = arith.mulf %228, %183 : vector<1x128xf32>
    %238 = arith.mulf %222, %230 : vector<1x128xf32>
    %239 = arith.addf %237, %238 : vector<1x128xf32>
    %240 = math.tanh %239 : vector<1x128xf32>
    %241 = arith.mulf %236, %240 : vector<1x128xf32>
    %242 = vector.extract_strided_slice %10 {offsets = [4, 0], sizes = [1, 512], strides = [1, 1]} : vector<8x512xf32> to vector<1x512xf32>
    %cst_52 = arith.constant dense<0.000000e+00> : vector<1x512xf32>
    %243 = tpu.matmul %213, %3, %cst_52 {dimension_numbers = #tpu.dot_dimension_numbers<[1], [0], [0], [1], [0, 0, 1, 1], [], []>} : vector<1x128xf32>, vector<128x512xf32>, vector<1x512xf32> -> vector<1x512xf32>
    %244 = arith.addf %243, %242 : vector<1x512xf32>
    %245 = vector.extract_strided_slice %244 {offsets = [0, 0], sizes = [1, 128], strides = [1, 1]} : vector<1x512xf32> to vector<1x128xf32>
    %246 = arith.negf %245 : vector<1x128xf32>
    %247 = math.exp %246 : vector<1x128xf32>
    %cst_53 = arith.constant 1.000000e+00 : f32
    %248 = vector.broadcast %cst_53 : f32 to vector<1x128xf32>
    %249 = arith.addf %248, %247 : vector<1x128xf32>
    %250 = arith.divf %248, %249 : vector<1x128xf32>
    %251 = vector.extract_strided_slice %244 {offsets = [0, 128], sizes = [1, 128], strides = [1, 1]} : vector<1x512xf32> to vector<1x128xf32>
    %252 = arith.negf %251 : vector<1x128xf32>
    %253 = math.exp %252 : vector<1x128xf32>
    %cst_54 = arith.constant 1.000000e+00 : f32
    %254 = vector.broadcast %cst_54 : f32 to vector<1x128xf32>
    %255 = arith.addf %254, %253 : vector<1x128xf32>
    %256 = arith.divf %254, %255 : vector<1x128xf32>
    %257 = vector.extract_strided_slice %244 {offsets = [0, 256], sizes = [1, 128], strides = [1, 1]} : vector<1x512xf32> to vector<1x128xf32>
    %258 = math.tanh %257 : vector<1x128xf32>
    %259 = vector.extract_strided_slice %244 {offsets = [0, 384], sizes = [1, 128], strides = [1, 1]} : vector<1x512xf32> to vector<1x128xf32>
    %260 = arith.negf %259 : vector<1x128xf32>
    %261 = math.exp %260 : vector<1x128xf32>
    %cst_55 = arith.constant 1.000000e+00 : f32
    %262 = vector.broadcast %cst_55 : f32 to vector<1x128xf32>
    %263 = arith.addf %262, %261 : vector<1x128xf32>
    %264 = arith.divf %262, %263 : vector<1x128xf32>
    %265 = arith.mulf %256, %211 : vector<1x128xf32>
    %266 = arith.mulf %250, %258 : vector<1x128xf32>
    %267 = arith.addf %265, %266 : vector<1x128xf32>
    %268 = math.tanh %267 : vector<1x128xf32>
    %269 = arith.mulf %264, %268 : vector<1x128xf32>
    %270 = vector.extract_strided_slice %13 {offsets = [4, 0], sizes = [1, 512], strides = [1, 1]} : vector<8x512xf32> to vector<1x512xf32>
    %cst_56 = arith.constant dense<0.000000e+00> : vector<1x512xf32>
    %271 = tpu.matmul %241, %6, %cst_56 {dimension_numbers = #tpu.dot_dimension_numbers<[1], [0], [0], [1], [0, 0, 1, 1], [], []>} : vector<1x128xf32>, vector<128x512xf32>, vector<1x512xf32> -> vector<1x512xf32>
    %272 = arith.addf %271, %270 : vector<1x512xf32>
    %273 = vector.extract_strided_slice %272 {offsets = [0, 0], sizes = [1, 128], strides = [1, 1]} : vector<1x512xf32> to vector<1x128xf32>
    %274 = arith.negf %273 : vector<1x128xf32>
    %275 = math.exp %274 : vector<1x128xf32>
    %cst_57 = arith.constant 1.000000e+00 : f32
    %276 = vector.broadcast %cst_57 : f32 to vector<1x128xf32>
    %277 = arith.addf %276, %275 : vector<1x128xf32>
    %278 = arith.divf %276, %277 : vector<1x128xf32>
    %279 = vector.extract_strided_slice %272 {offsets = [0, 128], sizes = [1, 128], strides = [1, 1]} : vector<1x512xf32> to vector<1x128xf32>
    %280 = arith.negf %279 : vector<1x128xf32>
    %281 = math.exp %280 : vector<1x128xf32>
    %cst_58 = arith.constant 1.000000e+00 : f32
    %282 = vector.broadcast %cst_58 : f32 to vector<1x128xf32>
    %283 = arith.addf %282, %281 : vector<1x128xf32>
    %284 = arith.divf %282, %283 : vector<1x128xf32>
    %285 = vector.extract_strided_slice %272 {offsets = [0, 256], sizes = [1, 128], strides = [1, 1]} : vector<1x512xf32> to vector<1x128xf32>
    %286 = math.tanh %285 : vector<1x128xf32>
    %287 = vector.extract_strided_slice %272 {offsets = [0, 384], sizes = [1, 128], strides = [1, 1]} : vector<1x512xf32> to vector<1x128xf32>
    %288 = arith.negf %287 : vector<1x128xf32>
    %289 = math.exp %288 : vector<1x128xf32>
    %cst_59 = arith.constant 1.000000e+00 : f32
    %290 = vector.broadcast %cst_59 : f32 to vector<1x128xf32>
    %291 = arith.addf %290, %289 : vector<1x128xf32>
    %292 = arith.divf %290, %291 : vector<1x128xf32>
    %293 = arith.mulf %284, %239 : vector<1x128xf32>
    %294 = arith.mulf %278, %286 : vector<1x128xf32>
    %295 = arith.addf %293, %294 : vector<1x128xf32>
    %296 = math.tanh %295 : vector<1x128xf32>
    %297 = arith.mulf %292, %296 : vector<1x128xf32>
    %298 = vector.extract_strided_slice %10 {offsets = [5, 0], sizes = [1, 512], strides = [1, 1]} : vector<8x512xf32> to vector<1x512xf32>
    %cst_60 = arith.constant dense<0.000000e+00> : vector<1x512xf32>
    %299 = tpu.matmul %269, %3, %cst_60 {dimension_numbers = #tpu.dot_dimension_numbers<[1], [0], [0], [1], [0, 0, 1, 1], [], []>} : vector<1x128xf32>, vector<128x512xf32>, vector<1x512xf32> -> vector<1x512xf32>
    %300 = arith.addf %299, %298 : vector<1x512xf32>
    %301 = vector.extract_strided_slice %300 {offsets = [0, 0], sizes = [1, 128], strides = [1, 1]} : vector<1x512xf32> to vector<1x128xf32>
    %302 = arith.negf %301 : vector<1x128xf32>
    %303 = math.exp %302 : vector<1x128xf32>
    %cst_61 = arith.constant 1.000000e+00 : f32
    %304 = vector.broadcast %cst_61 : f32 to vector<1x128xf32>
    %305 = arith.addf %304, %303 : vector<1x128xf32>
    %306 = arith.divf %304, %305 : vector<1x128xf32>
    %307 = vector.extract_strided_slice %300 {offsets = [0, 128], sizes = [1, 128], strides = [1, 1]} : vector<1x512xf32> to vector<1x128xf32>
    %308 = arith.negf %307 : vector<1x128xf32>
    %309 = math.exp %308 : vector<1x128xf32>
    %cst_62 = arith.constant 1.000000e+00 : f32
    %310 = vector.broadcast %cst_62 : f32 to vector<1x128xf32>
    %311 = arith.addf %310, %309 : vector<1x128xf32>
    %312 = arith.divf %310, %311 : vector<1x128xf32>
    %313 = vector.extract_strided_slice %300 {offsets = [0, 256], sizes = [1, 128], strides = [1, 1]} : vector<1x512xf32> to vector<1x128xf32>
    %314 = math.tanh %313 : vector<1x128xf32>
    %315 = vector.extract_strided_slice %300 {offsets = [0, 384], sizes = [1, 128], strides = [1, 1]} : vector<1x512xf32> to vector<1x128xf32>
    %316 = arith.negf %315 : vector<1x128xf32>
    %317 = math.exp %316 : vector<1x128xf32>
    %cst_63 = arith.constant 1.000000e+00 : f32
    %318 = vector.broadcast %cst_63 : f32 to vector<1x128xf32>
    %319 = arith.addf %318, %317 : vector<1x128xf32>
    %320 = arith.divf %318, %319 : vector<1x128xf32>
    %321 = arith.mulf %312, %267 : vector<1x128xf32>
    %322 = arith.mulf %306, %314 : vector<1x128xf32>
    %323 = arith.addf %321, %322 : vector<1x128xf32>
    %324 = math.tanh %323 : vector<1x128xf32>
    %325 = arith.mulf %320, %324 : vector<1x128xf32>
    %326 = vector.extract_strided_slice %13 {offsets = [5, 0], sizes = [1, 512], strides = [1, 1]} : vector<8x512xf32> to vector<1x512xf32>
    %cst_64 = arith.constant dense<0.000000e+00> : vector<1x512xf32>
    %327 = tpu.matmul %297, %6, %cst_64 {dimension_numbers = #tpu.dot_dimension_numbers<[1], [0], [0], [1], [0, 0, 1, 1], [], []>} : vector<1x128xf32>, vector<128x512xf32>, vector<1x512xf32> -> vector<1x512xf32>
    %328 = arith.addf %327, %326 : vector<1x512xf32>
    %329 = vector.extract_strided_slice %328 {offsets = [0, 0], sizes = [1, 128], strides = [1, 1]} : vector<1x512xf32> to vector<1x128xf32>
    %330 = arith.negf %329 : vector<1x128xf32>
    %331 = math.exp %330 : vector<1x128xf32>
    %cst_65 = arith.constant 1.000000e+00 : f32
    %332 = vector.broadcast %cst_65 : f32 to vector<1x128xf32>
    %333 = arith.addf %332, %331 : vector<1x128xf32>
    %334 = arith.divf %332, %333 : vector<1x128xf32>
    %335 = vector.extract_strided_slice %328 {offsets = [0, 128], sizes = [1, 128], strides = [1, 1]} : vector<1x512xf32> to vector<1x128xf32>
    %336 = arith.negf %335 : vector<1x128xf32>
    %337 = math.exp %336 : vector<1x128xf32>
    %cst_66 = arith.constant 1.000000e+00 : f32
    %338 = vector.broadcast %cst_66 : f32 to vector<1x128xf32>
    %339 = arith.addf %338, %337 : vector<1x128xf32>
    %340 = arith.divf %338, %339 : vector<1x128xf32>
    %341 = vector.extract_strided_slice %328 {offsets = [0, 256], sizes = [1, 128], strides = [1, 1]} : vector<1x512xf32> to vector<1x128xf32>
    %342 = math.tanh %341 : vector<1x128xf32>
    %343 = vector.extract_strided_slice %328 {offsets = [0, 384], sizes = [1, 128], strides = [1, 1]} : vector<1x512xf32> to vector<1x128xf32>
    %344 = arith.negf %343 : vector<1x128xf32>
    %345 = math.exp %344 : vector<1x128xf32>
    %cst_67 = arith.constant 1.000000e+00 : f32
    %346 = vector.broadcast %cst_67 : f32 to vector<1x128xf32>
    %347 = arith.addf %346, %345 : vector<1x128xf32>
    %348 = arith.divf %346, %347 : vector<1x128xf32>
    %349 = arith.mulf %340, %295 : vector<1x128xf32>
    %350 = arith.mulf %334, %342 : vector<1x128xf32>
    %351 = arith.addf %349, %350 : vector<1x128xf32>
    %352 = math.tanh %351 : vector<1x128xf32>
    %353 = arith.mulf %348, %352 : vector<1x128xf32>
    %354 = vector.extract_strided_slice %10 {offsets = [6, 0], sizes = [1, 512], strides = [1, 1]} : vector<8x512xf32> to vector<1x512xf32>
    %cst_68 = arith.constant dense<0.000000e+00> : vector<1x512xf32>
    %355 = tpu.matmul %325, %3, %cst_68 {dimension_numbers = #tpu.dot_dimension_numbers<[1], [0], [0], [1], [0, 0, 1, 1], [], []>} : vector<1x128xf32>, vector<128x512xf32>, vector<1x512xf32> -> vector<1x512xf32>
    %356 = arith.addf %355, %354 : vector<1x512xf32>
    %357 = vector.extract_strided_slice %356 {offsets = [0, 0], sizes = [1, 128], strides = [1, 1]} : vector<1x512xf32> to vector<1x128xf32>
    %358 = arith.negf %357 : vector<1x128xf32>
    %359 = math.exp %358 : vector<1x128xf32>
    %cst_69 = arith.constant 1.000000e+00 : f32
    %360 = vector.broadcast %cst_69 : f32 to vector<1x128xf32>
    %361 = arith.addf %360, %359 : vector<1x128xf32>
    %362 = arith.divf %360, %361 : vector<1x128xf32>
    %363 = vector.extract_strided_slice %356 {offsets = [0, 128], sizes = [1, 128], strides = [1, 1]} : vector<1x512xf32> to vector<1x128xf32>
    %364 = arith.negf %363 : vector<1x128xf32>
    %365 = math.exp %364 : vector<1x128xf32>
    %cst_70 = arith.constant 1.000000e+00 : f32
    %366 = vector.broadcast %cst_70 : f32 to vector<1x128xf32>
    %367 = arith.addf %366, %365 : vector<1x128xf32>
    %368 = arith.divf %366, %367 : vector<1x128xf32>
    %369 = vector.extract_strided_slice %356 {offsets = [0, 256], sizes = [1, 128], strides = [1, 1]} : vector<1x512xf32> to vector<1x128xf32>
    %370 = math.tanh %369 : vector<1x128xf32>
    %371 = vector.extract_strided_slice %356 {offsets = [0, 384], sizes = [1, 128], strides = [1, 1]} : vector<1x512xf32> to vector<1x128xf32>
    %372 = arith.negf %371 : vector<1x128xf32>
    %373 = math.exp %372 : vector<1x128xf32>
    %cst_71 = arith.constant 1.000000e+00 : f32
    %374 = vector.broadcast %cst_71 : f32 to vector<1x128xf32>
    %375 = arith.addf %374, %373 : vector<1x128xf32>
    %376 = arith.divf %374, %375 : vector<1x128xf32>
    %377 = arith.mulf %368, %323 : vector<1x128xf32>
    %378 = arith.mulf %362, %370 : vector<1x128xf32>
    %379 = arith.addf %377, %378 : vector<1x128xf32>
    %380 = math.tanh %379 : vector<1x128xf32>
    %381 = arith.mulf %376, %380 : vector<1x128xf32>
    %382 = vector.extract_strided_slice %13 {offsets = [6, 0], sizes = [1, 512], strides = [1, 1]} : vector<8x512xf32> to vector<1x512xf32>
    %cst_72 = arith.constant dense<0.000000e+00> : vector<1x512xf32>
    %383 = tpu.matmul %353, %6, %cst_72 {dimension_numbers = #tpu.dot_dimension_numbers<[1], [0], [0], [1], [0, 0, 1, 1], [], []>} : vector<1x128xf32>, vector<128x512xf32>, vector<1x512xf32> -> vector<1x512xf32>
    %384 = arith.addf %383, %382 : vector<1x512xf32>
    %385 = vector.extract_strided_slice %384 {offsets = [0, 0], sizes = [1, 128], strides = [1, 1]} : vector<1x512xf32> to vector<1x128xf32>
    %386 = arith.negf %385 : vector<1x128xf32>
    %387 = math.exp %386 : vector<1x128xf32>
    %cst_73 = arith.constant 1.000000e+00 : f32
    %388 = vector.broadcast %cst_73 : f32 to vector<1x128xf32>
    %389 = arith.addf %388, %387 : vector<1x128xf32>
    %390 = arith.divf %388, %389 : vector<1x128xf32>
    %391 = vector.extract_strided_slice %384 {offsets = [0, 128], sizes = [1, 128], strides = [1, 1]} : vector<1x512xf32> to vector<1x128xf32>
    %392 = arith.negf %391 : vector<1x128xf32>
    %393 = math.exp %392 : vector<1x128xf32>
    %cst_74 = arith.constant 1.000000e+00 : f32
    %394 = vector.broadcast %cst_74 : f32 to vector<1x128xf32>
    %395 = arith.addf %394, %393 : vector<1x128xf32>
    %396 = arith.divf %394, %395 : vector<1x128xf32>
    %397 = vector.extract_strided_slice %384 {offsets = [0, 256], sizes = [1, 128], strides = [1, 1]} : vector<1x512xf32> to vector<1x128xf32>
    %398 = math.tanh %397 : vector<1x128xf32>
    %399 = vector.extract_strided_slice %384 {offsets = [0, 384], sizes = [1, 128], strides = [1, 1]} : vector<1x512xf32> to vector<1x128xf32>
    %400 = arith.negf %399 : vector<1x128xf32>
    %401 = math.exp %400 : vector<1x128xf32>
    %cst_75 = arith.constant 1.000000e+00 : f32
    %402 = vector.broadcast %cst_75 : f32 to vector<1x128xf32>
    %403 = arith.addf %402, %401 : vector<1x128xf32>
    %404 = arith.divf %402, %403 : vector<1x128xf32>
    %405 = arith.mulf %396, %351 : vector<1x128xf32>
    %406 = arith.mulf %390, %398 : vector<1x128xf32>
    %407 = arith.addf %405, %406 : vector<1x128xf32>
    %408 = math.tanh %407 : vector<1x128xf32>
    %409 = arith.mulf %404, %408 : vector<1x128xf32>
    %410 = vector.extract_strided_slice %10 {offsets = [7, 0], sizes = [1, 512], strides = [1, 1]} : vector<8x512xf32> to vector<1x512xf32>
    %cst_76 = arith.constant dense<0.000000e+00> : vector<1x512xf32>
    %411 = tpu.matmul %381, %3, %cst_76 {dimension_numbers = #tpu.dot_dimension_numbers<[1], [0], [0], [1], [0, 0, 1, 1], [], []>} : vector<1x128xf32>, vector<128x512xf32>, vector<1x512xf32> -> vector<1x512xf32>
    %412 = arith.addf %411, %410 : vector<1x512xf32>
    %413 = vector.extract_strided_slice %412 {offsets = [0, 0], sizes = [1, 128], strides = [1, 1]} : vector<1x512xf32> to vector<1x128xf32>
    %414 = arith.negf %413 : vector<1x128xf32>
    %415 = math.exp %414 : vector<1x128xf32>
    %cst_77 = arith.constant 1.000000e+00 : f32
    %416 = vector.broadcast %cst_77 : f32 to vector<1x128xf32>
    %417 = arith.addf %416, %415 : vector<1x128xf32>
    %418 = arith.divf %416, %417 : vector<1x128xf32>
    %419 = vector.extract_strided_slice %412 {offsets = [0, 128], sizes = [1, 128], strides = [1, 1]} : vector<1x512xf32> to vector<1x128xf32>
    %420 = arith.negf %419 : vector<1x128xf32>
    %421 = math.exp %420 : vector<1x128xf32>
    %cst_78 = arith.constant 1.000000e+00 : f32
    %422 = vector.broadcast %cst_78 : f32 to vector<1x128xf32>
    %423 = arith.addf %422, %421 : vector<1x128xf32>
    %424 = arith.divf %422, %423 : vector<1x128xf32>
    %425 = vector.extract_strided_slice %412 {offsets = [0, 256], sizes = [1, 128], strides = [1, 1]} : vector<1x512xf32> to vector<1x128xf32>
    %426 = math.tanh %425 : vector<1x128xf32>
    %427 = vector.extract_strided_slice %412 {offsets = [0, 384], sizes = [1, 128], strides = [1, 1]} : vector<1x512xf32> to vector<1x128xf32>
    %428 = arith.negf %427 : vector<1x128xf32>
    %429 = math.exp %428 : vector<1x128xf32>
    %cst_79 = arith.constant 1.000000e+00 : f32
    %430 = vector.broadcast %cst_79 : f32 to vector<1x128xf32>
    %431 = arith.addf %430, %429 : vector<1x128xf32>
    %432 = arith.divf %430, %431 : vector<1x128xf32>
    %433 = arith.mulf %424, %379 : vector<1x128xf32>
    %434 = arith.mulf %418, %426 : vector<1x128xf32>
    %435 = arith.addf %433, %434 : vector<1x128xf32>
    %436 = math.tanh %435 : vector<1x128xf32>
    %437 = arith.mulf %432, %436 : vector<1x128xf32>
    %438 = vector.extract_strided_slice %13 {offsets = [7, 0], sizes = [1, 512], strides = [1, 1]} : vector<8x512xf32> to vector<1x512xf32>
    %cst_80 = arith.constant dense<0.000000e+00> : vector<1x512xf32>
    %439 = tpu.matmul %409, %6, %cst_80 {dimension_numbers = #tpu.dot_dimension_numbers<[1], [0], [0], [1], [0, 0, 1, 1], [], []>} : vector<1x128xf32>, vector<128x512xf32>, vector<1x512xf32> -> vector<1x512xf32>
    %440 = arith.addf %439, %438 : vector<1x512xf32>
    %441 = vector.extract_strided_slice %440 {offsets = [0, 0], sizes = [1, 128], strides = [1, 1]} : vector<1x512xf32> to vector<1x128xf32>
    %442 = arith.negf %441 : vector<1x128xf32>
    %443 = math.exp %442 : vector<1x128xf32>
    %cst_81 = arith.constant 1.000000e+00 : f32
    %444 = vector.broadcast %cst_81 : f32 to vector<1x128xf32>
    %445 = arith.addf %444, %443 : vector<1x128xf32>
    %446 = arith.divf %444, %445 : vector<1x128xf32>
    %447 = vector.extract_strided_slice %440 {offsets = [0, 128], sizes = [1, 128], strides = [1, 1]} : vector<1x512xf32> to vector<1x128xf32>
    %448 = arith.negf %447 : vector<1x128xf32>
    %449 = math.exp %448 : vector<1x128xf32>
    %cst_82 = arith.constant 1.000000e+00 : f32
    %450 = vector.broadcast %cst_82 : f32 to vector<1x128xf32>
    %451 = arith.addf %450, %449 : vector<1x128xf32>
    %452 = arith.divf %450, %451 : vector<1x128xf32>
    %453 = vector.extract_strided_slice %440 {offsets = [0, 256], sizes = [1, 128], strides = [1, 1]} : vector<1x512xf32> to vector<1x128xf32>
    %454 = math.tanh %453 : vector<1x128xf32>
    %455 = vector.extract_strided_slice %440 {offsets = [0, 384], sizes = [1, 128], strides = [1, 1]} : vector<1x512xf32> to vector<1x128xf32>
    %456 = arith.negf %455 : vector<1x128xf32>
    %457 = math.exp %456 : vector<1x128xf32>
    %cst_83 = arith.constant 1.000000e+00 : f32
    %458 = vector.broadcast %cst_83 : f32 to vector<1x128xf32>
    %459 = arith.addf %458, %457 : vector<1x128xf32>
    %460 = arith.divf %458, %459 : vector<1x128xf32>
    %461 = arith.mulf %452, %407 : vector<1x128xf32>
    %462 = arith.mulf %446, %454 : vector<1x128xf32>
    %463 = arith.addf %461, %462 : vector<1x128xf32>
    %464 = math.tanh %463 : vector<1x128xf32>
    %465 = arith.mulf %460, %464 : vector<1x128xf32>
    %466 = tpu.concatenate %45, %101, %157, %213, %269, %325, %381, %437 in 0 : vector<1x128xf32>, vector<1x128xf32>, vector<1x128xf32>, vector<1x128xf32>, vector<1x128xf32>, vector<1x128xf32>, vector<1x128xf32>, vector<1x128xf32> -> vector<8x128xf32>
    %467 = tpu.concatenate %465, %409, %353, %297, %241, %185, %129, %73 in 0 : vector<1x128xf32>, vector<1x128xf32>, vector<1x128xf32>, vector<1x128xf32>, vector<1x128xf32>, vector<1x128xf32>, vector<1x128xf32>, vector<1x128xf32> -> vector<8x128xf32>
    %c0_84 = arith.constant 0 : index
    %c0_85 = arith.constant 0 : index
    %468 = vector.load %arg9[%c0_84, %c0_85] : memref<128x512xf32, #tpu.memory_space<vmem>>, vector<128x512xf32>
    %c0_86 = arith.constant 0 : index
    %c0_87 = arith.constant 0 : index
    %469 = vector.load %arg10[%c0_86, %c0_87] : memref<128x512xf32, #tpu.memory_space<vmem>>, vector<128x512xf32>
    %c0_88 = arith.constant 0 : index
    %c0_89 = arith.constant 0 : index
    %470 = vector.load %arg11[%c0_88, %c0_89] : memref<1x512xf32, #tpu.memory_space<vmem>>, vector<1x512xf32>
    %c0_90 = arith.constant 0 : index
    %c0_91 = arith.constant 0 : index
    %471 = vector.load %arg12[%c0_90, %c0_91] : memref<128x512xf32, #tpu.memory_space<vmem>>, vector<128x512xf32>
    %c0_92 = arith.constant 0 : index
    %c0_93 = arith.constant 0 : index
    %472 = vector.load %arg13[%c0_92, %c0_93] : memref<128x512xf32, #tpu.memory_space<vmem>>, vector<128x512xf32>
    %c0_94 = arith.constant 0 : index
    %c0_95 = arith.constant 0 : index
    %473 = vector.load %arg14[%c0_94, %c0_95] : memref<1x512xf32, #tpu.memory_space<vmem>>, vector<1x512xf32>
    %cst_96 = arith.constant dense<0.000000e+00> : vector<8x512xf32>
    %474 = tpu.matmul %466, %468, %cst_96 {dimension_numbers = #tpu.dot_dimension_numbers<[1], [0], [0], [1], [0, 0, 1, 1], [], []>} : vector<8x128xf32>, vector<128x512xf32>, vector<8x512xf32> -> vector<8x512xf32>
    %475 = vector.broadcast %470 : vector<1x512xf32> to vector<8x512xf32>
    %476 = arith.addf %474, %475 : vector<8x512xf32>
    %cst_97 = arith.constant dense<0.000000e+00> : vector<8x512xf32>
    %477 = tpu.matmul %467, %471, %cst_97 {dimension_numbers = #tpu.dot_dimension_numbers<[1], [0], [0], [1], [0, 0, 1, 1], [], []>} : vector<8x128xf32>, vector<128x512xf32>, vector<8x512xf32> -> vector<8x512xf32>
    %478 = vector.broadcast %473 : vector<1x512xf32> to vector<8x512xf32>
    %479 = arith.addf %477, %478 : vector<8x512xf32>
    %cst_98 = arith.constant 0.000000e+00 : f32
    %480 = vector.broadcast %cst_98 : f32 to vector<1x128xf32>
    %cst_99 = arith.constant 0.000000e+00 : f32
    %481 = vector.broadcast %cst_99 : f32 to vector<1x128xf32>
    %cst_100 = arith.constant 0.000000e+00 : f32
    %482 = vector.broadcast %cst_100 : f32 to vector<1x128xf32>
    %cst_101 = arith.constant 0.000000e+00 : f32
    %483 = vector.broadcast %cst_101 : f32 to vector<1x128xf32>
    %484 = vector.extract_strided_slice %476 {offsets = [0, 0], sizes = [1, 512], strides = [1, 1]} : vector<8x512xf32> to vector<1x512xf32>
    %cst_102 = arith.constant dense<0.000000e+00> : vector<1x512xf32>
    %485 = tpu.matmul %480, %469, %cst_102 {dimension_numbers = #tpu.dot_dimension_numbers<[1], [0], [0], [1], [0, 0, 1, 1], [], []>} : vector<1x128xf32>, vector<128x512xf32>, vector<1x512xf32> -> vector<1x512xf32>
    %486 = arith.addf %485, %484 : vector<1x512xf32>
    %487 = vector.extract_strided_slice %486 {offsets = [0, 0], sizes = [1, 128], strides = [1, 1]} : vector<1x512xf32> to vector<1x128xf32>
    %488 = arith.negf %487 : vector<1x128xf32>
    %489 = math.exp %488 : vector<1x128xf32>
    %cst_103 = arith.constant 1.000000e+00 : f32
    %490 = vector.broadcast %cst_103 : f32 to vector<1x128xf32>
    %491 = arith.addf %490, %489 : vector<1x128xf32>
    %492 = arith.divf %490, %491 : vector<1x128xf32>
    %493 = vector.extract_strided_slice %486 {offsets = [0, 128], sizes = [1, 128], strides = [1, 1]} : vector<1x512xf32> to vector<1x128xf32>
    %494 = arith.negf %493 : vector<1x128xf32>
    %495 = math.exp %494 : vector<1x128xf32>
    %cst_104 = arith.constant 1.000000e+00 : f32
    %496 = vector.broadcast %cst_104 : f32 to vector<1x128xf32>
    %497 = arith.addf %496, %495 : vector<1x128xf32>
    %498 = arith.divf %496, %497 : vector<1x128xf32>
    %499 = vector.extract_strided_slice %486 {offsets = [0, 256], sizes = [1, 128], strides = [1, 1]} : vector<1x512xf32> to vector<1x128xf32>
    %500 = math.tanh %499 : vector<1x128xf32>
    %501 = vector.extract_strided_slice %486 {offsets = [0, 384], sizes = [1, 128], strides = [1, 1]} : vector<1x512xf32> to vector<1x128xf32>
    %502 = arith.negf %501 : vector<1x128xf32>
    %503 = math.exp %502 : vector<1x128xf32>
    %cst_105 = arith.constant 1.000000e+00 : f32
    %504 = vector.broadcast %cst_105 : f32 to vector<1x128xf32>
    %505 = arith.addf %504, %503 : vector<1x128xf32>
    %506 = arith.divf %504, %505 : vector<1x128xf32>
    %507 = arith.mulf %498, %481 : vector<1x128xf32>
    %508 = arith.mulf %492, %500 : vector<1x128xf32>
    %509 = arith.addf %507, %508 : vector<1x128xf32>
    %510 = math.tanh %509 : vector<1x128xf32>
    %511 = arith.mulf %506, %510 : vector<1x128xf32>
    %512 = vector.extract_strided_slice %479 {offsets = [0, 0], sizes = [1, 512], strides = [1, 1]} : vector<8x512xf32> to vector<1x512xf32>
    %cst_106 = arith.constant dense<0.000000e+00> : vector<1x512xf32>
    %513 = tpu.matmul %482, %472, %cst_106 {dimension_numbers = #tpu.dot_dimension_numbers<[1], [0], [0], [1], [0, 0, 1, 1], [], []>} : vector<1x128xf32>, vector<128x512xf32>, vector<1x512xf32> -> vector<1x512xf32>
    %514 = arith.addf %513, %512 : vector<1x512xf32>
    %515 = vector.extract_strided_slice %514 {offsets = [0, 0], sizes = [1, 128], strides = [1, 1]} : vector<1x512xf32> to vector<1x128xf32>
    %516 = arith.negf %515 : vector<1x128xf32>
    %517 = math.exp %516 : vector<1x128xf32>
    %cst_107 = arith.constant 1.000000e+00 : f32
    %518 = vector.broadcast %cst_107 : f32 to vector<1x128xf32>
    %519 = arith.addf %518, %517 : vector<1x128xf32>
    %520 = arith.divf %518, %519 : vector<1x128xf32>
    %521 = vector.extract_strided_slice %514 {offsets = [0, 128], sizes = [1, 128], strides = [1, 1]} : vector<1x512xf32> to vector<1x128xf32>
    %522 = arith.negf %521 : vector<1x128xf32>
    %523 = math.exp %522 : vector<1x128xf32>
    %cst_108 = arith.constant 1.000000e+00 : f32
    %524 = vector.broadcast %cst_108 : f32 to vector<1x128xf32>
    %525 = arith.addf %524, %523 : vector<1x128xf32>
    %526 = arith.divf %524, %525 : vector<1x128xf32>
    %527 = vector.extract_strided_slice %514 {offsets = [0, 256], sizes = [1, 128], strides = [1, 1]} : vector<1x512xf32> to vector<1x128xf32>
    %528 = math.tanh %527 : vector<1x128xf32>
    %529 = vector.extract_strided_slice %514 {offsets = [0, 384], sizes = [1, 128], strides = [1, 1]} : vector<1x512xf32> to vector<1x128xf32>
    %530 = arith.negf %529 : vector<1x128xf32>
    %531 = math.exp %530 : vector<1x128xf32>
    %cst_109 = arith.constant 1.000000e+00 : f32
    %532 = vector.broadcast %cst_109 : f32 to vector<1x128xf32>
    %533 = arith.addf %532, %531 : vector<1x128xf32>
    %534 = arith.divf %532, %533 : vector<1x128xf32>
    %535 = arith.mulf %526, %483 : vector<1x128xf32>
    %536 = arith.mulf %520, %528 : vector<1x128xf32>
    %537 = arith.addf %535, %536 : vector<1x128xf32>
    %538 = math.tanh %537 : vector<1x128xf32>
    %539 = arith.mulf %534, %538 : vector<1x128xf32>
    %540 = vector.extract_strided_slice %476 {offsets = [1, 0], sizes = [1, 512], strides = [1, 1]} : vector<8x512xf32> to vector<1x512xf32>
    %cst_110 = arith.constant dense<0.000000e+00> : vector<1x512xf32>
    %541 = tpu.matmul %511, %469, %cst_110 {dimension_numbers = #tpu.dot_dimension_numbers<[1], [0], [0], [1], [0, 0, 1, 1], [], []>} : vector<1x128xf32>, vector<128x512xf32>, vector<1x512xf32> -> vector<1x512xf32>
    %542 = arith.addf %541, %540 : vector<1x512xf32>
    %543 = vector.extract_strided_slice %542 {offsets = [0, 0], sizes = [1, 128], strides = [1, 1]} : vector<1x512xf32> to vector<1x128xf32>
    %544 = arith.negf %543 : vector<1x128xf32>
    %545 = math.exp %544 : vector<1x128xf32>
    %cst_111 = arith.constant 1.000000e+00 : f32
    %546 = vector.broadcast %cst_111 : f32 to vector<1x128xf32>
    %547 = arith.addf %546, %545 : vector<1x128xf32>
    %548 = arith.divf %546, %547 : vector<1x128xf32>
    %549 = vector.extract_strided_slice %542 {offsets = [0, 128], sizes = [1, 128], strides = [1, 1]} : vector<1x512xf32> to vector<1x128xf32>
    %550 = arith.negf %549 : vector<1x128xf32>
    %551 = math.exp %550 : vector<1x128xf32>
    %cst_112 = arith.constant 1.000000e+00 : f32
    %552 = vector.broadcast %cst_112 : f32 to vector<1x128xf32>
    %553 = arith.addf %552, %551 : vector<1x128xf32>
    %554 = arith.divf %552, %553 : vector<1x128xf32>
    %555 = vector.extract_strided_slice %542 {offsets = [0, 256], sizes = [1, 128], strides = [1, 1]} : vector<1x512xf32> to vector<1x128xf32>
    %556 = math.tanh %555 : vector<1x128xf32>
    %557 = vector.extract_strided_slice %542 {offsets = [0, 384], sizes = [1, 128], strides = [1, 1]} : vector<1x512xf32> to vector<1x128xf32>
    %558 = arith.negf %557 : vector<1x128xf32>
    %559 = math.exp %558 : vector<1x128xf32>
    %cst_113 = arith.constant 1.000000e+00 : f32
    %560 = vector.broadcast %cst_113 : f32 to vector<1x128xf32>
    %561 = arith.addf %560, %559 : vector<1x128xf32>
    %562 = arith.divf %560, %561 : vector<1x128xf32>
    %563 = arith.mulf %554, %509 : vector<1x128xf32>
    %564 = arith.mulf %548, %556 : vector<1x128xf32>
    %565 = arith.addf %563, %564 : vector<1x128xf32>
    %566 = math.tanh %565 : vector<1x128xf32>
    %567 = arith.mulf %562, %566 : vector<1x128xf32>
    %568 = vector.extract_strided_slice %479 {offsets = [1, 0], sizes = [1, 512], strides = [1, 1]} : vector<8x512xf32> to vector<1x512xf32>
    %cst_114 = arith.constant dense<0.000000e+00> : vector<1x512xf32>
    %569 = tpu.matmul %539, %472, %cst_114 {dimension_numbers = #tpu.dot_dimension_numbers<[1], [0], [0], [1], [0, 0, 1, 1], [], []>} : vector<1x128xf32>, vector<128x512xf32>, vector<1x512xf32> -> vector<1x512xf32>
    %570 = arith.addf %569, %568 : vector<1x512xf32>
    %571 = vector.extract_strided_slice %570 {offsets = [0, 0], sizes = [1, 128], strides = [1, 1]} : vector<1x512xf32> to vector<1x128xf32>
    %572 = arith.negf %571 : vector<1x128xf32>
    %573 = math.exp %572 : vector<1x128xf32>
    %cst_115 = arith.constant 1.000000e+00 : f32
    %574 = vector.broadcast %cst_115 : f32 to vector<1x128xf32>
    %575 = arith.addf %574, %573 : vector<1x128xf32>
    %576 = arith.divf %574, %575 : vector<1x128xf32>
    %577 = vector.extract_strided_slice %570 {offsets = [0, 128], sizes = [1, 128], strides = [1, 1]} : vector<1x512xf32> to vector<1x128xf32>
    %578 = arith.negf %577 : vector<1x128xf32>
    %579 = math.exp %578 : vector<1x128xf32>
    %cst_116 = arith.constant 1.000000e+00 : f32
    %580 = vector.broadcast %cst_116 : f32 to vector<1x128xf32>
    %581 = arith.addf %580, %579 : vector<1x128xf32>
    %582 = arith.divf %580, %581 : vector<1x128xf32>
    %583 = vector.extract_strided_slice %570 {offsets = [0, 256], sizes = [1, 128], strides = [1, 1]} : vector<1x512xf32> to vector<1x128xf32>
    %584 = math.tanh %583 : vector<1x128xf32>
    %585 = vector.extract_strided_slice %570 {offsets = [0, 384], sizes = [1, 128], strides = [1, 1]} : vector<1x512xf32> to vector<1x128xf32>
    %586 = arith.negf %585 : vector<1x128xf32>
    %587 = math.exp %586 : vector<1x128xf32>
    %cst_117 = arith.constant 1.000000e+00 : f32
    %588 = vector.broadcast %cst_117 : f32 to vector<1x128xf32>
    %589 = arith.addf %588, %587 : vector<1x128xf32>
    %590 = arith.divf %588, %589 : vector<1x128xf32>
    %591 = arith.mulf %582, %537 : vector<1x128xf32>
    %592 = arith.mulf %576, %584 : vector<1x128xf32>
    %593 = arith.addf %591, %592 : vector<1x128xf32>
    %594 = math.tanh %593 : vector<1x128xf32>
    %595 = arith.mulf %590, %594 : vector<1x128xf32>
    %596 = vector.extract_strided_slice %476 {offsets = [2, 0], sizes = [1, 512], strides = [1, 1]} : vector<8x512xf32> to vector<1x512xf32>
    %cst_118 = arith.constant dense<0.000000e+00> : vector<1x512xf32>
    %597 = tpu.matmul %567, %469, %cst_118 {dimension_numbers = #tpu.dot_dimension_numbers<[1], [0], [0], [1], [0, 0, 1, 1], [], []>} : vector<1x128xf32>, vector<128x512xf32>, vector<1x512xf32> -> vector<1x512xf32>
    %598 = arith.addf %597, %596 : vector<1x512xf32>
    %599 = vector.extract_strided_slice %598 {offsets = [0, 0], sizes = [1, 128], strides = [1, 1]} : vector<1x512xf32> to vector<1x128xf32>
    %600 = arith.negf %599 : vector<1x128xf32>
    %601 = math.exp %600 : vector<1x128xf32>
    %cst_119 = arith.constant 1.000000e+00 : f32
    %602 = vector.broadcast %cst_119 : f32 to vector<1x128xf32>
    %603 = arith.addf %602, %601 : vector<1x128xf32>
    %604 = arith.divf %602, %603 : vector<1x128xf32>
    %605 = vector.extract_strided_slice %598 {offsets = [0, 128], sizes = [1, 128], strides = [1, 1]} : vector<1x512xf32> to vector<1x128xf32>
    %606 = arith.negf %605 : vector<1x128xf32>
    %607 = math.exp %606 : vector<1x128xf32>
    %cst_120 = arith.constant 1.000000e+00 : f32
    %608 = vector.broadcast %cst_120 : f32 to vector<1x128xf32>
    %609 = arith.addf %608, %607 : vector<1x128xf32>
    %610 = arith.divf %608, %609 : vector<1x128xf32>
    %611 = vector.extract_strided_slice %598 {offsets = [0, 256], sizes = [1, 128], strides = [1, 1]} : vector<1x512xf32> to vector<1x128xf32>
    %612 = math.tanh %611 : vector<1x128xf32>
    %613 = vector.extract_strided_slice %598 {offsets = [0, 384], sizes = [1, 128], strides = [1, 1]} : vector<1x512xf32> to vector<1x128xf32>
    %614 = arith.negf %613 : vector<1x128xf32>
    %615 = math.exp %614 : vector<1x128xf32>
    %cst_121 = arith.constant 1.000000e+00 : f32
    %616 = vector.broadcast %cst_121 : f32 to vector<1x128xf32>
    %617 = arith.addf %616, %615 : vector<1x128xf32>
    %618 = arith.divf %616, %617 : vector<1x128xf32>
    %619 = arith.mulf %610, %565 : vector<1x128xf32>
    %620 = arith.mulf %604, %612 : vector<1x128xf32>
    %621 = arith.addf %619, %620 : vector<1x128xf32>
    %622 = math.tanh %621 : vector<1x128xf32>
    %623 = arith.mulf %618, %622 : vector<1x128xf32>
    %624 = vector.extract_strided_slice %479 {offsets = [2, 0], sizes = [1, 512], strides = [1, 1]} : vector<8x512xf32> to vector<1x512xf32>
    %cst_122 = arith.constant dense<0.000000e+00> : vector<1x512xf32>
    %625 = tpu.matmul %595, %472, %cst_122 {dimension_numbers = #tpu.dot_dimension_numbers<[1], [0], [0], [1], [0, 0, 1, 1], [], []>} : vector<1x128xf32>, vector<128x512xf32>, vector<1x512xf32> -> vector<1x512xf32>
    %626 = arith.addf %625, %624 : vector<1x512xf32>
    %627 = vector.extract_strided_slice %626 {offsets = [0, 0], sizes = [1, 128], strides = [1, 1]} : vector<1x512xf32> to vector<1x128xf32>
    %628 = arith.negf %627 : vector<1x128xf32>
    %629 = math.exp %628 : vector<1x128xf32>
    %cst_123 = arith.constant 1.000000e+00 : f32
    %630 = vector.broadcast %cst_123 : f32 to vector<1x128xf32>
    %631 = arith.addf %630, %629 : vector<1x128xf32>
    %632 = arith.divf %630, %631 : vector<1x128xf32>
    %633 = vector.extract_strided_slice %626 {offsets = [0, 128], sizes = [1, 128], strides = [1, 1]} : vector<1x512xf32> to vector<1x128xf32>
    %634 = arith.negf %633 : vector<1x128xf32>
    %635 = math.exp %634 : vector<1x128xf32>
    %cst_124 = arith.constant 1.000000e+00 : f32
    %636 = vector.broadcast %cst_124 : f32 to vector<1x128xf32>
    %637 = arith.addf %636, %635 : vector<1x128xf32>
    %638 = arith.divf %636, %637 : vector<1x128xf32>
    %639 = vector.extract_strided_slice %626 {offsets = [0, 256], sizes = [1, 128], strides = [1, 1]} : vector<1x512xf32> to vector<1x128xf32>
    %640 = math.tanh %639 : vector<1x128xf32>
    %641 = vector.extract_strided_slice %626 {offsets = [0, 384], sizes = [1, 128], strides = [1, 1]} : vector<1x512xf32> to vector<1x128xf32>
    %642 = arith.negf %641 : vector<1x128xf32>
    %643 = math.exp %642 : vector<1x128xf32>
    %cst_125 = arith.constant 1.000000e+00 : f32
    %644 = vector.broadcast %cst_125 : f32 to vector<1x128xf32>
    %645 = arith.addf %644, %643 : vector<1x128xf32>
    %646 = arith.divf %644, %645 : vector<1x128xf32>
    %647 = arith.mulf %638, %593 : vector<1x128xf32>
    %648 = arith.mulf %632, %640 : vector<1x128xf32>
    %649 = arith.addf %647, %648 : vector<1x128xf32>
    %650 = math.tanh %649 : vector<1x128xf32>
    %651 = arith.mulf %646, %650 : vector<1x128xf32>
    %652 = vector.extract_strided_slice %476 {offsets = [3, 0], sizes = [1, 512], strides = [1, 1]} : vector<8x512xf32> to vector<1x512xf32>
    %cst_126 = arith.constant dense<0.000000e+00> : vector<1x512xf32>
    %653 = tpu.matmul %623, %469, %cst_126 {dimension_numbers = #tpu.dot_dimension_numbers<[1], [0], [0], [1], [0, 0, 1, 1], [], []>} : vector<1x128xf32>, vector<128x512xf32>, vector<1x512xf32> -> vector<1x512xf32>
    %654 = arith.addf %653, %652 : vector<1x512xf32>
    %655 = vector.extract_strided_slice %654 {offsets = [0, 0], sizes = [1, 128], strides = [1, 1]} : vector<1x512xf32> to vector<1x128xf32>
    %656 = arith.negf %655 : vector<1x128xf32>
    %657 = math.exp %656 : vector<1x128xf32>
    %cst_127 = arith.constant 1.000000e+00 : f32
    %658 = vector.broadcast %cst_127 : f32 to vector<1x128xf32>
    %659 = arith.addf %658, %657 : vector<1x128xf32>
    %660 = arith.divf %658, %659 : vector<1x128xf32>
    %661 = vector.extract_strided_slice %654 {offsets = [0, 128], sizes = [1, 128], strides = [1, 1]} : vector<1x512xf32> to vector<1x128xf32>
    %662 = arith.negf %661 : vector<1x128xf32>
    %663 = math.exp %662 : vector<1x128xf32>
    %cst_128 = arith.constant 1.000000e+00 : f32
    %664 = vector.broadcast %cst_128 : f32 to vector<1x128xf32>
    %665 = arith.addf %664, %663 : vector<1x128xf32>
    %666 = arith.divf %664, %665 : vector<1x128xf32>
    %667 = vector.extract_strided_slice %654 {offsets = [0, 256], sizes = [1, 128], strides = [1, 1]} : vector<1x512xf32> to vector<1x128xf32>
    %668 = math.tanh %667 : vector<1x128xf32>
    %669 = vector.extract_strided_slice %654 {offsets = [0, 384], sizes = [1, 128], strides = [1, 1]} : vector<1x512xf32> to vector<1x128xf32>
    %670 = arith.negf %669 : vector<1x128xf32>
    %671 = math.exp %670 : vector<1x128xf32>
    %cst_129 = arith.constant 1.000000e+00 : f32
    %672 = vector.broadcast %cst_129 : f32 to vector<1x128xf32>
    %673 = arith.addf %672, %671 : vector<1x128xf32>
    %674 = arith.divf %672, %673 : vector<1x128xf32>
    %675 = arith.mulf %666, %621 : vector<1x128xf32>
    %676 = arith.mulf %660, %668 : vector<1x128xf32>
    %677 = arith.addf %675, %676 : vector<1x128xf32>
    %678 = math.tanh %677 : vector<1x128xf32>
    %679 = arith.mulf %674, %678 : vector<1x128xf32>
    %680 = vector.extract_strided_slice %479 {offsets = [3, 0], sizes = [1, 512], strides = [1, 1]} : vector<8x512xf32> to vector<1x512xf32>
    %cst_130 = arith.constant dense<0.000000e+00> : vector<1x512xf32>
    %681 = tpu.matmul %651, %472, %cst_130 {dimension_numbers = #tpu.dot_dimension_numbers<[1], [0], [0], [1], [0, 0, 1, 1], [], []>} : vector<1x128xf32>, vector<128x512xf32>, vector<1x512xf32> -> vector<1x512xf32>
    %682 = arith.addf %681, %680 : vector<1x512xf32>
    %683 = vector.extract_strided_slice %682 {offsets = [0, 0], sizes = [1, 128], strides = [1, 1]} : vector<1x512xf32> to vector<1x128xf32>
    %684 = arith.negf %683 : vector<1x128xf32>
    %685 = math.exp %684 : vector<1x128xf32>
    %cst_131 = arith.constant 1.000000e+00 : f32
    %686 = vector.broadcast %cst_131 : f32 to vector<1x128xf32>
    %687 = arith.addf %686, %685 : vector<1x128xf32>
    %688 = arith.divf %686, %687 : vector<1x128xf32>
    %689 = vector.extract_strided_slice %682 {offsets = [0, 128], sizes = [1, 128], strides = [1, 1]} : vector<1x512xf32> to vector<1x128xf32>
    %690 = arith.negf %689 : vector<1x128xf32>
    %691 = math.exp %690 : vector<1x128xf32>
    %cst_132 = arith.constant 1.000000e+00 : f32
    %692 = vector.broadcast %cst_132 : f32 to vector<1x128xf32>
    %693 = arith.addf %692, %691 : vector<1x128xf32>
    %694 = arith.divf %692, %693 : vector<1x128xf32>
    %695 = vector.extract_strided_slice %682 {offsets = [0, 256], sizes = [1, 128], strides = [1, 1]} : vector<1x512xf32> to vector<1x128xf32>
    %696 = math.tanh %695 : vector<1x128xf32>
    %697 = vector.extract_strided_slice %682 {offsets = [0, 384], sizes = [1, 128], strides = [1, 1]} : vector<1x512xf32> to vector<1x128xf32>
    %698 = arith.negf %697 : vector<1x128xf32>
    %699 = math.exp %698 : vector<1x128xf32>
    %cst_133 = arith.constant 1.000000e+00 : f32
    %700 = vector.broadcast %cst_133 : f32 to vector<1x128xf32>
    %701 = arith.addf %700, %699 : vector<1x128xf32>
    %702 = arith.divf %700, %701 : vector<1x128xf32>
    %703 = arith.mulf %694, %649 : vector<1x128xf32>
    %704 = arith.mulf %688, %696 : vector<1x128xf32>
    %705 = arith.addf %703, %704 : vector<1x128xf32>
    %706 = math.tanh %705 : vector<1x128xf32>
    %707 = arith.mulf %702, %706 : vector<1x128xf32>
    %708 = vector.extract_strided_slice %476 {offsets = [4, 0], sizes = [1, 512], strides = [1, 1]} : vector<8x512xf32> to vector<1x512xf32>
    %cst_134 = arith.constant dense<0.000000e+00> : vector<1x512xf32>
    %709 = tpu.matmul %679, %469, %cst_134 {dimension_numbers = #tpu.dot_dimension_numbers<[1], [0], [0], [1], [0, 0, 1, 1], [], []>} : vector<1x128xf32>, vector<128x512xf32>, vector<1x512xf32> -> vector<1x512xf32>
    %710 = arith.addf %709, %708 : vector<1x512xf32>
    %711 = vector.extract_strided_slice %710 {offsets = [0, 0], sizes = [1, 128], strides = [1, 1]} : vector<1x512xf32> to vector<1x128xf32>
    %712 = arith.negf %711 : vector<1x128xf32>
    %713 = math.exp %712 : vector<1x128xf32>
    %cst_135 = arith.constant 1.000000e+00 : f32
    %714 = vector.broadcast %cst_135 : f32 to vector<1x128xf32>
    %715 = arith.addf %714, %713 : vector<1x128xf32>
    %716 = arith.divf %714, %715 : vector<1x128xf32>
    %717 = vector.extract_strided_slice %710 {offsets = [0, 128], sizes = [1, 128], strides = [1, 1]} : vector<1x512xf32> to vector<1x128xf32>
    %718 = arith.negf %717 : vector<1x128xf32>
    %719 = math.exp %718 : vector<1x128xf32>
    %cst_136 = arith.constant 1.000000e+00 : f32
    %720 = vector.broadcast %cst_136 : f32 to vector<1x128xf32>
    %721 = arith.addf %720, %719 : vector<1x128xf32>
    %722 = arith.divf %720, %721 : vector<1x128xf32>
    %723 = vector.extract_strided_slice %710 {offsets = [0, 256], sizes = [1, 128], strides = [1, 1]} : vector<1x512xf32> to vector<1x128xf32>
    %724 = math.tanh %723 : vector<1x128xf32>
    %725 = vector.extract_strided_slice %710 {offsets = [0, 384], sizes = [1, 128], strides = [1, 1]} : vector<1x512xf32> to vector<1x128xf32>
    %726 = arith.negf %725 : vector<1x128xf32>
    %727 = math.exp %726 : vector<1x128xf32>
    %cst_137 = arith.constant 1.000000e+00 : f32
    %728 = vector.broadcast %cst_137 : f32 to vector<1x128xf32>
    %729 = arith.addf %728, %727 : vector<1x128xf32>
    %730 = arith.divf %728, %729 : vector<1x128xf32>
    %731 = arith.mulf %722, %677 : vector<1x128xf32>
    %732 = arith.mulf %716, %724 : vector<1x128xf32>
    %733 = arith.addf %731, %732 : vector<1x128xf32>
    %734 = math.tanh %733 : vector<1x128xf32>
    %735 = arith.mulf %730, %734 : vector<1x128xf32>
    %736 = vector.extract_strided_slice %479 {offsets = [4, 0], sizes = [1, 512], strides = [1, 1]} : vector<8x512xf32> to vector<1x512xf32>
    %cst_138 = arith.constant dense<0.000000e+00> : vector<1x512xf32>
    %737 = tpu.matmul %707, %472, %cst_138 {dimension_numbers = #tpu.dot_dimension_numbers<[1], [0], [0], [1], [0, 0, 1, 1], [], []>} : vector<1x128xf32>, vector<128x512xf32>, vector<1x512xf32> -> vector<1x512xf32>
    %738 = arith.addf %737, %736 : vector<1x512xf32>
    %739 = vector.extract_strided_slice %738 {offsets = [0, 0], sizes = [1, 128], strides = [1, 1]} : vector<1x512xf32> to vector<1x128xf32>
    %740 = arith.negf %739 : vector<1x128xf32>
    %741 = math.exp %740 : vector<1x128xf32>
    %cst_139 = arith.constant 1.000000e+00 : f32
    %742 = vector.broadcast %cst_139 : f32 to vector<1x128xf32>
    %743 = arith.addf %742, %741 : vector<1x128xf32>
    %744 = arith.divf %742, %743 : vector<1x128xf32>
    %745 = vector.extract_strided_slice %738 {offsets = [0, 128], sizes = [1, 128], strides = [1, 1]} : vector<1x512xf32> to vector<1x128xf32>
    %746 = arith.negf %745 : vector<1x128xf32>
    %747 = math.exp %746 : vector<1x128xf32>
    %cst_140 = arith.constant 1.000000e+00 : f32
    %748 = vector.broadcast %cst_140 : f32 to vector<1x128xf32>
    %749 = arith.addf %748, %747 : vector<1x128xf32>
    %750 = arith.divf %748, %749 : vector<1x128xf32>
    %751 = vector.extract_strided_slice %738 {offsets = [0, 256], sizes = [1, 128], strides = [1, 1]} : vector<1x512xf32> to vector<1x128xf32>
    %752 = math.tanh %751 : vector<1x128xf32>
    %753 = vector.extract_strided_slice %738 {offsets = [0, 384], sizes = [1, 128], strides = [1, 1]} : vector<1x512xf32> to vector<1x128xf32>
    %754 = arith.negf %753 : vector<1x128xf32>
    %755 = math.exp %754 : vector<1x128xf32>
    %cst_141 = arith.constant 1.000000e+00 : f32
    %756 = vector.broadcast %cst_141 : f32 to vector<1x128xf32>
    %757 = arith.addf %756, %755 : vector<1x128xf32>
    %758 = arith.divf %756, %757 : vector<1x128xf32>
    %759 = arith.mulf %750, %705 : vector<1x128xf32>
    %760 = arith.mulf %744, %752 : vector<1x128xf32>
    %761 = arith.addf %759, %760 : vector<1x128xf32>
    %762 = math.tanh %761 : vector<1x128xf32>
    %763 = arith.mulf %758, %762 : vector<1x128xf32>
    %764 = vector.extract_strided_slice %476 {offsets = [5, 0], sizes = [1, 512], strides = [1, 1]} : vector<8x512xf32> to vector<1x512xf32>
    %cst_142 = arith.constant dense<0.000000e+00> : vector<1x512xf32>
    %765 = tpu.matmul %735, %469, %cst_142 {dimension_numbers = #tpu.dot_dimension_numbers<[1], [0], [0], [1], [0, 0, 1, 1], [], []>} : vector<1x128xf32>, vector<128x512xf32>, vector<1x512xf32> -> vector<1x512xf32>
    %766 = arith.addf %765, %764 : vector<1x512xf32>
    %767 = vector.extract_strided_slice %766 {offsets = [0, 0], sizes = [1, 128], strides = [1, 1]} : vector<1x512xf32> to vector<1x128xf32>
    %768 = arith.negf %767 : vector<1x128xf32>
    %769 = math.exp %768 : vector<1x128xf32>
    %cst_143 = arith.constant 1.000000e+00 : f32
    %770 = vector.broadcast %cst_143 : f32 to vector<1x128xf32>
    %771 = arith.addf %770, %769 : vector<1x128xf32>
    %772 = arith.divf %770, %771 : vector<1x128xf32>
    %773 = vector.extract_strided_slice %766 {offsets = [0, 128], sizes = [1, 128], strides = [1, 1]} : vector<1x512xf32> to vector<1x128xf32>
    %774 = arith.negf %773 : vector<1x128xf32>
    %775 = math.exp %774 : vector<1x128xf32>
    %cst_144 = arith.constant 1.000000e+00 : f32
    %776 = vector.broadcast %cst_144 : f32 to vector<1x128xf32>
    %777 = arith.addf %776, %775 : vector<1x128xf32>
    %778 = arith.divf %776, %777 : vector<1x128xf32>
    %779 = vector.extract_strided_slice %766 {offsets = [0, 256], sizes = [1, 128], strides = [1, 1]} : vector<1x512xf32> to vector<1x128xf32>
    %780 = math.tanh %779 : vector<1x128xf32>
    %781 = vector.extract_strided_slice %766 {offsets = [0, 384], sizes = [1, 128], strides = [1, 1]} : vector<1x512xf32> to vector<1x128xf32>
    %782 = arith.negf %781 : vector<1x128xf32>
    %783 = math.exp %782 : vector<1x128xf32>
    %cst_145 = arith.constant 1.000000e+00 : f32
    %784 = vector.broadcast %cst_145 : f32 to vector<1x128xf32>
    %785 = arith.addf %784, %783 : vector<1x128xf32>
    %786 = arith.divf %784, %785 : vector<1x128xf32>
    %787 = arith.mulf %778, %733 : vector<1x128xf32>
    %788 = arith.mulf %772, %780 : vector<1x128xf32>
    %789 = arith.addf %787, %788 : vector<1x128xf32>
    %790 = math.tanh %789 : vector<1x128xf32>
    %791 = arith.mulf %786, %790 : vector<1x128xf32>
    %792 = vector.extract_strided_slice %479 {offsets = [5, 0], sizes = [1, 512], strides = [1, 1]} : vector<8x512xf32> to vector<1x512xf32>
    %cst_146 = arith.constant dense<0.000000e+00> : vector<1x512xf32>
    %793 = tpu.matmul %763, %472, %cst_146 {dimension_numbers = #tpu.dot_dimension_numbers<[1], [0], [0], [1], [0, 0, 1, 1], [], []>} : vector<1x128xf32>, vector<128x512xf32>, vector<1x512xf32> -> vector<1x512xf32>
    %794 = arith.addf %793, %792 : vector<1x512xf32>
    %795 = vector.extract_strided_slice %794 {offsets = [0, 0], sizes = [1, 128], strides = [1, 1]} : vector<1x512xf32> to vector<1x128xf32>
    %796 = arith.negf %795 : vector<1x128xf32>
    %797 = math.exp %796 : vector<1x128xf32>
    %cst_147 = arith.constant 1.000000e+00 : f32
    %798 = vector.broadcast %cst_147 : f32 to vector<1x128xf32>
    %799 = arith.addf %798, %797 : vector<1x128xf32>
    %800 = arith.divf %798, %799 : vector<1x128xf32>
    %801 = vector.extract_strided_slice %794 {offsets = [0, 128], sizes = [1, 128], strides = [1, 1]} : vector<1x512xf32> to vector<1x128xf32>
    %802 = arith.negf %801 : vector<1x128xf32>
    %803 = math.exp %802 : vector<1x128xf32>
    %cst_148 = arith.constant 1.000000e+00 : f32
    %804 = vector.broadcast %cst_148 : f32 to vector<1x128xf32>
    %805 = arith.addf %804, %803 : vector<1x128xf32>
    %806 = arith.divf %804, %805 : vector<1x128xf32>
    %807 = vector.extract_strided_slice %794 {offsets = [0, 256], sizes = [1, 128], strides = [1, 1]} : vector<1x512xf32> to vector<1x128xf32>
    %808 = math.tanh %807 : vector<1x128xf32>
    %809 = vector.extract_strided_slice %794 {offsets = [0, 384], sizes = [1, 128], strides = [1, 1]} : vector<1x512xf32> to vector<1x128xf32>
    %810 = arith.negf %809 : vector<1x128xf32>
    %811 = math.exp %810 : vector<1x128xf32>
    %cst_149 = arith.constant 1.000000e+00 : f32
    %812 = vector.broadcast %cst_149 : f32 to vector<1x128xf32>
    %813 = arith.addf %812, %811 : vector<1x128xf32>
    %814 = arith.divf %812, %813 : vector<1x128xf32>
    %815 = arith.mulf %806, %761 : vector<1x128xf32>
    %816 = arith.mulf %800, %808 : vector<1x128xf32>
    %817 = arith.addf %815, %816 : vector<1x128xf32>
    %818 = math.tanh %817 : vector<1x128xf32>
    %819 = arith.mulf %814, %818 : vector<1x128xf32>
    %820 = vector.extract_strided_slice %476 {offsets = [6, 0], sizes = [1, 512], strides = [1, 1]} : vector<8x512xf32> to vector<1x512xf32>
    %cst_150 = arith.constant dense<0.000000e+00> : vector<1x512xf32>
    %821 = tpu.matmul %791, %469, %cst_150 {dimension_numbers = #tpu.dot_dimension_numbers<[1], [0], [0], [1], [0, 0, 1, 1], [], []>} : vector<1x128xf32>, vector<128x512xf32>, vector<1x512xf32> -> vector<1x512xf32>
    %822 = arith.addf %821, %820 : vector<1x512xf32>
    %823 = vector.extract_strided_slice %822 {offsets = [0, 0], sizes = [1, 128], strides = [1, 1]} : vector<1x512xf32> to vector<1x128xf32>
    %824 = arith.negf %823 : vector<1x128xf32>
    %825 = math.exp %824 : vector<1x128xf32>
    %cst_151 = arith.constant 1.000000e+00 : f32
    %826 = vector.broadcast %cst_151 : f32 to vector<1x128xf32>
    %827 = arith.addf %826, %825 : vector<1x128xf32>
    %828 = arith.divf %826, %827 : vector<1x128xf32>
    %829 = vector.extract_strided_slice %822 {offsets = [0, 128], sizes = [1, 128], strides = [1, 1]} : vector<1x512xf32> to vector<1x128xf32>
    %830 = arith.negf %829 : vector<1x128xf32>
    %831 = math.exp %830 : vector<1x128xf32>
    %cst_152 = arith.constant 1.000000e+00 : f32
    %832 = vector.broadcast %cst_152 : f32 to vector<1x128xf32>
    %833 = arith.addf %832, %831 : vector<1x128xf32>
    %834 = arith.divf %832, %833 : vector<1x128xf32>
    %835 = vector.extract_strided_slice %822 {offsets = [0, 256], sizes = [1, 128], strides = [1, 1]} : vector<1x512xf32> to vector<1x128xf32>
    %836 = math.tanh %835 : vector<1x128xf32>
    %837 = vector.extract_strided_slice %822 {offsets = [0, 384], sizes = [1, 128], strides = [1, 1]} : vector<1x512xf32> to vector<1x128xf32>
    %838 = arith.negf %837 : vector<1x128xf32>
    %839 = math.exp %838 : vector<1x128xf32>
    %cst_153 = arith.constant 1.000000e+00 : f32
    %840 = vector.broadcast %cst_153 : f32 to vector<1x128xf32>
    %841 = arith.addf %840, %839 : vector<1x128xf32>
    %842 = arith.divf %840, %841 : vector<1x128xf32>
    %843 = arith.mulf %834, %789 : vector<1x128xf32>
    %844 = arith.mulf %828, %836 : vector<1x128xf32>
    %845 = arith.addf %843, %844 : vector<1x128xf32>
    %846 = math.tanh %845 : vector<1x128xf32>
    %847 = arith.mulf %842, %846 : vector<1x128xf32>
    %848 = vector.extract_strided_slice %479 {offsets = [6, 0], sizes = [1, 512], strides = [1, 1]} : vector<8x512xf32> to vector<1x512xf32>
    %cst_154 = arith.constant dense<0.000000e+00> : vector<1x512xf32>
    %849 = tpu.matmul %819, %472, %cst_154 {dimension_numbers = #tpu.dot_dimension_numbers<[1], [0], [0], [1], [0, 0, 1, 1], [], []>} : vector<1x128xf32>, vector<128x512xf32>, vector<1x512xf32> -> vector<1x512xf32>
    %850 = arith.addf %849, %848 : vector<1x512xf32>
    %851 = vector.extract_strided_slice %850 {offsets = [0, 0], sizes = [1, 128], strides = [1, 1]} : vector<1x512xf32> to vector<1x128xf32>
    %852 = arith.negf %851 : vector<1x128xf32>
    %853 = math.exp %852 : vector<1x128xf32>
    %cst_155 = arith.constant 1.000000e+00 : f32
    %854 = vector.broadcast %cst_155 : f32 to vector<1x128xf32>
    %855 = arith.addf %854, %853 : vector<1x128xf32>
    %856 = arith.divf %854, %855 : vector<1x128xf32>
    %857 = vector.extract_strided_slice %850 {offsets = [0, 128], sizes = [1, 128], strides = [1, 1]} : vector<1x512xf32> to vector<1x128xf32>
    %858 = arith.negf %857 : vector<1x128xf32>
    %859 = math.exp %858 : vector<1x128xf32>
    %cst_156 = arith.constant 1.000000e+00 : f32
    %860 = vector.broadcast %cst_156 : f32 to vector<1x128xf32>
    %861 = arith.addf %860, %859 : vector<1x128xf32>
    %862 = arith.divf %860, %861 : vector<1x128xf32>
    %863 = vector.extract_strided_slice %850 {offsets = [0, 256], sizes = [1, 128], strides = [1, 1]} : vector<1x512xf32> to vector<1x128xf32>
    %864 = math.tanh %863 : vector<1x128xf32>
    %865 = vector.extract_strided_slice %850 {offsets = [0, 384], sizes = [1, 128], strides = [1, 1]} : vector<1x512xf32> to vector<1x128xf32>
    %866 = arith.negf %865 : vector<1x128xf32>
    %867 = math.exp %866 : vector<1x128xf32>
    %cst_157 = arith.constant 1.000000e+00 : f32
    %868 = vector.broadcast %cst_157 : f32 to vector<1x128xf32>
    %869 = arith.addf %868, %867 : vector<1x128xf32>
    %870 = arith.divf %868, %869 : vector<1x128xf32>
    %871 = arith.mulf %862, %817 : vector<1x128xf32>
    %872 = arith.mulf %856, %864 : vector<1x128xf32>
    %873 = arith.addf %871, %872 : vector<1x128xf32>
    %874 = math.tanh %873 : vector<1x128xf32>
    %875 = arith.mulf %870, %874 : vector<1x128xf32>
    %876 = vector.extract_strided_slice %476 {offsets = [7, 0], sizes = [1, 512], strides = [1, 1]} : vector<8x512xf32> to vector<1x512xf32>
    %cst_158 = arith.constant dense<0.000000e+00> : vector<1x512xf32>
    %877 = tpu.matmul %847, %469, %cst_158 {dimension_numbers = #tpu.dot_dimension_numbers<[1], [0], [0], [1], [0, 0, 1, 1], [], []>} : vector<1x128xf32>, vector<128x512xf32>, vector<1x512xf32> -> vector<1x512xf32>
    %878 = arith.addf %877, %876 : vector<1x512xf32>
    %879 = vector.extract_strided_slice %878 {offsets = [0, 0], sizes = [1, 128], strides = [1, 1]} : vector<1x512xf32> to vector<1x128xf32>
    %880 = arith.negf %879 : vector<1x128xf32>
    %881 = math.exp %880 : vector<1x128xf32>
    %cst_159 = arith.constant 1.000000e+00 : f32
    %882 = vector.broadcast %cst_159 : f32 to vector<1x128xf32>
    %883 = arith.addf %882, %881 : vector<1x128xf32>
    %884 = arith.divf %882, %883 : vector<1x128xf32>
    %885 = vector.extract_strided_slice %878 {offsets = [0, 128], sizes = [1, 128], strides = [1, 1]} : vector<1x512xf32> to vector<1x128xf32>
    %886 = arith.negf %885 : vector<1x128xf32>
    %887 = math.exp %886 : vector<1x128xf32>
    %cst_160 = arith.constant 1.000000e+00 : f32
    %888 = vector.broadcast %cst_160 : f32 to vector<1x128xf32>
    %889 = arith.addf %888, %887 : vector<1x128xf32>
    %890 = arith.divf %888, %889 : vector<1x128xf32>
    %891 = vector.extract_strided_slice %878 {offsets = [0, 256], sizes = [1, 128], strides = [1, 1]} : vector<1x512xf32> to vector<1x128xf32>
    %892 = math.tanh %891 : vector<1x128xf32>
    %893 = vector.extract_strided_slice %878 {offsets = [0, 384], sizes = [1, 128], strides = [1, 1]} : vector<1x512xf32> to vector<1x128xf32>
    %894 = arith.negf %893 : vector<1x128xf32>
    %895 = math.exp %894 : vector<1x128xf32>
    %cst_161 = arith.constant 1.000000e+00 : f32
    %896 = vector.broadcast %cst_161 : f32 to vector<1x128xf32>
    %897 = arith.addf %896, %895 : vector<1x128xf32>
    %898 = arith.divf %896, %897 : vector<1x128xf32>
    %899 = arith.mulf %890, %845 : vector<1x128xf32>
    %900 = arith.mulf %884, %892 : vector<1x128xf32>
    %901 = arith.addf %899, %900 : vector<1x128xf32>
    %902 = math.tanh %901 : vector<1x128xf32>
    %903 = arith.mulf %898, %902 : vector<1x128xf32>
    %904 = vector.extract_strided_slice %479 {offsets = [7, 0], sizes = [1, 512], strides = [1, 1]} : vector<8x512xf32> to vector<1x512xf32>
    %cst_162 = arith.constant dense<0.000000e+00> : vector<1x512xf32>
    %905 = tpu.matmul %875, %472, %cst_162 {dimension_numbers = #tpu.dot_dimension_numbers<[1], [0], [0], [1], [0, 0, 1, 1], [], []>} : vector<1x128xf32>, vector<128x512xf32>, vector<1x512xf32> -> vector<1x512xf32>
    %906 = arith.addf %905, %904 : vector<1x512xf32>
    %907 = vector.extract_strided_slice %906 {offsets = [0, 0], sizes = [1, 128], strides = [1, 1]} : vector<1x512xf32> to vector<1x128xf32>
    %908 = arith.negf %907 : vector<1x128xf32>
    %909 = math.exp %908 : vector<1x128xf32>
    %cst_163 = arith.constant 1.000000e+00 : f32
    %910 = vector.broadcast %cst_163 : f32 to vector<1x128xf32>
    %911 = arith.addf %910, %909 : vector<1x128xf32>
    %912 = arith.divf %910, %911 : vector<1x128xf32>
    %913 = vector.extract_strided_slice %906 {offsets = [0, 128], sizes = [1, 128], strides = [1, 1]} : vector<1x512xf32> to vector<1x128xf32>
    %914 = arith.negf %913 : vector<1x128xf32>
    %915 = math.exp %914 : vector<1x128xf32>
    %cst_164 = arith.constant 1.000000e+00 : f32
    %916 = vector.broadcast %cst_164 : f32 to vector<1x128xf32>
    %917 = arith.addf %916, %915 : vector<1x128xf32>
    %918 = arith.divf %916, %917 : vector<1x128xf32>
    %919 = vector.extract_strided_slice %906 {offsets = [0, 256], sizes = [1, 128], strides = [1, 1]} : vector<1x512xf32> to vector<1x128xf32>
    %920 = math.tanh %919 : vector<1x128xf32>
    %921 = vector.extract_strided_slice %906 {offsets = [0, 384], sizes = [1, 128], strides = [1, 1]} : vector<1x512xf32> to vector<1x128xf32>
    %922 = arith.negf %921 : vector<1x128xf32>
    %923 = math.exp %922 : vector<1x128xf32>
    %cst_165 = arith.constant 1.000000e+00 : f32
    %924 = vector.broadcast %cst_165 : f32 to vector<1x128xf32>
    %925 = arith.addf %924, %923 : vector<1x128xf32>
    %926 = arith.divf %924, %925 : vector<1x128xf32>
    %927 = arith.mulf %918, %873 : vector<1x128xf32>
    %928 = arith.mulf %912, %920 : vector<1x128xf32>
    %929 = arith.addf %927, %928 : vector<1x128xf32>
    %930 = math.tanh %929 : vector<1x128xf32>
    %931 = arith.mulf %926, %930 : vector<1x128xf32>
    %932 = tpu.concatenate %511, %567, %623, %679, %735, %791, %847, %903 in 0 : vector<1x128xf32>, vector<1x128xf32>, vector<1x128xf32>, vector<1x128xf32>, vector<1x128xf32>, vector<1x128xf32>, vector<1x128xf32>, vector<1x128xf32> -> vector<8x128xf32>
    %933 = tpu.concatenate %931, %875, %819, %763, %707, %651, %595, %539 in 0 : vector<1x128xf32>, vector<1x128xf32>, vector<1x128xf32>, vector<1x128xf32>, vector<1x128xf32>, vector<1x128xf32>, vector<1x128xf32>, vector<1x128xf32> -> vector<8x128xf32>
    %934 = tpu.concatenate %466, %467 in 1 : vector<8x128xf32>, vector<8x128xf32> -> vector<8x256xf32>
    %935 = tpu.concatenate %932, %933 in 1 : vector<8x128xf32>, vector<8x128xf32> -> vector<8x256xf32>
    %c0_166 = arith.constant 0 : index
    %936 = memref.load %arg0[%c0_166] : memref<2xf32, #tpu.memory_space<smem>>
    %c1 = arith.constant 1 : index
    %937 = memref.load %arg0[%c1] : memref<2xf32, #tpu.memory_space<smem>>
    %938 = vector.broadcast %936 : f32 to vector<8x256xf32>
    %939 = arith.mulf %938, %934 : vector<8x256xf32>
    %940 = vector.broadcast %937 : f32 to vector<8x256xf32>
    %941 = arith.mulf %940, %935 : vector<8x256xf32>
    %942 = arith.addf %939, %941 : vector<8x256xf32>
    %c0_167 = arith.constant 0 : index
    %c0_168 = arith.constant 0 : index
    %943 = vector.load %arg15[%c0_167, %c0_168] : memref<256x512xf32, #tpu.memory_space<vmem>>, vector<256x512xf32>
    %cst_169 = arith.constant dense<0.000000e+00> : vector<8x512xf32>
    %944 = tpu.matmul %942, %943, %cst_169 {dimension_numbers = #tpu.dot_dimension_numbers<[1], [0], [0], [1], [0, 0, 1, 1], [], []>} : vector<8x256xf32>, vector<256x512xf32>, vector<8x512xf32> -> vector<8x512xf32>
    %c0_170 = arith.constant 0 : index
    %c0_171 = arith.constant 0 : index
    %945 = vector.load %arg17[%c0_170, %c0_171] : memref<1x512xf32, #tpu.memory_space<vmem>>, vector<1x512xf32>
    %946 = vector.broadcast %945 : vector<1x512xf32> to vector<8x512xf32>
    %947 = arith.addf %944, %946 : vector<8x512xf32>
    %c0_172 = arith.constant 0 : index
    %c0_173 = arith.constant 0 : index
    %948 = vector.load %arg16[%c0_172, %c0_173] : memref<128x512xf32, #tpu.memory_space<vmem>>, vector<128x512xf32>
    %cst_174 = arith.constant 0.000000e+00 : f32
    %949 = vector.broadcast %cst_174 : f32 to vector<1x128xf32>
    %cst_175 = arith.constant 0.000000e+00 : f32
    %950 = vector.broadcast %cst_175 : f32 to vector<1x128xf32>
    %951 = vector.extract_strided_slice %947 {offsets = [0, 0], sizes = [1, 512], strides = [1, 1]} : vector<8x512xf32> to vector<1x512xf32>
    %cst_176 = arith.constant dense<0.000000e+00> : vector<1x512xf32>
    %952 = tpu.matmul %949, %948, %cst_176 {dimension_numbers = #tpu.dot_dimension_numbers<[1], [0], [0], [1], [0, 0, 1, 1], [], []>} : vector<1x128xf32>, vector<128x512xf32>, vector<1x512xf32> -> vector<1x512xf32>
    %953 = arith.addf %952, %951 : vector<1x512xf32>
    %954 = vector.extract_strided_slice %953 {offsets = [0, 0], sizes = [1, 128], strides = [1, 1]} : vector<1x512xf32> to vector<1x128xf32>
    %955 = arith.negf %954 : vector<1x128xf32>
    %956 = math.exp %955 : vector<1x128xf32>
    %cst_177 = arith.constant 1.000000e+00 : f32
    %957 = vector.broadcast %cst_177 : f32 to vector<1x128xf32>
    %958 = arith.addf %957, %956 : vector<1x128xf32>
    %959 = arith.divf %957, %958 : vector<1x128xf32>
    %960 = vector.extract_strided_slice %953 {offsets = [0, 128], sizes = [1, 128], strides = [1, 1]} : vector<1x512xf32> to vector<1x128xf32>
    %961 = arith.negf %960 : vector<1x128xf32>
    %962 = math.exp %961 : vector<1x128xf32>
    %cst_178 = arith.constant 1.000000e+00 : f32
    %963 = vector.broadcast %cst_178 : f32 to vector<1x128xf32>
    %964 = arith.addf %963, %962 : vector<1x128xf32>
    %965 = arith.divf %963, %964 : vector<1x128xf32>
    %966 = vector.extract_strided_slice %953 {offsets = [0, 256], sizes = [1, 128], strides = [1, 1]} : vector<1x512xf32> to vector<1x128xf32>
    %967 = math.tanh %966 : vector<1x128xf32>
    %968 = vector.extract_strided_slice %953 {offsets = [0, 384], sizes = [1, 128], strides = [1, 1]} : vector<1x512xf32> to vector<1x128xf32>
    %969 = arith.negf %968 : vector<1x128xf32>
    %970 = math.exp %969 : vector<1x128xf32>
    %cst_179 = arith.constant 1.000000e+00 : f32
    %971 = vector.broadcast %cst_179 : f32 to vector<1x128xf32>
    %972 = arith.addf %971, %970 : vector<1x128xf32>
    %973 = arith.divf %971, %972 : vector<1x128xf32>
    %974 = arith.mulf %965, %950 : vector<1x128xf32>
    %975 = arith.mulf %959, %967 : vector<1x128xf32>
    %976 = arith.addf %974, %975 : vector<1x128xf32>
    %977 = math.tanh %976 : vector<1x128xf32>
    %978 = arith.mulf %973, %977 : vector<1x128xf32>
    %979 = vector.extract_strided_slice %947 {offsets = [1, 0], sizes = [1, 512], strides = [1, 1]} : vector<8x512xf32> to vector<1x512xf32>
    %cst_180 = arith.constant dense<0.000000e+00> : vector<1x512xf32>
    %980 = tpu.matmul %978, %948, %cst_180 {dimension_numbers = #tpu.dot_dimension_numbers<[1], [0], [0], [1], [0, 0, 1, 1], [], []>} : vector<1x128xf32>, vector<128x512xf32>, vector<1x512xf32> -> vector<1x512xf32>
    %981 = arith.addf %980, %979 : vector<1x512xf32>
    %982 = vector.extract_strided_slice %981 {offsets = [0, 0], sizes = [1, 128], strides = [1, 1]} : vector<1x512xf32> to vector<1x128xf32>
    %983 = arith.negf %982 : vector<1x128xf32>
    %984 = math.exp %983 : vector<1x128xf32>
    %cst_181 = arith.constant 1.000000e+00 : f32
    %985 = vector.broadcast %cst_181 : f32 to vector<1x128xf32>
    %986 = arith.addf %985, %984 : vector<1x128xf32>
    %987 = arith.divf %985, %986 : vector<1x128xf32>
    %988 = vector.extract_strided_slice %981 {offsets = [0, 128], sizes = [1, 128], strides = [1, 1]} : vector<1x512xf32> to vector<1x128xf32>
    %989 = arith.negf %988 : vector<1x128xf32>
    %990 = math.exp %989 : vector<1x128xf32>
    %cst_182 = arith.constant 1.000000e+00 : f32
    %991 = vector.broadcast %cst_182 : f32 to vector<1x128xf32>
    %992 = arith.addf %991, %990 : vector<1x128xf32>
    %993 = arith.divf %991, %992 : vector<1x128xf32>
    %994 = vector.extract_strided_slice %981 {offsets = [0, 256], sizes = [1, 128], strides = [1, 1]} : vector<1x512xf32> to vector<1x128xf32>
    %995 = math.tanh %994 : vector<1x128xf32>
    %996 = vector.extract_strided_slice %981 {offsets = [0, 384], sizes = [1, 128], strides = [1, 1]} : vector<1x512xf32> to vector<1x128xf32>
    %997 = arith.negf %996 : vector<1x128xf32>
    %998 = math.exp %997 : vector<1x128xf32>
    %cst_183 = arith.constant 1.000000e+00 : f32
    %999 = vector.broadcast %cst_183 : f32 to vector<1x128xf32>
    %1000 = arith.addf %999, %998 : vector<1x128xf32>
    %1001 = arith.divf %999, %1000 : vector<1x128xf32>
    %1002 = arith.mulf %993, %976 : vector<1x128xf32>
    %1003 = arith.mulf %987, %995 : vector<1x128xf32>
    %1004 = arith.addf %1002, %1003 : vector<1x128xf32>
    %1005 = math.tanh %1004 : vector<1x128xf32>
    %1006 = arith.mulf %1001, %1005 : vector<1x128xf32>
    %1007 = vector.extract_strided_slice %947 {offsets = [2, 0], sizes = [1, 512], strides = [1, 1]} : vector<8x512xf32> to vector<1x512xf32>
    %cst_184 = arith.constant dense<0.000000e+00> : vector<1x512xf32>
    %1008 = tpu.matmul %1006, %948, %cst_184 {dimension_numbers = #tpu.dot_dimension_numbers<[1], [0], [0], [1], [0, 0, 1, 1], [], []>} : vector<1x128xf32>, vector<128x512xf32>, vector<1x512xf32> -> vector<1x512xf32>
    %1009 = arith.addf %1008, %1007 : vector<1x512xf32>
    %1010 = vector.extract_strided_slice %1009 {offsets = [0, 0], sizes = [1, 128], strides = [1, 1]} : vector<1x512xf32> to vector<1x128xf32>
    %1011 = arith.negf %1010 : vector<1x128xf32>
    %1012 = math.exp %1011 : vector<1x128xf32>
    %cst_185 = arith.constant 1.000000e+00 : f32
    %1013 = vector.broadcast %cst_185 : f32 to vector<1x128xf32>
    %1014 = arith.addf %1013, %1012 : vector<1x128xf32>
    %1015 = arith.divf %1013, %1014 : vector<1x128xf32>
    %1016 = vector.extract_strided_slice %1009 {offsets = [0, 128], sizes = [1, 128], strides = [1, 1]} : vector<1x512xf32> to vector<1x128xf32>
    %1017 = arith.negf %1016 : vector<1x128xf32>
    %1018 = math.exp %1017 : vector<1x128xf32>
    %cst_186 = arith.constant 1.000000e+00 : f32
    %1019 = vector.broadcast %cst_186 : f32 to vector<1x128xf32>
    %1020 = arith.addf %1019, %1018 : vector<1x128xf32>
    %1021 = arith.divf %1019, %1020 : vector<1x128xf32>
    %1022 = vector.extract_strided_slice %1009 {offsets = [0, 256], sizes = [1, 128], strides = [1, 1]} : vector<1x512xf32> to vector<1x128xf32>
    %1023 = math.tanh %1022 : vector<1x128xf32>
    %1024 = vector.extract_strided_slice %1009 {offsets = [0, 384], sizes = [1, 128], strides = [1, 1]} : vector<1x512xf32> to vector<1x128xf32>
    %1025 = arith.negf %1024 : vector<1x128xf32>
    %1026 = math.exp %1025 : vector<1x128xf32>
    %cst_187 = arith.constant 1.000000e+00 : f32
    %1027 = vector.broadcast %cst_187 : f32 to vector<1x128xf32>
    %1028 = arith.addf %1027, %1026 : vector<1x128xf32>
    %1029 = arith.divf %1027, %1028 : vector<1x128xf32>
    %1030 = arith.mulf %1021, %1004 : vector<1x128xf32>
    %1031 = arith.mulf %1015, %1023 : vector<1x128xf32>
    %1032 = arith.addf %1030, %1031 : vector<1x128xf32>
    %1033 = math.tanh %1032 : vector<1x128xf32>
    %1034 = arith.mulf %1029, %1033 : vector<1x128xf32>
    %1035 = vector.extract_strided_slice %947 {offsets = [3, 0], sizes = [1, 512], strides = [1, 1]} : vector<8x512xf32> to vector<1x512xf32>
    %cst_188 = arith.constant dense<0.000000e+00> : vector<1x512xf32>
    %1036 = tpu.matmul %1034, %948, %cst_188 {dimension_numbers = #tpu.dot_dimension_numbers<[1], [0], [0], [1], [0, 0, 1, 1], [], []>} : vector<1x128xf32>, vector<128x512xf32>, vector<1x512xf32> -> vector<1x512xf32>
    %1037 = arith.addf %1036, %1035 : vector<1x512xf32>
    %1038 = vector.extract_strided_slice %1037 {offsets = [0, 0], sizes = [1, 128], strides = [1, 1]} : vector<1x512xf32> to vector<1x128xf32>
    %1039 = arith.negf %1038 : vector<1x128xf32>
    %1040 = math.exp %1039 : vector<1x128xf32>
    %cst_189 = arith.constant 1.000000e+00 : f32
    %1041 = vector.broadcast %cst_189 : f32 to vector<1x128xf32>
    %1042 = arith.addf %1041, %1040 : vector<1x128xf32>
    %1043 = arith.divf %1041, %1042 : vector<1x128xf32>
    %1044 = vector.extract_strided_slice %1037 {offsets = [0, 128], sizes = [1, 128], strides = [1, 1]} : vector<1x512xf32> to vector<1x128xf32>
    %1045 = arith.negf %1044 : vector<1x128xf32>
    %1046 = math.exp %1045 : vector<1x128xf32>
    %cst_190 = arith.constant 1.000000e+00 : f32
    %1047 = vector.broadcast %cst_190 : f32 to vector<1x128xf32>
    %1048 = arith.addf %1047, %1046 : vector<1x128xf32>
    %1049 = arith.divf %1047, %1048 : vector<1x128xf32>
    %1050 = vector.extract_strided_slice %1037 {offsets = [0, 256], sizes = [1, 128], strides = [1, 1]} : vector<1x512xf32> to vector<1x128xf32>
    %1051 = math.tanh %1050 : vector<1x128xf32>
    %1052 = vector.extract_strided_slice %1037 {offsets = [0, 384], sizes = [1, 128], strides = [1, 1]} : vector<1x512xf32> to vector<1x128xf32>
    %1053 = arith.negf %1052 : vector<1x128xf32>
    %1054 = math.exp %1053 : vector<1x128xf32>
    %cst_191 = arith.constant 1.000000e+00 : f32
    %1055 = vector.broadcast %cst_191 : f32 to vector<1x128xf32>
    %1056 = arith.addf %1055, %1054 : vector<1x128xf32>
    %1057 = arith.divf %1055, %1056 : vector<1x128xf32>
    %1058 = arith.mulf %1049, %1032 : vector<1x128xf32>
    %1059 = arith.mulf %1043, %1051 : vector<1x128xf32>
    %1060 = arith.addf %1058, %1059 : vector<1x128xf32>
    %1061 = math.tanh %1060 : vector<1x128xf32>
    %1062 = arith.mulf %1057, %1061 : vector<1x128xf32>
    %1063 = vector.extract_strided_slice %947 {offsets = [4, 0], sizes = [1, 512], strides = [1, 1]} : vector<8x512xf32> to vector<1x512xf32>
    %cst_192 = arith.constant dense<0.000000e+00> : vector<1x512xf32>
    %1064 = tpu.matmul %1062, %948, %cst_192 {dimension_numbers = #tpu.dot_dimension_numbers<[1], [0], [0], [1], [0, 0, 1, 1], [], []>} : vector<1x128xf32>, vector<128x512xf32>, vector<1x512xf32> -> vector<1x512xf32>
    %1065 = arith.addf %1064, %1063 : vector<1x512xf32>
    %1066 = vector.extract_strided_slice %1065 {offsets = [0, 0], sizes = [1, 128], strides = [1, 1]} : vector<1x512xf32> to vector<1x128xf32>
    %1067 = arith.negf %1066 : vector<1x128xf32>
    %1068 = math.exp %1067 : vector<1x128xf32>
    %cst_193 = arith.constant 1.000000e+00 : f32
    %1069 = vector.broadcast %cst_193 : f32 to vector<1x128xf32>
    %1070 = arith.addf %1069, %1068 : vector<1x128xf32>
    %1071 = arith.divf %1069, %1070 : vector<1x128xf32>
    %1072 = vector.extract_strided_slice %1065 {offsets = [0, 128], sizes = [1, 128], strides = [1, 1]} : vector<1x512xf32> to vector<1x128xf32>
    %1073 = arith.negf %1072 : vector<1x128xf32>
    %1074 = math.exp %1073 : vector<1x128xf32>
    %cst_194 = arith.constant 1.000000e+00 : f32
    %1075 = vector.broadcast %cst_194 : f32 to vector<1x128xf32>
    %1076 = arith.addf %1075, %1074 : vector<1x128xf32>
    %1077 = arith.divf %1075, %1076 : vector<1x128xf32>
    %1078 = vector.extract_strided_slice %1065 {offsets = [0, 256], sizes = [1, 128], strides = [1, 1]} : vector<1x512xf32> to vector<1x128xf32>
    %1079 = math.tanh %1078 : vector<1x128xf32>
    %1080 = vector.extract_strided_slice %1065 {offsets = [0, 384], sizes = [1, 128], strides = [1, 1]} : vector<1x512xf32> to vector<1x128xf32>
    %1081 = arith.negf %1080 : vector<1x128xf32>
    %1082 = math.exp %1081 : vector<1x128xf32>
    %cst_195 = arith.constant 1.000000e+00 : f32
    %1083 = vector.broadcast %cst_195 : f32 to vector<1x128xf32>
    %1084 = arith.addf %1083, %1082 : vector<1x128xf32>
    %1085 = arith.divf %1083, %1084 : vector<1x128xf32>
    %1086 = arith.mulf %1077, %1060 : vector<1x128xf32>
    %1087 = arith.mulf %1071, %1079 : vector<1x128xf32>
    %1088 = arith.addf %1086, %1087 : vector<1x128xf32>
    %1089 = math.tanh %1088 : vector<1x128xf32>
    %1090 = arith.mulf %1085, %1089 : vector<1x128xf32>
    %1091 = vector.extract_strided_slice %947 {offsets = [5, 0], sizes = [1, 512], strides = [1, 1]} : vector<8x512xf32> to vector<1x512xf32>
    %cst_196 = arith.constant dense<0.000000e+00> : vector<1x512xf32>
    %1092 = tpu.matmul %1090, %948, %cst_196 {dimension_numbers = #tpu.dot_dimension_numbers<[1], [0], [0], [1], [0, 0, 1, 1], [], []>} : vector<1x128xf32>, vector<128x512xf32>, vector<1x512xf32> -> vector<1x512xf32>
    %1093 = arith.addf %1092, %1091 : vector<1x512xf32>
    %1094 = vector.extract_strided_slice %1093 {offsets = [0, 0], sizes = [1, 128], strides = [1, 1]} : vector<1x512xf32> to vector<1x128xf32>
    %1095 = arith.negf %1094 : vector<1x128xf32>
    %1096 = math.exp %1095 : vector<1x128xf32>
    %cst_197 = arith.constant 1.000000e+00 : f32
    %1097 = vector.broadcast %cst_197 : f32 to vector<1x128xf32>
    %1098 = arith.addf %1097, %1096 : vector<1x128xf32>
    %1099 = arith.divf %1097, %1098 : vector<1x128xf32>
    %1100 = vector.extract_strided_slice %1093 {offsets = [0, 128], sizes = [1, 128], strides = [1, 1]} : vector<1x512xf32> to vector<1x128xf32>
    %1101 = arith.negf %1100 : vector<1x128xf32>
    %1102 = math.exp %1101 : vector<1x128xf32>
    %cst_198 = arith.constant 1.000000e+00 : f32
    %1103 = vector.broadcast %cst_198 : f32 to vector<1x128xf32>
    %1104 = arith.addf %1103, %1102 : vector<1x128xf32>
    %1105 = arith.divf %1103, %1104 : vector<1x128xf32>
    %1106 = vector.extract_strided_slice %1093 {offsets = [0, 256], sizes = [1, 128], strides = [1, 1]} : vector<1x512xf32> to vector<1x128xf32>
    %1107 = math.tanh %1106 : vector<1x128xf32>
    %1108 = vector.extract_strided_slice %1093 {offsets = [0, 384], sizes = [1, 128], strides = [1, 1]} : vector<1x512xf32> to vector<1x128xf32>
    %1109 = arith.negf %1108 : vector<1x128xf32>
    %1110 = math.exp %1109 : vector<1x128xf32>
    %cst_199 = arith.constant 1.000000e+00 : f32
    %1111 = vector.broadcast %cst_199 : f32 to vector<1x128xf32>
    %1112 = arith.addf %1111, %1110 : vector<1x128xf32>
    %1113 = arith.divf %1111, %1112 : vector<1x128xf32>
    %1114 = arith.mulf %1105, %1088 : vector<1x128xf32>
    %1115 = arith.mulf %1099, %1107 : vector<1x128xf32>
    %1116 = arith.addf %1114, %1115 : vector<1x128xf32>
    %1117 = math.tanh %1116 : vector<1x128xf32>
    %1118 = arith.mulf %1113, %1117 : vector<1x128xf32>
    %1119 = vector.extract_strided_slice %947 {offsets = [6, 0], sizes = [1, 512], strides = [1, 1]} : vector<8x512xf32> to vector<1x512xf32>
    %cst_200 = arith.constant dense<0.000000e+00> : vector<1x512xf32>
    %1120 = tpu.matmul %1118, %948, %cst_200 {dimension_numbers = #tpu.dot_dimension_numbers<[1], [0], [0], [1], [0, 0, 1, 1], [], []>} : vector<1x128xf32>, vector<128x512xf32>, vector<1x512xf32> -> vector<1x512xf32>
    %1121 = arith.addf %1120, %1119 : vector<1x512xf32>
    %1122 = vector.extract_strided_slice %1121 {offsets = [0, 0], sizes = [1, 128], strides = [1, 1]} : vector<1x512xf32> to vector<1x128xf32>
    %1123 = arith.negf %1122 : vector<1x128xf32>
    %1124 = math.exp %1123 : vector<1x128xf32>
    %cst_201 = arith.constant 1.000000e+00 : f32
    %1125 = vector.broadcast %cst_201 : f32 to vector<1x128xf32>
    %1126 = arith.addf %1125, %1124 : vector<1x128xf32>
    %1127 = arith.divf %1125, %1126 : vector<1x128xf32>
    %1128 = vector.extract_strided_slice %1121 {offsets = [0, 128], sizes = [1, 128], strides = [1, 1]} : vector<1x512xf32> to vector<1x128xf32>
    %1129 = arith.negf %1128 : vector<1x128xf32>
    %1130 = math.exp %1129 : vector<1x128xf32>
    %cst_202 = arith.constant 1.000000e+00 : f32
    %1131 = vector.broadcast %cst_202 : f32 to vector<1x128xf32>
    %1132 = arith.addf %1131, %1130 : vector<1x128xf32>
    %1133 = arith.divf %1131, %1132 : vector<1x128xf32>
    %1134 = vector.extract_strided_slice %1121 {offsets = [0, 256], sizes = [1, 128], strides = [1, 1]} : vector<1x512xf32> to vector<1x128xf32>
    %1135 = math.tanh %1134 : vector<1x128xf32>
    %1136 = vector.extract_strided_slice %1121 {offsets = [0, 384], sizes = [1, 128], strides = [1, 1]} : vector<1x512xf32> to vector<1x128xf32>
    %1137 = arith.negf %1136 : vector<1x128xf32>
    %1138 = math.exp %1137 : vector<1x128xf32>
    %cst_203 = arith.constant 1.000000e+00 : f32
    %1139 = vector.broadcast %cst_203 : f32 to vector<1x128xf32>
    %1140 = arith.addf %1139, %1138 : vector<1x128xf32>
    %1141 = arith.divf %1139, %1140 : vector<1x128xf32>
    %1142 = arith.mulf %1133, %1116 : vector<1x128xf32>
    %1143 = arith.mulf %1127, %1135 : vector<1x128xf32>
    %1144 = arith.addf %1142, %1143 : vector<1x128xf32>
    %1145 = math.tanh %1144 : vector<1x128xf32>
    %1146 = arith.mulf %1141, %1145 : vector<1x128xf32>
    %1147 = vector.extract_strided_slice %947 {offsets = [7, 0], sizes = [1, 512], strides = [1, 1]} : vector<8x512xf32> to vector<1x512xf32>
    %cst_204 = arith.constant dense<0.000000e+00> : vector<1x512xf32>
    %1148 = tpu.matmul %1146, %948, %cst_204 {dimension_numbers = #tpu.dot_dimension_numbers<[1], [0], [0], [1], [0, 0, 1, 1], [], []>} : vector<1x128xf32>, vector<128x512xf32>, vector<1x512xf32> -> vector<1x512xf32>
    %1149 = arith.addf %1148, %1147 : vector<1x512xf32>
    %1150 = vector.extract_strided_slice %1149 {offsets = [0, 0], sizes = [1, 128], strides = [1, 1]} : vector<1x512xf32> to vector<1x128xf32>
    %1151 = arith.negf %1150 : vector<1x128xf32>
    %1152 = math.exp %1151 : vector<1x128xf32>
    %cst_205 = arith.constant 1.000000e+00 : f32
    %1153 = vector.broadcast %cst_205 : f32 to vector<1x128xf32>
    %1154 = arith.addf %1153, %1152 : vector<1x128xf32>
    %1155 = arith.divf %1153, %1154 : vector<1x128xf32>
    %1156 = vector.extract_strided_slice %1149 {offsets = [0, 128], sizes = [1, 128], strides = [1, 1]} : vector<1x512xf32> to vector<1x128xf32>
    %1157 = arith.negf %1156 : vector<1x128xf32>
    %1158 = math.exp %1157 : vector<1x128xf32>
    %cst_206 = arith.constant 1.000000e+00 : f32
    %1159 = vector.broadcast %cst_206 : f32 to vector<1x128xf32>
    %1160 = arith.addf %1159, %1158 : vector<1x128xf32>
    %1161 = arith.divf %1159, %1160 : vector<1x128xf32>
    %1162 = vector.extract_strided_slice %1149 {offsets = [0, 256], sizes = [1, 128], strides = [1, 1]} : vector<1x512xf32> to vector<1x128xf32>
    %1163 = math.tanh %1162 : vector<1x128xf32>
    %1164 = vector.extract_strided_slice %1149 {offsets = [0, 384], sizes = [1, 128], strides = [1, 1]} : vector<1x512xf32> to vector<1x128xf32>
    %1165 = arith.negf %1164 : vector<1x128xf32>
    %1166 = math.exp %1165 : vector<1x128xf32>
    %cst_207 = arith.constant 1.000000e+00 : f32
    %1167 = vector.broadcast %cst_207 : f32 to vector<1x128xf32>
    %1168 = arith.addf %1167, %1166 : vector<1x128xf32>
    %1169 = arith.divf %1167, %1168 : vector<1x128xf32>
    %1170 = arith.mulf %1161, %1144 : vector<1x128xf32>
    %1171 = arith.mulf %1155, %1163 : vector<1x128xf32>
    %1172 = arith.addf %1170, %1171 : vector<1x128xf32>
    %1173 = math.tanh %1172 : vector<1x128xf32>
    %1174 = arith.mulf %1169, %1173 : vector<1x128xf32>
    %c0_208 = arith.constant 0 : index
    %c0_209 = arith.constant 0 : index
    %1175 = vector.load %arg18[%c0_208, %c0_209] : memref<128x5xf32, #tpu.memory_space<vmem>>, vector<128x5xf32>
    %cst_210 = arith.constant dense<0.000000e+00> : vector<1x5xf32>
    %1176 = tpu.matmul %1174, %1175, %cst_210 {dimension_numbers = #tpu.dot_dimension_numbers<[1], [0], [0], [1], [0, 0, 1, 1], [], []>} : vector<1x128xf32>, vector<128x5xf32>, vector<1x5xf32> -> vector<1x5xf32>
    %c0_211 = arith.constant 0 : index
    %c0_212 = arith.constant 0 : index
    %1177 = vector.load %arg19[%c0_211, %c0_212] : memref<1x5xf32, #tpu.memory_space<vmem>>, vector<1x5xf32>
    %1178 = arith.addf %1176, %1177 : vector<1x5xf32>
    %c0_213 = arith.constant 0 : index
    %c0_214 = arith.constant 0 : index
    %1179 = vector.load %arg20[%c0_213, %c0_214] : memref<1x5xf32, #tpu.memory_space<vmem>>, vector<1x5xf32>
    tpu.vector_store %arg20[%c0_213, %c0_214], %1178 {strides = array<i32>} : memref<1x5xf32, #tpu.memory_space<vmem>>, vector<1x5xf32>,
    return
  }
}

</mosaic_0001>

<llo_original>
// kernel: tpu_custom_call.1
$region0: #{tpu_custom_call.1}
  #allocation0 [shape = 'u32[]', space=smem, size = 0x4, offset = 0x4, fixed_abs, tag = 'smem constant byte address 0x4 - core index']
  #allocation1 [shape = 'u32[144,128]{1,0:T(1,128)}', space=vmem, size = 0x12000, scoped, tag = 'internal scratch']
  %s0 = inlined_call_operand.vmem [shape: f32[2], index: 0, kind: input, shape index: {}]
  %s1 = inlined_call_operand.vmem [shape: f32[8,128], index: 1, kind: input, shape index: {}]
  %s2 = inlined_call_operand.vmem [shape: f32[8,128], index: 2, kind: input, shape index: {}]
  %s3 = inlined_call_operand.hbm [shape: f32[128,512], index: 3, kind: input, shape index: {}]
  %s4 = inlined_call_operand.hbm [shape: f32[128,512], index: 4, kind: input, shape index: {}]
  %s5 = inlined_call_operand.vmem [shape: f32[1,512], index: 5, kind: input, shape index: {}]
  %s6 = inlined_call_operand.hbm [shape: f32[128,512], index: 6, kind: input, shape index: {}]
  %s7 = inlined_call_operand.hbm [shape: f32[128,512], index: 7, kind: input, shape index: {}]
  %s8 = inlined_call_operand.vmem [shape: f32[1,512], index: 8, kind: input, shape index: {}]
  %s9 = inlined_call_operand.hbm [shape: f32[128,512], index: 9, kind: input, shape index: {}]
  %s10 = inlined_call_operand.hbm [shape: f32[128,512], index: 10, kind: input, shape index: {}]
  %s11 = inlined_call_operand.vmem [shape: f32[1,512], index: 11, kind: input, shape index: {}]
  %s12 = inlined_call_operand.hbm [shape: f32[128,512], index: 12, kind: input, shape index: {}]
  %s13 = inlined_call_operand.hbm [shape: f32[128,512], index: 13, kind: input, shape index: {}]
  %s14 = inlined_call_operand.vmem [shape: f32[1,512], index: 14, kind: input, shape index: {}]
  %s15 = inlined_call_operand.hbm [shape: f32[256,512], index: 15, kind: input, shape index: {}]
  %s16 = inlined_call_operand.hbm [shape: f32[128,512], index: 16, kind: input, shape index: {}]
  %s17 = inlined_call_operand.vmem [shape: f32[1,512], index: 17, kind: input, shape index: {}]
  %s18 = inlined_call_operand.vmem [shape: f32[128,5], index: 18, kind: input, shape index: {}]
  %s19 = inlined_call_operand.vmem [shape: f32[1,5], index: 19, kind: input, shape index: {}]
  %s20 = inlined_call_operand.hbm [shape: f32[1,5], index: 20, kind: output, shape index: {}]
  %s21 = sld [smem:[#allocation0]]
  $region134: #{tpu_custom_call.1} parent=0
    _
  %s23 = ssub.s32 1, %s21
  %s24 = scalar_select 0, %s23, %s21
  $region1: #{tpu_custom_call.1} parent=0
    #allocation2 [shape = 'u8[512]{0}', space=smem, size = 0x200, scoped, tag = 'input window, operand 0, single buffered']
    #allocation3 [shape = 's32[1]{0}', space=sflag, size = 0x4, scoped, tag = 'scoped memory for tpu_custom_call.1']
    #allocation4 [shape = 's32[1]{0}', space=sflag, size = 0x4, scoped, tag = 'scoped memory for tpu_custom_call.1']
    #allocation5 [shape = 's32[1]{0}', space=sflag, size = 0x4, scoped, tag = 'scoped memory for tpu_custom_call.1']
    #allocation6 [shape = 'u8[262144]{0}', space=vmem, size = 0x40000, scoped, tag = 'input window, operand 3, single buffered']
    #allocation7 [shape = 'u8[262144]{0}', space=vmem, size = 0x40000, scoped, tag = 'input window, operand 4, single buffered']
    #allocation8 [shape = 's32[1]{0}', space=sflag, size = 0x4, scoped, tag = 'scoped memory for tpu_custom_call.1']
    #allocation9 [shape = 'u8[262144]{0}', space=vmem, size = 0x40000, scoped, tag = 'input window, operand 6, single buffered']
    #allocation10 [shape = 'u8[262144]{0}', space=vmem, size = 0x40000, scoped, tag = 'input window, operand 7, single buffered']
    #allocation11 [shape = 's32[1]{0}', space=sflag, size = 0x4, scoped, tag = 'scoped memory for tpu_custom_call.1']
    #allocation12 [shape = 'u8[262144]{0}', space=vmem, size = 0x40000, scoped, tag = 'input window, operand 9, single buffered']
    #allocation13 [shape = 'u8[262144]{0}', space=vmem, size = 0x40000, scoped, tag = 'input window, operand 10, single buffered']
    #allocation14 [shape = 's32[1]{0}', space=sflag, size = 0x4, scoped, tag = 'scoped memory for tpu_custom_call.1']
    #allocation15 [shape = 'u8[262144]{0}', space=vmem, size = 0x40000, scoped, tag = 'input window, operand 12, single buffered']
    #allocation16 [shape = 'u8[262144]{0}', space=vmem, size = 0x40000, scoped, tag = 'input window, operand 13, single buffered']
    #allocation17 [shape = 's32[1]{0}', space=sflag, size = 0x4, scoped, tag = 'scoped memory for tpu_custom_call.1']
    #allocation18 [shape = 'u8[524288]{0}', space=vmem, size = 0x80000, scoped, tag = 'input window, operand 15, single buffered']
    #allocation19 [shape = 'u8[262144]{0}', space=vmem, size = 0x40000, scoped, tag = 'input window, operand 16, single buffered']
    #allocation20 [shape = 's32[1]{0}', space=sflag, size = 0x4, scoped, tag = 'scoped memory for tpu_custom_call.1']
    #allocation21 [shape = 'u8[512]{0}', space=vmem, size = 0x400, scoped, tag = 'output window, operand 0, single buffered']
    %25 = vsyncpa [#allocation5], 0
    %26 = vsyncpa [#allocation3], 0
    %27 = vsyncpa [#allocation8], 0
    %28 = vsyncpa [#allocation11], 0
    %29 = vsyncpa [#allocation14], 0
    %30 = vsyncpa [#allocation17], 0
    %31 = vsyncpa [#allocation20], 0
    %32 = vsyncpa [#allocation4], 0
    // Predicated region
    $region2: #{tpu_custom_call.1} parent=1 // pred_check
      _
    $region3: #{tpu_custom_call.1} parent=1 // pred_check_branch
      %34 = sbr.rel (0) target = $region5
    $region4: #{tpu_custom_call.1} parent=1 // pred_region
      %s36 = ssub.s32 16, 16
      %37 = vsyncadd [#allocation5], %s36
      %s39 = sshll.u32 %s0, 4
      %s40 = int_to_ptr.vmem [resolvable:$true] %s39
      %42 = dma.vmem_to_smem %s40, 16, [#allocation2], [#allocation5]
    $region5: #{tpu_custom_call.1} parent=1 // pred_fallthru
      _
    // Predicated region
    $region6: #{tpu_custom_call.1} parent=1 // pred_check
      _
    $region7: #{tpu_custom_call.1} parent=1 // pred_check_branch
      %44 = sbr.rel (0) target = $region9
    $region8: #{tpu_custom_call.1} parent=1 // pred_region
      _
    $region9: #{tpu_custom_call.1} parent=1 // pred_fallthru
      _
    // Predicated region
    $region10: #{tpu_custom_call.1} parent=1 // pred_check
      _
    $region11: #{tpu_custom_call.1} parent=1 // pred_check_branch
      %46 = sbr.rel (0) target = $region13
    $region12: #{tpu_custom_call.1} parent=1 // pred_region
      _
    $region13: #{tpu_custom_call.1} parent=1 // pred_fallthru
      _
    // Predicated region
    $region14: #{tpu_custom_call.1} parent=1 // pred_check
      _
    $region15: #{tpu_custom_call.1} parent=1 // pred_check_branch
      %48 = sbr.rel (0) target = $region17
    $region16: #{tpu_custom_call.1} parent=1 // pred_region
      %s50 = ssub.s32 8192, 8192
      %51 = vsyncadd [#allocation3], %s50
      %s52 = sshll.u32 [#allocation6], 4
      %s53 = int_to_ptr.vmem [resolvable:$true] %s52
      %58 = dma.hbm_to_vmem [thread:$0]  %s3, 8192, %s53, [#allocation3], 512, 512, 32
    $region17: #{tpu_custom_call.1} parent=1 // pred_fallthru
      _
    // Predicated region
    $region18: #{tpu_custom_call.1} parent=1 // pred_check
      _
    $region19: #{tpu_custom_call.1} parent=1 // pred_check_branch
      %60 = sbr.rel (0) target = $region21
    $region20: #{tpu_custom_call.1} parent=1 // pred_region
      %s62 = ssub.s32 8192, 8192
      %63 = vsyncadd [#allocation8], %s62
      %s64 = sshll.u32 [#allocation7], 4
      %s65 = int_to_ptr.vmem [resolvable:$true] %s64
      %70 = dma.hbm_to_vmem [thread:$0]  %s4, 8192, %s65, [#allocation8], 512, 512, 32
    $region21: #{tpu_custom_call.1} parent=1 // pred_fallthru
      _
    // Predicated region
    $region22: #{tpu_custom_call.1} parent=1 // pred_check
      _
    $region23: #{tpu_custom_call.1} parent=1 // pred_check_branch
      %72 = sbr.rel (0) target = $region25
    $region24: #{tpu_custom_call.1} parent=1 // pred_region
      _
    $region25: #{tpu_custom_call.1} parent=1 // pred_fallthru
      _
    // Predicated region
    $region26: #{tpu_custom_call.1} parent=1 // pred_check
      _
    $region27: #{tpu_custom_call.1} parent=1 // pred_check_branch
      %74 = sbr.rel (0) target = $region29
    $region28: #{tpu_custom_call.1} parent=1 // pred_region
      %s76 = ssub.s32 8192, 8192
      %77 = vsyncadd [#allocation8], %s76
      %s78 = sshll.u32 [#allocation9], 4
      %s79 = int_to_ptr.vmem [resolvable:$true] %s78
      %84 = dma.hbm_to_vmem [thread:$0]  %s6, 8192, %s79, [#allocation8], 512, 512, 32
    $region29: #{tpu_custom_call.1} parent=1 // pred_fallthru
      _
    // Predicated region
    $region30: #{tpu_custom_call.1} parent=1 // pred_check
      _
    $region31: #{tpu_custom_call.1} parent=1 // pred_check_branch
      %86 = sbr.rel (0) target = $region33
    $region32: #{tpu_custom_call.1} parent=1 // pred_region
      %s88 = ssub.s32 8192, 8192
      %89 = vsyncadd [#allocation11], %s88
      %s90 = sshll.u32 [#allocation10], 4
      %s91 = int_to_ptr.vmem [resolvable:$true] %s90
      %96 = dma.hbm_to_vmem [thread:$0]  %s7, 8192, %s91, [#allocation11], 512, 512, 32
    $region33: #{tpu_custom_call.1} parent=1 // pred_fallthru
      _
    // Predicated region
    $region34: #{tpu_custom_call.1} parent=1 // pred_check
      _
    $region35: #{tpu_custom_call.1} parent=1 // pred_check_branch
      %98 = sbr.rel (0) target = $region37
    $region36: #{tpu_custom_call.1} parent=1 // pred_region
      _
    $region37: #{tpu_custom_call.1} parent=1 // pred_fallthru
      _
    // Predicated region
    $region38: #{tpu_custom_call.1} parent=1 // pred_check
      _
    $region39: #{tpu_custom_call.1} parent=1 // pred_check_branch
      %100 = sbr.rel (0) target = $region41
    $region40: #{tpu_custom_call.1} parent=1 // pred_region
      %s102 = ssub.s32 8192, 8192
      %103 = vsyncadd [#allocation11], %s102
      %s104 = sshll.u32 [#allocation12], 4
      %s105 = int_to_ptr.vmem [resolvable:$true] %s104
      %110 = dma.hbm_to_vmem [thread:$0]  %s9, 8192, %s105, [#allocation11], 512, 512, 32
    $region41: #{tpu_custom_call.1} parent=1 // pred_fallthru
      _
    // Predicated region
    $region42: #{tpu_custom_call.1} parent=1 // pred_check
      _
    $region43: #{tpu_custom_call.1} parent=1 // pred_check_branch
      %112 = sbr.rel (0) target = $region45
    $region44: #{tpu_custom_call.1} parent=1 // pred_region
      %s114 = ssub.s32 8192, 8192
      %115 = vsyncadd [#allocation14], %s114
      %s116 = sshll.u32 [#allocation13], 4
      %s117 = int_to_ptr.vmem [resolvable:$true] %s116
      %122 = dma.hbm_to_vmem [thread:$0]  %s10, 8192, %s117, [#allocation14], 512, 512, 32
    $region45: #{tpu_custom_call.1} parent=1 // pred_fallthru
      _
    // Predicated region
    $region46: #{tpu_custom_call.1} parent=1 // pred_check
      _
    $region47: #{tpu_custom_call.1} parent=1 // pred_check_branch
      %124 = sbr.rel (0) target = $region49
    $region48: #{tpu_custom_call.1} parent=1 // pred_region
      _
    $region49: #{tpu_custom_call.1} parent=1 // pred_fallthru
      _
    // Predicated region
    $region50: #{tpu_custom_call.1} parent=1 // pred_check
      _
    $region51: #{tpu_custom_call.1} parent=1 // pred_check_branch
      %126 = sbr.rel (0) target = $region53
    $region52: #{tpu_custom_call.1} parent=1 // pred_region
      %s128 = ssub.s32 8192, 8192
      %129 = vsyncadd [#allocation14], %s128
      %s130 = sshll.u32 [#allocation15], 4
      %s131 = int_to_ptr.vmem [resolvable:$true] %s130
      %136 = dma.hbm_to_vmem [thread:$0]  %s12, 8192, %s131, [#allocation14], 512, 512, 32
    $region53: #{tpu_custom_call.1} parent=1 // pred_fallthru
      _
    // Predicated region
    $region54: #{tpu_custom_call.1} parent=1 // pred_check
      _
    $region55: #{tpu_custom_call.1} parent=1 // pred_check_branch
      %138 = sbr.rel (0) target = $region57
    $region56: #{tpu_custom_call.1} parent=1 // pred_region
      %s140 = ssub.s32 8192, 8192
      %141 = vsyncadd [#allocation17], %s140
      %s142 = sshll.u32 [#allocation16], 4
      %s143 = int_to_ptr.vmem [resolvable:$true] %s142
      %148 = dma.hbm_to_vmem [thread:$0]  %s13, 8192, %s143, [#allocation17], 512, 512, 32
    $region57: #{tpu_custom_call.1} parent=1 // pred_fallthru
      _
    // Predicated region
    $region58: #{tpu_custom_call.1} parent=1 // pred_check
      _
    $region59: #{tpu_custom_call.1} parent=1 // pred_check_branch
      %150 = sbr.rel (0) target = $region61
    $region60: #{tpu_custom_call.1} parent=1 // pred_region
      _
    $region61: #{tpu_custom_call.1} parent=1 // pred_fallthru
      _
    // Predicated region
    $region62: #{tpu_custom_call.1} parent=1 // pred_check
      _
    $region63: #{tpu_custom_call.1} parent=1 // pred_check_branch
      %152 = sbr.rel (0) target = $region65
    $region64: #{tpu_custom_call.1} parent=1 // pred_region
      %s154 = ssub.s32 16384, 16384
      %155 = vsyncadd [#allocation17], %s154
      %s156 = sshll.u32 [#allocation18], 4
      %s157 = int_to_ptr.vmem [resolvable:$true] %s156
      %162 = dma.hbm_to_vmem [thread:$0]  %s15, 16384, %s157, [#allocation17], 512, 512, 32
    $region65: #{tpu_custom_call.1} parent=1 // pred_fallthru
      _
    // Predicated region
    $region66: #{tpu_custom_call.1} parent=1 // pred_check
      _
    $region67: #{tpu_custom_call.1} parent=1 // pred_check_branch
      %164 = sbr.rel (0) target = $region69
    $region68: #{tpu_custom_call.1} parent=1 // pred_region
      %s166 = ssub.s32 8192, 8192
      %167 = vsyncadd [#allocation20], %s166
      %s168 = sshll.u32 [#allocation19], 4
      %s169 = int_to_ptr.vmem [resolvable:$true] %s168
      %174 = dma.hbm_to_vmem [thread:$0]  %s16, 8192, %s169, [#allocation20], 512, 512, 32
    $region69: #{tpu_custom_call.1} parent=1 // pred_fallthru
      _
    // Predicated region
    $region70: #{tpu_custom_call.1} parent=1 // pred_check
      _
    $region71: #{tpu_custom_call.1} parent=1 // pred_check_branch
      %176 = sbr.rel (0) target = $region73
    $region72: #{tpu_custom_call.1} parent=1 // pred_region
      _
    $region73: #{tpu_custom_call.1} parent=1 // pred_fallthru
      _
    // Predicated region
    $region74: #{tpu_custom_call.1} parent=1 // pred_check
      _
    $region75: #{tpu_custom_call.1} parent=1 // pred_check_branch
      %178 = sbr.rel (0) target = $region77
    $region76: #{tpu_custom_call.1} parent=1 // pred_region
      _
    $region77: #{tpu_custom_call.1} parent=1 // pred_fallthru
      _
    // Predicated region
    $region78: #{tpu_custom_call.1} parent=1 // pred_check
      _
    $region79: #{tpu_custom_call.1} parent=1 // pred_check_branch
      %180 = sbr.rel (0) target = $region81
    $region80: #{tpu_custom_call.1} parent=1 // pred_region
      _
    $region81: #{tpu_custom_call.1} parent=1 // pred_fallthru
      _
    // Predicated region
    $region82: #{tpu_custom_call.1} parent=1 // pred_check
      _
    $region83: #{tpu_custom_call.1} parent=1 // pred_check_branch
      %182 = sbr.rel (0) target = $region85
    $region84: #{tpu_custom_call.1} parent=1 // pred_region
      %183 = dma.done [#allocation5], 16
    $region85: #{tpu_custom_call.1} parent=1 // pred_fallthru
      _
    // Predicated region
    $region86: #{tpu_custom_call.1} parent=1 // pred_check
      _
    $region87: #{tpu_custom_call.1} parent=1 // pred_check_branch
      %185 = sbr.rel (0) target = $region89
    $region88: #{tpu_custom_call.1} parent=1 // pred_region
      %186 = dma.done [#allocation3], 8192
    $region89: #{tpu_custom_call.1} parent=1 // pred_fallthru
      _
    // Predicated region
    $region90: #{tpu_custom_call.1} parent=1 // pred_check
      _
    $region91: #{tpu_custom_call.1} parent=1 // pred_check_branch
      %188 = sbr.rel (0) target = $region93
    $region92: #{tpu_custom_call.1} parent=1 // pred_region
      %189 = dma.done [#allocation8], 8192
    $region93: #{tpu_custom_call.1} parent=1 // pred_fallthru
      _
    // Predicated region
    $region94: #{tpu_custom_call.1} parent=1 // pred_check
      _
    $region95: #{tpu_custom_call.1} parent=1 // pred_check_branch
      %191 = sbr.rel (0) target = $region97
    $region96: #{tpu_custom_call.1} parent=1 // pred_region
      %192 = dma.done [#allocation8], 8192
    $region97: #{tpu_custom_call.1} parent=1 // pred_fallthru
      _
    // Predicated region
    $region98: #{tpu_custom_call.1} parent=1 // pred_check
      _
    $region99: #{tpu_custom_call.1} parent=1 // pred_check_branch
      %194 = sbr.rel (0) target = $region101
    $region100: #{tpu_custom_call.1} parent=1 // pred_region
      %195 = dma.done [#allocation11], 8192
    $region101: #{tpu_custom_call.1} parent=1 // pred_fallthru
      _
    // Predicated region
    $region102: #{tpu_custom_call.1} parent=1 // pred_check
      _
    $region103: #{tpu_custom_call.1} parent=1 // pred_check_branch
      %197 = sbr.rel (0) target = $region105
    $region104: #{tpu_custom_call.1} parent=1 // pred_region
      %198 = dma.done [#allocation11], 8192
    $region105: #{tpu_custom_call.1} parent=1 // pred_fallthru
      _
    // Predicated region
    $region106: #{tpu_custom_call.1} parent=1 // pred_check
      _
    $region107: #{tpu_custom_call.1} parent=1 // pred_check_branch
      %200 = sbr.rel (0) target = $region109
    $region108: #{tpu_custom_call.1} parent=1 // pred_region
      %201 = dma.done [#allocation14], 8192
    $region109: #{tpu_custom_call.1} parent=1 // pred_fallthru
      _
    // Predicated region
    $region110: #{tpu_custom_call.1} parent=1 // pred_check
      _
    $region111: #{tpu_custom_call.1} parent=1 // pred_check_branch
      %203 = sbr.rel (0) target = $region113
    $region112: #{tpu_custom_call.1} parent=1 // pred_region
      %204 = dma.done [#allocation14], 8192
    $region113: #{tpu_custom_call.1} parent=1 // pred_fallthru
      _
    // Predicated region
    $region114: #{tpu_custom_call.1} parent=1 // pred_check
      _
    $region115: #{tpu_custom_call.1} parent=1 // pred_check_branch
      %206 = sbr.rel (0) target = $region117
    $region116: #{tpu_custom_call.1} parent=1 // pred_region
      %207 = dma.done [#allocation17], 8192
    $region117: #{tpu_custom_call.1} parent=1 // pred_fallthru
      _
    // Predicated region
    $region118: #{tpu_custom_call.1} parent=1 // pred_check
      _
    $region119: #{tpu_custom_call.1} parent=1 // pred_check_branch
      %209 = sbr.rel (0) target = $region121
    $region120: #{tpu_custom_call.1} parent=1 // pred_region
      %210 = dma.done [#allocation17], 16384
    $region121: #{tpu_custom_call.1} parent=1 // pred_fallthru
      _
    // Predicated region
    $region122: #{tpu_custom_call.1} parent=1 // pred_check
      _
    $region123: #{tpu_custom_call.1} parent=1 // pred_check_branch
      %212 = sbr.rel (0) target = $region125
    $region124: #{tpu_custom_call.1} parent=1 // pred_region
      %213 = dma.done [#allocation20], 8192
    $region125: #{tpu_custom_call.1} parent=1 // pred_fallthru
      _
    %214 = sfence
    %v215 = vld [vmem:[%s1] sm:$0xff]
    %v216 = vld [vmem:[%s2] sm:$0xff]
    %v217 = vld [vmem:[#allocation6] sm:$0xff]
    %v218 = vld [vmem:[#allocation6 + $0x8] sm:$0xff]
    %v219 = vld [vmem:[#allocation6 + $0x10] sm:$0xff]
    %v220 = vld [vmem:[#allocation6 + $0x18] sm:$0xff]
    %v221 = vld [vmem:[#allocation6 + $0x20] sm:$0xff]
    %v222 = vld [vmem:[#allocation6 + $0x28] sm:$0xff]
    %v223 = vld [vmem:[#allocation6 + $0x30] sm:$0xff]
    %v224 = vld [vmem:[#allocation6 + $0x38] sm:$0xff]
    %v225 = vld [vmem:[#allocation6 + $0x40] sm:$0xff]
    %v226 = vld [vmem:[#allocation6 + $0x48] sm:$0xff]
    %v227 = vld [vmem:[#allocation6 + $0x50] sm:$0xff]
    %v228 = vld [vmem:[#allocation6 + $0x58] sm:$0xff]
    %v229 = vld [vmem:[#allocation6 + $0x60] sm:$0xff]
    %v230 = vld [vmem:[#allocation6 + $0x68] sm:$0xff]
    %v231 = vld [vmem:[#allocation6 + $0x70] sm:$0xff]
    %v232 = vld [vmem:[#allocation6 + $0x78] sm:$0xff]
    %v233 = vld [vmem:[#allocation6 + $0x80] sm:$0xff]
    %v234 = vld [vmem:[#allocation6 + $0x88] sm:$0xff]
    %v235 = vld [vmem:[#allocation6 + $0x90] sm:$0xff]
    %v236 = vld [vmem:[#allocation6 + $0x98] sm:$0xff]
    %v237 = vld [vmem:[#allocation6 + $0xa0] sm:$0xff]
    %v238 = vld [vmem:[#allocation6 + $0xa8] sm:$0xff]
    %v239 = vld [vmem:[#allocation6 + $0xb0] sm:$0xff]
    %v240 = vld [vmem:[#allocation6 + $0xb8] sm:$0xff]
    %v241 = vld [vmem:[#allocation6 + $0xc0] sm:$0xff]
    %v242 = vld [vmem:[#allocation6 + $0xc8] sm:$0xff]
    %v243 = vld [vmem:[#allocation6 + $0xd0] sm:$0xff]
    %v244 = vld [vmem:[#allocation6 + $0xd8] sm:$0xff]
    %v245 = vld [vmem:[#allocation6 + $0xe0] sm:$0xff]
    %v246 = vld [vmem:[#allocation6 + $0xe8] sm:$0xff]
    %v247 = vld [vmem:[#allocation6 + $0xf0] sm:$0xff]
    %v248 = vld [vmem:[#allocation6 + $0xf8] sm:$0xff]
    %v249 = vld [vmem:[#allocation6 + $0x100] sm:$0xff]
    %v250 = vld [vmem:[#allocation6 + $0x108] sm:$0xff]
    %v251 = vld [vmem:[#allocation6 + $0x110] sm:$0xff]
    %v252 = vld [vmem:[#allocation6 + $0x118] sm:$0xff]
    %v253 = vld [vmem:[#allocation6 + $0x120] sm:$0xff]
    %v254 = vld [vmem:[#allocation6 + $0x128] sm:$0xff]
    %v255 = vld [vmem:[#allocation6 + $0x130] sm:$0xff]
    %v256 = vld [vmem:[#allocation6 + $0x138] sm:$0xff]
    %v257 = vld [vmem:[#allocation6 + $0x140] sm:$0xff]
    %v258 = vld [vmem:[#allocation6 + $0x148] sm:$0xff]
    %v259 = vld [vmem:[#allocation6 + $0x150] sm:$0xff]
    %v260 = vld [vmem:[#allocation6 + $0x158] sm:$0xff]
    %v261 = vld [vmem:[#allocation6 + $0x160] sm:$0xff]
    %v262 = vld [vmem:[#allocation6 + $0x168] sm:$0xff]
    %v263 = vld [vmem:[#allocation6 + $0x170] sm:$0xff]
    %v264 = vld [vmem:[#allocation6 + $0x178] sm:$0xff]
    %v265 = vld [vmem:[#allocation6 + $0x180] sm:$0xff]
    %v266 = vld [vmem:[#allocation6 + $0x188] sm:$0xff]
    %v267 = vld [vmem:[#allocation6 + $0x190] sm:$0xff]
    %v268 = vld [vmem:[#allocation6 + $0x198] sm:$0xff]
    %v269 = vld [vmem:[#allocation6 + $0x1a0] sm:$0xff]
    %v270 = vld [vmem:[#allocation6 + $0x1a8] sm:$0xff]
    %v271 = vld [vmem:[#allocation6 + $0x1b0] sm:$0xff]
    %v272 = vld [vmem:[#allocation6 + $0x1b8] sm:$0xff]
    %v273 = vld [vmem:[#allocation6 + $0x1c0] sm:$0xff]
    %v274 = vld [vmem:[#allocation6 + $0x1c8] sm:$0xff]
    %v275 = vld [vmem:[#allocation6 + $0x1d0] sm:$0xff]
    %v276 = vld [vmem:[#allocation6 + $0x1d8] sm:$0xff]
    %v277 = vld [vmem:[#allocation6 + $0x1e0] sm:$0xff]
    %v278 = vld [vmem:[#allocation6 + $0x1e8] sm:$0xff]
    %v279 = vld [vmem:[#allocation6 + $0x1f0] sm:$0xff]
    %v280 = vld [vmem:[#allocation6 + $0x1f8] sm:$0xff]
    %v281 = vld [vmem:[#allocation7] sm:$0xff]
    %v282 = vld [vmem:[#allocation7 + $0x8] sm:$0xff]
    %v283 = vld [vmem:[#allocation7 + $0x10] sm:$0xff]
    %v284 = vld [vmem:[#allocation7 + $0x18] sm:$0xff]
    %v285 = vld [vmem:[#allocation7 + $0x20] sm:$0xff]
    %v286 = vld [vmem:[#allocation7 + $0x28] sm:$0xff]
    %v287 = vld [vmem:[#allocation7 + $0x30] sm:$0xff]
    %v288 = vld [vmem:[#allocation7 + $0x38] sm:$0xff]
    %v289 = vld [vmem:[#allocation7 + $0x40] sm:$0xff]
    %v290 = vld [vmem:[#allocation7 + $0x48] sm:$0xff]
    %v291 = vld [vmem:[#allocation7 + $0x50] sm:$0xff]
    %v292 = vld [vmem:[#allocation7 + $0x58] sm:$0xff]
    %v293 = vld [vmem:[#allocation7 + $0x60] sm:$0xff]
    %v294 = vld [vmem:[#allocation7 + $0x68] sm:$0xff]
    %v295 = vld [vmem:[#allocation7 + $0x70] sm:$0xff]
    %v296 = vld [vmem:[#allocation7 + $0x78] sm:$0xff]
    %v297 = vld [vmem:[#allocation7 + $0x80] sm:$0xff]
    %v298 = vld [vmem:[#allocation7 + $0x88] sm:$0xff]
    %v299 = vld [vmem:[#allocation7 + $0x90] sm:$0xff]
    %v300 = vld [vmem:[#allocation7 + $0x98] sm:$0xff]
    %v301 = vld [vmem:[#allocation7 + $0xa0] sm:$0xff]
    %v302 = vld [vmem:[#allocation7 + $0xa8] sm:$0xff]
    %v303 = vld [vmem:[#allocation7 + $0xb0] sm:$0xff]
    %v304 = vld [vmem:[#allocation7 + $0xb8] sm:$0xff]
    %v305 = vld [vmem:[#allocation7 + $0xc0] sm:$0xff]
    %v306 = vld [vmem:[#allocation7 + $0xc8] sm:$0xff]
    %v307 = vld [vmem:[#allocation7 + $0xd0] sm:$0xff]
    %v308 = vld [vmem:[#allocation7 + $0xd8] sm:$0xff]
    %v309 = vld [vmem:[#allocation7 + $0xe0] sm:$0xff]
    %v310 = vld [vmem:[#allocation7 + $0xe8] sm:$0xff]
    %v311 = vld [vmem:[#allocation7 + $0xf0] sm:$0xff]
    %v312 = vld [vmem:[#allocation7 + $0xf8] sm:$0xff]
    %v313 = vld [vmem:[#allocation7 + $0x100] sm:$0xff]
    %v314 = vld [vmem:[#allocation7 + $0x108] sm:$0xff]
    %v315 = vld [vmem:[#allocation7 + $0x110] sm:$0xff]
    %v316 = vld [vmem:[#allocation7 + $0x118] sm:$0xff]
    %v317 = vld [vmem:[#allocation7 + $0x120] sm:$0xff]
    %v318 = vld [vmem:[#allocation7 + $0x128] sm:$0xff]
    %v319 = vld [vmem:[#allocation7 + $0x130] sm:$0xff]
    %v320 = vld [vmem:[#allocation7 + $0x138] sm:$0xff]
    %v321 = vld [vmem:[#allocation7 + $0x140] sm:$0xff]
    %v322 = vld [vmem:[#allocation7 + $0x148] sm:$0xff]
    %v323 = vld [vmem:[#allocation7 + $0x150] sm:$0xff]
    %v324 = vld [vmem:[#allocation7 + $0x158] sm:$0xff]
    %v325 = vld [vmem:[#allocation7 + $0x160] sm:$0xff]
    %v326 = vld [vmem:[#allocation7 + $0x168] sm:$0xff]
    %v327 = vld [vmem:[#allocation7 + $0x170] sm:$0xff]
    %v328 = vld [vmem:[#allocation7 + $0x178] sm:$0xff]
    %v329 = vld [vmem:[#allocation7 + $0x180] sm:$0xff]
    %v330 = vld [vmem:[#allocation7 + $0x188] sm:$0xff]
    %v331 = vld [vmem:[#allocation7 + $0x190] sm:$0xff]
    %v332 = vld [vmem:[#allocation7 + $0x198] sm:$0xff]
    %v333 = vld [vmem:[#allocation7 + $0x1a0] sm:$0xff]
    %v334 = vld [vmem:[#allocation7 + $0x1a8] sm:$0xff]
    %v335 = vld [vmem:[#allocation7 + $0x1b0] sm:$0xff]
    %v336 = vld [vmem:[#allocation7 + $0x1b8] sm:$0xff]
    %v337 = vld [vmem:[#allocation7 + $0x1c0] sm:$0xff]
    %v338 = vld [vmem:[#allocation7 + $0x1c8] sm:$0xff]
    %v339 = vld [vmem:[#allocation7 + $0x1d0] sm:$0xff]
    %v340 = vld [vmem:[#allocation7 + $0x1d8] sm:$0xff]
    %v341 = vld [vmem:[#allocation7 + $0x1e0] sm:$0xff]
    %v342 = vld [vmem:[#allocation7 + $0x1e8] sm:$0xff]
    %v343 = vld [vmem:[#allocation7 + $0x1f0] sm:$0xff]
    %v344 = vld [vmem:[#allocation7 + $0x1f8] sm:$0xff]
    %v345 = vld [vmem:[%s5] sm:$0xf]
    %v346 = vld [vmem:[#allocation9] sm:$0xff]
    %v347 = vld [vmem:[#allocation9 + $0x8] sm:$0xff]
    %v348 = vld [vmem:[#allocation9 + $0x10] sm:$0xff]
    %v349 = vld [vmem:[#allocation9 + $0x18] sm:$0xff]
    %v350 = vld [vmem:[#allocation9 + $0x20] sm:$0xff]
    %v351 = vld [vmem:[#allocation9 + $0x28] sm:$0xff]
    %v352 = vld [vmem:[#allocation9 + $0x30] sm:$0xff]
    %v353 = vld [vmem:[#allocation9 + $0x38] sm:$0xff]
    %v354 = vld [vmem:[#allocation9 + $0x40] sm:$0xff]
    %v355 = vld [vmem:[#allocation9 + $0x48] sm:$0xff]
    %v356 = vld [vmem:[#allocation9 + $0x50] sm:$0xff]
    %v357 = vld [vmem:[#allocation9 + $0x58] sm:$0xff]
    %v358 = vld [vmem:[#allocation9 + $0x60] sm:$0xff]
    %v359 = vld [vmem:[#allocation9 + $0x68] sm:$0xff]
    %v360 = vld [vmem:[#allocation9 + $0x70] sm:$0xff]
    %v361 = vld [vmem:[#allocation9 + $0x78] sm:$0xff]
    %v362 = vld [vmem:[#allocation9 + $0x80] sm:$0xff]
    %v363 = vld [vmem:[#allocation9 + $0x88] sm:$0xff]
    %v364 = vld [vmem:[#allocation9 + $0x90] sm:$0xff]
    %v365 = vld [vmem:[#allocation9 + $0x98] sm:$0xff]
    %v366 = vld [vmem:[#allocation9 + $0xa0] sm:$0xff]
    %v367 = vld [vmem:[#allocation9 + $0xa8] sm:$0xff]
    %v368 = vld [vmem:[#allocation9 + $0xb0] sm:$0xff]
    %v369 = vld [vmem:[#allocation9 + $0xb8] sm:$0xff]
    %v370 = vld [vmem:[#allocation9 + $0xc0] sm:$0xff]
    %v371 = vld [vmem:[#allocation9 + $0xc8] sm:$0xff]
    %v372 = vld [vmem:[#allocation9 + $0xd0] sm:$0xff]
    %v373 = vld [vmem:[#allocation9 + $0xd8] sm:$0xff]
    %v374 = vld [vmem:[#allocation9 + $0xe0] sm:$0xff]
    %v375 = vld [vmem:[#allocation9 + $0xe8] sm:$0xff]
    %v376 = vld [vmem:[#allocation9 + $0xf0] sm:$0xff]
    %v377 = vld [vmem:[#allocation9 + $0xf8] sm:$0xff]
    %v378 = vld [vmem:[#allocation9 + $0x100] sm:$0xff]
    %v379 = vld [vmem:[#allocation9 + $0x108] sm:$0xff]
    %v380 = vld [vmem:[#allocation9 + $0x110] sm:$0xff]
    %v381 = vld [vmem:[#allocation9 + $0x118] sm:$0xff]
    %v382 = vld [vmem:[#allocation9 + $0x120] sm:$0xff]
    %v383 = vld [vmem:[#allocation9 + $0x128] sm:$0xff]
    %v384 = vld [vmem:[#allocation9 + $0x130] sm:$0xff]
    %v385 = vld [vmem:[#allocation9 + $0x138] sm:$0xff]
    %v386 = vld [vmem:[#allocation9 + $0x140] sm:$0xff]
    %v387 = vld [vmem:[#allocation9 + $0x148] sm:$0xff]
    %v388 = vld [vmem:[#allocation9 + $0x150] sm:$0xff]
    %v389 = vld [vmem:[#allocation9 + $0x158] sm:$0xff]
    %v390 = vld [vmem:[#allocation9 + $0x160] sm:$0xff]
    %v391 = vld [vmem:[#allocation9 + $0x168] sm:$0xff]
    %v392 = vld [vmem:[#allocation9 + $0x170] sm:$0xff]
    %v393 = vld [vmem:[#allocation9 + $0x178] sm:$0xff]
    %v394 = vld [vmem:[#allocation9 + $0x180] sm:$0xff]
    %v395 = vld [vmem:[#allocation9 + $0x188] sm:$0xff]
    %v396 = vld [vmem:[#allocation9 + $0x190] sm:$0xff]
    %v397 = vld [vmem:[#allocation9 + $0x198] sm:$0xff]
    %v398 = vld [vmem:[#allocation9 + $0x1a0] sm:$0xff]
    %v399 = vld [vmem:[#allocation9 + $0x1a8] sm:$0xff]
    %v400 = vld [vmem:[#allocation9 + $0x1b0] sm:$0xff]
    %v401 = vld [vmem:[#allocation9 + $0x1b8] sm:$0xff]
    %v402 = vld [vmem:[#allocation9 + $0x1c0] sm:$0xff]
    %v403 = vld [vmem:[#allocation9 + $0x1c8] sm:$0xff]
    %v404 = vld [vmem:[#allocation9 + $0x1d0] sm:$0xff]
    %v405 = vld [vmem:[#allocation9 + $0x1d8] sm:$0xff]
    %v406 = vld [vmem:[#allocation9 + $0x1e0] sm:$0xff]
    %v407 = vld [vmem:[#allocation9 + $0x1e8] sm:$0xff]
    %v408 = vld [vmem:[#allocation9 + $0x1f0] sm:$0xff]
    %v409 = vld [vmem:[#allocation9 + $0x1f8] sm:$0xff]
    %v410 = vld [vmem:[#allocation10] sm:$0xff]
    %v411 = vld [vmem:[#allocation10 + $0x8] sm:$0xff]
    %v412 = vld [vmem:[#allocation10 + $0x10] sm:$0xff]
    %v413 = vld [vmem:[#allocation10 + $0x18] sm:$0xff]
    %v414 = vld [vmem:[#allocation10 + $0x20] sm:$0xff]
    %v415 = vld [vmem:[#allocation10 + $0x28] sm:$0xff]
    %v416 = vld [vmem:[#allocation10 + $0x30] sm:$0xff]
    %v417 = vld [vmem:[#allocation10 + $0x38] sm:$0xff]
    %v418 = vld [vmem:[#allocation10 + $0x40] sm:$0xff]
    %v419 = vld [vmem:[#allocation10 + $0x48] sm:$0xff]
    %v420 = vld [vmem:[#allocation10 + $0x50] sm:$0xff]
    %v421 = vld [vmem:[#allocation10 + $0x58] sm:$0xff]
    %v422 = vld [vmem:[#allocation10 + $0x60] sm:$0xff]
    %v423 = vld [vmem:[#allocation10 + $0x68] sm:$0xff]
    %v424 = vld [vmem:[#allocation10 + $0x70] sm:$0xff]
    %v425 = vld [vmem:[#allocation10 + $0x78] sm:$0xff]
    %v426 = vld [vmem:[#allocation10 + $0x80] sm:$0xff]
    %v427 = vld [vmem:[#allocation10 + $0x88] sm:$0xff]
    %v428 = vld [vmem:[#allocation10 + $0x90] sm:$0xff]
    %v429 = vld [vmem:[#allocation10 + $0x98] sm:$0xff]
    %v430 = vld [vmem:[#allocation10 + $0xa0] sm:$0xff]
    %v431 = vld [vmem:[#allocation10 + $0xa8] sm:$0xff]
    %v432 = vld [vmem:[#allocation10 + $0xb0] sm:$0xff]
    %v433 = vld [vmem:[#allocation10 + $0xb8] sm:$0xff]
    %v434 = vld [vmem:[#allocation10 + $0xc0] sm:$0xff]
    %v435 = vld [vmem:[#allocation10 + $0xc8] sm:$0xff]
    %v436 = vld [vmem:[#allocation10 + $0xd0] sm:$0xff]
    %v437 = vld [vmem:[#allocation10 + $0xd8] sm:$0xff]
    %v438 = vld [vmem:[#allocation10 + $0xe0] sm:$0xff]
    %v439 = vld [vmem:[#allocation10 + $0xe8] sm:$0xff]
    %v440 = vld [vmem:[#allocation10 + $0xf0] sm:$0xff]
    %v441 = vld [vmem:[#allocation10 + $0xf8] sm:$0xff]
    %v442 = vld [vmem:[#allocation10 + $0x100] sm:$0xff]
    %v443 = vld [vmem:[#allocation10 + $0x108] sm:$0xff]
    %v444 = vld [vmem:[#allocation10 + $0x110] sm:$0xff]
    %v445 = vld [vmem:[#allocation10 + $0x118] sm:$0xff]
    %v446 = vld [vmem:[#allocation10 + $0x120] sm:$0xff]
    %v447 = vld [vmem:[#allocation10 + $0x128] sm:$0xff]
    %v448 = vld [vmem:[#allocation10 + $0x130] sm:$0xff]
    %v449 = vld [vmem:[#allocation10 + $0x138] sm:$0xff]
    %v450 = vld [vmem:[#allocation10 + $0x140] sm:$0xff]
    %v451 = vld [vmem:[#allocation10 + $0x148] sm:$0xff]
    %v452 = vld [vmem:[#allocation10 + $0x150] sm:$0xff]
    %v453 = vld [vmem:[#allocation10 + $0x158] sm:$0xff]
    %v454 = vld [vmem:[#allocation10 + $0x160] sm:$0xff]
    %v455 = vld [vmem:[#allocation10 + $0x168] sm:$0xff]
    %v456 = vld [vmem:[#allocation10 + $0x170] sm:$0xff]
    %v457 = vld [vmem:[#allocation10 + $0x178] sm:$0xff]
    %v458 = vld [vmem:[#allocation10 + $0x180] sm:$0xff]
    %v459 = vld [vmem:[#allocation10 + $0x188] sm:$0xff]
    %v460 = vld [vmem:[#allocation10 + $0x190] sm:$0xff]
    %v461 = vld [vmem:[#allocation10 + $0x198] sm:$0xff]
    %v462 = vld [vmem:[#allocation10 + $0x1a0] sm:$0xff]
    %v463 = vld [vmem:[#allocation10 + $0x1a8] sm:$0xff]
    %v464 = vld [vmem:[#allocation10 + $0x1b0] sm:$0xff]
    %v465 = vld [vmem:[#allocation10 + $0x1b8] sm:$0xff]
    %v466 = vld [vmem:[#allocation10 + $0x1c0] sm:$0xff]
    %v467 = vld [vmem:[#allocation10 + $0x1c8] sm:$0xff]
    %v468 = vld [vmem:[#allocation10 + $0x1d0] sm:$0xff]
    %v469 = vld [vmem:[#allocation10 + $0x1d8] sm:$0xff]
    %v470 = vld [vmem:[#allocation10 + $0x1e0] sm:$0xff]
    %v471 = vld [vmem:[#allocation10 + $0x1e8] sm:$0xff]
    %v472 = vld [vmem:[#allocation10 + $0x1f0] sm:$0xff]
    %v473 = vld [vmem:[#allocation10 + $0x1f8] sm:$0xff]
    %v474 = vld [vmem:[%s8] sm:$0xf]
    %v476 = vlaneseq
    %v477 = vshrl.u32 %v476, 7
    %v478 = vsub.s32 0, %v477
    %v479 = vrot.slane %v345, %v478
    %v480 = vlaneseq
    %v481 = vshrl.u32 %v480, 7
    %v482 = vsub.s32 1, %v481
    %v483 = vrot.slane %v345, %v482
    %v484 = vlaneseq
    %v485 = vshrl.u32 %v484, 7
    %v486 = vsub.s32 2, %v485
    %v487 = vrot.slane %v345, %v486
    %v488 = vlaneseq
    %v489 = vshrl.u32 %v488, 7
    %v490 = vsub.s32 3, %v489
    %v491 = vrot.slane %v345, %v490
    %496 = vmatprep.subr.mxu0 %v218
    %497 = vmatpush1.msra.mxu0 %v217
    %498 = vmatprep.subr.mxu0 %v222
    %499 = vmatpush1.msra.mxu0 %v221
    %500 = vmatprep.subr.mxu0 %v226
    %501 = vmatpush1.msra.mxu0 %v225
    %502 = vmatprep.subr.mxu0 %v230
    %503 = vmatpush1.msra.mxu0 %v229
    %504 = vmatprep.subr.mxu0 %v234
    %505 = vmatpush1.msra.mxu0 %v233
    %506 = vmatprep.subr.mxu0 %v238
    %507 = vmatpush1.msra.mxu0 %v237
    %508 = vmatprep.subr.mxu0 %v242
    %509 = vmatpush1.msra.mxu0 %v241
    %510 = vmatprep.subr.mxu0 %v246
    %511 = vmatpush1.msra.mxu0 %v245
    %512 = vmatprep.subr.mxu0 %v250
    %513 = vmatpush1.msra.mxu0 %v249
    %514 = vmatprep.subr.mxu0 %v254
    %515 = vmatpush1.msra.mxu0 %v253
    %516 = vmatprep.subr.mxu0 %v258
    %517 = vmatpush1.msra.mxu0 %v257
    %518 = vmatprep.subr.mxu0 %v262
    %519 = vmatpush1.msra.mxu0 %v261
    %520 = vmatprep.subr.mxu0 %v266
    %521 = vmatpush1.msra.mxu0 %v265
    %522 = vmatprep.subr.mxu0 %v270
    %523 = vmatpush1.msra.mxu0 %v269
    %524 = vmatprep.subr.mxu0 %v274
    %525 = vmatpush1.msra.mxu0 %v273
    %526 = vmatprep.subr.mxu0 %v278
    %527 = vmatpush1.msra.mxu0 %v277
    %528 = vmatprep.subr.mxu0 0.0
    %529 = vmatpush1.msra.mxu0 0.0
    %530 = vmatprep.subr.mxu0 0.0
    %531 = vmatpush1.msra.mxu0 0.0
    %532 = vmatprep.subr.mxu0 0.0
    %533 = vmatpush1.msra.mxu0 0.0
    %534 = vmatprep.subr.mxu0 0.0
    %535 = vmatpush1.msra.mxu0 0.0
    %536 = vmatprep.subr.mxu0 0.0
    %537 = vmatpush1.msra.mxu0 0.0
    %538 = vmatprep.subr.mxu0 0.0
    %539 = vmatpush1.msra.mxu0 0.0
    %540 = vmatprep.subr.mxu0 0.0
    %541 = vmatpush1.msra.mxu0 0.0
    %542 = vmatprep.subr.mxu0 0.0
    %543 = vmatpush1.msra.mxu0 0.0
    %544 = vmatprep.subr.mxu0 0.0
    %545 = vmatpush1.msra.mxu0 0.0
    %546 = vmatprep.subr.mxu0 0.0
    %547 = vmatpush1.msra.mxu0 0.0
    %548 = vmatprep.subr.mxu0 0.0
    %549 = vmatpush1.msra.mxu0 0.0
    %550 = vmatprep.subr.mxu0 0.0
    %551 = vmatpush1.msra.mxu0 0.0
    %552 = vmatprep.subr.mxu0 0.0
    %553 = vmatpush1.msra.mxu0 0.0
    %554 = vmatprep.subr.mxu0 0.0
    %555 = vmatpush1.msra.mxu0 0.0
    %556 = vmatprep.subr.mxu0 0.0
    %557 = vmatpush1.msra.mxu0 0.0
    %558 = vmatprep.subr.mxu0 0.0
    %559 = vmatpush1.msra.mxu0 0.0
    %560 = vmatprep.mubr.f32.mxu0 0.0
    %561 = vmatmul.mubr.f32.gmra.mrb[0].mxu0 %v215
    %v562 = vpop.f32.mrb[0].mxu0
    %v563 = vadd.f32 %v479, %v562
    %v564 = vpop.f32.mrb[0].mxu0
    %v565 = vadd.f32 %v483, %v564
    %566 = vdwg.mxu0
    %567 = vmatprep.subr.mxu0 %v220
    %568 = vmatpush1.msra.mxu0 %v219
    %569 = vmatprep.subr.mxu0 %v224
    %570 = vmatpush1.msra.mxu0 %v223
    %571 = vmatprep.subr.mxu0 %v228
    %572 = vmatpush1.msra.mxu0 %v227
    %573 = vmatprep.subr.mxu0 %v232
    %574 = vmatpush1.msra.mxu0 %v231
    %575 = vmatprep.subr.mxu0 %v236
    %576 = vmatpush1.msra.mxu0 %v235
    %577 = vmatprep.subr.mxu0 %v240
    %578 = vmatpush1.msra.mxu0 %v239
    %579 = vmatprep.subr.mxu0 %v244
    %580 = vmatpush1.msra.mxu0 %v243
    %581 = vmatprep.subr.mxu0 %v248
    %582 = vmatpush1.msra.mxu0 %v247
    %583 = vmatprep.subr.mxu0 %v252
    %584 = vmatpush1.msra.mxu0 %v251
    %585 = vmatprep.subr.mxu0 %v256
    %586 = vmatpush1.msra.mxu0 %v255
    %587 = vmatprep.subr.mxu0 %v260
    %588 = vmatpush1.msra.mxu0 %v259
    %589 = vmatprep.subr.mxu0 %v264
    %590 = vmatpush1.msra.mxu0 %v263
    %591 = vmatprep.subr.mxu0 %v268
    %592 = vmatpush1.msra.mxu0 %v267
    %593 = vmatprep.subr.mxu0 %v272
    %594 = vmatpush1.msra.mxu0 %v271
    %595 = vmatprep.subr.mxu0 %v276
    %596 = vmatpush1.msra.mxu0 %v275
    %597 = vmatprep.subr.mxu0 %v280
    %598 = vmatpush1.msra.mxu0 %v279
    %599 = vmatprep.subr.mxu0 0.0
    %600 = vmatpush1.msra.mxu0 0.0
    %601 = vmatprep.subr.mxu0 0.0
    %602 = vmatpush1.msra.mxu0 0.0
    %603 = vmatprep.subr.mxu0 0.0
    %604 = vmatpush1.msra.mxu0 0.0
    %605 = vmatprep.subr.mxu0 0.0
    %606 = vmatpush1.msra.mxu0 0.0
    %607 = vmatprep.subr.mxu0 0.0
    %608 = vmatpush1.msra.mxu0 0.0
    %609 = vmatprep.subr.mxu0 0.0
    %610 = vmatpush1.msra.mxu0 0.0
    %611 = vmatprep.subr.mxu0 0.0
    %612 = vmatpush1.msra.mxu0 0.0
    %613 = vmatprep.subr.mxu0 0.0
    %614 = vmatpush1.msra.mxu0 0.0
    %615 = vmatprep.subr.mxu0 0.0
    %616 = vmatpush1.msra.mxu0 0.0
    %617 = vmatprep.subr.mxu0 0.0
    %618 = vmatpush1.msra.mxu0 0.0
    %619 = vmatprep.subr.mxu0 0.0
    %620 = vmatpush1.msra.mxu0 0.0
    %621 = vmatprep.subr.mxu0 0.0
    %622 = vmatpush1.msra.mxu0 0.0
    %623 = vmatprep.subr.mxu0 0.0
    %624 = vmatpush1.msra.mxu0 0.0
    %625 = vmatprep.subr.mxu0 0.0
    %626 = vmatpush1.msra.mxu0 0.0
    %627 = vmatprep.subr.mxu0 0.0
    %628 = vmatpush1.msra.mxu0 0.0
    %629 = vmatprep.subr.mxu0 0.0
    %630 = vmatpush1.msra.mxu0 0.0
    %631 = vmatprep.mubr.f32.mxu0 0.0
    %632 = vmatmul.mubr.f32.gmra.mrb[0].mxu0 %v215
    %v633 = vpop.f32.mrb[0].mxu0
    %v634 = vadd.f32 %v487, %v633
    %v635 = vpop.f32.mrb[0].mxu0
    %v636 = vadd.f32 %v491, %v635
    %637 = vdwg.mxu0
    %v639 = vlaneseq
    %v640 = vshrl.u32 %v639, 7
    %v641 = vsub.s32 0, %v640
    %v642 = vrot.slane %v474, %v641
    %v643 = vlaneseq
    %v644 = vshrl.u32 %v643, 7
    %v645 = vsub.s32 1, %v644
    %v646 = vrot.slane %v474, %v645
    %v647 = vlaneseq
    %v648 = vshrl.u32 %v647, 7
    %v649 = vsub.s32 2, %v648
    %v650 = vrot.slane %v474, %v649
    %v651 = vlaneseq
    %v652 = vshrl.u32 %v651, 7
    %v653 = vsub.s32 3, %v652
    %v654 = vrot.slane %v474, %v653
    %659 = vmatprep.subr.mxu0 %v347
    %660 = vmatpush1.msra.mxu0 %v346
    %661 = vmatprep.subr.mxu0 %v351
    %662 = vmatpush1.msra.mxu0 %v350
    %663 = vmatprep.subr.mxu0 %v355
    %664 = vmatpush1.msra.mxu0 %v354
    %665 = vmatprep.subr.mxu0 %v359
    %666 = vmatpush1.msra.mxu0 %v358
    %667 = vmatprep.subr.mxu0 %v363
    %668 = vmatpush1.msra.mxu0 %v362
    %669 = vmatprep.subr.mxu0 %v367
    %670 = vmatpush1.msra.mxu0 %v366
    %671 = vmatprep.subr.mxu0 %v371
    %672 = vmatpush1.msra.mxu0 %v370
    %673 = vmatprep.subr.mxu0 %v375
    %674 = vmatpush1.msra.mxu0 %v374
    %675 = vmatprep.subr.mxu0 %v379
    %676 = vmatpush1.msra.mxu0 %v378
    %677 = vmatprep.subr.mxu0 %v383
    %678 = vmatpush1.msra.mxu0 %v382
    %679 = vmatprep.subr.mxu0 %v387
    %680 = vmatpush1.msra.mxu0 %v386
    %681 = vmatprep.subr.mxu0 %v391
    %682 = vmatpush1.msra.mxu0 %v390
    %683 = vmatprep.subr.mxu0 %v395
    %684 = vmatpush1.msra.mxu0 %v394
    %685 = vmatprep.subr.mxu0 %v399
    %686 = vmatpush1.msra.mxu0 %v398
    %687 = vmatprep.subr.mxu0 %v403
    %688 = vmatpush1.msra.mxu0 %v402
    %689 = vmatprep.subr.mxu0 %v407
    %690 = vmatpush1.msra.mxu0 %v406
    %691 = vmatprep.subr.mxu0 0.0
    %692 = vmatpush1.msra.mxu0 0.0
    %693 = vmatprep.subr.mxu0 0.0
    %694 = vmatpush1.msra.mxu0 0.0
    %695 = vmatprep.subr.mxu0 0.0
    %696 = vmatpush1.msra.mxu0 0.0
    %697 = vmatprep.subr.mxu0 0.0
    %698 = vmatpush1.msra.mxu0 0.0
    %699 = vmatprep.subr.mxu0 0.0
    %700 = vmatpush1.msra.mxu0 0.0
    %701 = vmatprep.subr.mxu0 0.0
    %702 = vmatpush1.msra.mxu0 0.0
    %703 = vmatprep.subr.mxu0 0.0
    %704 = vmatpush1.msra.mxu0 0.0
    %705 = vmatprep.subr.mxu0 0.0
    %706 = vmatpush1.msra.mxu0 0.0
    %707 = vmatprep.subr.mxu0 0.0
    %708 = vmatpush1.msra.mxu0 0.0
    %709 = vmatprep.subr.mxu0 0.0
    %710 = vmatpush1.msra.mxu0 0.0
    %711 = vmatprep.subr.mxu0 0.0
    %712 = vmatpush1.msra.mxu0 0.0
    %713 = vmatprep.subr.mxu0 0.0
    %714 = vmatpush1.msra.mxu0 0.0
    %715 = vmatprep.subr.mxu0 0.0
    %716 = vmatpush1.msra.mxu0 0.0
    %717 = vmatprep.subr.mxu0 0.0
    %718 = vmatpush1.msra.mxu0 0.0
    %719 = vmatprep.subr.mxu0 0.0
    %720 = vmatpush1.msra.mxu0 0.0
    %721 = vmatprep.subr.mxu0 0.0
    %722 = vmatpush1.msra.mxu0 0.0
    %723 = vmatprep.mubr.f32.mxu0 0.0
    %724 = vmatmul.mubr.f32.gmra.mrb[0].mxu0 %v216
    %v725 = vpop.f32.mrb[0].mxu0
    %v726 = vadd.f32 %v642, %v725
    %v727 = vpop.f32.mrb[0].mxu0
    %v728 = vadd.f32 %v646, %v727
    %729 = vdwg.mxu0
    %730 = vmatprep.subr.mxu0 %v349
    %731 = vmatpush1.msra.mxu0 %v348
    %732 = vmatprep.subr.mxu0 %v353
    %733 = vmatpush1.msra.mxu0 %v352
    %734 = vmatprep.subr.mxu0 %v357
    %735 = vmatpush1.msra.mxu0 %v356
    %736 = vmatprep.subr.mxu0 %v361
    %737 = vmatpush1.msra.mxu0 %v360
    %738 = vmatprep.subr.mxu0 %v365
    %739 = vmatpush1.msra.mxu0 %v364
    %740 = vmatprep.subr.mxu0 %v369
    %741 = vmatpush1.msra.mxu0 %v368
    %742 = vmatprep.subr.mxu0 %v373
    %743 = vmatpush1.msra.mxu0 %v372
    %744 = vmatprep.subr.mxu0 %v377
    %745 = vmatpush1.msra.mxu0 %v376
    %746 = vmatprep.subr.mxu0 %v381
    %747 = vmatpush1.msra.mxu0 %v380
    %748 = vmatprep.subr.mxu0 %v385
    %749 = vmatpush1.msra.mxu0 %v384
    %750 = vmatprep.subr.mxu0 %v389
    %751 = vmatpush1.msra.mxu0 %v388
    %752 = vmatprep.subr.mxu0 %v393
    %753 = vmatpush1.msra.mxu0 %v392
    %754 = vmatprep.subr.mxu0 %v397
    %755 = vmatpush1.msra.mxu0 %v396
    %756 = vmatprep.subr.mxu0 %v401
    %757 = vmatpush1.msra.mxu0 %v400
    %758 = vmatprep.subr.mxu0 %v405
    %759 = vmatpush1.msra.mxu0 %v404
    %760 = vmatprep.subr.mxu0 %v409
    %761 = vmatpush1.msra.mxu0 %v408
    %762 = vmatprep.subr.mxu0 0.0
    %763 = vmatpush1.msra.mxu0 0.0
    %764 = vmatprep.subr.mxu0 0.0
    %765 = vmatpush1.msra.mxu0 0.0
    %766 = vmatprep.subr.mxu0 0.0
    %767 = vmatpush1.msra.mxu0 0.0
    %768 = vmatprep.subr.mxu0 0.0
    %769 = vmatpush1.msra.mxu0 0.0
    %770 = vmatprep.subr.mxu0 0.0
    %771 = vmatpush1.msra.mxu0 0.0
    %772 = vmatprep.subr.mxu0 0.0
    %773 = vmatpush1.msra.mxu0 0.0
    %774 = vmatprep.subr.mxu0 0.0
    %775 = vmatpush1.msra.mxu0 0.0
    %776 = vmatprep.subr.mxu0 0.0
    %777 = vmatpush1.msra.mxu0 0.0
    %778 = vmatprep.subr.mxu0 0.0
    %779 = vmatpush1.msra.mxu0 0.0
    %780 = vmatprep.subr.mxu0 0.0
    %781 = vmatpush1.msra.mxu0 0.0
    %782 = vmatprep.subr.mxu0 0.0
    %783 = vmatpush1.msra.mxu0 0.0
    %784 = vmatprep.subr.mxu0 0.0
    %785 = vmatpush1.msra.mxu0 0.0
    %786 = vmatprep.subr.mxu0 0.0
    %787 = vmatpush1.msra.mxu0 0.0
    %788 = vmatprep.subr.mxu0 0.0
    %789 = vmatpush1.msra.mxu0 0.0
    %790 = vmatprep.subr.mxu0 0.0
    %791 = vmatpush1.msra.mxu0 0.0
    %792 = vmatprep.subr.mxu0 0.0
    %793 = vmatpush1.msra.mxu0 0.0
    %794 = vmatprep.mubr.f32.mxu0 0.0
    %795 = vmatmul.mubr.f32.gmra.mrb[0].mxu0 %v216
    %v796 = vpop.f32.mrb[0].mxu0
    %v797 = vadd.f32 %v650, %v796
    %v798 = vpop.f32.mrb[0].mxu0
    %v799 = vadd.f32 %v654, %v798
    %800 = vdwg.mxu0
    %801 = vmatprep.subr.mxu0 %v282
    %802 = vmatpush1.msra.mxu0 %v281
    %803 = vmatprep.subr.mxu0 %v286
    %804 = vmatpush1.msra.mxu0 %v285
    %805 = vmatprep.subr.mxu0 %v290
    %806 = vmatpush1.msra.mxu0 %v289
    %807 = vmatprep.subr.mxu0 %v294
    %808 = vmatpush1.msra.mxu0 %v293
    %809 = vmatprep.subr.mxu0 %v298
    %810 = vmatpush1.msra.mxu0 %v297
    %811 = vmatprep.subr.mxu0 %v302
    %812 = vmatpush1.msra.mxu0 %v301
    %813 = vmatprep.subr.mxu0 %v306
    %814 = vmatpush1.msra.mxu0 %v305
    %815 = vmatprep.subr.mxu0 %v310
    %816 = vmatpush1.msra.mxu0 %v309
    %817 = vmatprep.subr.mxu0 %v314
    %818 = vmatpush1.msra.mxu0 %v313
    %819 = vmatprep.subr.mxu0 %v318
    %820 = vmatpush1.msra.mxu0 %v317
    %821 = vmatprep.subr.mxu0 %v322
    %822 = vmatpush1.msra.mxu0 %v321
    %823 = vmatprep.subr.mxu0 %v326
    %824 = vmatpush1.msra.mxu0 %v325
    %825 = vmatprep.subr.mxu0 %v330
    %826 = vmatpush1.msra.mxu0 %v329
    %827 = vmatprep.subr.mxu0 %v334
    %828 = vmatpush1.msra.mxu0 %v333
    %829 = vmatprep.subr.mxu0 %v338
    %830 = vmatpush1.msra.mxu0 %v337
    %831 = vmatprep.subr.mxu0 %v342
    %832 = vmatpush1.msra.mxu0 %v341
    %833 = vmatprep.subr.mxu0 0.0
    %834 = vmatpush1.msra.mxu0 0.0
    %835 = vmatprep.subr.mxu0 0.0
    %836 = vmatpush1.msra.mxu0 0.0
    %837 = vmatprep.subr.mxu0 0.0
    %838 = vmatpush1.msra.mxu0 0.0
    %839 = vmatprep.subr.mxu0 0.0
    %840 = vmatpush1.msra.mxu0 0.0
    %841 = vmatprep.subr.mxu0 0.0
    %842 = vmatpush1.msra.mxu0 0.0
    %843 = vmatprep.subr.mxu0 0.0
    %844 = vmatpush1.msra.mxu0 0.0
    %845 = vmatprep.subr.mxu0 0.0
    %846 = vmatpush1.msra.mxu0 0.0
    %847 = vmatprep.subr.mxu0 0.0
    %848 = vmatpush1.msra.mxu0 0.0
    %849 = vmatprep.subr.mxu0 0.0
    %850 = vmatpush1.msra.mxu0 0.0
    %851 = vmatprep.subr.mxu0 0.0
    %852 = vmatpush1.msra.mxu0 0.0
    %853 = vmatprep.subr.mxu0 0.0
    %854 = vmatpush1.msra.mxu0 0.0
    %855 = vmatprep.subr.mxu0 0.0
    %856 = vmatpush1.msra.mxu0 0.0
    %857 = vmatprep.subr.mxu0 0.0
    %858 = vmatpush1.msra.mxu0 0.0
    %859 = vmatprep.subr.mxu0 0.0
    %860 = vmatpush1.msra.mxu0 0.0
    %861 = vmatprep.subr.mxu0 0.0
    %862 = vmatpush1.msra.mxu0 0.0
    %863 = vmatprep.subr.mxu0 0.0
    %864 = vmatpush1.msra.mxu0 0.0
    %865 = vmatprep.mubr.f32.mxu0 0.0
    %866 = vmatmul.mubr.f32.gmra.mrb[0].mxu0 0.0
    %v867 = vpop.f32.mrb[0].mxu0
    %v868 = vadd.f32 %v563, %v867
    %v869 = vpop.f32.mrb[0].mxu0
    %v870 = vadd.f32 %v565, %v869
    %871 = vdwg.mxu0
    %872 = vmatprep.subr.mxu0 %v284
    %873 = vmatpush1.msra.mxu0 %v283
    %874 = vmatprep.subr.mxu0 %v288
    %875 = vmatpush1.msra.mxu0 %v287
    %876 = vmatprep.subr.mxu0 %v292
    %877 = vmatpush1.msra.mxu0 %v291
    %878 = vmatprep.subr.mxu0 %v296
    %879 = vmatpush1.msra.mxu0 %v295
    %880 = vmatprep.subr.mxu0 %v300
    %881 = vmatpush1.msra.mxu0 %v299
    %882 = vmatprep.subr.mxu0 %v304
    %883 = vmatpush1.msra.mxu0 %v303
    %884 = vmatprep.subr.mxu0 %v308
    %885 = vmatpush1.msra.mxu0 %v307
    %886 = vmatprep.subr.mxu0 %v312
    %887 = vmatpush1.msra.mxu0 %v311
    %888 = vmatprep.subr.mxu0 %v316
    %889 = vmatpush1.msra.mxu0 %v315
    %890 = vmatprep.subr.mxu0 %v320
    %891 = vmatpush1.msra.mxu0 %v319
    %892 = vmatprep.subr.mxu0 %v324
    %893 = vmatpush1.msra.mxu0 %v323
    %894 = vmatprep.subr.mxu0 %v328
    %895 = vmatpush1.msra.mxu0 %v327
    %896 = vmatprep.subr.mxu0 %v332
    %897 = vmatpush1.msra.mxu0 %v331
    %898 = vmatprep.subr.mxu0 %v336
    %899 = vmatpush1.msra.mxu0 %v335
    %900 = vmatprep.subr.mxu0 %v340
    %901 = vmatpush1.msra.mxu0 %v339
    %902 = vmatprep.subr.mxu0 %v344
    %903 = vmatpush1.msra.mxu0 %v343
    %904 = vmatprep.subr.mxu0 0.0
    %905 = vmatpush1.msra.mxu0 0.0
    %906 = vmatprep.subr.mxu0 0.0
    %907 = vmatpush1.msra.mxu0 0.0
    %908 = vmatprep.subr.mxu0 0.0
    %909 = vmatpush1.msra.mxu0 0.0
    %910 = vmatprep.subr.mxu0 0.0
    %911 = vmatpush1.msra.mxu0 0.0
    %912 = vmatprep.subr.mxu0 0.0
    %913 = vmatpush1.msra.mxu0 0.0
    %914 = vmatprep.subr.mxu0 0.0
    %915 = vmatpush1.msra.mxu0 0.0
    %916 = vmatprep.subr.mxu0 0.0
    %917 = vmatpush1.msra.mxu0 0.0
    %918 = vmatprep.subr.mxu0 0.0
    %919 = vmatpush1.msra.mxu0 0.0
    %920 = vmatprep.subr.mxu0 0.0
    %921 = vmatpush1.msra.mxu0 0.0
    %922 = vmatprep.subr.mxu0 0.0
    %923 = vmatpush1.msra.mxu0 0.0
    %924 = vmatprep.subr.mxu0 0.0
    %925 = vmatpush1.msra.mxu0 0.0
    %926 = vmatprep.subr.mxu0 0.0
    %927 = vmatpush1.msra.mxu0 0.0
    %928 = vmatprep.subr.mxu0 0.0
    %929 = vmatpush1.msra.mxu0 0.0
    %930 = vmatprep.subr.mxu0 0.0
    %931 = vmatpush1.msra.mxu0 0.0
    %932 = vmatprep.subr.mxu0 0.0
    %933 = vmatpush1.msra.mxu0 0.0
    %934 = vmatprep.subr.mxu0 0.0
    %935 = vmatpush1.msra.mxu0 0.0
    %936 = vmatprep.mubr.f32.mxu0 0.0
    %937 = vmatmul.mubr.f32.gmra.mrb[0].mxu0 0.0
    %v938 = vpop.f32.mrb[0].mxu0
    %v939 = vadd.f32 %v634, %v938
    %v940 = vpop.f32.mrb[0].mxu0
    %v941 = vadd.f32 %v636, %v940
    %942 = vdwg.mxu0
    %v943 = vxor.u32 %v868, 2147483648
    %v944 = vmul.f32 %v943, 1.442695
    %v945 = vpow.pop %v944
    %v946 = vadd.f32 %v945, 1.0
    %v947 = vrcp.pop %v946
    %v948 = vmul.f32 1.0, %v947
    %v949 = vxor.u32 %v870, 2147483648
    %v950 = vmul.f32 %v949, 1.442695
    %v951 = vpow.pop %v950
    %v952 = vadd.f32 %v951, 1.0
    %v953 = vrcp.pop %v952
    %v954 = vmul.f32 1.0, %v953
    %v955 = vtanh.pop %v939
    %v956 = vxor.u32 %v941, 2147483648
    %v957 = vmul.f32 %v956, 1.442695
    %v958 = vpow.pop %v957
    %v959 = vadd.f32 %v958, 1.0
    %v960 = vrcp.pop %v959
    %v961 = vmul.f32 1.0, %v960
    %v962 = vmul.f32 %v954, 0.0
    %v963 = vmul.f32 %v948, %v955
    %v964 = vadd.f32 %v962, %v963
    %v965 = vtanh.pop %v964
    %v966 = vmul.f32 %v961, %v965
    %967 = vmatprep.subr.mxu0 %v411
    %968 = vmatpush1.msra.mxu0 %v410
    %969 = vmatprep.subr.mxu0 %v415
    %970 = vmatpush1.msra.mxu0 %v414
    %971 = vmatprep.subr.mxu0 %v419
    %972 = vmatpush1.msra.mxu0 %v418
    %973 = vmatprep.subr.mxu0 %v423
    %974 = vmatpush1.msra.mxu0 %v422
    %975 = vmatprep.subr.mxu0 %v427
    %976 = vmatpush1.msra.mxu0 %v426
    %977 = vmatprep.subr.mxu0 %v431
    %978 = vmatpush1.msra.mxu0 %v430
    %979 = vmatprep.subr.mxu0 %v435
    %980 = vmatpush1.msra.mxu0 %v434
    %981 = vmatprep.subr.mxu0 %v439
    %982 = vmatpush1.msra.mxu0 %v438
    %983 = vmatprep.subr.mxu0 %v443
    %984 = vmatpush1.msra.mxu0 %v442
    %985 = vmatprep.subr.mxu0 %v447
    %986 = vmatpush1.msra.mxu0 %v446
    %987 = vmatprep.subr.mxu0 %v451
    %988 = vmatpush1.msra.mxu0 %v450
    %989 = vmatprep.subr.mxu0 %v455
    %990 = vmatpush1.msra.mxu0 %v454
    %991 = vmatprep.subr.mxu0 %v459
    %992 = vmatpush1.msra.mxu0 %v458
    %993 = vmatprep.subr.mxu0 %v463
    %994 = vmatpush1.msra.mxu0 %v462
    %995 = vmatprep.subr.mxu0 %v467
    %996 = vmatpush1.msra.mxu0 %v466
    %997 = vmatprep.subr.mxu0 %v471
    %998 = vmatpush1.msra.mxu0 %v470
    %999 = vmatprep.subr.mxu0 0.0
    %1000 = vmatpush1.msra.mxu0 0.0
    %1001 = vmatprep.subr.mxu0 0.0
    %1002 = vmatpush1.msra.mxu0 0.0
    %1003 = vmatprep.subr.mxu0 0.0
    %1004 = vmatpush1.msra.mxu0 0.0
    %1005 = vmatprep.subr.mxu0 0.0
    %1006 = vmatpush1.msra.mxu0 0.0
    %1007 = vmatprep.subr.mxu0 0.0
    %1008 = vmatpush1.msra.mxu0 0.0
    %1009 = vmatprep.subr.mxu0 0.0
    %1010 = vmatpush1.msra.mxu0 0.0
    %1011 = vmatprep.subr.mxu0 0.0
    %1012 = vmatpush1.msra.mxu0 0.0
    %1013 = vmatprep.subr.mxu0 0.0
    %1014 = vmatpush1.msra.mxu0 0.0
    %1015 = vmatprep.subr.mxu0 0.0
    %1016 = vmatpush1.msra.mxu0 0.0
    %1017 = vmatprep.subr.mxu0 0.0
    %1018 = vmatpush1.msra.mxu0 0.0
    %1019 = vmatprep.subr.mxu0 0.0
    %1020 = vmatpush1.msra.mxu0 0.0
    %1021 = vmatprep.subr.mxu0 0.0
    %1022 = vmatpush1.msra.mxu0 0.0
    %1023 = vmatprep.subr.mxu0 0.0
    %1024 = vmatpush1.msra.mxu0 0.0
    %1025 = vmatprep.subr.mxu0 0.0
    %1026 = vmatpush1.msra.mxu0 0.0
    %1027 = vmatprep.subr.mxu0 0.0
    %1028 = vmatpush1.msra.mxu0 0.0
    %1029 = vmatprep.subr.mxu0 0.0
    %1030 = vmatpush1.msra.mxu0 0.0
    %1031 = vmatprep.mubr.f32.mxu0 0.0
    %1032 = vmatmul.mubr.f32.gmra.mrb[0].mxu0 0.0
    %v1033 = vpop.f32.mrb[0].mxu0
    %v1034 = vadd.f32 %v726, %v1033
    %v1035 = vpop.f32.mrb[0].mxu0
    %v1036 = vadd.f32 %v728, %v1035
    %1037 = vdwg.mxu0
    %1038 = vmatprep.subr.mxu0 %v413
    %1039 = vmatpush1.msra.mxu0 %v412
    %1040 = vmatprep.subr.mxu0 %v417
    %1041 = vmatpush1.msra.mxu0 %v416
    %1042 = vmatprep.subr.mxu0 %v421
    %1043 = vmatpush1.msra.mxu0 %v420
    %1044 = vmatprep.subr.mxu0 %v425
    %1045 = vmatpush1.msra.mxu0 %v424
    %1046 = vmatprep.subr.mxu0 %v429
    %1047 = vmatpush1.msra.mxu0 %v428
    %1048 = vmatprep.subr.mxu0 %v433
    %1049 = vmatpush1.msra.mxu0 %v432
    %1050 = vmatprep.subr.mxu0 %v437
    %1051 = vmatpush1.msra.mxu0 %v436
    %1052 = vmatprep.subr.mxu0 %v441
    %1053 = vmatpush1.msra.mxu0 %v440
    %1054 = vmatprep.subr.mxu0 %v445
    %1055 = vmatpush1.msra.mxu0 %v444
    %1056 = vmatprep.subr.mxu0 %v449
    %1057 = vmatpush1.msra.mxu0 %v448
    %1058 = vmatprep.subr.mxu0 %v453
    %1059 = vmatpush1.msra.mxu0 %v452
    %1060 = vmatprep.subr.mxu0 %v457
    %1061 = vmatpush1.msra.mxu0 %v456
    %1062 = vmatprep.subr.mxu0 %v461
    %1063 = vmatpush1.msra.mxu0 %v460
    %1064 = vmatprep.subr.mxu0 %v465
    %1065 = vmatpush1.msra.mxu0 %v464
    %1066 = vmatprep.subr.mxu0 %v469
    %1067 = vmatpush1.msra.mxu0 %v468
    %1068 = vmatprep.subr.mxu0 %v473
    %1069 = vmatpush1.msra.mxu0 %v472
    %1070 = vmatprep.subr.mxu0 0.0
    %1071 = vmatpush1.msra.mxu0 0.0
    %1072 = vmatprep.subr.mxu0 0.0
    %1073 = vmatpush1.msra.mxu0 0.0
    %1074 = vmatprep.subr.mxu0 0.0
    %1075 = vmatpush1.msra.mxu0 0.0
    %1076 = vmatprep.subr.mxu0 0.0
    %1077 = vmatpush1.msra.mxu0 0.0
    %1078 = vmatprep.subr.mxu0 0.0
    %1079 = vmatpush1.msra.mxu0 0.0
    %1080 = vmatprep.subr.mxu0 0.0
    %1081 = vmatpush1.msra.mxu0 0.0
    %1082 = vmatprep.subr.mxu0 0.0
    %1083 = vmatpush1.msra.mxu0 0.0
    %1084 = vmatprep.subr.mxu0 0.0
    %1085 = vmatpush1.msra.mxu0 0.0
    %1086 = vmatprep.subr.mxu0 0.0
    %1087 = vmatpush1.msra.mxu0 0.0
    %1088 = vmatprep.subr.mxu0 0.0
    %1089 = vmatpush1.msra.mxu0 0.0
    %1090 = vmatprep.subr.mxu0 0.0
    %1091 = vmatpush1.msra.mxu0 0.0
    %1092 = vmatprep.subr.mxu0 0.0
    %1093 = vmatpush1.msra.mxu0 0.0
    %1094 = vmatprep.subr.mxu0 0.0
    %1095 = vmatpush1.msra.mxu0 0.0
    %1096 = vmatprep.subr.mxu0 0.0
    %1097 = vmatpush1.msra.mxu0 0.0
    %1098 = vmatprep.subr.mxu0 0.0
    %1099 = vmatpush1.msra.mxu0 0.0
    %1100 = vmatprep.subr.mxu0 0.0
    %1101 = vmatpush1.msra.mxu0 0.0
    %1102 = vmatprep.mubr.f32.mxu0 0.0
    %1103 = vmatmul.mubr.f32.gmra.mrb[0].mxu0 0.0
    %v1104 = vpop.f32.mrb[0].mxu0
    %v1105 = vadd.f32 %v797, %v1104
    %v1106 = vpop.f32.mrb[0].mxu0
    %v1107 = vadd.f32 %v799, %v1106
    %1108 = vdwg.mxu0
    %v1109 = vxor.u32 %v1034, 2147483648
    %v1110 = vmul.f32 %v1109, 1.442695
    %v1111 = vpow.pop %v1110
    %v1112 = vadd.f32 %v1111, 1.0
    %v1113 = vrcp.pop %v1112
    %v1114 = vmul.f32 1.0, %v1113
    %v1115 = vxor.u32 %v1036, 2147483648
    %v1116 = vmul.f32 %v1115, 1.442695
    %v1117 = vpow.pop %v1116
    %v1118 = vadd.f32 %v1117, 1.0
    %v1119 = vrcp.pop %v1118
    %v1120 = vmul.f32 1.0, %v1119
    %v1121 = vtanh.pop %v1105
    %v1122 = vxor.u32 %v1107, 2147483648
    %v1123 = vmul.f32 %v1122, 1.442695
    %v1124 = vpow.pop %v1123
    %v1125 = vadd.f32 %v1124, 1.0
    %v1126 = vrcp.pop %v1125
    %v1127 = vmul.f32 1.0, %v1126
    %v1128 = vmul.f32 %v1120, 0.0
    %v1129 = vmul.f32 %v1114, %v1121
    %v1130 = vadd.f32 %v1128, %v1129
    %v1131 = vtanh.pop %v1130
    %v1132 = vmul.f32 %v1127, %v1131
    %v1137 = vrot.slane %v563, 1
    %v1138 = vrot.slane %v565, 1
    %v1139 = vrot.slane %v634, 1
    %v1140 = vrot.slane %v636, 1
    %1145 = vmatprep.subr.mxu0 %v282
    %1146 = vmatpush1.msra.mxu0 %v281
    %1147 = vmatprep.subr.mxu0 %v286
    %1148 = vmatpush1.msra.mxu0 %v285
    %1149 = vmatprep.subr.mxu0 %v290
    %1150 = vmatpush1.msra.mxu0 %v289
    %1151 = vmatprep.subr.mxu0 %v294
    %1152 = vmatpush1.msra.mxu0 %v293
    %1153 = vmatprep.subr.mxu0 %v298
    %1154 = vmatpush1.msra.mxu0 %v297
    %1155 = vmatprep.subr.mxu0 %v302
    %1156 = vmatpush1.msra.mxu0 %v301
    %1157 = vmatprep.subr.mxu0 %v306
    %1158 = vmatpush1.msra.mxu0 %v305
    %1159 = vmatprep.subr.mxu0 %v310
    %1160 = vmatpush1.msra.mxu0 %v309
    %1161 = vmatprep.subr.mxu0 %v314
    %1162 = vmatpush1.msra.mxu0 %v313
    %1163 = vmatprep.subr.mxu0 %v318
    %1164 = vmatpush1.msra.mxu0 %v317
    %1165 = vmatprep.subr.mxu0 %v322
    %1166 = vmatpush1.msra.mxu0 %v321
    %1167 = vmatprep.subr.mxu0 %v326
    %1168 = vmatpush1.msra.mxu0 %v325
    %1169 = vmatprep.subr.mxu0 %v330
    %1170 = vmatpush1.msra.mxu0 %v329
    %1171 = vmatprep.subr.mxu0 %v334
    %1172 = vmatpush1.msra.mxu0 %v333
    %1173 = vmatprep.subr.mxu0 %v338
    %1174 = vmatpush1.msra.mxu0 %v337
    %1175 = vmatprep.subr.mxu0 %v342
    %1176 = vmatpush1.msra.mxu0 %v341
    %1177 = vmatprep.subr.mxu0 0.0
    %1178 = vmatpush1.msra.mxu0 0.0
    %1179 = vmatprep.subr.mxu0 0.0
    %1180 = vmatpush1.msra.mxu0 0.0
    %1181 = vmatprep.subr.mxu0 0.0
    %1182 = vmatpush1.msra.mxu0 0.0
    %1183 = vmatprep.subr.mxu0 0.0
    %1184 = vmatpush1.msra.mxu0 0.0
    %1185 = vmatprep.subr.mxu0 0.0
    %1186 = vmatpush1.msra.mxu0 0.0
    %1187 = vmatprep.subr.mxu0 0.0
    %1188 = vmatpush1.msra.mxu0 0.0
    %1189 = vmatprep.subr.mxu0 0.0
    %1190 = vmatpush1.msra.mxu0 0.0
    %1191 = vmatprep.subr.mxu0 0.0
    %1192 = vmatpush1.msra.mxu0 0.0
    %1193 = vmatprep.subr.mxu0 0.0
    %1194 = vmatpush1.msra.mxu0 0.0
    %1195 = vmatprep.subr.mxu0 0.0
    %1196 = vmatpush1.msra.mxu0 0.0
    %1197 = vmatprep.subr.mxu0 0.0
    %1198 = vmatpush1.msra.mxu0 0.0
    %1199 = vmatprep.subr.mxu0 0.0
    %1200 = vmatpush1.msra.mxu0 0.0
    %1201 = vmatprep.subr.mxu0 0.0
    %1202 = vmatpush1.msra.mxu0 0.0
    %1203 = vmatprep.subr.mxu0 0.0
    %1204 = vmatpush1.msra.mxu0 0.0
    %1205 = vmatprep.subr.mxu0 0.0
    %1206 = vmatpush1.msra.mxu0 0.0
    %1207 = vmatprep.subr.mxu0 0.0
    %1208 = vmatpush1.msra.mxu0 0.0
    %1209 = vmatprep.mubr.f32.mxu0 0.0
    %1210 = vmatmul.mubr.f32.gmra.mrb[0].mxu0 %v966
    %v1211 = vpop.f32.mrb[0].mxu0
    %v1212 = vadd.f32 %v1137, %v1211
    %v1213 = vpop.f32.mrb[0].mxu0
    %v1214 = vadd.f32 %v1138, %v1213
    %1215 = vdwg.mxu0
    %1216 = vmatprep.subr.mxu0 %v284
    %1217 = vmatpush1.msra.mxu0 %v283
    %1218 = vmatprep.subr.mxu0 %v288
    %1219 = vmatpush1.msra.mxu0 %v287
    %1220 = vmatprep.subr.mxu0 %v292
    %1221 = vmatpush1.msra.mxu0 %v291
    %1222 = vmatprep.subr.mxu0 %v296
    %1223 = vmatpush1.msra.mxu0 %v295
    %1224 = vmatprep.subr.mxu0 %v300
    %1225 = vmatpush1.msra.mxu0 %v299
    %1226 = vmatprep.subr.mxu0 %v304
    %1227 = vmatpush1.msra.mxu0 %v303
    %1228 = vmatprep.subr.mxu0 %v308
    %1229 = vmatpush1.msra.mxu0 %v307
    %1230 = vmatprep.subr.mxu0 %v312
    %1231 = vmatpush1.msra.mxu0 %v311
    %1232 = vmatprep.subr.mxu0 %v316
    %1233 = vmatpush1.msra.mxu0 %v315
    %1234 = vmatprep.subr.mxu0 %v320
    %1235 = vmatpush1.msra.mxu0 %v319
    %1236 = vmatprep.subr.mxu0 %v324
    %1237 = vmatpush1.msra.mxu0 %v323
    %1238 = vmatprep.subr.mxu0 %v328
    %1239 = vmatpush1.msra.mxu0 %v327
    %1240 = vmatprep.subr.mxu0 %v332
    %1241 = vmatpush1.msra.mxu0 %v331
    %1242 = vmatprep.subr.mxu0 %v336
    %1243 = vmatpush1.msra.mxu0 %v335
    %1244 = vmatprep.subr.mxu0 %v340
    %1245 = vmatpush1.msra.mxu0 %v339
    %1246 = vmatprep.subr.mxu0 %v344
    %1247 = vmatpush1.msra.mxu0 %v343
    %1248 = vmatprep.subr.mxu0 0.0
    %1249 = vmatpush1.msra.mxu0 0.0
    %1250 = vmatprep.subr.mxu0 0.0
    %1251 = vmatpush1.msra.mxu0 0.0
    %1252 = vmatprep.subr.mxu0 0.0
    %1253 = vmatpush1.msra.mxu0 0.0
    %1254 = vmatprep.subr.mxu0 0.0
    %1255 = vmatpush1.msra.mxu0 0.0
    %1256 = vmatprep.subr.mxu0 0.0
    %1257 = vmatpush1.msra.mxu0 0.0
    %1258 = vmatprep.subr.mxu0 0.0
    %1259 = vmatpush1.msra.mxu0 0.0
    %1260 = vmatprep.subr.mxu0 0.0
    %1261 = vmatpush1.msra.mxu0 0.0
    %1262 = vmatprep.subr.mxu0 0.0
    %1263 = vmatpush1.msra.mxu0 0.0
    %1264 = vmatprep.subr.mxu0 0.0
    %1265 = vmatpush1.msra.mxu0 0.0
    %1266 = vmatprep.subr.mxu0 0.0
    %1267 = vmatpush1.msra.mxu0 0.0
    %1268 = vmatprep.subr.mxu0 0.0
    %1269 = vmatpush1.msra.mxu0 0.0
    %1270 = vmatprep.subr.mxu0 0.0
    %1271 = vmatpush1.msra.mxu0 0.0
    %1272 = vmatprep.subr.mxu0 0.0
    %1273 = vmatpush1.msra.mxu0 0.0
    %1274 = vmatprep.subr.mxu0 0.0
    %1275 = vmatpush1.msra.mxu0 0.0
    %1276 = vmatprep.subr.mxu0 0.0
    %1277 = vmatpush1.msra.mxu0 0.0
    %1278 = vmatprep.subr.mxu0 0.0
    %1279 = vmatpush1.msra.mxu0 0.0
    %1280 = vmatprep.mubr.f32.mxu0 0.0
    %1281 = vmatmul.mubr.f32.gmra.mrb[0].mxu0 %v966
    %v1282 = vpop.f32.mrb[0].mxu0
    %v1283 = vadd.f32 %v1139, %v1282
    %v1284 = vpop.f32.mrb[0].mxu0
    %v1285 = vadd.f32 %v1140, %v1284
    %1286 = vdwg.mxu0
    %v1287 = vxor.u32 %v1212, 2147483648
    %v1288 = vmul.f32 %v1287, 1.442695
    %v1289 = vpow.pop %v1288
    %v1290 = vadd.f32 %v1289, 1.0
    %v1291 = vrcp.pop %v1290
    %v1292 = vmul.f32 1.0, %v1291
    %v1293 = vxor.u32 %v1214, 2147483648
    %v1294 = vmul.f32 %v1293, 1.442695
    %v1295 = vpow.pop %v1294
    %v1296 = vadd.f32 %v1295, 1.0
    %v1297 = vrcp.pop %v1296
    %v1298 = vmul.f32 1.0, %v1297
    %v1299 = vtanh.pop %v1283
    %v1300 = vxor.u32 %v1285, 2147483648
    %v1301 = vmul.f32 %v1300, 1.442695
    %v1302 = vpow.pop %v1301
    %v1303 = vadd.f32 %v1302, 1.0
    %v1304 = vrcp.pop %v1303
    %v1305 = vmul.f32 1.0, %v1304
    %v1306 = vmul.f32 %v1298, %v964
    %v1307 = vmul.f32 %v1292, %v1299
    %v1308 = vadd.f32 %v1306, %v1307
    %v1309 = vtanh.pop %v1308
    %v1310 = vmul.f32 %v1305, %v1309
    %v1315 = vrot.slane %v726, 1
    %v1316 = vrot.slane %v728, 1
    %v1317 = vrot.slane %v797, 1
    %v1318 = vrot.slane %v799, 1
    %1323 = vmatprep.subr.mxu0 %v411
    %1324 = vmatpush1.msra.mxu0 %v410
    %1325 = vmatprep.subr.mxu0 %v415
    %1326 = vmatpush1.msra.mxu0 %v414
    %1327 = vmatprep.subr.mxu0 %v419
    %1328 = vmatpush1.msra.mxu0 %v418
    %1329 = vmatprep.subr.mxu0 %v423
    %1330 = vmatpush1.msra.mxu0 %v422
    %1331 = vmatprep.subr.mxu0 %v427
    %1332 = vmatpush1.msra.mxu0 %v426
    %1333 = vmatprep.subr.mxu0 %v431
    %1334 = vmatpush1.msra.mxu0 %v430
    %1335 = vmatprep.subr.mxu0 %v435
    %1336 = vmatpush1.msra.mxu0 %v434
    %1337 = vmatprep.subr.mxu0 %v439
    %1338 = vmatpush1.msra.mxu0 %v438
    %1339 = vmatprep.subr.mxu0 %v443
    %1340 = vmatpush1.msra.mxu0 %v442
    %1341 = vmatprep.subr.mxu0 %v447
    %1342 = vmatpush1.msra.mxu0 %v446
    %1343 = vmatprep.subr.mxu0 %v451
    %1344 = vmatpush1.msra.mxu0 %v450
    %1345 = vmatprep.subr.mxu0 %v455
    %1346 = vmatpush1.msra.mxu0 %v454
    %1347 = vmatprep.subr.mxu0 %v459
    %1348 = vmatpush1.msra.mxu0 %v458
    %1349 = vmatprep.subr.mxu0 %v463
    %1350 = vmatpush1.msra.mxu0 %v462
    %1351 = vmatprep.subr.mxu0 %v467
    %1352 = vmatpush1.msra.mxu0 %v466
    %1353 = vmatprep.subr.mxu0 %v471
    %1354 = vmatpush1.msra.mxu0 %v470
    %1355 = vmatprep.subr.mxu0 0.0
    %1356 = vmatpush1.msra.mxu0 0.0
    %1357 = vmatprep.subr.mxu0 0.0
    %1358 = vmatpush1.msra.mxu0 0.0
    %1359 = vmatprep.subr.mxu0 0.0
    %1360 = vmatpush1.msra.mxu0 0.0
    %1361 = vmatprep.subr.mxu0 0.0
    %1362 = vmatpush1.msra.mxu0 0.0
    %1363 = vmatprep.subr.mxu0 0.0
    %1364 = vmatpush1.msra.mxu0 0.0
    %1365 = vmatprep.subr.mxu0 0.0
    %1366 = vmatpush1.msra.mxu0 0.0
    %1367 = vmatprep.subr.mxu0 0.0
    %1368 = vmatpush1.msra.mxu0 0.0
    %1369 = vmatprep.subr.mxu0 0.0
    %1370 = vmatpush1.msra.mxu0 0.0
    %1371 = vmatprep.subr.mxu0 0.0
    %1372 = vmatpush1.msra.mxu0 0.0
    %1373 = vmatprep.subr.mxu0 0.0
    %1374 = vmatpush1.msra.mxu0 0.0
    %1375 = vmatprep.subr.mxu0 0.0
    %1376 = vmatpush1.msra.mxu0 0.0
    %1377 = vmatprep.subr.mxu0 0.0
    %1378 = vmatpush1.msra.mxu0 0.0
    %1379 = vmatprep.subr.mxu0 0.0
    %1380 = vmatpush1.msra.mxu0 0.0
    %1381 = vmatprep.subr.mxu0 0.0
    %1382 = vmatpush1.msra.mxu0 0.0
    %1383 = vmatprep.subr.mxu0 0.0
    %1384 = vmatpush1.msra.mxu0 0.0
    %1385 = vmatprep.subr.mxu0 0.0
    %1386 = vmatpush1.msra.mxu0 0.0
    %1387 = vmatprep.mubr.f32.mxu0 0.0
    %1388 = vmatmul.mubr.f32.gmra.mrb[0].mxu0 %v1132
    %v1389 = vpop.f32.mrb[0].mxu0
    %v1390 = vadd.f32 %v1315, %v1389
    %v1391 = vpop.f32.mrb[0].mxu0
    %v1392 = vadd.f32 %v1316, %v1391
    %1393 = vdwg.mxu0
    %1394 = vmatprep.subr.mxu0 %v413
    %1395 = vmatpush1.msra.mxu0 %v412
    %1396 = vmatprep.subr.mxu0 %v417
    %1397 = vmatpush1.msra.mxu0 %v416
    %1398 = vmatprep.subr.mxu0 %v421
    %1399 = vmatpush1.msra.mxu0 %v420
    %1400 = vmatprep.subr.mxu0 %v425
    %1401 = vmatpush1.msra.mxu0 %v424
    %1402 = vmatprep.subr.mxu0 %v429
    %1403 = vmatpush1.msra.mxu0 %v428
    %1404 = vmatprep.subr.mxu0 %v433
    %1405 = vmatpush1.msra.mxu0 %v432
    %1406 = vmatprep.subr.mxu0 %v437
    %1407 = vmatpush1.msra.mxu0 %v436
    %1408 = vmatprep.subr.mxu0 %v441
    %1409 = vmatpush1.msra.mxu0 %v440
    %1410 = vmatprep.subr.mxu0 %v445
    %1411 = vmatpush1.msra.mxu0 %v444
    %1412 = vmatprep.subr.mxu0 %v449
    %1413 = vmatpush1.msra.mxu0 %v448
    %1414 = vmatprep.subr.mxu0 %v453
    %1415 = vmatpush1.msra.mxu0 %v452
    %1416 = vmatprep.subr.mxu0 %v457
    %1417 = vmatpush1.msra.mxu0 %v456
    %1418 = vmatprep.subr.mxu0 %v461
    %1419 = vmatpush1.msra.mxu0 %v460
    %1420 = vmatprep.subr.mxu0 %v465
    %1421 = vmatpush1.msra.mxu0 %v464
    %1422 = vmatprep.subr.mxu0 %v469
    %1423 = vmatpush1.msra.mxu0 %v468
    %1424 = vmatprep.subr.mxu0 %v473
    %1425 = vmatpush1.msra.mxu0 %v472
    %1426 = vmatprep.subr.mxu0 0.0
    %1427 = vmatpush1.msra.mxu0 0.0
    %1428 = vmatprep.subr.mxu0 0.0
    %1429 = vmatpush1.msra.mxu0 0.0
    %1430 = vmatprep.subr.mxu0 0.0
    %1431 = vmatpush1.msra.mxu0 0.0
    %1432 = vmatprep.subr.mxu0 0.0
    %1433 = vmatpush1.msra.mxu0 0.0
    %1434 = vmatprep.subr.mxu0 0.0
    %1435 = vmatpush1.msra.mxu0 0.0
    %1436 = vmatprep.subr.mxu0 0.0
    %1437 = vmatpush1.msra.mxu0 0.0
    %1438 = vmatprep.subr.mxu0 0.0
    %1439 = vmatpush1.msra.mxu0 0.0
    %1440 = vmatprep.subr.mxu0 0.0
    %1441 = vmatpush1.msra.mxu0 0.0
    %1442 = vmatprep.subr.mxu0 0.0
    %1443 = vmatpush1.msra.mxu0 0.0
    %1444 = vmatprep.subr.mxu0 0.0
    %1445 = vmatpush1.msra.mxu0 0.0
    %1446 = vmatprep.subr.mxu0 0.0
    %1447 = vmatpush1.msra.mxu0 0.0
    %1448 = vmatprep.subr.mxu0 0.0
    %1449 = vmatpush1.msra.mxu0 0.0
    %1450 = vmatprep.subr.mxu0 0.0
    %1451 = vmatpush1.msra.mxu0 0.0
    %1452 = vmatprep.subr.mxu0 0.0
    %1453 = vmatpush1.msra.mxu0 0.0
    %1454 = vmatprep.subr.mxu0 0.0
    %1455 = vmatpush1.msra.mxu0 0.0
    %1456 = vmatprep.subr.mxu0 0.0
    %1457 = vmatpush1.msra.mxu0 0.0
    %1458 = vmatprep.mubr.f32.mxu0 0.0
    %1459 = vmatmul.mubr.f32.gmra.mrb[0].mxu0 %v1132
    %v1460 = vpop.f32.mrb[0].mxu0
    %v1461 = vadd.f32 %v1317, %v1460
    %v1462 = vpop.f32.mrb[0].mxu0
    %v1463 = vadd.f32 %v1318, %v1462
    %1464 = vdwg.mxu0
    %v1465 = vxor.u32 %v1390, 2147483648
    %v1466 = vmul.f32 %v1465, 1.442695
    %v1467 = vpow.pop %v1466
    %v1468 = vadd.f32 %v1467, 1.0
    %v1469 = vrcp.pop %v1468
    %v1470 = vmul.f32 1.0, %v1469
    %v1471 = vxor.u32 %v1392, 2147483648
    %v1472 = vmul.f32 %v1471, 1.442695
    %v1473 = vpow.pop %v1472
    %v1474 = vadd.f32 %v1473, 1.0
    %v1475 = vrcp.pop %v1474
    %v1476 = vmul.f32 1.0, %v1475
    %v1477 = vtanh.pop %v1461
    %v1478 = vxor.u32 %v1463, 2147483648
    %v1479 = vmul.f32 %v1478, 1.442695
    %v1480 = vpow.pop %v1479
    %v1481 = vadd.f32 %v1480, 1.0
    %v1482 = vrcp.pop %v1481
    %v1483 = vmul.f32 1.0, %v1482
    %v1484 = vmul.f32 %v1476, %v1130
    %v1485 = vmul.f32 %v1470, %v1477
    %v1486 = vadd.f32 %v1484, %v1485
    %v1487 = vtanh.pop %v1486
    %v1488 = vmul.f32 %v1483, %v1487
    %v1489 = vrot.slane %v563, 2
    %v1490 = vrot.slane %v565, 2
    %v1491 = vrot.slane %v634, 2
    %v1492 = vrot.slane %v636, 2
    %1497 = vmatprep.subr.mxu0 %v282
    %1498 = vmatpush1.msra.mxu0 %v281
    %1499 = vmatprep.subr.mxu0 %v286
    %1500 = vmatpush1.msra.mxu0 %v285
    %1501 = vmatprep.subr.mxu0 %v290
    %1502 = vmatpush1.msra.mxu0 %v289
    %1503 = vmatprep.subr.mxu0 %v294
    %1504 = vmatpush1.msra.mxu0 %v293
    %1505 = vmatprep.subr.mxu0 %v298
    %1506 = vmatpush1.msra.mxu0 %v297
    %1507 = vmatprep.subr.mxu0 %v302
    %1508 = vmatpush1.msra.mxu0 %v301
    %1509 = vmatprep.subr.mxu0 %v306
    %1510 = vmatpush1.msra.mxu0 %v305
    %1511 = vmatprep.subr.mxu0 %v310
    %1512 = vmatpush1.msra.mxu0 %v309
    %1513 = vmatprep.subr.mxu0 %v314
    %1514 = vmatpush1.msra.mxu0 %v313
    %1515 = vmatprep.subr.mxu0 %v318
    %1516 = vmatpush1.msra.mxu0 %v317
    %1517 = vmatprep.subr.mxu0 %v322
    %1518 = vmatpush1.msra.mxu0 %v321
    %1519 = vmatprep.subr.mxu0 %v326
    %1520 = vmatpush1.msra.mxu0 %v325
    %1521 = vmatprep.subr.mxu0 %v330
    %1522 = vmatpush1.msra.mxu0 %v329
    %1523 = vmatprep.subr.mxu0 %v334
    %1524 = vmatpush1.msra.mxu0 %v333
    %1525 = vmatprep.subr.mxu0 %v338
    %1526 = vmatpush1.msra.mxu0 %v337
    %1527 = vmatprep.subr.mxu0 %v342
    %1528 = vmatpush1.msra.mxu0 %v341
    %1529 = vmatprep.subr.mxu0 0.0
    %1530 = vmatpush1.msra.mxu0 0.0
    %1531 = vmatprep.subr.mxu0 0.0
    %1532 = vmatpush1.msra.mxu0 0.0
    %1533 = vmatprep.subr.mxu0 0.0
    %1534 = vmatpush1.msra.mxu0 0.0
    %1535 = vmatprep.subr.mxu0 0.0
    %1536 = vmatpush1.msra.mxu0 0.0
    %1537 = vmatprep.subr.mxu0 0.0
    %1538 = vmatpush1.msra.mxu0 0.0
    %1539 = vmatprep.subr.mxu0 0.0
    %1540 = vmatpush1.msra.mxu0 0.0
    %1541 = vmatprep.subr.mxu0 0.0
    %1542 = vmatpush1.msra.mxu0 0.0
    %1543 = vmatprep.subr.mxu0 0.0
    %1544 = vmatpush1.msra.mxu0 0.0
    %1545 = vmatprep.subr.mxu0 0.0
    %1546 = vmatpush1.msra.mxu0 0.0
    %1547 = vmatprep.subr.mxu0 0.0
    %1548 = vmatpush1.msra.mxu0 0.0
    %1549 = vmatprep.subr.mxu0 0.0
    %1550 = vmatpush1.msra.mxu0 0.0
    %1551 = vmatprep.subr.mxu0 0.0
    %1552 = vmatpush1.msra.mxu0 0.0
    %1553 = vmatprep.subr.mxu0 0.0
    %1554 = vmatpush1.msra.mxu0 0.0
    %1555 = vmatprep.subr.mxu0 0.0
    %1556 = vmatpush1.msra.mxu0 0.0
    %1557 = vmatprep.subr.mxu0 0.0
    %1558 = vmatpush1.msra.mxu0 0.0
    %1559 = vmatprep.subr.mxu0 0.0
    %1560 = vmatpush1.msra.mxu0 0.0
    %1561 = vmatprep.mubr.f32.mxu0 0.0
    %1562 = vmatmul.mubr.f32.gmra.mrb[0].mxu0 %v1310
    %v1563 = vpop.f32.mrb[0].mxu0
    %v1564 = vadd.f32 %v1489, %v1563
    %v1565 = vpop.f32.mrb[0].mxu0
    %v1566 = vadd.f32 %v1490, %v1565
    %1567 = vdwg.mxu0
    %1568 = vmatprep.subr.mxu0 %v284
    %1569 = vmatpush1.msra.mxu0 %v283
    %1570 = vmatprep.subr.mxu0 %v288
    %1571 = vmatpush1.msra.mxu0 %v287
    %1572 = vmatprep.subr.mxu0 %v292
    %1573 = vmatpush1.msra.mxu0 %v291
    %1574 = vmatprep.subr.mxu0 %v296
    %1575 = vmatpush1.msra.mxu0 %v295
    %1576 = vmatprep.subr.mxu0 %v300
    %1577 = vmatpush1.msra.mxu0 %v299
    %1578 = vmatprep.subr.mxu0 %v304
    %1579 = vmatpush1.msra.mxu0 %v303
    %1580 = vmatprep.subr.mxu0 %v308
    %1581 = vmatpush1.msra.mxu0 %v307
    %1582 = vmatprep.subr.mxu0 %v312
    %1583 = vmatpush1.msra.mxu0 %v311
    %1584 = vmatprep.subr.mxu0 %v316
    %1585 = vmatpush1.msra.mxu0 %v315
    %1586 = vmatprep.subr.mxu0 %v320
    %1587 = vmatpush1.msra.mxu0 %v319
    %1588 = vmatprep.subr.mxu0 %v324
    %1589 = vmatpush1.msra.mxu0 %v323
    %1590 = vmatprep.subr.mxu0 %v328
    %1591 = vmatpush1.msra.mxu0 %v327
    %1592 = vmatprep.subr.mxu0 %v332
    %1593 = vmatpush1.msra.mxu0 %v331
    %1594 = vmatprep.subr.mxu0 %v336
    %1595 = vmatpush1.msra.mxu0 %v335
    %1596 = vmatprep.subr.mxu0 %v340
    %1597 = vmatpush1.msra.mxu0 %v339
    %1598 = vmatprep.subr.mxu0 %v344
    %1599 = vmatpush1.msra.mxu0 %v343
    %1600 = vmatprep.subr.mxu0 0.0
    %1601 = vmatpush1.msra.mxu0 0.0
    %1602 = vmatprep.subr.mxu0 0.0
    %1603 = vmatpush1.msra.mxu0 0.0
    %1604 = vmatprep.subr.mxu0 0.0
    %1605 = vmatpush1.msra.mxu0 0.0
    %1606 = vmatprep.subr.mxu0 0.0
    %1607 = vmatpush1.msra.mxu0 0.0
    %1608 = vmatprep.subr.mxu0 0.0
    %1609 = vmatpush1.msra.mxu0 0.0
    %1610 = vmatprep.subr.mxu0 0.0
    %1611 = vmatpush1.msra.mxu0 0.0
    %1612 = vmatprep.subr.mxu0 0.0
    %1613 = vmatpush1.msra.mxu0 0.0
    %1614 = vmatprep.subr.mxu0 0.0
    %1615 = vmatpush1.msra.mxu0 0.0
    %1616 = vmatprep.subr.mxu0 0.0
    %1617 = vmatpush1.msra.mxu0 0.0
    %1618 = vmatprep.subr.mxu0 0.0
    %1619 = vmatpush1.msra.mxu0 0.0
    %1620 = vmatprep.subr.mxu0 0.0
    %1621 = vmatpush1.msra.mxu0 0.0
    %1622 = vmatprep.subr.mxu0 0.0
    %1623 = vmatpush1.msra.mxu0 0.0
    %1624 = vmatprep.subr.mxu0 0.0
    %1625 = vmatpush1.msra.mxu0 0.0
    %1626 = vmatprep.subr.mxu0 0.0
    %1627 = vmatpush1.msra.mxu0 0.0
    %1628 = vmatprep.subr.mxu0 0.0
    %1629 = vmatpush1.msra.mxu0 0.0
    %1630 = vmatprep.subr.mxu0 0.0
    %1631 = vmatpush1.msra.mxu0 0.0
    %1632 = vmatprep.mubr.f32.mxu0 0.0
    %1633 = vmatmul.mubr.f32.gmra.mrb[0].mxu0 %v1310
    %v1634 = vpop.f32.mrb[0].mxu0
    %v1635 = vadd.f32 %v1491, %v1634
    %v1636 = vpop.f32.mrb[0].mxu0
    %v1637 = vadd.f32 %v1492, %v1636
    %1638 = vdwg.mxu0
    %v1639 = vxor.u32 %v1564, 2147483648
    %v1640 = vmul.f32 %v1639, 1.442695
    %v1641 = vpow.pop %v1640
    %v1642 = vadd.f32 %v1641, 1.0
    %v1643 = vrcp.pop %v1642
    %v1644 = vmul.f32 1.0, %v1643
    %v1645 = vxor.u32 %v1566, 2147483648
    %v1646 = vmul.f32 %v1645, 1.442695
    %v1647 = vpow.pop %v1646
    %v1648 = vadd.f32 %v1647, 1.0
    %v1649 = vrcp.pop %v1648
    %v1650 = vmul.f32 1.0, %v1649
    %v1651 = vtanh.pop %v1635
    %v1652 = vxor.u32 %v1637, 2147483648
    %v1653 = vmul.f32 %v1652, 1.442695
    %v1654 = vpow.pop %v1653
    %v1655 = vadd.f32 %v1654, 1.0
    %v1656 = vrcp.pop %v1655
    %v1657 = vmul.f32 1.0, %v1656
    %v1658 = vmul.f32 %v1650, %v1308
    %v1659 = vmul.f32 %v1644, %v1651
    %v1660 = vadd.f32 %v1658, %v1659
    %v1661 = vtanh.pop %v1660
    %v1662 = vmul.f32 %v1657, %v1661
    %v1663 = vrot.slane %v726, 2
    %v1664 = vrot.slane %v728, 2
    %v1665 = vrot.slane %v797, 2
    %v1666 = vrot.slane %v799, 2
    %1671 = vmatprep.subr.mxu0 %v411
    %1672 = vmatpush1.msra.mxu0 %v410
    %1673 = vmatprep.subr.mxu0 %v415
    %1674 = vmatpush1.msra.mxu0 %v414
    %1675 = vmatprep.subr.mxu0 %v419
    %1676 = vmatpush1.msra.mxu0 %v418
    %1677 = vmatprep.subr.mxu0 %v423
    %1678 = vmatpush1.msra.mxu0 %v422
    %1679 = vmatprep.subr.mxu0 %v427
    %1680 = vmatpush1.msra.mxu0 %v426
    %1681 = vmatprep.subr.mxu0 %v431
    %1682 = vmatpush1.msra.mxu0 %v430
    %1683 = vmatprep.subr.mxu0 %v435
    %1684 = vmatpush1.msra.mxu0 %v434
    %1685 = vmatprep.subr.mxu0 %v439
    %1686 = vmatpush1.msra.mxu0 %v438
    %1687 = vmatprep.subr.mxu0 %v443
    %1688 = vmatpush1.msra.mxu0 %v442
    %1689 = vmatprep.subr.mxu0 %v447
    %1690 = vmatpush1.msra.mxu0 %v446
    %1691 = vmatprep.subr.mxu0 %v451
    %1692 = vmatpush1.msra.mxu0 %v450
    %1693 = vmatprep.subr.mxu0 %v455
    %1694 = vmatpush1.msra.mxu0 %v454
    %1695 = vmatprep.subr.mxu0 %v459
    %1696 = vmatpush1.msra.mxu0 %v458
    %1697 = vmatprep.subr.mxu0 %v463
    %1698 = vmatpush1.msra.mxu0 %v462
    %1699 = vmatprep.subr.mxu0 %v467
    %1700 = vmatpush1.msra.mxu0 %v466
    %1701 = vmatprep.subr.mxu0 %v471
    %1702 = vmatpush1.msra.mxu0 %v470
    %1703 = vmatprep.subr.mxu0 0.0
    %1704 = vmatpush1.msra.mxu0 0.0
    %1705 = vmatprep.subr.mxu0 0.0
    %1706 = vmatpush1.msra.mxu0 0.0
    %1707 = vmatprep.subr.mxu0 0.0
    %1708 = vmatpush1.msra.mxu0 0.0
    %1709 = vmatprep.subr.mxu0 0.0
    %1710 = vmatpush1.msra.mxu0 0.0
    %1711 = vmatprep.subr.mxu0 0.0
    %1712 = vmatpush1.msra.mxu0 0.0
    %1713 = vmatprep.subr.mxu0 0.0
    %1714 = vmatpush1.msra.mxu0 0.0
    %1715 = vmatprep.subr.mxu0 0.0
    %1716 = vmatpush1.msra.mxu0 0.0
    %1717 = vmatprep.subr.mxu0 0.0
    %1718 = vmatpush1.msra.mxu0 0.0
    %1719 = vmatprep.subr.mxu0 0.0
    %1720 = vmatpush1.msra.mxu0 0.0
    %1721 = vmatprep.subr.mxu0 0.0
    %1722 = vmatpush1.msra.mxu0 0.0
    %1723 = vmatprep.subr.mxu0 0.0
    %1724 = vmatpush1.msra.mxu0 0.0
    %1725 = vmatprep.subr.mxu0 0.0
    %1726 = vmatpush1.msra.mxu0 0.0
    %1727 = vmatprep.subr.mxu0 0.0
    %1728 = vmatpush1.msra.mxu0 0.0
    %1729 = vmatprep.subr.mxu0 0.0
    %1730 = vmatpush1.msra.mxu0 0.0
    %1731 = vmatprep.subr.mxu0 0.0
    %1732 = vmatpush1.msra.mxu0 0.0
    %1733 = vmatprep.subr.mxu0 0.0
    %1734 = vmatpush1.msra.mxu0 0.0
    %1735 = vmatprep.mubr.f32.mxu0 0.0
    %1736 = vmatmul.mubr.f32.gmra.mrb[0].mxu0 %v1488
    %v1737 = vpop.f32.mrb[0].mxu0
    %v1738 = vadd.f32 %v1663, %v1737
    %v1739 = vpop.f32.mrb[0].mxu0
    %v1740 = vadd.f32 %v1664, %v1739
    %1741 = vdwg.mxu0
    %1742 = vmatprep.subr.mxu0 %v413
    %1743 = vmatpush1.msra.mxu0 %v412
    %1744 = vmatprep.subr.mxu0 %v417
    %1745 = vmatpush1.msra.mxu0 %v416
    %1746 = vmatprep.subr.mxu0 %v421
    %1747 = vmatpush1.msra.mxu0 %v420
    %1748 = vmatprep.subr.mxu0 %v425
    %1749 = vmatpush1.msra.mxu0 %v424
    %1750 = vmatprep.subr.mxu0 %v429
    %1751 = vmatpush1.msra.mxu0 %v428
    %1752 = vmatprep.subr.mxu0 %v433
    %1753 = vmatpush1.msra.mxu0 %v432
    %1754 = vmatprep.subr.mxu0 %v437
    %1755 = vmatpush1.msra.mxu0 %v436
    %1756 = vmatprep.subr.mxu0 %v441
    %1757 = vmatpush1.msra.mxu0 %v440
    %1758 = vmatprep.subr.mxu0 %v445
    %1759 = vmatpush1.msra.mxu0 %v444
    %1760 = vmatprep.subr.mxu0 %v449
    %1761 = vmatpush1.msra.mxu0 %v448
    %1762 = vmatprep.subr.mxu0 %v453
    %1763 = vmatpush1.msra.mxu0 %v452
    %1764 = vmatprep.subr.mxu0 %v457
    %1765 = vmatpush1.msra.mxu0 %v456
    %1766 = vmatprep.subr.mxu0 %v461
    %1767 = vmatpush1.msra.mxu0 %v460
    %1768 = vmatprep.subr.mxu0 %v465
    %1769 = vmatpush1.msra.mxu0 %v464
    %1770 = vmatprep.subr.mxu0 %v469
    %1771 = vmatpush1.msra.mxu0 %v468
    %1772 = vmatprep.subr.mxu0 %v473
    %1773 = vmatpush1.msra.mxu0 %v472
    %1774 = vmatprep.subr.mxu0 0.0
    %1775 = vmatpush1.msra.mxu0 0.0
    %1776 = vmatprep.subr.mxu0 0.0
    %1777 = vmatpush1.msra.mxu0 0.0
    %1778 = vmatprep.subr.mxu0 0.0
    %1779 = vmatpush1.msra.mxu0 0.0
    %1780 = vmatprep.subr.mxu0 0.0
    %1781 = vmatpush1.msra.mxu0 0.0
    %1782 = vmatprep.subr.mxu0 0.0
    %1783 = vmatpush1.msra.mxu0 0.0
    %1784 = vmatprep.subr.mxu0 0.0
    %1785 = vmatpush1.msra.mxu0 0.0
    %1786 = vmatprep.subr.mxu0 0.0
    %1787 = vmatpush1.msra.mxu0 0.0
    %1788 = vmatprep.subr.mxu0 0.0
    %1789 = vmatpush1.msra.mxu0 0.0
    %1790 = vmatprep.subr.mxu0 0.0
    %1791 = vmatpush1.msra.mxu0 0.0
    %1792 = vmatprep.subr.mxu0 0.0
    %1793 = vmatpush1.msra.mxu0 0.0
    %1794 = vmatprep.subr.mxu0 0.0
    %1795 = vmatpush1.msra.mxu0 0.0
    %1796 = vmatprep.subr.mxu0 0.0
    %1797 = vmatpush1.msra.mxu0 0.0
    %1798 = vmatprep.subr.mxu0 0.0
    %1799 = vmatpush1.msra.mxu0 0.0
    %1800 = vmatprep.subr.mxu0 0.0
    %1801 = vmatpush1.msra.mxu0 0.0
    %1802 = vmatprep.subr.mxu0 0.0
    %1803 = vmatpush1.msra.mxu0 0.0
    %1804 = vmatprep.subr.mxu0 0.0
    %1805 = vmatpush1.msra.mxu0 0.0
    %1806 = vmatprep.mubr.f32.mxu0 0.0
    %1807 = vmatmul.mubr.f32.gmra.mrb[0].mxu0 %v1488
    %v1808 = vpop.f32.mrb[0].mxu0
    %v1809 = vadd.f32 %v1665, %v1808
    %v1810 = vpop.f32.mrb[0].mxu0
    %v1811 = vadd.f32 %v1666, %v1810
    %1812 = vdwg.mxu0
    %v1813 = vxor.u32 %v1738, 2147483648
    %v1814 = vmul.f32 %v1813, 1.442695
    %v1815 = vpow.pop %v1814
    %v1816 = vadd.f32 %v1815, 1.0
    %v1817 = vrcp.pop %v1816
    %v1818 = vmul.f32 1.0, %v1817
    %v1819 = vxor.u32 %v1740, 2147483648
    %v1820 = vmul.f32 %v1819, 1.442695
    %v1821 = vpow.pop %v1820
    %v1822 = vadd.f32 %v1821, 1.0
    %v1823 = vrcp.pop %v1822
    %v1824 = vmul.f32 1.0, %v1823
    %v1825 = vtanh.pop %v1809
    %v1826 = vxor.u32 %v1811, 2147483648
    %v1827 = vmul.f32 %v1826, 1.442695
    %v1828 = vpow.pop %v1827
    %v1829 = vadd.f32 %v1828, 1.0
    %v1830 = vrcp.pop %v1829
    %v1831 = vmul.f32 1.0, %v1830
    %v1832 = vmul.f32 %v1824, %v1486
    %v1833 = vmul.f32 %v1818, %v1825
    %v1834 = vadd.f32 %v1832, %v1833
    %v1835 = vtanh.pop %v1834
    %v1836 = vmul.f32 %v1831, %v1835
    %v1837 = vrot.slane %v563, 3
    %v1838 = vrot.slane %v565, 3
    %v1839 = vrot.slane %v634, 3
    %v1840 = vrot.slane %v636, 3
    %1845 = vmatprep.subr.mxu0 %v282
    %1846 = vmatpush1.msra.mxu0 %v281
    %1847 = vmatprep.subr.mxu0 %v286
    %1848 = vmatpush1.msra.mxu0 %v285
    %1849 = vmatprep.subr.mxu0 %v290
    %1850 = vmatpush1.msra.mxu0 %v289
    %1851 = vmatprep.subr.mxu0 %v294
    %1852 = vmatpush1.msra.mxu0 %v293
    %1853 = vmatprep.subr.mxu0 %v298
    %1854 = vmatpush1.msra.mxu0 %v297
    %1855 = vmatprep.subr.mxu0 %v302
    %1856 = vmatpush1.msra.mxu0 %v301
    %1857 = vmatprep.subr.mxu0 %v306
    %1858 = vmatpush1.msra.mxu0 %v305
    %1859 = vmatprep.subr.mxu0 %v310
    %1860 = vmatpush1.msra.mxu0 %v309
    %1861 = vmatprep.subr.mxu0 %v314
    %1862 = vmatpush1.msra.mxu0 %v313
    %1863 = vmatprep.subr.mxu0 %v318
    %1864 = vmatpush1.msra.mxu0 %v317
    %1865 = vmatprep.subr.mxu0 %v322
    %1866 = vmatpush1.msra.mxu0 %v321
    %1867 = vmatprep.subr.mxu0 %v326
    %1868 = vmatpush1.msra.mxu0 %v325
    %1869 = vmatprep.subr.mxu0 %v330
    %1870 = vmatpush1.msra.mxu0 %v329
    %1871 = vmatprep.subr.mxu0 %v334
    %1872 = vmatpush1.msra.mxu0 %v333
    %1873 = vmatprep.subr.mxu0 %v338
    %1874 = vmatpush1.msra.mxu0 %v337
    %1875 = vmatprep.subr.mxu0 %v342
    %1876 = vmatpush1.msra.mxu0 %v341
    %1877 = vmatprep.subr.mxu0 0.0
    %1878 = vmatpush1.msra.mxu0 0.0
    %1879 = vmatprep.subr.mxu0 0.0
    %1880 = vmatpush1.msra.mxu0 0.0
    %1881 = vmatprep.subr.mxu0 0.0
    %1882 = vmatpush1.msra.mxu0 0.0
    %1883 = vmatprep.subr.mxu0 0.0
    %1884 = vmatpush1.msra.mxu0 0.0
    %1885 = vmatprep.subr.mxu0 0.0
    %1886 = vmatpush1.msra.mxu0 0.0
    %1887 = vmatprep.subr.mxu0 0.0
    %1888 = vmatpush1.msra.mxu0 0.0
    %1889 = vmatprep.subr.mxu0 0.0
    %1890 = vmatpush1.msra.mxu0 0.0
    %1891 = vmatprep.subr.mxu0 0.0
    %1892 = vmatpush1.msra.mxu0 0.0
    %1893 = vmatprep.subr.mxu0 0.0
    %1894 = vmatpush1.msra.mxu0 0.0
    %1895 = vmatprep.subr.mxu0 0.0
    %1896 = vmatpush1.msra.mxu0 0.0
    %1897 = vmatprep.subr.mxu0 0.0
    %1898 = vmatpush1.msra.mxu0 0.0
    %1899 = vmatprep.subr.mxu0 0.0
    %1900 = vmatpush1.msra.mxu0 0.0
    %1901 = vmatprep.subr.mxu0 0.0
    %1902 = vmatpush1.msra.mxu0 0.0
    %1903 = vmatprep.subr.mxu0 0.0
    %1904 = vmatpush1.msra.mxu0 0.0
    %1905 = vmatprep.subr.mxu0 0.0
    %1906 = vmatpush1.msra.mxu0 0.0
    %1907 = vmatprep.subr.mxu0 0.0
    %1908 = vmatpush1.msra.mxu0 0.0
    %1909 = vmatprep.mubr.f32.mxu0 0.0
    %1910 = vmatmul.mubr.f32.gmra.mrb[0].mxu0 %v1662
    %v1911 = vpop.f32.mrb[0].mxu0
    %v1912 = vadd.f32 %v1837, %v1911
    %v1913 = vpop.f32.mrb[0].mxu0
    %v1914 = vadd.f32 %v1838, %v1913
    %1915 = vdwg.mxu0
    %1916 = vmatprep.subr.mxu0 %v284
    %1917 = vmatpush1.msra.mxu0 %v283
    %1918 = vmatprep.subr.mxu0 %v288
    %1919 = vmatpush1.msra.mxu0 %v287
    %1920 = vmatprep.subr.mxu0 %v292
    %1921 = vmatpush1.msra.mxu0 %v291
    %1922 = vmatprep.subr.mxu0 %v296
    %1923 = vmatpush1.msra.mxu0 %v295
    %1924 = vmatprep.subr.mxu0 %v300
    %1925 = vmatpush1.msra.mxu0 %v299
    %1926 = vmatprep.subr.mxu0 %v304
    %1927 = vmatpush1.msra.mxu0 %v303
    %1928 = vmatprep.subr.mxu0 %v308
    %1929 = vmatpush1.msra.mxu0 %v307
    %1930 = vmatprep.subr.mxu0 %v312
    %1931 = vmatpush1.msra.mxu0 %v311
    %1932 = vmatprep.subr.mxu0 %v316
    %1933 = vmatpush1.msra.mxu0 %v315
    %1934 = vmatprep.subr.mxu0 %v320
    %1935 = vmatpush1.msra.mxu0 %v319
    %1936 = vmatprep.subr.mxu0 %v324
    %1937 = vmatpush1.msra.mxu0 %v323
    %1938 = vmatprep.subr.mxu0 %v328
    %1939 = vmatpush1.msra.mxu0 %v327
    %1940 = vmatprep.subr.mxu0 %v332
    %1941 = vmatpush1.msra.mxu0 %v331
    %1942 = vmatprep.subr.mxu0 %v336
    %1943 = vmatpush1.msra.mxu0 %v335
    %1944 = vmatprep.subr.mxu0 %v340
    %1945 = vmatpush1.msra.mxu0 %v339
    %1946 = vmatprep.subr.mxu0 %v344
    %1947 = vmatpush1.msra.mxu0 %v343
    %1948 = vmatprep.subr.mxu0 0.0
    %1949 = vmatpush1.msra.mxu0 0.0
    %1950 = vmatprep.subr.mxu0 0.0
    %1951 = vmatpush1.msra.mxu0 0.0
    %1952 = vmatprep.subr.mxu0 0.0
    %1953 = vmatpush1.msra.mxu0 0.0
    %1954 = vmatprep.subr.mxu0 0.0
    %1955 = vmatpush1.msra.mxu0 0.0
    %1956 = vmatprep.subr.mxu0 0.0
    %1957 = vmatpush1.msra.mxu0 0.0
    %1958 = vmatprep.subr.mxu0 0.0
    %1959 = vmatpush1.msra.mxu0 0.0
    %1960 = vmatprep.subr.mxu0 0.0
    %1961 = vmatpush1.msra.mxu0 0.0
    %1962 = vmatprep.subr.mxu0 0.0
    %1963 = vmatpush1.msra.mxu0 0.0
    %1964 = vmatprep.subr.mxu0 0.0
    %1965 = vmatpush1.msra.mxu0 0.0
    %1966 = vmatprep.subr.mxu0 0.0
    %1967 = vmatpush1.msra.mxu0 0.0
    %1968 = vmatprep.subr.mxu0 0.0
    %1969 = vmatpush1.msra.mxu0 0.0
    %1970 = vmatprep.subr.mxu0 0.0
    %1971 = vmatpush1.msra.mxu0 0.0
    %1972 = vmatprep.subr.mxu0 0.0
    %1973 = vmatpush1.msra.mxu0 0.0
    %1974 = vmatprep.subr.mxu0 0.0
    %1975 = vmatpush1.msra.mxu0 0.0
    %1976 = vmatprep.subr.mxu0 0.0
    %1977 = vmatpush1.msra.mxu0 0.0
    %1978 = vmatprep.subr.mxu0 0.0
    %1979 = vmatpush1.msra.mxu0 0.0
    %1980 = vmatprep.mubr.f32.mxu0 0.0
    %1981 = vmatmul.mubr.f32.gmra.mrb[0].mxu0 %v1662
    %v1982 = vpop.f32.mrb[0].mxu0
    %v1983 = vadd.f32 %v1839, %v1982
    %v1984 = vpop.f32.mrb[0].mxu0
    %v1985 = vadd.f32 %v1840, %v1984
    %1986 = vdwg.mxu0
    %v1987 = vxor.u32 %v1912, 2147483648
    %v1988 = vmul.f32 %v1987, 1.442695
    %v1989 = vpow.pop %v1988
    %v1990 = vadd.f32 %v1989, 1.0
    %v1991 = vrcp.pop %v1990
    %v1992 = vmul.f32 1.0, %v1991
    %v1993 = vxor.u32 %v1914, 2147483648
    %v1994 = vmul.f32 %v1993, 1.442695
    %v1995 = vpow.pop %v1994
    %v1996 = vadd.f32 %v1995, 1.0
    %v1997 = vrcp.pop %v1996
    %v1998 = vmul.f32 1.0, %v1997
    %v1999 = vtanh.pop %v1983
    %v2000 = vxor.u32 %v1985, 2147483648
    %v2001 = vmul.f32 %v2000, 1.442695
    %v2002 = vpow.pop %v2001
    %v2003 = vadd.f32 %v2002, 1.0
    %v2004 = vrcp.pop %v2003
    %v2005 = vmul.f32 1.0, %v2004
    %v2006 = vmul.f32 %v1998, %v1660
    %v2007 = vmul.f32 %v1992, %v1999
    %v2008 = vadd.f32 %v2006, %v2007
    %v2009 = vtanh.pop %v2008
    %v2010 = vmul.f32 %v2005, %v2009
    %v2011 = vrot.slane %v726, 3
    %v2012 = vrot.slane %v728, 3
    %v2013 = vrot.slane %v797, 3
    %v2014 = vrot.slane %v799, 3
    %2019 = vmatprep.subr.mxu0 %v411
    %2020 = vmatpush1.msra.mxu0 %v410
    %2021 = vmatprep.subr.mxu0 %v415
    %2022 = vmatpush1.msra.mxu0 %v414
    %2023 = vmatprep.subr.mxu0 %v419
    %2024 = vmatpush1.msra.mxu0 %v418
    %2025 = vmatprep.subr.mxu0 %v423
    %2026 = vmatpush1.msra.mxu0 %v422
    %2027 = vmatprep.subr.mxu0 %v427
    %2028 = vmatpush1.msra.mxu0 %v426
    %2029 = vmatprep.subr.mxu0 %v431
    %2030 = vmatpush1.msra.mxu0 %v430
    %2031 = vmatprep.subr.mxu0 %v435
    %2032 = vmatpush1.msra.mxu0 %v434
    %2033 = vmatprep.subr.mxu0 %v439
    %2034 = vmatpush1.msra.mxu0 %v438
    %2035 = vmatprep.subr.mxu0 %v443
    %2036 = vmatpush1.msra.mxu0 %v442
    %2037 = vmatprep.subr.mxu0 %v447
    %2038 = vmatpush1.msra.mxu0 %v446
    %2039 = vmatprep.subr.mxu0 %v451
    %2040 = vmatpush1.msra.mxu0 %v450
    %2041 = vmatprep.subr.mxu0 %v455
    %2042 = vmatpush1.msra.mxu0 %v454
    %2043 = vmatprep.subr.mxu0 %v459
    %2044 = vmatpush1.msra.mxu0 %v458
    %2045 = vmatprep.subr.mxu0 %v463
    %2046 = vmatpush1.msra.mxu0 %v462
    %2047 = vmatprep.subr.mxu0 %v467
    %2048 = vmatpush1.msra.mxu0 %v466
    %2049 = vmatprep.subr.mxu0 %v471
    %2050 = vmatpush1.msra.mxu0 %v470
    %2051 = vmatprep.subr.mxu0 0.0
    %2052 = vmatpush1.msra.mxu0 0.0
    %2053 = vmatprep.subr.mxu0 0.0
    %2054 = vmatpush1.msra.mxu0 0.0
    %2055 = vmatprep.subr.mxu0 0.0
    %2056 = vmatpush1.msra.mxu0 0.0
    %2057 = vmatprep.subr.mxu0 0.0
    %2058 = vmatpush1.msra.mxu0 0.0
    %2059 = vmatprep.subr.mxu0 0.0
    %2060 = vmatpush1.msra.mxu0 0.0
    %2061 = vmatprep.subr.mxu0 0.0
    %2062 = vmatpush1.msra.mxu0 0.0
    %2063 = vmatprep.subr.mxu0 0.0
    %2064 = vmatpush1.msra.mxu0 0.0
    %2065 = vmatprep.subr.mxu0 0.0
    %2066 = vmatpush1.msra.mxu0 0.0
    %2067 = vmatprep.subr.mxu0 0.0
    %2068 = vmatpush1.msra.mxu0 0.0
    %2069 = vmatprep.subr.mxu0 0.0
    %2070 = vmatpush1.msra.mxu0 0.0
    %2071 = vmatprep.subr.mxu0 0.0
    %2072 = vmatpush1.msra.mxu0 0.0
    %2073 = vmatprep.subr.mxu0 0.0
    %2074 = vmatpush1.msra.mxu0 0.0
    %2075 = vmatprep.subr.mxu0 0.0
    %2076 = vmatpush1.msra.mxu0 0.0
    %2077 = vmatprep.subr.mxu0 0.0
    %2078 = vmatpush1.msra.mxu0 0.0
    %2079 = vmatprep.subr.mxu0 0.0
    %2080 = vmatpush1.msra.mxu0 0.0
    %2081 = vmatprep.subr.mxu0 0.0
    %2082 = vmatpush1.msra.mxu0 0.0
    %2083 = vmatprep.mubr.f32.mxu0 0.0
    %2084 = vmatmul.mubr.f32.gmra.mrb[0].mxu0 %v1836
    %v2085 = vpop.f32.mrb[0].mxu0
    %v2086 = vadd.f32 %v2011, %v2085
    %v2087 = vpop.f32.mrb[0].mxu0
    %v2088 = vadd.f32 %v2012, %v2087
    %2089 = vdwg.mxu0
    %2090 = vmatprep.subr.mxu0 %v413
    %2091 = vmatpush1.msra.mxu0 %v412
    %2092 = vmatprep.subr.mxu0 %v417
    %2093 = vmatpush1.msra.mxu0 %v416
    %2094 = vmatprep.subr.mxu0 %v421
    %2095 = vmatpush1.msra.mxu0 %v420
    %2096 = vmatprep.subr.mxu0 %v425
    %2097 = vmatpush1.msra.mxu0 %v424
    %2098 = vmatprep.subr.mxu0 %v429
    %2099 = vmatpush1.msra.mxu0 %v428
    %2100 = vmatprep.subr.mxu0 %v433
    %2101 = vmatpush1.msra.mxu0 %v432
    %2102 = vmatprep.subr.mxu0 %v437
    %2103 = vmatpush1.msra.mxu0 %v436
    %2104 = vmatprep.subr.mxu0 %v441
    %2105 = vmatpush1.msra.mxu0 %v440
    %2106 = vmatprep.subr.mxu0 %v445
    %2107 = vmatpush1.msra.mxu0 %v444
    %2108 = vmatprep.subr.mxu0 %v449
    %2109 = vmatpush1.msra.mxu0 %v448
    %2110 = vmatprep.subr.mxu0 %v453
    %2111 = vmatpush1.msra.mxu0 %v452
    %2112 = vmatprep.subr.mxu0 %v457
    %2113 = vmatpush1.msra.mxu0 %v456
    %2114 = vmatprep.subr.mxu0 %v461
    %2115 = vmatpush1.msra.mxu0 %v460
    %2116 = vmatprep.subr.mxu0 %v465
    %2117 = vmatpush1.msra.mxu0 %v464
    %2118 = vmatprep.subr.mxu0 %v469
    %2119 = vmatpush1.msra.mxu0 %v468
    %2120 = vmatprep.subr.mxu0 %v473
    %2121 = vmatpush1.msra.mxu0 %v472
    %2122 = vmatprep.subr.mxu0 0.0
    %2123 = vmatpush1.msra.mxu0 0.0
    %2124 = vmatprep.subr.mxu0 0.0
    %2125 = vmatpush1.msra.mxu0 0.0
    %2126 = vmatprep.subr.mxu0 0.0
    %2127 = vmatpush1.msra.mxu0 0.0
    %2128 = vmatprep.subr.mxu0 0.0
    %2129 = vmatpush1.msra.mxu0 0.0
    %2130 = vmatprep.subr.mxu0 0.0
    %2131 = vmatpush1.msra.mxu0 0.0
    %2132 = vmatprep.subr.mxu0 0.0
    %2133 = vmatpush1.msra.mxu0 0.0
    %2134 = vmatprep.subr.mxu0 0.0
    %2135 = vmatpush1.msra.mxu0 0.0
    %2136 = vmatprep.subr.mxu0 0.0
    %2137 = vmatpush1.msra.mxu0 0.0
    %2138 = vmatprep.subr.mxu0 0.0
    %2139 = vmatpush1.msra.mxu0 0.0
    %2140 = vmatprep.subr.mxu0 0.0
    %2141 = vmatpush1.msra.mxu0 0.0
    %2142 = vmatprep.subr.mxu0 0.0
    %2143 = vmatpush1.msra.mxu0 0.0
    %2144 = vmatprep.subr.mxu0 0.0
    %2145 = vmatpush1.msra.mxu0 0.0
    %2146 = vmatprep.subr.mxu0 0.0
    %2147 = vmatpush1.msra.mxu0 0.0
    %2148 = vmatprep.subr.mxu0 0.0
    %2149 = vmatpush1.msra.mxu0 0.0
    %2150 = vmatprep.subr.mxu0 0.0
    %2151 = vmatpush1.msra.mxu0 0.0
    %2152 = vmatprep.subr.mxu0 0.0
    %2153 = vmatpush1.msra.mxu0 0.0
    %2154 = vmatprep.mubr.f32.mxu0 0.0
    %2155 = vmatmul.mubr.f32.gmra.mrb[0].mxu0 %v1836
    %v2156 = vpop.f32.mrb[0].mxu0
    %v2157 = vadd.f32 %v2013, %v2156
    %v2158 = vpop.f32.mrb[0].mxu0
    %v2159 = vadd.f32 %v2014, %v2158
    %2160 = vdwg.mxu0
    %v2161 = vxor.u32 %v2086, 2147483648
    %v2162 = vmul.f32 %v2161, 1.442695
    %v2163 = vpow.pop %v2162
    %v2164 = vadd.f32 %v2163, 1.0
    %v2165 = vrcp.pop %v2164
    %v2166 = vmul.f32 1.0, %v2165
    %v2167 = vxor.u32 %v2088, 2147483648
    %v2168 = vmul.f32 %v2167, 1.442695
    %v2169 = vpow.pop %v2168
    %v2170 = vadd.f32 %v2169, 1.0
    %v2171 = vrcp.pop %v2170
    %v2172 = vmul.f32 1.0, %v2171
    %v2173 = vtanh.pop %v2157
    %v2174 = vxor.u32 %v2159, 2147483648
    %v2175 = vmul.f32 %v2174, 1.442695
    %v2176 = vpow.pop %v2175
    %v2177 = vadd.f32 %v2176, 1.0
    %v2178 = vrcp.pop %v2177
    %v2179 = vmul.f32 1.0, %v2178
    %v2180 = vmul.f32 %v2172, %v1834
    %v2181 = vmul.f32 %v2166, %v2173
    %v2182 = vadd.f32 %v2180, %v2181
    %v2183 = vtanh.pop %v2182
    %v2184 = vmul.f32 %v2179, %v2183
    %v2185 = vrot.slane %v563, 4
    %v2186 = vrot.slane %v565, 4
    %v2187 = vrot.slane %v634, 4
    %v2188 = vrot.slane %v636, 4
    %2193 = vmatprep.subr.mxu0 %v282
    %2194 = vmatpush1.msra.mxu0 %v281
    %2195 = vmatprep.subr.mxu0 %v286
    %2196 = vmatpush1.msra.mxu0 %v285
    %2197 = vmatprep.subr.mxu0 %v290
    %2198 = vmatpush1.msra.mxu0 %v289
    %2199 = vmatprep.subr.mxu0 %v294
    %2200 = vmatpush1.msra.mxu0 %v293
    %2201 = vmatprep.subr.mxu0 %v298
    %2202 = vmatpush1.msra.mxu0 %v297
    %2203 = vmatprep.subr.mxu0 %v302
    %2204 = vmatpush1.msra.mxu0 %v301
    %2205 = vmatprep.subr.mxu0 %v306
    %2206 = vmatpush1.msra.mxu0 %v305
    %2207 = vmatprep.subr.mxu0 %v310
    %2208 = vmatpush1.msra.mxu0 %v309
    %2209 = vmatprep.subr.mxu0 %v314
    %2210 = vmatpush1.msra.mxu0 %v313
    %2211 = vmatprep.subr.mxu0 %v318
    %2212 = vmatpush1.msra.mxu0 %v317
    %2213 = vmatprep.subr.mxu0 %v322
    %2214 = vmatpush1.msra.mxu0 %v321
    %2215 = vmatprep.subr.mxu0 %v326
    %2216 = vmatpush1.msra.mxu0 %v325
    %2217 = vmatprep.subr.mxu0 %v330
    %2218 = vmatpush1.msra.mxu0 %v329
    %2219 = vmatprep.subr.mxu0 %v334
    %2220 = vmatpush1.msra.mxu0 %v333
    %2221 = vmatprep.subr.mxu0 %v338
    %2222 = vmatpush1.msra.mxu0 %v337
    %2223 = vmatprep.subr.mxu0 %v342
    %2224 = vmatpush1.msra.mxu0 %v341
    %2225 = vmatprep.subr.mxu0 0.0
    %2226 = vmatpush1.msra.mxu0 0.0
    %2227 = vmatprep.subr.mxu0 0.0
    %2228 = vmatpush1.msra.mxu0 0.0
    %2229 = vmatprep.subr.mxu0 0.0
    %2230 = vmatpush1.msra.mxu0 0.0
    %2231 = vmatprep.subr.mxu0 0.0
    %2232 = vmatpush1.msra.mxu0 0.0
    %2233 = vmatprep.subr.mxu0 0.0
    %2234 = vmatpush1.msra.mxu0 0.0
    %2235 = vmatprep.subr.mxu0 0.0
    %2236 = vmatpush1.msra.mxu0 0.0
    %2237 = vmatprep.subr.mxu0 0.0
    %2238 = vmatpush1.msra.mxu0 0.0
    %2239 = vmatprep.subr.mxu0 0.0
    %2240 = vmatpush1.msra.mxu0 0.0
    %2241 = vmatprep.subr.mxu0 0.0
    %2242 = vmatpush1.msra.mxu0 0.0
    %2243 = vmatprep.subr.mxu0 0.0
    %2244 = vmatpush1.msra.mxu0 0.0
    %2245 = vmatprep.subr.mxu0 0.0
    %2246 = vmatpush1.msra.mxu0 0.0
    %2247 = vmatprep.subr.mxu0 0.0
    %2248 = vmatpush1.msra.mxu0 0.0
    %2249 = vmatprep.subr.mxu0 0.0
    %2250 = vmatpush1.msra.mxu0 0.0
    %2251 = vmatprep.subr.mxu0 0.0
    %2252 = vmatpush1.msra.mxu0 0.0
    %2253 = vmatprep.subr.mxu0 0.0
    %2254 = vmatpush1.msra.mxu0 0.0
    %2255 = vmatprep.subr.mxu0 0.0
    %2256 = vmatpush1.msra.mxu0 0.0
    %2257 = vmatprep.mubr.f32.mxu0 0.0
    %2258 = vmatmul.mubr.f32.gmra.mrb[0].mxu0 %v2010
    %v2259 = vpop.f32.mrb[0].mxu0
    %v2260 = vadd.f32 %v2185, %v2259
    %v2261 = vpop.f32.mrb[0].mxu0
    %v2262 = vadd.f32 %v2186, %v2261
    %2263 = vdwg.mxu0
    %2264 = vmatprep.subr.mxu0 %v284
    %2265 = vmatpush1.msra.mxu0 %v283
    %2266 = vmatprep.subr.mxu0 %v288
    %2267 = vmatpush1.msra.mxu0 %v287
    %2268 = vmatprep.subr.mxu0 %v292
    %2269 = vmatpush1.msra.mxu0 %v291
    %2270 = vmatprep.subr.mxu0 %v296
    %2271 = vmatpush1.msra.mxu0 %v295
    %2272 = vmatprep.subr.mxu0 %v300
    %2273 = vmatpush1.msra.mxu0 %v299
    %2274 = vmatprep.subr.mxu0 %v304
    %2275 = vmatpush1.msra.mxu0 %v303
    %2276 = vmatprep.subr.mxu0 %v308
    %2277 = vmatpush1.msra.mxu0 %v307
    %2278 = vmatprep.subr.mxu0 %v312
    %2279 = vmatpush1.msra.mxu0 %v311
    %2280 = vmatprep.subr.mxu0 %v316
    %2281 = vmatpush1.msra.mxu0 %v315
    %2282 = vmatprep.subr.mxu0 %v320
    %2283 = vmatpush1.msra.mxu0 %v319
    %2284 = vmatprep.subr.mxu0 %v324
    %2285 = vmatpush1.msra.mxu0 %v323
    %2286 = vmatprep.subr.mxu0 %v328
    %2287 = vmatpush1.msra.mxu0 %v327
    %2288 = vmatprep.subr.mxu0 %v332
    %2289 = vmatpush1.msra.mxu0 %v331
    %2290 = vmatprep.subr.mxu0 %v336
    %2291 = vmatpush1.msra.mxu0 %v335
    %2292 = vmatprep.subr.mxu0 %v340
    %2293 = vmatpush1.msra.mxu0 %v339
    %2294 = vmatprep.subr.mxu0 %v344
    %2295 = vmatpush1.msra.mxu0 %v343
    %2296 = vmatprep.subr.mxu0 0.0
    %2297 = vmatpush1.msra.mxu0 0.0
    %2298 = vmatprep.subr.mxu0 0.0
    %2299 = vmatpush1.msra.mxu0 0.0
    %2300 = vmatprep.subr.mxu0 0.0
    %2301 = vmatpush1.msra.mxu0 0.0
    %2302 = vmatprep.subr.mxu0 0.0
    %2303 = vmatpush1.msra.mxu0 0.0
    %2304 = vmatprep.subr.mxu0 0.0
    %2305 = vmatpush1.msra.mxu0 0.0
    %2306 = vmatprep.subr.mxu0 0.0
    %2307 = vmatpush1.msra.mxu0 0.0
    %2308 = vmatprep.subr.mxu0 0.0
    %2309 = vmatpush1.msra.mxu0 0.0
    %2310 = vmatprep.subr.mxu0 0.0
    %2311 = vmatpush1.msra.mxu0 0.0
    %2312 = vmatprep.subr.mxu0 0.0
    %2313 = vmatpush1.msra.mxu0 0.0
    %2314 = vmatprep.subr.mxu0 0.0
    %2315 = vmatpush1.msra.mxu0 0.0
    %2316 = vmatprep.subr.mxu0 0.0
    %2317 = vmatpush1.msra.mxu0 0.0
    %2318 = vmatprep.subr.mxu0 0.0
    %2319 = vmatpush1.msra.mxu0 0.0
    %2320 = vmatprep.subr.mxu0 0.0
    %2321 = vmatpush1.msra.mxu0 0.0
    %2322 = vmatprep.subr.mxu0 0.0
    %2323 = vmatpush1.msra.mxu0 0.0
    %2324 = vmatprep.subr.mxu0 0.0
    %2325 = vmatpush1.msra.mxu0 0.0
    %2326 = vmatprep.subr.mxu0 0.0
    %2327 = vmatpush1.msra.mxu0 0.0
    %2328 = vmatprep.mubr.f32.mxu0 0.0
    %2329 = vmatmul.mubr.f32.gmra.mrb[0].mxu0 %v2010
    %v2330 = vpop.f32.mrb[0].mxu0
    %v2331 = vadd.f32 %v2187, %v2330
    %v2332 = vpop.f32.mrb[0].mxu0
    %v2333 = vadd.f32 %v2188, %v2332
    %2334 = vdwg.mxu0
    %v2335 = vxor.u32 %v2260, 2147483648
    %v2336 = vmul.f32 %v2335, 1.442695
    %v2337 = vpow.pop %v2336
    %v2338 = vadd.f32 %v2337, 1.0
    %v2339 = vrcp.pop %v2338
    %v2340 = vmul.f32 1.0, %v2339
    %v2341 = vxor.u32 %v2262, 2147483648
    %v2342 = vmul.f32 %v2341, 1.442695
    %v2343 = vpow.pop %v2342
    %v2344 = vadd.f32 %v2343, 1.0
    %v2345 = vrcp.pop %v2344
    %v2346 = vmul.f32 1.0, %v2345
    %v2347 = vtanh.pop %v2331
    %v2348 = vxor.u32 %v2333, 2147483648
    %v2349 = vmul.f32 %v2348, 1.442695
    %v2350 = vpow.pop %v2349
    %v2351 = vadd.f32 %v2350, 1.0
    %v2352 = vrcp.pop %v2351
    %v2353 = vmul.f32 1.0, %v2352
    %v2354 = vmul.f32 %v2346, %v2008
    %v2355 = vmul.f32 %v2340, %v2347
    %v2356 = vadd.f32 %v2354, %v2355
    %v2357 = vtanh.pop %v2356
    %v2358 = vmul.f32 %v2353, %v2357
    %v2359 = vrot.slane %v726, 4
    %v2360 = vrot.slane %v728, 4
    %v2361 = vrot.slane %v797, 4
    %v2362 = vrot.slane %v799, 4
    %2367 = vmatprep.subr.mxu0 %v411
    %2368 = vmatpush1.msra.mxu0 %v410
    %2369 = vmatprep.subr.mxu0 %v415
    %2370 = vmatpush1.msra.mxu0 %v414
    %2371 = vmatprep.subr.mxu0 %v419
    %2372 = vmatpush1.msra.mxu0 %v418
    %2373 = vmatprep.subr.mxu0 %v423
    %2374 = vmatpush1.msra.mxu0 %v422
    %2375 = vmatprep.subr.mxu0 %v427
    %2376 = vmatpush1.msra.mxu0 %v426
    %2377 = vmatprep.subr.mxu0 %v431
    %2378 = vmatpush1.msra.mxu0 %v430
    %2379 = vmatprep.subr.mxu0 %v435
    %2380 = vmatpush1.msra.mxu0 %v434
    %2381 = vmatprep.subr.mxu0 %v439
    %2382 = vmatpush1.msra.mxu0 %v438
    %2383 = vmatprep.subr.mxu0 %v443
    %2384 = vmatpush1.msra.mxu0 %v442
    %2385 = vmatprep.subr.mxu0 %v447
    %2386 = vmatpush1.msra.mxu0 %v446
    %2387 = vmatprep.subr.mxu0 %v451
    %2388 = vmatpush1.msra.mxu0 %v450
    %2389 = vmatprep.subr.mxu0 %v455
    %2390 = vmatpush1.msra.mxu0 %v454
    %2391 = vmatprep.subr.mxu0 %v459
    %2392 = vmatpush1.msra.mxu0 %v458
    %2393 = vmatprep.subr.mxu0 %v463
    %2394 = vmatpush1.msra.mxu0 %v462
    %2395 = vmatprep.subr.mxu0 %v467
    %2396 = vmatpush1.msra.mxu0 %v466
    %2397 = vmatprep.subr.mxu0 %v471
    %2398 = vmatpush1.msra.mxu0 %v470
    %2399 = vmatprep.subr.mxu0 0.0
    %2400 = vmatpush1.msra.mxu0 0.0
    %2401 = vmatprep.subr.mxu0 0.0
    %2402 = vmatpush1.msra.mxu0 0.0
    %2403 = vmatprep.subr.mxu0 0.0
    %2404 = vmatpush1.msra.mxu0 0.0
    %2405 = vmatprep.subr.mxu0 0.0
    %2406 = vmatpush1.msra.mxu0 0.0
    %2407 = vmatprep.subr.mxu0 0.0
    %2408 = vmatpush1.msra.mxu0 0.0
    %2409 = vmatprep.subr.mxu0 0.0
    %2410 = vmatpush1.msra.mxu0 0.0
    %2411 = vmatprep.subr.mxu0 0.0
    %2412 = vmatpush1.msra.mxu0 0.0
    %2413 = vmatprep.subr.mxu0 0.0
    %2414 = vmatpush1.msra.mxu0 0.0
    %2415 = vmatprep.subr.mxu0 0.0
    %2416 = vmatpush1.msra.mxu0 0.0
    %2417 = vmatprep.subr.mxu0 0.0
    %2418 = vmatpush1.msra.mxu0 0.0
    %2419 = vmatprep.subr.mxu0 0.0
    %2420 = vmatpush1.msra.mxu0 0.0
    %2421 = vmatprep.subr.mxu0 0.0
    %2422 = vmatpush1.msra.mxu0 0.0
    %2423 = vmatprep.subr.mxu0 0.0
    %2424 = vmatpush1.msra.mxu0 0.0
    %2425 = vmatprep.subr.mxu0 0.0
    %2426 = vmatpush1.msra.mxu0 0.0
    %2427 = vmatprep.subr.mxu0 0.0
    %2428 = vmatpush1.msra.mxu0 0.0
    %2429 = vmatprep.subr.mxu0 0.0
    %2430 = vmatpush1.msra.mxu0 0.0
    %2431 = vmatprep.mubr.f32.mxu0 0.0
    %2432 = vmatmul.mubr.f32.gmra.mrb[0].mxu0 %v2184
    %v2433 = vpop.f32.mrb[0].mxu0
    %v2434 = vadd.f32 %v2359, %v2433
    %v2435 = vpop.f32.mrb[0].mxu0
    %v2436 = vadd.f32 %v2360, %v2435
    %2437 = vdwg.mxu0
    %2438 = vmatprep.subr.mxu0 %v413
    %2439 = vmatpush1.msra.mxu0 %v412
    %2440 = vmatprep.subr.mxu0 %v417
    %2441 = vmatpush1.msra.mxu0 %v416
    %2442 = vmatprep.subr.mxu0 %v421
    %2443 = vmatpush1.msra.mxu0 %v420
    %2444 = vmatprep.subr.mxu0 %v425
    %2445 = vmatpush1.msra.mxu0 %v424
    %2446 = vmatprep.subr.mxu0 %v429
    %2447 = vmatpush1.msra.mxu0 %v428
    %2448 = vmatprep.subr.mxu0 %v433
    %2449 = vmatpush1.msra.mxu0 %v432
    %2450 = vmatprep.subr.mxu0 %v437
    %2451 = vmatpush1.msra.mxu0 %v436
    %2452 = vmatprep.subr.mxu0 %v441
    %2453 = vmatpush1.msra.mxu0 %v440
    %2454 = vmatprep.subr.mxu0 %v445
    %2455 = vmatpush1.msra.mxu0 %v444
    %2456 = vmatprep.subr.mxu0 %v449
    %2457 = vmatpush1.msra.mxu0 %v448
    %2458 = vmatprep.subr.mxu0 %v453
    %2459 = vmatpush1.msra.mxu0 %v452
    %2460 = vmatprep.subr.mxu0 %v457
    %2461 = vmatpush1.msra.mxu0 %v456
    %2462 = vmatprep.subr.mxu0 %v461
    %2463 = vmatpush1.msra.mxu0 %v460
    %2464 = vmatprep.subr.mxu0 %v465
    %2465 = vmatpush1.msra.mxu0 %v464
    %2466 = vmatprep.subr.mxu0 %v469
    %2467 = vmatpush1.msra.mxu0 %v468
    %2468 = vmatprep.subr.mxu0 %v473
    %2469 = vmatpush1.msra.mxu0 %v472
    %2470 = vmatprep.subr.mxu0 0.0
    %2471 = vmatpush1.msra.mxu0 0.0
    %2472 = vmatprep.subr.mxu0 0.0
    %2473 = vmatpush1.msra.mxu0 0.0
    %2474 = vmatprep.subr.mxu0 0.0
    %2475 = vmatpush1.msra.mxu0 0.0
    %2476 = vmatprep.subr.mxu0 0.0
    %2477 = vmatpush1.msra.mxu0 0.0
    %2478 = vmatprep.subr.mxu0 0.0
    %2479 = vmatpush1.msra.mxu0 0.0
    %2480 = vmatprep.subr.mxu0 0.0
    %2481 = vmatpush1.msra.mxu0 0.0
    %2482 = vmatprep.subr.mxu0 0.0
    %2483 = vmatpush1.msra.mxu0 0.0
    %2484 = vmatprep.subr.mxu0 0.0
    %2485 = vmatpush1.msra.mxu0 0.0
    %2486 = vmatprep.subr.mxu0 0.0
    %2487 = vmatpush1.msra.mxu0 0.0
    %2488 = vmatprep.subr.mxu0 0.0
    %2489 = vmatpush1.msra.mxu0 0.0
    %2490 = vmatprep.subr.mxu0 0.0
    %2491 = vmatpush1.msra.mxu0 0.0
    %2492 = vmatprep.subr.mxu0 0.0
    %2493 = vmatpush1.msra.mxu0 0.0
    %2494 = vmatprep.subr.mxu0 0.0
    %2495 = vmatpush1.msra.mxu0 0.0
    %2496 = vmatprep.subr.mxu0 0.0
    %2497 = vmatpush1.msra.mxu0 0.0
    %2498 = vmatprep.subr.mxu0 0.0
    %2499 = vmatpush1.msra.mxu0 0.0
    %2500 = vmatprep.subr.mxu0 0.0
    %2501 = vmatpush1.msra.mxu0 0.0
    %2502 = vmatprep.mubr.f32.mxu0 0.0
    %2503 = vmatmul.mubr.f32.gmra.mrb[0].mxu0 %v2184
    %v2504 = vpop.f32.mrb[0].mxu0
    %v2505 = vadd.f32 %v2361, %v2504
    %v2506 = vpop.f32.mrb[0].mxu0
    %v2507 = vadd.f32 %v2362, %v2506
    %2508 = vdwg.mxu0
    %v2509 = vxor.u32 %v2434, 2147483648
    %v2510 = vmul.f32 %v2509, 1.442695
    %v2511 = vpow.pop %v2510
    %v2512 = vadd.f32 %v2511, 1.0
    %v2513 = vrcp.pop %v2512
    %v2514 = vmul.f32 1.0, %v2513
    %v2515 = vxor.u32 %v2436, 2147483648
    %v2516 = vmul.f32 %v2515, 1.442695
    %v2517 = vpow.pop %v2516
    %v2518 = vadd.f32 %v2517, 1.0
    %v2519 = vrcp.pop %v2518
    %v2520 = vmul.f32 1.0, %v2519
    %v2521 = vtanh.pop %v2505
    %v2522 = vxor.u32 %v2507, 2147483648
    %v2523 = vmul.f32 %v2522, 1.442695
    %v2524 = vpow.pop %v2523
    %v2525 = vadd.f32 %v2524, 1.0
    %v2526 = vrcp.pop %v2525
    %v2527 = vmul.f32 1.0, %v2526
    %v2528 = vmul.f32 %v2520, %v2182
    %v2529 = vmul.f32 %v2514, %v2521
    %v2530 = vadd.f32 %v2528, %v2529
    %v2531 = vtanh.pop %v2530
    %v2532 = vmul.f32 %v2527, %v2531
    %v2533 = vrot.slane %v563, 5
    %v2534 = vrot.slane %v565, 5
    %v2535 = vrot.slane %v634, 5
    %v2536 = vrot.slane %v636, 5
    %2541 = vmatprep.subr.mxu0 %v282
    %2542 = vmatpush1.msra.mxu0 %v281
    %2543 = vmatprep.subr.mxu0 %v286
    %2544 = vmatpush1.msra.mxu0 %v285
    %2545 = vmatprep.subr.mxu0 %v290
    %2546 = vmatpush1.msra.mxu0 %v289
    %2547 = vmatprep.subr.mxu0 %v294
    %2548 = vmatpush1.msra.mxu0 %v293
    %2549 = vmatprep.subr.mxu0 %v298
    %2550 = vmatpush1.msra.mxu0 %v297
    %2551 = vmatprep.subr.mxu0 %v302
    %2552 = vmatpush1.msra.mxu0 %v301
    %2553 = vmatprep.subr.mxu0 %v306
    %2554 = vmatpush1.msra.mxu0 %v305
    %2555 = vmatprep.subr.mxu0 %v310
    %2556 = vmatpush1.msra.mxu0 %v309
    %2557 = vmatprep.subr.mxu0 %v314
    %2558 = vmatpush1.msra.mxu0 %v313
    %2559 = vmatprep.subr.mxu0 %v318
    %2560 = vmatpush1.msra.mxu0 %v317
    %2561 = vmatprep.subr.mxu0 %v322
    %2562 = vmatpush1.msra.mxu0 %v321
    %2563 = vmatprep.subr.mxu0 %v326
    %2564 = vmatpush1.msra.mxu0 %v325
    %2565 = vmatprep.subr.mxu0 %v330
    %2566 = vmatpush1.msra.mxu0 %v329
    %2567 = vmatprep.subr.mxu0 %v334
    %2568 = vmatpush1.msra.mxu0 %v333
    %2569 = vmatprep.subr.mxu0 %v338
    %2570 = vmatpush1.msra.mxu0 %v337
    %2571 = vmatprep.subr.mxu0 %v342
    %2572 = vmatpush1.msra.mxu0 %v341
    %2573 = vmatprep.subr.mxu0 0.0
    %2574 = vmatpush1.msra.mxu0 0.0
    %2575 = vmatprep.subr.mxu0 0.0
    %2576 = vmatpush1.msra.mxu0 0.0
    %2577 = vmatprep.subr.mxu0 0.0
    %2578 = vmatpush1.msra.mxu0 0.0
    %2579 = vmatprep.subr.mxu0 0.0
    %2580 = vmatpush1.msra.mxu0 0.0
    %2581 = vmatprep.subr.mxu0 0.0
    %2582 = vmatpush1.msra.mxu0 0.0
    %2583 = vmatprep.subr.mxu0 0.0
    %2584 = vmatpush1.msra.mxu0 0.0
    %2585 = vmatprep.subr.mxu0 0.0
    %2586 = vmatpush1.msra.mxu0 0.0
    %2587 = vmatprep.subr.mxu0 0.0
    %2588 = vmatpush1.msra.mxu0 0.0
    %2589 = vmatprep.subr.mxu0 0.0
    %2590 = vmatpush1.msra.mxu0 0.0
    %2591 = vmatprep.subr.mxu0 0.0
    %2592 = vmatpush1.msra.mxu0 0.0
    %2593 = vmatprep.subr.mxu0 0.0
    %2594 = vmatpush1.msra.mxu0 0.0
    %2595 = vmatprep.subr.mxu0 0.0
    %2596 = vmatpush1.msra.mxu0 0.0
    %2597 = vmatprep.subr.mxu0 0.0
    %2598 = vmatpush1.msra.mxu0 0.0
    %2599 = vmatprep.subr.mxu0 0.0
    %2600 = vmatpush1.msra.mxu0 0.0
    %2601 = vmatprep.subr.mxu0 0.0
    %2602 = vmatpush1.msra.mxu0 0.0
    %2603 = vmatprep.subr.mxu0 0.0
    %2604 = vmatpush1.msra.mxu0 0.0
    %2605 = vmatprep.mubr.f32.mxu0 0.0
    %2606 = vmatmul.mubr.f32.gmra.mrb[0].mxu0 %v2358
    %v2607 = vpop.f32.mrb[0].mxu0
    %v2608 = vadd.f32 %v2533, %v2607
    %v2609 = vpop.f32.mrb[0].mxu0
    %v2610 = vadd.f32 %v2534, %v2609
    %2611 = vdwg.mxu0
    %2612 = vmatprep.subr.mxu0 %v284
    %2613 = vmatpush1.msra.mxu0 %v283
    %2614 = vmatprep.subr.mxu0 %v288
    %2615 = vmatpush1.msra.mxu0 %v287
    %2616 = vmatprep.subr.mxu0 %v292
    %2617 = vmatpush1.msra.mxu0 %v291
    %2618 = vmatprep.subr.mxu0 %v296
    %2619 = vmatpush1.msra.mxu0 %v295
    %2620 = vmatprep.subr.mxu0 %v300
    %2621 = vmatpush1.msra.mxu0 %v299
    %2622 = vmatprep.subr.mxu0 %v304
    %2623 = vmatpush1.msra.mxu0 %v303
    %2624 = vmatprep.subr.mxu0 %v308
    %2625 = vmatpush1.msra.mxu0 %v307
    %2626 = vmatprep.subr.mxu0 %v312
    %2627 = vmatpush1.msra.mxu0 %v311
    %2628 = vmatprep.subr.mxu0 %v316
    %2629 = vmatpush1.msra.mxu0 %v315
    %2630 = vmatprep.subr.mxu0 %v320
    %2631 = vmatpush1.msra.mxu0 %v319
    %2632 = vmatprep.subr.mxu0 %v324
    %2633 = vmatpush1.msra.mxu0 %v323
    %2634 = vmatprep.subr.mxu0 %v328
    %2635 = vmatpush1.msra.mxu0 %v327
    %2636 = vmatprep.subr.mxu0 %v332
    %2637 = vmatpush1.msra.mxu0 %v331
    %2638 = vmatprep.subr.mxu0 %v336
    %2639 = vmatpush1.msra.mxu0 %v335
    %2640 = vmatprep.subr.mxu0 %v340
    %2641 = vmatpush1.msra.mxu0 %v339
    %2642 = vmatprep.subr.mxu0 %v344
    %2643 = vmatpush1.msra.mxu0 %v343
    %2644 = vmatprep.subr.mxu0 0.0
    %2645 = vmatpush1.msra.mxu0 0.0
    %2646 = vmatprep.subr.mxu0 0.0
    %2647 = vmatpush1.msra.mxu0 0.0
    %2648 = vmatprep.subr.mxu0 0.0
    %2649 = vmatpush1.msra.mxu0 0.0
    %2650 = vmatprep.subr.mxu0 0.0
    %2651 = vmatpush1.msra.mxu0 0.0
    %2652 = vmatprep.subr.mxu0 0.0
    %2653 = vmatpush1.msra.mxu0 0.0
    %2654 = vmatprep.subr.mxu0 0.0
    %2655 = vmatpush1.msra.mxu0 0.0
    %2656 = vmatprep.subr.mxu0 0.0
    %2657 = vmatpush1.msra.mxu0 0.0
    %2658 = vmatprep.subr.mxu0 0.0
    %2659 = vmatpush1.msra.mxu0 0.0
    %2660 = vmatprep.subr.mxu0 0.0
    %2661 = vmatpush1.msra.mxu0 0.0
    %2662 = vmatprep.subr.mxu0 0.0
    %2663 = vmatpush1.msra.mxu0 0.0
    %2664 = vmatprep.subr.mxu0 0.0
    %2665 = vmatpush1.msra.mxu0 0.0
    %2666 = vmatprep.subr.mxu0 0.0
    %2667 = vmatpush1.msra.mxu0 0.0
    %2668 = vmatprep.subr.mxu0 0.0
    %2669 = vmatpush1.msra.mxu0 0.0
    %2670 = vmatprep.subr.mxu0 0.0
    %2671 = vmatpush1.msra.mxu0 0.0
    %2672 = vmatprep.subr.mxu0 0.0
    %2673 = vmatpush1.msra.mxu0 0.0
    %2674 = vmatprep.subr.mxu0 0.0
    %2675 = vmatpush1.msra.mxu0 0.0
    %2676 = vmatprep.mubr.f32.mxu0 0.0
    %2677 = vmatmul.mubr.f32.gmra.mrb[0].mxu0 %v2358
    %v2678 = vpop.f32.mrb[0].mxu0
    %v2679 = vadd.f32 %v2535, %v2678
    %v2680 = vpop.f32.mrb[0].mxu0
    %v2681 = vadd.f32 %v2536, %v2680
    %2682 = vdwg.mxu0
    %v2683 = vxor.u32 %v2608, 2147483648
    %v2684 = vmul.f32 %v2683, 1.442695
    %v2685 = vpow.pop %v2684
    %v2686 = vadd.f32 %v2685, 1.0
    %v2687 = vrcp.pop %v2686
    %v2688 = vmul.f32 1.0, %v2687
    %v2689 = vxor.u32 %v2610, 2147483648
    %v2690 = vmul.f32 %v2689, 1.442695
    %v2691 = vpow.pop %v2690
    %v2692 = vadd.f32 %v2691, 1.0
    %v2693 = vrcp.pop %v2692
    %v2694 = vmul.f32 1.0, %v2693
    %v2695 = vtanh.pop %v2679
    %v2696 = vxor.u32 %v2681, 2147483648
    %v2697 = vmul.f32 %v2696, 1.442695
    %v2698 = vpow.pop %v2697
    %v2699 = vadd.f32 %v2698, 1.0
    %v2700 = vrcp.pop %v2699
    %v2701 = vmul.f32 1.0, %v2700
    %v2702 = vmul.f32 %v2694, %v2356
    %v2703 = vmul.f32 %v2688, %v2695
    %v2704 = vadd.f32 %v2702, %v2703
    %v2705 = vtanh.pop %v2704
    %v2706 = vmul.f32 %v2701, %v2705
    %v2707 = vrot.slane %v726, 5
    %v2708 = vrot.slane %v728, 5
    %v2709 = vrot.slane %v797, 5
    %v2710 = vrot.slane %v799, 5
    %2715 = vmatprep.subr.mxu0 %v411
    %2716 = vmatpush1.msra.mxu0 %v410
    %2717 = vmatprep.subr.mxu0 %v415
    %2718 = vmatpush1.msra.mxu0 %v414
    %2719 = vmatprep.subr.mxu0 %v419
    %2720 = vmatpush1.msra.mxu0 %v418
    %2721 = vmatprep.subr.mxu0 %v423
    %2722 = vmatpush1.msra.mxu0 %v422
    %2723 = vmatprep.subr.mxu0 %v427
    %2724 = vmatpush1.msra.mxu0 %v426
    %2725 = vmatprep.subr.mxu0 %v431
    %2726 = vmatpush1.msra.mxu0 %v430
    %2727 = vmatprep.subr.mxu0 %v435
    %2728 = vmatpush1.msra.mxu0 %v434
    %2729 = vmatprep.subr.mxu0 %v439
    %2730 = vmatpush1.msra.mxu0 %v438
    %2731 = vmatprep.subr.mxu0 %v443
    %2732 = vmatpush1.msra.mxu0 %v442
    %2733 = vmatprep.subr.mxu0 %v447
    %2734 = vmatpush1.msra.mxu0 %v446
    %2735 = vmatprep.subr.mxu0 %v451
    %2736 = vmatpush1.msra.mxu0 %v450
    %2737 = vmatprep.subr.mxu0 %v455
    %2738 = vmatpush1.msra.mxu0 %v454
    %2739 = vmatprep.subr.mxu0 %v459
    %2740 = vmatpush1.msra.mxu0 %v458
    %2741 = vmatprep.subr.mxu0 %v463
    %2742 = vmatpush1.msra.mxu0 %v462
    %2743 = vmatprep.subr.mxu0 %v467
    %2744 = vmatpush1.msra.mxu0 %v466
    %2745 = vmatprep.subr.mxu0 %v471
    %2746 = vmatpush1.msra.mxu0 %v470
    %2747 = vmatprep.subr.mxu0 0.0
    %2748 = vmatpush1.msra.mxu0 0.0
    %2749 = vmatprep.subr.mxu0 0.0
    %2750 = vmatpush1.msra.mxu0 0.0
    %2751 = vmatprep.subr.mxu0 0.0
    %2752 = vmatpush1.msra.mxu0 0.0
    %2753 = vmatprep.subr.mxu0 0.0
    %2754 = vmatpush1.msra.mxu0 0.0
    %2755 = vmatprep.subr.mxu0 0.0
    %2756 = vmatpush1.msra.mxu0 0.0
    %2757 = vmatprep.subr.mxu0 0.0
    %2758 = vmatpush1.msra.mxu0 0.0
    %2759 = vmatprep.subr.mxu0 0.0
    %2760 = vmatpush1.msra.mxu0 0.0
    %2761 = vmatprep.subr.mxu0 0.0
    %2762 = vmatpush1.msra.mxu0 0.0
    %2763 = vmatprep.subr.mxu0 0.0
    %2764 = vmatpush1.msra.mxu0 0.0
    %2765 = vmatprep.subr.mxu0 0.0
    %2766 = vmatpush1.msra.mxu0 0.0
    %2767 = vmatprep.subr.mxu0 0.0
    %2768 = vmatpush1.msra.mxu0 0.0
    %2769 = vmatprep.subr.mxu0 0.0
    %2770 = vmatpush1.msra.mxu0 0.0
    %2771 = vmatprep.subr.mxu0 0.0
    %2772 = vmatpush1.msra.mxu0 0.0
    %2773 = vmatprep.subr.mxu0 0.0
    %2774 = vmatpush1.msra.mxu0 0.0
    %2775 = vmatprep.subr.mxu0 0.0
    %2776 = vmatpush1.msra.mxu0 0.0
    %2777 = vmatprep.subr.mxu0 0.0
    %2778 = vmatpush1.msra.mxu0 0.0
    %2779 = vmatprep.mubr.f32.mxu0 0.0
    %2780 = vmatmul.mubr.f32.gmra.mrb[0].mxu0 %v2532
    %v2781 = vpop.f32.mrb[0].mxu0
    %v2782 = vadd.f32 %v2707, %v2781
    %v2783 = vpop.f32.mrb[0].mxu0
    %v2784 = vadd.f32 %v2708, %v2783
    %2785 = vdwg.mxu0
    %2786 = vmatprep.subr.mxu0 %v413
    %2787 = vmatpush1.msra.mxu0 %v412
    %2788 = vmatprep.subr.mxu0 %v417
    %2789 = vmatpush1.msra.mxu0 %v416
    %2790 = vmatprep.subr.mxu0 %v421
    %2791 = vmatpush1.msra.mxu0 %v420
    %2792 = vmatprep.subr.mxu0 %v425
    %2793 = vmatpush1.msra.mxu0 %v424
    %2794 = vmatprep.subr.mxu0 %v429
    %2795 = vmatpush1.msra.mxu0 %v428
    %2796 = vmatprep.subr.mxu0 %v433
    %2797 = vmatpush1.msra.mxu0 %v432
    %2798 = vmatprep.subr.mxu0 %v437
    %2799 = vmatpush1.msra.mxu0 %v436
    %2800 = vmatprep.subr.mxu0 %v441
    %2801 = vmatpush1.msra.mxu0 %v440
    %2802 = vmatprep.subr.mxu0 %v445
    %2803 = vmatpush1.msra.mxu0 %v444
    %2804 = vmatprep.subr.mxu0 %v449
    %2805 = vmatpush1.msra.mxu0 %v448
    %2806 = vmatprep.subr.mxu0 %v453
    %2807 = vmatpush1.msra.mxu0 %v452
    %2808 = vmatprep.subr.mxu0 %v457
    %2809 = vmatpush1.msra.mxu0 %v456
    %2810 = vmatprep.subr.mxu0 %v461
    %2811 = vmatpush1.msra.mxu0 %v460
    %2812 = vmatprep.subr.mxu0 %v465
    %2813 = vmatpush1.msra.mxu0 %v464
    %2814 = vmatprep.subr.mxu0 %v469
    %2815 = vmatpush1.msra.mxu0 %v468
    %2816 = vmatprep.subr.mxu0 %v473
    %2817 = vmatpush1.msra.mxu0 %v472
    %2818 = vmatprep.subr.mxu0 0.0
    %2819 = vmatpush1.msra.mxu0 0.0
    %2820 = vmatprep.subr.mxu0 0.0
    %2821 = vmatpush1.msra.mxu0 0.0
    %2822 = vmatprep.subr.mxu0 0.0
    %2823 = vmatpush1.msra.mxu0 0.0
    %2824 = vmatprep.subr.mxu0 0.0
    %2825 = vmatpush1.msra.mxu0 0.0
    %2826 = vmatprep.subr.mxu0 0.0
    %2827 = vmatpush1.msra.mxu0 0.0
    %2828 = vmatprep.subr.mxu0 0.0
    %2829 = vmatpush1.msra.mxu0 0.0
    %2830 = vmatprep.subr.mxu0 0.0
    %2831 = vmatpush1.msra.mxu0 0.0
    %2832 = vmatprep.subr.mxu0 0.0
    %2833 = vmatpush1.msra.mxu0 0.0
    %2834 = vmatprep.subr.mxu0 0.0
    %2835 = vmatpush1.msra.mxu0 0.0
    %2836 = vmatprep.subr.mxu0 0.0
    %2837 = vmatpush1.msra.mxu0 0.0
    %2838 = vmatprep.subr.mxu0 0.0
    %2839 = vmatpush1.msra.mxu0 0.0
    %2840 = vmatprep.subr.mxu0 0.0
    %2841 = vmatpush1.msra.mxu0 0.0
    %2842 = vmatprep.subr.mxu0 0.0
    %2843 = vmatpush1.msra.mxu0 0.0
    %2844 = vmatprep.subr.mxu0 0.0
    %2845 = vmatpush1.msra.mxu0 0.0
    %2846 = vmatprep.subr.mxu0 0.0
    %2847 = vmatpush1.msra.mxu0 0.0
    %2848 = vmatprep.subr.mxu0 0.0
    %2849 = vmatpush1.msra.mxu0 0.0
    %2850 = vmatprep.mubr.f32.mxu0 0.0
    %2851 = vmatmul.mubr.f32.gmra.mrb[0].mxu0 %v2532
    %v2852 = vpop.f32.mrb[0].mxu0
    %v2853 = vadd.f32 %v2709, %v2852
    %v2854 = vpop.f32.mrb[0].mxu0
    %v2855 = vadd.f32 %v2710, %v2854
    %2856 = vdwg.mxu0
    %v2857 = vxor.u32 %v2782, 2147483648
    %v2858 = vmul.f32 %v2857, 1.442695
    %v2859 = vpow.pop %v2858
    %v2860 = vadd.f32 %v2859, 1.0
    %v2861 = vrcp.pop %v2860
    %v2862 = vmul.f32 1.0, %v2861
    %v2863 = vxor.u32 %v2784, 2147483648
    %v2864 = vmul.f32 %v2863, 1.442695
    %v2865 = vpow.pop %v2864
    %v2866 = vadd.f32 %v2865, 1.0
    %v2867 = vrcp.pop %v2866
    %v2868 = vmul.f32 1.0, %v2867
    %v2869 = vtanh.pop %v2853
    %v2870 = vxor.u32 %v2855, 2147483648
    %v2871 = vmul.f32 %v2870, 1.442695
    %v2872 = vpow.pop %v2871
    %v2873 = vadd.f32 %v2872, 1.0
    %v2874 = vrcp.pop %v2873
    %v2875 = vmul.f32 1.0, %v2874
    %v2876 = vmul.f32 %v2868, %v2530
    %v2877 = vmul.f32 %v2862, %v2869
    %v2878 = vadd.f32 %v2876, %v2877
    %v2879 = vtanh.pop %v2878
    %v2880 = vmul.f32 %v2875, %v2879
    %v2881 = vrot.slane %v563, 6
    %v2882 = vrot.slane %v565, 6
    %v2883 = vrot.slane %v634, 6
    %v2884 = vrot.slane %v636, 6
    %2889 = vmatprep.subr.mxu0 %v282
    %2890 = vmatpush1.msra.mxu0 %v281
    %2891 = vmatprep.subr.mxu0 %v286
    %2892 = vmatpush1.msra.mxu0 %v285
    %2893 = vmatprep.subr.mxu0 %v290
    %2894 = vmatpush1.msra.mxu0 %v289
    %2895 = vmatprep.subr.mxu0 %v294
    %2896 = vmatpush1.msra.mxu0 %v293
    %2897 = vmatprep.subr.mxu0 %v298
    %2898 = vmatpush1.msra.mxu0 %v297
    %2899 = vmatprep.subr.mxu0 %v302
    %2900 = vmatpush1.msra.mxu0 %v301
    %2901 = vmatprep.subr.mxu0 %v306
    %2902 = vmatpush1.msra.mxu0 %v305
    %2903 = vmatprep.subr.mxu0 %v310
    %2904 = vmatpush1.msra.mxu0 %v309
    %2905 = vmatprep.subr.mxu0 %v314
    %2906 = vmatpush1.msra.mxu0 %v313
    %2907 = vmatprep.subr.mxu0 %v318
    %2908 = vmatpush1.msra.mxu0 %v317
    %2909 = vmatprep.subr.mxu0 %v322
    %2910 = vmatpush1.msra.mxu0 %v321
    %2911 = vmatprep.subr.mxu0 %v326
    %2912 = vmatpush1.msra.mxu0 %v325
    %2913 = vmatprep.subr.mxu0 %v330
    %2914 = vmatpush1.msra.mxu0 %v329
    %2915 = vmatprep.subr.mxu0 %v334
    %2916 = vmatpush1.msra.mxu0 %v333
    %2917 = vmatprep.subr.mxu0 %v338
    %2918 = vmatpush1.msra.mxu0 %v337
    %2919 = vmatprep.subr.mxu0 %v342
    %2920 = vmatpush1.msra.mxu0 %v341
    %2921 = vmatprep.subr.mxu0 0.0
    %2922 = vmatpush1.msra.mxu0 0.0
    %2923 = vmatprep.subr.mxu0 0.0
    %2924 = vmatpush1.msra.mxu0 0.0
    %2925 = vmatprep.subr.mxu0 0.0
    %2926 = vmatpush1.msra.mxu0 0.0
    %2927 = vmatprep.subr.mxu0 0.0
    %2928 = vmatpush1.msra.mxu0 0.0
    %2929 = vmatprep.subr.mxu0 0.0
    %2930 = vmatpush1.msra.mxu0 0.0
    %2931 = vmatprep.subr.mxu0 0.0
    %2932 = vmatpush1.msra.mxu0 0.0
    %2933 = vmatprep.subr.mxu0 0.0
    %2934 = vmatpush1.msra.mxu0 0.0
    %2935 = vmatprep.subr.mxu0 0.0
    %2936 = vmatpush1.msra.mxu0 0.0
    %2937 = vmatprep.subr.mxu0 0.0
    %2938 = vmatpush1.msra.mxu0 0.0
    %2939 = vmatprep.subr.mxu0 0.0
    %2940 = vmatpush1.msra.mxu0 0.0
    %2941 = vmatprep.subr.mxu0 0.0
    %2942 = vmatpush1.msra.mxu0 0.0
    %2943 = vmatprep.subr.mxu0 0.0
    %2944 = vmatpush1.msra.mxu0 0.0
    %2945 = vmatprep.subr.mxu0 0.0
    %2946 = vmatpush1.msra.mxu0 0.0
    %2947 = vmatprep.subr.mxu0 0.0
    %2948 = vmatpush1.msra.mxu0 0.0
    %2949 = vmatprep.subr.mxu0 0.0
    %2950 = vmatpush1.msra.mxu0 0.0
    %2951 = vmatprep.subr.mxu0 0.0
    %2952 = vmatpush1.msra.mxu0 0.0
    %2953 = vmatprep.mubr.f32.mxu0 0.0
    %2954 = vmatmul.mubr.f32.gmra.mrb[0].mxu0 %v2706
    %v2955 = vpop.f32.mrb[0].mxu0
    %v2956 = vadd.f32 %v2881, %v2955
    %v2957 = vpop.f32.mrb[0].mxu0
    %v2958 = vadd.f32 %v2882, %v2957
    %2959 = vdwg.mxu0
    %2960 = vmatprep.subr.mxu0 %v284
    %2961 = vmatpush1.msra.mxu0 %v283
    %2962 = vmatprep.subr.mxu0 %v288
    %2963 = vmatpush1.msra.mxu0 %v287
    %2964 = vmatprep.subr.mxu0 %v292
    %2965 = vmatpush1.msra.mxu0 %v291
    %2966 = vmatprep.subr.mxu0 %v296
    %2967 = vmatpush1.msra.mxu0 %v295
    %2968 = vmatprep.subr.mxu0 %v300
    %2969 = vmatpush1.msra.mxu0 %v299
    %2970 = vmatprep.subr.mxu0 %v304
    %2971 = vmatpush1.msra.mxu0 %v303
    %2972 = vmatprep.subr.mxu0 %v308
    %2973 = vmatpush1.msra.mxu0 %v307
    %2974 = vmatprep.subr.mxu0 %v312
    %2975 = vmatpush1.msra.mxu0 %v311
    %2976 = vmatprep.subr.mxu0 %v316
    %2977 = vmatpush1.msra.mxu0 %v315
    %2978 = vmatprep.subr.mxu0 %v320
    %2979 = vmatpush1.msra.mxu0 %v319
    %2980 = vmatprep.subr.mxu0 %v324
    %2981 = vmatpush1.msra.mxu0 %v323
    %2982 = vmatprep.subr.mxu0 %v328
    %2983 = vmatpush1.msra.mxu0 %v327
    %2984 = vmatprep.subr.mxu0 %v332
    %2985 = vmatpush1.msra.mxu0 %v331
    %2986 = vmatprep.subr.mxu0 %v336
    %2987 = vmatpush1.msra.mxu0 %v335
    %2988 = vmatprep.subr.mxu0 %v340
    %2989 = vmatpush1.msra.mxu0 %v339
    %2990 = vmatprep.subr.mxu0 %v344
    %2991 = vmatpush1.msra.mxu0 %v343
    %2992 = vmatprep.subr.mxu0 0.0
    %2993 = vmatpush1.msra.mxu0 0.0
    %2994 = vmatprep.subr.mxu0 0.0
    %2995 = vmatpush1.msra.mxu0 0.0
    %2996 = vmatprep.subr.mxu0 0.0
    %2997 = vmatpush1.msra.mxu0 0.0
    %2998 = vmatprep.subr.mxu0 0.0
    %2999 = vmatpush1.msra.mxu0 0.0
    %3000 = vmatprep.subr.mxu0 0.0
    %3001 = vmatpush1.msra.mxu0 0.0
    %3002 = vmatprep.subr.mxu0 0.0
    %3003 = vmatpush1.msra.mxu0 0.0
    %3004 = vmatprep.subr.mxu0 0.0
    %3005 = vmatpush1.msra.mxu0 0.0
    %3006 = vmatprep.subr.mxu0 0.0
    %3007 = vmatpush1.msra.mxu0 0.0
    %3008 = vmatprep.subr.mxu0 0.0
    %3009 = vmatpush1.msra.mxu0 0.0
    %3010 = vmatprep.subr.mxu0 0.0
    %3011 = vmatpush1.msra.mxu0 0.0
    %3012 = vmatprep.subr.mxu0 0.0
    %3013 = vmatpush1.msra.mxu0 0.0
    %3014 = vmatprep.subr.mxu0 0.0
    %3015 = vmatpush1.msra.mxu0 0.0
    %3016 = vmatprep.subr.mxu0 0.0
    %3017 = vmatpush1.msra.mxu0 0.0
    %3018 = vmatprep.subr.mxu0 0.0
    %3019 = vmatpush1.msra.mxu0 0.0
    %3020 = vmatprep.subr.mxu0 0.0
    %3021 = vmatpush1.msra.mxu0 0.0
    %3022 = vmatprep.subr.mxu0 0.0
    %3023 = vmatpush1.msra.mxu0 0.0
    %3024 = vmatprep.mubr.f32.mxu0 0.0
    %3025 = vmatmul.mubr.f32.gmra.mrb[0].mxu0 %v2706
    %v3026 = vpop.f32.mrb[0].mxu0
    %v3027 = vadd.f32 %v2883, %v3026
    %v3028 = vpop.f32.mrb[0].mxu0
    %v3029 = vadd.f32 %v2884, %v3028
    %3030 = vdwg.mxu0
    %v3031 = vxor.u32 %v2956, 2147483648
    %v3032 = vmul.f32 %v3031, 1.442695
    %v3033 = vpow.pop %v3032
    %v3034 = vadd.f32 %v3033, 1.0
    %v3035 = vrcp.pop %v3034
    %v3036 = vmul.f32 1.0, %v3035
    %v3037 = vxor.u32 %v2958, 2147483648
    %v3038 = vmul.f32 %v3037, 1.442695
    %v3039 = vpow.pop %v3038
    %v3040 = vadd.f32 %v3039, 1.0
    %v3041 = vrcp.pop %v3040
    %v3042 = vmul.f32 1.0, %v3041
    %v3043 = vtanh.pop %v3027
    %v3044 = vxor.u32 %v3029, 2147483648
    %v3045 = vmul.f32 %v3044, 1.442695
    %v3046 = vpow.pop %v3045
    %v3047 = vadd.f32 %v3046, 1.0
    %v3048 = vrcp.pop %v3047
    %v3049 = vmul.f32 1.0, %v3048
    %v3050 = vmul.f32 %v3042, %v2704
    %v3051 = vmul.f32 %v3036, %v3043
    %v3052 = vadd.f32 %v3050, %v3051
    %v3053 = vtanh.pop %v3052
    %v3054 = vmul.f32 %v3049, %v3053
    %v3055 = vrot.slane %v726, 6
    %v3056 = vrot.slane %v728, 6
    %v3057 = vrot.slane %v797, 6
    %v3058 = vrot.slane %v799, 6
    %3063 = vmatprep.subr.mxu0 %v411
    %3064 = vmatpush1.msra.mxu0 %v410
    %3065 = vmatprep.subr.mxu0 %v415
    %3066 = vmatpush1.msra.mxu0 %v414
    %3067 = vmatprep.subr.mxu0 %v419
    %3068 = vmatpush1.msra.mxu0 %v418
    %3069 = vmatprep.subr.mxu0 %v423
    %3070 = vmatpush1.msra.mxu0 %v422
    %3071 = vmatprep.subr.mxu0 %v427
    %3072 = vmatpush1.msra.mxu0 %v426
    %3073 = vmatprep.subr.mxu0 %v431
    %3074 = vmatpush1.msra.mxu0 %v430
    %3075 = vmatprep.subr.mxu0 %v435
    %3076 = vmatpush1.msra.mxu0 %v434
    %3077 = vmatprep.subr.mxu0 %v439
    %3078 = vmatpush1.msra.mxu0 %v438
    %3079 = vmatprep.subr.mxu0 %v443
    %3080 = vmatpush1.msra.mxu0 %v442
    %3081 = vmatprep.subr.mxu0 %v447
    %3082 = vmatpush1.msra.mxu0 %v446
    %3083 = vmatprep.subr.mxu0 %v451
    %3084 = vmatpush1.msra.mxu0 %v450
    %3085 = vmatprep.subr.mxu0 %v455
    %3086 = vmatpush1.msra.mxu0 %v454
    %3087 = vmatprep.subr.mxu0 %v459
    %3088 = vmatpush1.msra.mxu0 %v458
    %3089 = vmatprep.subr.mxu0 %v463
    %3090 = vmatpush1.msra.mxu0 %v462
    %3091 = vmatprep.subr.mxu0 %v467
    %3092 = vmatpush1.msra.mxu0 %v466
    %3093 = vmatprep.subr.mxu0 %v471
    %3094 = vmatpush1.msra.mxu0 %v470
    %3095 = vmatprep.subr.mxu0 0.0
    %3096 = vmatpush1.msra.mxu0 0.0
    %3097 = vmatprep.subr.mxu0 0.0
    %3098 = vmatpush1.msra.mxu0 0.0
    %3099 = vmatprep.subr.mxu0 0.0
    %3100 = vmatpush1.msra.mxu0 0.0
    %3101 = vmatprep.subr.mxu0 0.0
    %3102 = vmatpush1.msra.mxu0 0.0
    %3103 = vmatprep.subr.mxu0 0.0
    %3104 = vmatpush1.msra.mxu0 0.0
    %3105 = vmatprep.subr.mxu0 0.0
    %3106 = vmatpush1.msra.mxu0 0.0
    %3107 = vmatprep.subr.mxu0 0.0
    %3108 = vmatpush1.msra.mxu0 0.0
    %3109 = vmatprep.subr.mxu0 0.0
    %3110 = vmatpush1.msra.mxu0 0.0
    %3111 = vmatprep.subr.mxu0 0.0
    %3112 = vmatpush1.msra.mxu0 0.0
    %3113 = vmatprep.subr.mxu0 0.0
    %3114 = vmatpush1.msra.mxu0 0.0
    %3115 = vmatprep.subr.mxu0 0.0
    %3116 = vmatpush1.msra.mxu0 0.0
    %3117 = vmatprep.subr.mxu0 0.0
    %3118 = vmatpush1.msra.mxu0 0.0
    %3119 = vmatprep.subr.mxu0 0.0
    %3120 = vmatpush1.msra.mxu0 0.0
    %3121 = vmatprep.subr.mxu0 0.0
    %3122 = vmatpush1.msra.mxu0 0.0
    %3123 = vmatprep.subr.mxu0 0.0
    %3124 = vmatpush1.msra.mxu0 0.0
    %3125 = vmatprep.subr.mxu0 0.0
    %3126 = vmatpush1.msra.mxu0 0.0
    %3127 = vmatprep.mubr.f32.mxu0 0.0
    %3128 = vmatmul.mubr.f32.gmra.mrb[0].mxu0 %v2880
    %v3129 = vpop.f32.mrb[0].mxu0
    %v3130 = vadd.f32 %v3055, %v3129
    %v3131 = vpop.f32.mrb[0].mxu0
    %v3132 = vadd.f32 %v3056, %v3131
    %3133 = vdwg.mxu0
    %3134 = vmatprep.subr.mxu0 %v413
    %3135 = vmatpush1.msra.mxu0 %v412
    %3136 = vmatprep.subr.mxu0 %v417
    %3137 = vmatpush1.msra.mxu0 %v416
    %3138 = vmatprep.subr.mxu0 %v421
    %3139 = vmatpush1.msra.mxu0 %v420
    %3140 = vmatprep.subr.mxu0 %v425
    %3141 = vmatpush1.msra.mxu0 %v424
    %3142 = vmatprep.subr.mxu0 %v429
    %3143 = vmatpush1.msra.mxu0 %v428
    %3144 = vmatprep.subr.mxu0 %v433
    %3145 = vmatpush1.msra.mxu0 %v432
    %3146 = vmatprep.subr.mxu0 %v437
    %3147 = vmatpush1.msra.mxu0 %v436
    %3148 = vmatprep.subr.mxu0 %v441
    %3149 = vmatpush1.msra.mxu0 %v440
    %3150 = vmatprep.subr.mxu0 %v445
    %3151 = vmatpush1.msra.mxu0 %v444
    %3152 = vmatprep.subr.mxu0 %v449
    %3153 = vmatpush1.msra.mxu0 %v448
    %3154 = vmatprep.subr.mxu0 %v453
    %3155 = vmatpush1.msra.mxu0 %v452
    %3156 = vmatprep.subr.mxu0 %v457
    %3157 = vmatpush1.msra.mxu0 %v456
    %3158 = vmatprep.subr.mxu0 %v461
    %3159 = vmatpush1.msra.mxu0 %v460
    %3160 = vmatprep.subr.mxu0 %v465
    %3161 = vmatpush1.msra.mxu0 %v464
    %3162 = vmatprep.subr.mxu0 %v469
    %3163 = vmatpush1.msra.mxu0 %v468
    %3164 = vmatprep.subr.mxu0 %v473
    %3165 = vmatpush1.msra.mxu0 %v472
    %3166 = vmatprep.subr.mxu0 0.0
    %3167 = vmatpush1.msra.mxu0 0.0
    %3168 = vmatprep.subr.mxu0 0.0
    %3169 = vmatpush1.msra.mxu0 0.0
    %3170 = vmatprep.subr.mxu0 0.0
    %3171 = vmatpush1.msra.mxu0 0.0
    %3172 = vmatprep.subr.mxu0 0.0
    %3173 = vmatpush1.msra.mxu0 0.0
    %3174 = vmatprep.subr.mxu0 0.0
    %3175 = vmatpush1.msra.mxu0 0.0
    %3176 = vmatprep.subr.mxu0 0.0
    %3177 = vmatpush1.msra.mxu0 0.0
    %3178 = vmatprep.subr.mxu0 0.0
    %3179 = vmatpush1.msra.mxu0 0.0
    %3180 = vmatprep.subr.mxu0 0.0
    %3181 = vmatpush1.msra.mxu0 0.0
    %3182 = vmatprep.subr.mxu0 0.0
    %3183 = vmatpush1.msra.mxu0 0.0
    %3184 = vmatprep.subr.mxu0 0.0
    %3185 = vmatpush1.msra.mxu0 0.0
    %3186 = vmatprep.subr.mxu0 0.0
    %3187 = vmatpush1.msra.mxu0 0.0
    %3188 = vmatprep.subr.mxu0 0.0
    %3189 = vmatpush1.msra.mxu0 0.0
    %3190 = vmatprep.subr.mxu0 0.0
    %3191 = vmatpush1.msra.mxu0 0.0
    %3192 = vmatprep.subr.mxu0 0.0
    %3193 = vmatpush1.msra.mxu0 0.0
    %3194 = vmatprep.subr.mxu0 0.0
    %3195 = vmatpush1.msra.mxu0 0.0
    %3196 = vmatprep.subr.mxu0 0.0
    %3197 = vmatpush1.msra.mxu0 0.0
    %3198 = vmatprep.mubr.f32.mxu0 0.0
    %3199 = vmatmul.mubr.f32.gmra.mrb[0].mxu0 %v2880
    %v3200 = vpop.f32.mrb[0].mxu0
    %v3201 = vadd.f32 %v3057, %v3200
    %v3202 = vpop.f32.mrb[0].mxu0
    %v3203 = vadd.f32 %v3058, %v3202
    %3204 = vdwg.mxu0
    %v3205 = vxor.u32 %v3130, 2147483648
    %v3206 = vmul.f32 %v3205, 1.442695
    %v3207 = vpow.pop %v3206
    %v3208 = vadd.f32 %v3207, 1.0
    %v3209 = vrcp.pop %v3208
    %v3210 = vmul.f32 1.0, %v3209
    %v3211 = vxor.u32 %v3132, 2147483648
    %v3212 = vmul.f32 %v3211, 1.442695
    %v3213 = vpow.pop %v3212
    %v3214 = vadd.f32 %v3213, 1.0
    %v3215 = vrcp.pop %v3214
    %v3216 = vmul.f32 1.0, %v3215
    %v3217 = vtanh.pop %v3201
    %v3218 = vxor.u32 %v3203, 2147483648
    %v3219 = vmul.f32 %v3218, 1.442695
    %v3220 = vpow.pop %v3219
    %v3221 = vadd.f32 %v3220, 1.0
    %v3222 = vrcp.pop %v3221
    %v3223 = vmul.f32 1.0, %v3222
    %v3224 = vmul.f32 %v3216, %v2878
    %v3225 = vmul.f32 %v3210, %v3217
    %v3226 = vadd.f32 %v3224, %v3225
    %v3227 = vtanh.pop %v3226
    %v3228 = vmul.f32 %v3223, %v3227
    %v3229 = vrot.slane %v563, 7
    %v3230 = vrot.slane %v565, 7
    %v3231 = vrot.slane %v634, 7
    %v3232 = vrot.slane %v636, 7
    %3237 = vmatprep.subr.mxu0 %v282
    %3238 = vmatpush1.msra.mxu0 %v281
    %3239 = vmatprep.subr.mxu0 %v286
    %3240 = vmatpush1.msra.mxu0 %v285
    %3241 = vmatprep.subr.mxu0 %v290
    %3242 = vmatpush1.msra.mxu0 %v289
    %3243 = vmatprep.subr.mxu0 %v294
    %3244 = vmatpush1.msra.mxu0 %v293
    %3245 = vmatprep.subr.mxu0 %v298
    %3246 = vmatpush1.msra.mxu0 %v297
    %3247 = vmatprep.subr.mxu0 %v302
    %3248 = vmatpush1.msra.mxu0 %v301
    %3249 = vmatprep.subr.mxu0 %v306
    %3250 = vmatpush1.msra.mxu0 %v305
    %3251 = vmatprep.subr.mxu0 %v310
    %3252 = vmatpush1.msra.mxu0 %v309
    %3253 = vmatprep.subr.mxu0 %v314
    %3254 = vmatpush1.msra.mxu0 %v313
    %3255 = vmatprep.subr.mxu0 %v318
    %3256 = vmatpush1.msra.mxu0 %v317
    %3257 = vmatprep.subr.mxu0 %v322
    %3258 = vmatpush1.msra.mxu0 %v321
    %3259 = vmatprep.subr.mxu0 %v326
    %3260 = vmatpush1.msra.mxu0 %v325
    %3261 = vmatprep.subr.mxu0 %v330
    %3262 = vmatpush1.msra.mxu0 %v329
    %3263 = vmatprep.subr.mxu0 %v334
    %3264 = vmatpush1.msra.mxu0 %v333
    %3265 = vmatprep.subr.mxu0 %v338
    %3266 = vmatpush1.msra.mxu0 %v337
    %3267 = vmatprep.subr.mxu0 %v342
    %3268 = vmatpush1.msra.mxu0 %v341
    %3269 = vmatprep.subr.mxu0 0.0
    %3270 = vmatpush1.msra.mxu0 0.0
    %3271 = vmatprep.subr.mxu0 0.0
    %3272 = vmatpush1.msra.mxu0 0.0
    %3273 = vmatprep.subr.mxu0 0.0
    %3274 = vmatpush1.msra.mxu0 0.0
    %3275 = vmatprep.subr.mxu0 0.0
    %3276 = vmatpush1.msra.mxu0 0.0
    %3277 = vmatprep.subr.mxu0 0.0
    %3278 = vmatpush1.msra.mxu0 0.0
    %3279 = vmatprep.subr.mxu0 0.0
    %3280 = vmatpush1.msra.mxu0 0.0
    %3281 = vmatprep.subr.mxu0 0.0
    %3282 = vmatpush1.msra.mxu0 0.0
    %3283 = vmatprep.subr.mxu0 0.0
    %3284 = vmatpush1.msra.mxu0 0.0
    %3285 = vmatprep.subr.mxu0 0.0
    %3286 = vmatpush1.msra.mxu0 0.0
    %3287 = vmatprep.subr.mxu0 0.0
    %3288 = vmatpush1.msra.mxu0 0.0
    %3289 = vmatprep.subr.mxu0 0.0
    %3290 = vmatpush1.msra.mxu0 0.0
    %3291 = vmatprep.subr.mxu0 0.0
    %3292 = vmatpush1.msra.mxu0 0.0
    %3293 = vmatprep.subr.mxu0 0.0
    %3294 = vmatpush1.msra.mxu0 0.0
    %3295 = vmatprep.subr.mxu0 0.0
    %3296 = vmatpush1.msra.mxu0 0.0
    %3297 = vmatprep.subr.mxu0 0.0
    %3298 = vmatpush1.msra.mxu0 0.0
    %3299 = vmatprep.subr.mxu0 0.0
    %3300 = vmatpush1.msra.mxu0 0.0
    %3301 = vmatprep.mubr.f32.mxu0 0.0
    %3302 = vmatmul.mubr.f32.gmra.mrb[0].mxu0 %v3054
    %v3303 = vpop.f32.mrb[0].mxu0
    %v3304 = vadd.f32 %v3229, %v3303
    %v3305 = vpop.f32.mrb[0].mxu0
    %v3306 = vadd.f32 %v3230, %v3305
    %3307 = vdwg.mxu0
    %3308 = vmatprep.subr.mxu0 %v284
    %3309 = vmatpush1.msra.mxu0 %v283
    %3310 = vmatprep.subr.mxu0 %v288
    %3311 = vmatpush1.msra.mxu0 %v287
    %3312 = vmatprep.subr.mxu0 %v292
    %3313 = vmatpush1.msra.mxu0 %v291
    %3314 = vmatprep.subr.mxu0 %v296
    %3315 = vmatpush1.msra.mxu0 %v295
    %3316 = vmatprep.subr.mxu0 %v300
    %3317 = vmatpush1.msra.mxu0 %v299
    %3318 = vmatprep.subr.mxu0 %v304
    %3319 = vmatpush1.msra.mxu0 %v303
    %3320 = vmatprep.subr.mxu0 %v308
    %3321 = vmatpush1.msra.mxu0 %v307
    %3322 = vmatprep.subr.mxu0 %v312
    %3323 = vmatpush1.msra.mxu0 %v311
    %3324 = vmatprep.subr.mxu0 %v316
    %3325 = vmatpush1.msra.mxu0 %v315
    %3326 = vmatprep.subr.mxu0 %v320
    %3327 = vmatpush1.msra.mxu0 %v319
    %3328 = vmatprep.subr.mxu0 %v324
    %3329 = vmatpush1.msra.mxu0 %v323
    %3330 = vmatprep.subr.mxu0 %v328
    %3331 = vmatpush1.msra.mxu0 %v327
    %3332 = vmatprep.subr.mxu0 %v332
    %3333 = vmatpush1.msra.mxu0 %v331
    %3334 = vmatprep.subr.mxu0 %v336
    %3335 = vmatpush1.msra.mxu0 %v335
    %3336 = vmatprep.subr.mxu0 %v340
    %3337 = vmatpush1.msra.mxu0 %v339
    %3338 = vmatprep.subr.mxu0 %v344
    %3339 = vmatpush1.msra.mxu0 %v343
    %3340 = vmatprep.subr.mxu0 0.0
    %3341 = vmatpush1.msra.mxu0 0.0
    %3342 = vmatprep.subr.mxu0 0.0
    %3343 = vmatpush1.msra.mxu0 0.0
    %3344 = vmatprep.subr.mxu0 0.0
    %3345 = vmatpush1.msra.mxu0 0.0
    %3346 = vmatprep.subr.mxu0 0.0
    %3347 = vmatpush1.msra.mxu0 0.0
    %3348 = vmatprep.subr.mxu0 0.0
    %3349 = vmatpush1.msra.mxu0 0.0
    %3350 = vmatprep.subr.mxu0 0.0
    %3351 = vmatpush1.msra.mxu0 0.0
    %3352 = vmatprep.subr.mxu0 0.0
    %3353 = vmatpush1.msra.mxu0 0.0
    %3354 = vmatprep.subr.mxu0 0.0
    %3355 = vmatpush1.msra.mxu0 0.0
    %3356 = vmatprep.subr.mxu0 0.0
    %3357 = vmatpush1.msra.mxu0 0.0
    %3358 = vmatprep.subr.mxu0 0.0
    %3359 = vmatpush1.msra.mxu0 0.0
    %3360 = vmatprep.subr.mxu0 0.0
    %3361 = vmatpush1.msra.mxu0 0.0
    %3362 = vmatprep.subr.mxu0 0.0
    %3363 = vmatpush1.msra.mxu0 0.0
    %3364 = vmatprep.subr.mxu0 0.0
    %3365 = vmatpush1.msra.mxu0 0.0
    %3366 = vmatprep.subr.mxu0 0.0
    %3367 = vmatpush1.msra.mxu0 0.0
    %3368 = vmatprep.subr.mxu0 0.0
    %3369 = vmatpush1.msra.mxu0 0.0
    %3370 = vmatprep.subr.mxu0 0.0
    %3371 = vmatpush1.msra.mxu0 0.0
    %3372 = vmatprep.mubr.f32.mxu0 0.0
    %3373 = vmatmul.mubr.f32.gmra.mrb[0].mxu0 %v3054
    %v3374 = vpop.f32.mrb[0].mxu0
    %v3375 = vadd.f32 %v3231, %v3374
    %v3376 = vpop.f32.mrb[0].mxu0
    %v3377 = vadd.f32 %v3232, %v3376
    %3378 = vdwg.mxu0
    %v3379 = vxor.u32 %v3304, 2147483648
    %v3380 = vmul.f32 %v3379, 1.442695
    %v3381 = vpow.pop %v3380
    %v3382 = vadd.f32 %v3381, 1.0
    %v3383 = vrcp.pop %v3382
    %v3384 = vmul.f32 1.0, %v3383
    %v3385 = vxor.u32 %v3306, 2147483648
    %v3386 = vmul.f32 %v3385, 1.442695
    %v3387 = vpow.pop %v3386
    %v3388 = vadd.f32 %v3387, 1.0
    %v3389 = vrcp.pop %v3388
    %v3390 = vmul.f32 1.0, %v3389
    %v3391 = vtanh.pop %v3375
    %v3392 = vxor.u32 %v3377, 2147483648
    %v3393 = vmul.f32 %v3392, 1.442695
    %v3394 = vpow.pop %v3393
    %v3395 = vadd.f32 %v3394, 1.0
    %v3396 = vrcp.pop %v3395
    %v3397 = vmul.f32 1.0, %v3396
    %v3398 = vmul.f32 %v3390, %v3052
    %v3399 = vmul.f32 %v3384, %v3391
    %v3400 = vadd.f32 %v3398, %v3399
    %v3401 = vtanh.pop %v3400
    %v3402 = vmul.f32 %v3397, %v3401
    %v3403 = vrot.slane %v726, 7
    %v3404 = vrot.slane %v728, 7
    %v3405 = vrot.slane %v797, 7
    %v3406 = vrot.slane %v799, 7
    %3411 = vmatprep.subr.mxu0 %v411
    %3412 = vmatpush1.msra.mxu0 %v410
    %3413 = vmatprep.subr.mxu0 %v415
    %3414 = vmatpush1.msra.mxu0 %v414
    %3415 = vmatprep.subr.mxu0 %v419
    %3416 = vmatpush1.msra.mxu0 %v418
    %3417 = vmatprep.subr.mxu0 %v423
    %3418 = vmatpush1.msra.mxu0 %v422
    %3419 = vmatprep.subr.mxu0 %v427
    %3420 = vmatpush1.msra.mxu0 %v426
    %3421 = vmatprep.subr.mxu0 %v431
    %3422 = vmatpush1.msra.mxu0 %v430
    %3423 = vmatprep.subr.mxu0 %v435
    %3424 = vmatpush1.msra.mxu0 %v434
    %3425 = vmatprep.subr.mxu0 %v439
    %3426 = vmatpush1.msra.mxu0 %v438
    %3427 = vmatprep.subr.mxu0 %v443
    %3428 = vmatpush1.msra.mxu0 %v442
    %3429 = vmatprep.subr.mxu0 %v447
    %3430 = vmatpush1.msra.mxu0 %v446
    %3431 = vmatprep.subr.mxu0 %v451
    %3432 = vmatpush1.msra.mxu0 %v450
    %3433 = vmatprep.subr.mxu0 %v455
    %3434 = vmatpush1.msra.mxu0 %v454
    %3435 = vmatprep.subr.mxu0 %v459
    %3436 = vmatpush1.msra.mxu0 %v458
    %3437 = vmatprep.subr.mxu0 %v463
    %3438 = vmatpush1.msra.mxu0 %v462
    %3439 = vmatprep.subr.mxu0 %v467
    %3440 = vmatpush1.msra.mxu0 %v466
    %3441 = vmatprep.subr.mxu0 %v471
    %3442 = vmatpush1.msra.mxu0 %v470
    %3443 = vmatprep.subr.mxu0 0.0
    %3444 = vmatpush1.msra.mxu0 0.0
    %3445 = vmatprep.subr.mxu0 0.0
    %3446 = vmatpush1.msra.mxu0 0.0
    %3447 = vmatprep.subr.mxu0 0.0
    %3448 = vmatpush1.msra.mxu0 0.0
    %3449 = vmatprep.subr.mxu0 0.0
    %3450 = vmatpush1.msra.mxu0 0.0
    %3451 = vmatprep.subr.mxu0 0.0
    %3452 = vmatpush1.msra.mxu0 0.0
    %3453 = vmatprep.subr.mxu0 0.0
    %3454 = vmatpush1.msra.mxu0 0.0
    %3455 = vmatprep.subr.mxu0 0.0
    %3456 = vmatpush1.msra.mxu0 0.0
    %3457 = vmatprep.subr.mxu0 0.0
    %3458 = vmatpush1.msra.mxu0 0.0
    %3459 = vmatprep.subr.mxu0 0.0
    %3460 = vmatpush1.msra.mxu0 0.0
    %3461 = vmatprep.subr.mxu0 0.0
    %3462 = vmatpush1.msra.mxu0 0.0
    %3463 = vmatprep.subr.mxu0 0.0
    %3464 = vmatpush1.msra.mxu0 0.0
    %3465 = vmatprep.subr.mxu0 0.0
    %3466 = vmatpush1.msra.mxu0 0.0
    %3467 = vmatprep.subr.mxu0 0.0
    %3468 = vmatpush1.msra.mxu0 0.0
    %3469 = vmatprep.subr.mxu0 0.0
    %3470 = vmatpush1.msra.mxu0 0.0
    %3471 = vmatprep.subr.mxu0 0.0
    %3472 = vmatpush1.msra.mxu0 0.0
    %3473 = vmatprep.subr.mxu0 0.0
    %3474 = vmatpush1.msra.mxu0 0.0
    %3475 = vmatprep.mubr.f32.mxu0 0.0
    %3476 = vmatmul.mubr.f32.gmra.mrb[0].mxu0 %v3228
    %v3477 = vpop.f32.mrb[0].mxu0
    %v3478 = vadd.f32 %v3403, %v3477
    %v3479 = vpop.f32.mrb[0].mxu0
    %v3480 = vadd.f32 %v3404, %v3479
    %3481 = vdwg.mxu0
    %3482 = vmatprep.subr.mxu0 %v413
    %3483 = vmatpush1.msra.mxu0 %v412
    %3484 = vmatprep.subr.mxu0 %v417
    %3485 = vmatpush1.msra.mxu0 %v416
    %3486 = vmatprep.subr.mxu0 %v421
    %3487 = vmatpush1.msra.mxu0 %v420
    %3488 = vmatprep.subr.mxu0 %v425
    %3489 = vmatpush1.msra.mxu0 %v424
    %3490 = vmatprep.subr.mxu0 %v429
    %3491 = vmatpush1.msra.mxu0 %v428
    %3492 = vmatprep.subr.mxu0 %v433
    %3493 = vmatpush1.msra.mxu0 %v432
    %3494 = vmatprep.subr.mxu0 %v437
    %3495 = vmatpush1.msra.mxu0 %v436
    %3496 = vmatprep.subr.mxu0 %v441
    %3497 = vmatpush1.msra.mxu0 %v440
    %3498 = vmatprep.subr.mxu0 %v445
    %3499 = vmatpush1.msra.mxu0 %v444
    %3500 = vmatprep.subr.mxu0 %v449
    %3501 = vmatpush1.msra.mxu0 %v448
    %3502 = vmatprep.subr.mxu0 %v453
    %3503 = vmatpush1.msra.mxu0 %v452
    %3504 = vmatprep.subr.mxu0 %v457
    %3505 = vmatpush1.msra.mxu0 %v456
    %3506 = vmatprep.subr.mxu0 %v461
    %3507 = vmatpush1.msra.mxu0 %v460
    %3508 = vmatprep.subr.mxu0 %v465
    %3509 = vmatpush1.msra.mxu0 %v464
    %3510 = vmatprep.subr.mxu0 %v469
    %3511 = vmatpush1.msra.mxu0 %v468
    %3512 = vmatprep.subr.mxu0 %v473
    %3513 = vmatpush1.msra.mxu0 %v472
    %3514 = vmatprep.subr.mxu0 0.0
    %3515 = vmatpush1.msra.mxu0 0.0
    %3516 = vmatprep.subr.mxu0 0.0
    %3517 = vmatpush1.msra.mxu0 0.0
    %3518 = vmatprep.subr.mxu0 0.0
    %3519 = vmatpush1.msra.mxu0 0.0
    %3520 = vmatprep.subr.mxu0 0.0
    %3521 = vmatpush1.msra.mxu0 0.0
    %3522 = vmatprep.subr.mxu0 0.0
    %3523 = vmatpush1.msra.mxu0 0.0
    %3524 = vmatprep.subr.mxu0 0.0
    %3525 = vmatpush1.msra.mxu0 0.0
    %3526 = vmatprep.subr.mxu0 0.0
    %3527 = vmatpush1.msra.mxu0 0.0
    %3528 = vmatprep.subr.mxu0 0.0
    %3529 = vmatpush1.msra.mxu0 0.0
    %3530 = vmatprep.subr.mxu0 0.0
    %3531 = vmatpush1.msra.mxu0 0.0
    %3532 = vmatprep.subr.mxu0 0.0
    %3533 = vmatpush1.msra.mxu0 0.0
    %3534 = vmatprep.subr.mxu0 0.0
    %3535 = vmatpush1.msra.mxu0 0.0
    %3536 = vmatprep.subr.mxu0 0.0
    %3537 = vmatpush1.msra.mxu0 0.0
    %3538 = vmatprep.subr.mxu0 0.0
    %3539 = vmatpush1.msra.mxu0 0.0
    %3540 = vmatprep.subr.mxu0 0.0
    %3541 = vmatpush1.msra.mxu0 0.0
    %3542 = vmatprep.subr.mxu0 0.0
    %3543 = vmatpush1.msra.mxu0 0.0
    %3544 = vmatprep.subr.mxu0 0.0
    %3545 = vmatpush1.msra.mxu0 0.0
    %3546 = vmatprep.mubr.f32.mxu0 0.0
    %3547 = vmatmul.mubr.f32.gmra.mrb[0].mxu0 %v3228
    %v3548 = vpop.f32.mrb[0].mxu0
    %v3549 = vadd.f32 %v3405, %v3548
    %v3550 = vpop.f32.mrb[0].mxu0
    %v3551 = vadd.f32 %v3406, %v3550
    %3552 = vdwg.mxu0
    %v3553 = vxor.u32 %v3478, 2147483648
    %v3554 = vmul.f32 %v3553, 1.442695
    %v3555 = vpow.pop %v3554
    %v3556 = vadd.f32 %v3555, 1.0
    %v3557 = vrcp.pop %v3556
    %v3558 = vmul.f32 1.0, %v3557
    %v3559 = vxor.u32 %v3480, 2147483648
    %v3560 = vmul.f32 %v3559, 1.442695
    %v3561 = vpow.pop %v3560
    %v3562 = vadd.f32 %v3561, 1.0
    %v3563 = vrcp.pop %v3562
    %v3564 = vmul.f32 1.0, %v3563
    %v3565 = vtanh.pop %v3549
    %v3566 = vxor.u32 %v3551, 2147483648
    %v3567 = vmul.f32 %v3566, 1.442695
    %v3568 = vpow.pop %v3567
    %v3569 = vadd.f32 %v3568, 1.0
    %v3570 = vrcp.pop %v3569
    %v3571 = vmul.f32 1.0, %v3570
    %v3572 = vmul.f32 %v3564, %v3226
    %v3573 = vmul.f32 %v3558, %v3565
    %v3574 = vadd.f32 %v3572, %v3573
    %v3575 = vtanh.pop %v3574
    %v3576 = vmul.f32 %v3571, %v3575
    %v3578 = vrot.slane %v1310, 7
    %v3581 = vrot.slane %v1662, 6
    %v3584 = vrot.slane %v2010, 5
    %v3587 = vrot.slane %v2358, 4
    %v3590 = vrot.slane %v2706, 3
    %v3593 = vrot.slane %v3054, 2
    %v3596 = vrot.slane %v3402, 1
    %vm3598 = vcmask 1040384
    %v3599 = vsel %vm3598, %v966, %v3578
    %vm3600 = vcmask 1041408
    %v3601 = vsel %vm3600, %v3599, %v3581
    %vm3602 = vcmask 1042432
    %v3603 = vsel %vm3602, %v3601, %v3584
    %vm3604 = vcmask 1043456
    %v3605 = vsel %vm3604, %v3603, %v3587
    %vm3606 = vcmask 1044480
    %v3607 = vsel %vm3606, %v3605, %v3590
    %vm3608 = vcmask 1045504
    %v3609 = vsel %vm3608, %v3607, %v3593
    %vm3610 = vcmask 1046528
    %v3611 = vsel %vm3610, %v3609, %v3596
    %v3613 = vrot.slane %v3228, 7
    %v3616 = vrot.slane %v2880, 6
    %v3619 = vrot.slane %v2532, 5
    %v3622 = vrot.slane %v2184, 4
    %v3625 = vrot.slane %v1836, 3
    %v3628 = vrot.slane %v1488, 2
    %v3631 = vrot.slane %v1132, 1
    %v3633 = vsel %vm3598, %v3576, %v3613
    %v3634 = vsel %vm3600, %v3633, %v3616
    %v3635 = vsel %vm3602, %v3634, %v3619
    %v3636 = vsel %vm3604, %v3635, %v3622
    %v3637 = vsel %vm3606, %v3636, %v3625
    %v3638 = vsel %vm3608, %v3637, %v3628
    %v3639 = vsel %vm3610, %v3638, %v3631
    %v3640 = vld [vmem:[#allocation12] sm:$0xff]
    %v3641 = vld [vmem:[#allocation12 + $0x8] sm:$0xff]
    %v3642 = vld [vmem:[#allocation12 + $0x10] sm:$0xff]
    %v3643 = vld [vmem:[#allocation12 + $0x18] sm:$0xff]
    %v3644 = vld [vmem:[#allocation12 + $0x20] sm:$0xff]
    %v3645 = vld [vmem:[#allocation12 + $0x28] sm:$0xff]
    %v3646 = vld [vmem:[#allocation12 + $0x30] sm:$0xff]
    %v3647 = vld [vmem:[#allocation12 + $0x38] sm:$0xff]
    %v3648 = vld [vmem:[#allocation12 + $0x40] sm:$0xff]
    %v3649 = vld [vmem:[#allocation12 + $0x48] sm:$0xff]
    %v3650 = vld [vmem:[#allocation12 + $0x50] sm:$0xff]
    %v3651 = vld [vmem:[#allocation12 + $0x58] sm:$0xff]
    %v3652 = vld [vmem:[#allocation12 + $0x60] sm:$0xff]
    %v3653 = vld [vmem:[#allocation12 + $0x68] sm:$0xff]
    %v3654 = vld [vmem:[#allocation12 + $0x70] sm:$0xff]
    %v3655 = vld [vmem:[#allocation12 + $0x78] sm:$0xff]
    %v3656 = vld [vmem:[#allocation12 + $0x80] sm:$0xff]
    %v3657 = vld [vmem:[#allocation12 + $0x88] sm:$0xff]
    %v3658 = vld [vmem:[#allocation12 + $0x90] sm:$0xff]
    %v3659 = vld [vmem:[#allocation12 + $0x98] sm:$0xff]
    %v3660 = vld [vmem:[#allocation12 + $0xa0] sm:$0xff]
    %v3661 = vld [vmem:[#allocation12 + $0xa8] sm:$0xff]
    %v3662 = vld [vmem:[#allocation12 + $0xb0] sm:$0xff]
    %v3663 = vld [vmem:[#allocation12 + $0xb8] sm:$0xff]
    %v3664 = vld [vmem:[#allocation12 + $0xc0] sm:$0xff]
    %v3665 = vld [vmem:[#allocation12 + $0xc8] sm:$0xff]
    %v3666 = vld [vmem:[#allocation12 + $0xd0] sm:$0xff]
    %v3667 = vld [vmem:[#allocation12 + $0xd8] sm:$0xff]
    %v3668 = vld [vmem:[#allocation12 + $0xe0] sm:$0xff]
    %v3669 = vld [vmem:[#allocation12 + $0xe8] sm:$0xff]
    %v3670 = vld [vmem:[#allocation12 + $0xf0] sm:$0xff]
    %v3671 = vld [vmem:[#allocation12 + $0xf8] sm:$0xff]
    %v3672 = vld [vmem:[#allocation12 + $0x100] sm:$0xff]
    %v3673 = vld [vmem:[#allocation12 + $0x108] sm:$0xff]
    %v3674 = vld [vmem:[#allocation12 + $0x110] sm:$0xff]
    %v3675 = vld [vmem:[#allocation12 + $0x118] sm:$0xff]
    %v3676 = vld [vmem:[#allocation12 + $0x120] sm:$0xff]
    %v3677 = vld [vmem:[#allocation12 + $0x128] sm:$0xff]
    %v3678 = vld [vmem:[#allocation12 + $0x130] sm:$0xff]
    %v3679 = vld [vmem:[#allocation12 + $0x138] sm:$0xff]
    %v3680 = vld [vmem:[#allocation12 + $0x140] sm:$0xff]
    %v3681 = vld [vmem:[#allocation12 + $0x148] sm:$0xff]
    %v3682 = vld [vmem:[#allocation12 + $0x150] sm:$0xff]
    %v3683 = vld [vmem:[#allocation12 + $0x158] sm:$0xff]
    %v3684 = vld [vmem:[#allocation12 + $0x160] sm:$0xff]
    %v3685 = vld [vmem:[#allocation12 + $0x168] sm:$0xff]
    %v3686 = vld [vmem:[#allocation12 + $0x170] sm:$0xff]
    %v3687 = vld [vmem:[#allocation12 + $0x178] sm:$0xff]
    %v3688 = vld [vmem:[#allocation12 + $0x180] sm:$0xff]
    %v3689 = vld [vmem:[#allocation12 + $0x188] sm:$0xff]
    %v3690 = vld [vmem:[#allocation12 + $0x190] sm:$0xff]
    %v3691 = vld [vmem:[#allocation12 + $0x198] sm:$0xff]
    %v3692 = vld [vmem:[#allocation12 + $0x1a0] sm:$0xff]
    %v3693 = vld [vmem:[#allocation12 + $0x1a8] sm:$0xff]
    %v3694 = vld [vmem:[#allocation12 + $0x1b0] sm:$0xff]
    %v3695 = vld [vmem:[#allocation12 + $0x1b8] sm:$0xff]
    %v3696 = vld [vmem:[#allocation12 + $0x1c0] sm:$0xff]
    %v3697 = vld [vmem:[#allocation12 + $0x1c8] sm:$0xff]
    %v3698 = vld [vmem:[#allocation12 + $0x1d0] sm:$0xff]
    %v3699 = vld [vmem:[#allocation12 + $0x1d8] sm:$0xff]
    %v3700 = vld [vmem:[#allocation12 + $0x1e0] sm:$0xff]
    %v3701 = vld [vmem:[#allocation12 + $0x1e8] sm:$0xff]
    %v3702 = vld [vmem:[#allocation12 + $0x1f0] sm:$0xff]
    %v3703 = vld [vmem:[#allocation12 + $0x1f8] sm:$0xff]
    %v3704 = vld [vmem:[#allocation13] sm:$0xff]
    %v3705 = vld [vmem:[#allocation13 + $0x8] sm:$0xff]
    %v3706 = vld [vmem:[#allocation13 + $0x10] sm:$0xff]
    %v3707 = vld [vmem:[#allocation13 + $0x18] sm:$0xff]
    %v3708 = vld [vmem:[#allocation13 + $0x20] sm:$0xff]
    %v3709 = vld [vmem:[#allocation13 + $0x28] sm:$0xff]
    %v3710 = vld [vmem:[#allocation13 + $0x30] sm:$0xff]
    %v3711 = vld [vmem:[#allocation13 + $0x38] sm:$0xff]
    %v3712 = vld [vmem:[#allocation13 + $0x40] sm:$0xff]
    %v3713 = vld [vmem:[#allocation13 + $0x48] sm:$0xff]
    %v3714 = vld [vmem:[#allocation13 + $0x50] sm:$0xff]
    %v3715 = vld [vmem:[#allocation13 + $0x58] sm:$0xff]
    %v3716 = vld [vmem:[#allocation13 + $0x60] sm:$0xff]
    %v3717 = vld [vmem:[#allocation13 + $0x68] sm:$0xff]
    %v3718 = vld [vmem:[#allocation13 + $0x70] sm:$0xff]
    %v3719 = vld [vmem:[#allocation13 + $0x78] sm:$0xff]
    %v3720 = vld [vmem:[#allocation13 + $0x80] sm:$0xff]
    %v3721 = vld [vmem:[#allocation13 + $0x88] sm:$0xff]
    %v3722 = vld [vmem:[#allocation13 + $0x90] sm:$0xff]
    %v3723 = vld [vmem:[#allocation13 + $0x98] sm:$0xff]
    %v3724 = vld [vmem:[#allocation13 + $0xa0] sm:$0xff]
    %v3725 = vld [vmem:[#allocation13 + $0xa8] sm:$0xff]
    %v3726 = vld [vmem:[#allocation13 + $0xb0] sm:$0xff]
    %v3727 = vld [vmem:[#allocation13 + $0xb8] sm:$0xff]
    %v3728 = vld [vmem:[#allocation13 + $0xc0] sm:$0xff]
    %v3729 = vld [vmem:[#allocation13 + $0xc8] sm:$0xff]
    %v3730 = vld [vmem:[#allocation13 + $0xd0] sm:$0xff]
    %v3731 = vld [vmem:[#allocation13 + $0xd8] sm:$0xff]
    %v3732 = vld [vmem:[#allocation13 + $0xe0] sm:$0xff]
    %v3733 = vld [vmem:[#allocation13 + $0xe8] sm:$0xff]
    %v3734 = vld [vmem:[#allocation13 + $0xf0] sm:$0xff]
    %v3735 = vld [vmem:[#allocation13 + $0xf8] sm:$0xff]
    %v3736 = vld [vmem:[#allocation13 + $0x100] sm:$0xff]
    %v3737 = vld [vmem:[#allocation13 + $0x108] sm:$0xff]
    %v3738 = vld [vmem:[#allocation13 + $0x110] sm:$0xff]
    %v3739 = vld [vmem:[#allocation13 + $0x118] sm:$0xff]
    %v3740 = vld [vmem:[#allocation13 + $0x120] sm:$0xff]
    %v3741 = vld [vmem:[#allocation13 + $0x128] sm:$0xff]
    %v3742 = vld [vmem:[#allocation13 + $0x130] sm:$0xff]
    %v3743 = vld [vmem:[#allocation13 + $0x138] sm:$0xff]
    %v3744 = vld [vmem:[#allocation13 + $0x140] sm:$0xff]
    %v3745 = vld [vmem:[#allocation13 + $0x148] sm:$0xff]
    %v3746 = vld [vmem:[#allocation13 + $0x150] sm:$0xff]
    %v3747 = vld [vmem:[#allocation13 + $0x158] sm:$0xff]
    %v3748 = vld [vmem:[#allocation13 + $0x160] sm:$0xff]
    %v3749 = vld [vmem:[#allocation13 + $0x168] sm:$0xff]
    %v3750 = vld [vmem:[#allocation13 + $0x170] sm:$0xff]
    %v3751 = vld [vmem:[#allocation13 + $0x178] sm:$0xff]
    %v3752 = vld [vmem:[#allocation13 + $0x180] sm:$0xff]
    %v3753 = vld [vmem:[#allocation13 + $0x188] sm:$0xff]
    %v3754 = vld [vmem:[#allocation13 + $0x190] sm:$0xff]
    %v3755 = vld [vmem:[#allocation13 + $0x198] sm:$0xff]
    %v3756 = vld [vmem:[#allocation13 + $0x1a0] sm:$0xff]
    %v3757 = vld [vmem:[#allocation13 + $0x1a8] sm:$0xff]
    %v3758 = vld [vmem:[#allocation13 + $0x1b0] sm:$0xff]
    %v3759 = vld [vmem:[#allocation13 + $0x1b8] sm:$0xff]
    %v3760 = vld [vmem:[#allocation13 + $0x1c0] sm:$0xff]
    %v3761 = vld [vmem:[#allocation13 + $0x1c8] sm:$0xff]
    %v3762 = vld [vmem:[#allocation13 + $0x1d0] sm:$0xff]
    %v3763 = vld [vmem:[#allocation13 + $0x1d8] sm:$0xff]
    %v3764 = vld [vmem:[#allocation13 + $0x1e0] sm:$0xff]
    %v3765 = vld [vmem:[#allocation13 + $0x1e8] sm:$0xff]
    %v3766 = vld [vmem:[#allocation13 + $0x1f0] sm:$0xff]
    %v3767 = vld [vmem:[#allocation13 + $0x1f8] sm:$0xff]
    %v3768 = vld [vmem:[%s11] sm:$0xf]
    %v3769 = vld [vmem:[#allocation15] sm:$0xff]
    %v3770 = vld [vmem:[#allocation15 + $0x8] sm:$0xff]
    %v3771 = vld [vmem:[#allocation15 + $0x10] sm:$0xff]
    %v3772 = vld [vmem:[#allocation15 + $0x18] sm:$0xff]
    %v3773 = vld [vmem:[#allocation15 + $0x20] sm:$0xff]
    %v3774 = vld [vmem:[#allocation15 + $0x28] sm:$0xff]
    %v3775 = vld [vmem:[#allocation15 + $0x30] sm:$0xff]
    %v3776 = vld [vmem:[#allocation15 + $0x38] sm:$0xff]
    %v3777 = vld [vmem:[#allocation15 + $0x40] sm:$0xff]
    %v3778 = vld [vmem:[#allocation15 + $0x48] sm:$0xff]
    %v3779 = vld [vmem:[#allocation15 + $0x50] sm:$0xff]
    %v3780 = vld [vmem:[#allocation15 + $0x58] sm:$0xff]
    %v3781 = vld [vmem:[#allocation15 + $0x60] sm:$0xff]
    %v3782 = vld [vmem:[#allocation15 + $0x68] sm:$0xff]
    %v3783 = vld [vmem:[#allocation15 + $0x70] sm:$0xff]
    %v3784 = vld [vmem:[#allocation15 + $0x78] sm:$0xff]
    %v3785 = vld [vmem:[#allocation15 + $0x80] sm:$0xff]
    %v3786 = vld [vmem:[#allocation15 + $0x88] sm:$0xff]
    %v3787 = vld [vmem:[#allocation15 + $0x90] sm:$0xff]
    %v3788 = vld [vmem:[#allocation15 + $0x98] sm:$0xff]
    %v3789 = vld [vmem:[#allocation15 + $0xa0] sm:$0xff]
    %v3790 = vld [vmem:[#allocation15 + $0xa8] sm:$0xff]
    %v3791 = vld [vmem:[#allocation15 + $0xb0] sm:$0xff]
    %v3792 = vld [vmem:[#allocation15 + $0xb8] sm:$0xff]
    %v3793 = vld [vmem:[#allocation15 + $0xc0] sm:$0xff]
    %v3794 = vld [vmem:[#allocation15 + $0xc8] sm:$0xff]
    %v3795 = vld [vmem:[#allocation15 + $0xd0] sm:$0xff]
    %v3796 = vld [vmem:[#allocation15 + $0xd8] sm:$0xff]
    %v3797 = vld [vmem:[#allocation15 + $0xe0] sm:$0xff]
    %v3798 = vld [vmem:[#allocation15 + $0xe8] sm:$0xff]
    %v3799 = vld [vmem:[#allocation15 + $0xf0] sm:$0xff]
    %v3800 = vld [vmem:[#allocation15 + $0xf8] sm:$0xff]
    %v3801 = vld [vmem:[#allocation15 + $0x100] sm:$0xff]
    %v3802 = vld [vmem:[#allocation15 + $0x108] sm:$0xff]
    %v3803 = vld [vmem:[#allocation15 + $0x110] sm:$0xff]
    %v3804 = vld [vmem:[#allocation15 + $0x118] sm:$0xff]
    %v3805 = vld [vmem:[#allocation15 + $0x120] sm:$0xff]
    %v3806 = vld [vmem:[#allocation15 + $0x128] sm:$0xff]
    %v3807 = vld [vmem:[#allocation15 + $0x130] sm:$0xff]
    %v3808 = vld [vmem:[#allocation15 + $0x138] sm:$0xff]
    %v3809 = vld [vmem:[#allocation15 + $0x140] sm:$0xff]
    %v3810 = vld [vmem:[#allocation15 + $0x148] sm:$0xff]
    %v3811 = vld [vmem:[#allocation15 + $0x150] sm:$0xff]
    %v3812 = vld [vmem:[#allocation15 + $0x158] sm:$0xff]
    %v3813 = vld [vmem:[#allocation15 + $0x160] sm:$0xff]
    %v3814 = vld [vmem:[#allocation15 + $0x168] sm:$0xff]
    %v3815 = vld [vmem:[#allocation15 + $0x170] sm:$0xff]
    %v3816 = vld [vmem:[#allocation15 + $0x178] sm:$0xff]
    %v3817 = vld [vmem:[#allocation15 + $0x180] sm:$0xff]
    %v3818 = vld [vmem:[#allocation15 + $0x188] sm:$0xff]
    %v3819 = vld [vmem:[#allocation15 + $0x190] sm:$0xff]
    %v3820 = vld [vmem:[#allocation15 + $0x198] sm:$0xff]
    %v3821 = vld [vmem:[#allocation15 + $0x1a0] sm:$0xff]
    %v3822 = vld [vmem:[#allocation15 + $0x1a8] sm:$0xff]
    %v3823 = vld [vmem:[#allocation15 + $0x1b0] sm:$0xff]
    %v3824 = vld [vmem:[#allocation15 + $0x1b8] sm:$0xff]
    %v3825 = vld [vmem:[#allocation15 + $0x1c0] sm:$0xff]
    %v3826 = vld [vmem:[#allocation15 + $0x1c8] sm:$0xff]
    %v3827 = vld [vmem:[#allocation15 + $0x1d0] sm:$0xff]
    %v3828 = vld [vmem:[#allocation15 + $0x1d8] sm:$0xff]
    %v3829 = vld [vmem:[#allocation15 + $0x1e0] sm:$0xff]
    %v3830 = vld [vmem:[#allocation15 + $0x1e8] sm:$0xff]
    %v3831 = vld [vmem:[#allocation15 + $0x1f0] sm:$0xff]
    %v3832 = vld [vmem:[#allocation15 + $0x1f8] sm:$0xff]
    %v3833 = vld [vmem:[#allocation16] sm:$0xff]
    %v3834 = vld [vmem:[#allocation16 + $0x8] sm:$0xff]
    %v3835 = vld [vmem:[#allocation16 + $0x10] sm:$0xff]
    %v3836 = vld [vmem:[#allocation16 + $0x18] sm:$0xff]
    %v3837 = vld [vmem:[#allocation16 + $0x20] sm:$0xff]
    %v3838 = vld [vmem:[#allocation16 + $0x28] sm:$0xff]
    %v3839 = vld [vmem:[#allocation16 + $0x30] sm:$0xff]
    %v3840 = vld [vmem:[#allocation16 + $0x38] sm:$0xff]
    %v3841 = vld [vmem:[#allocation16 + $0x40] sm:$0xff]
    %v3842 = vld [vmem:[#allocation16 + $0x48] sm:$0xff]
    %v3843 = vld [vmem:[#allocation16 + $0x50] sm:$0xff]
    %v3844 = vld [vmem:[#allocation16 + $0x58] sm:$0xff]
    %v3845 = vld [vmem:[#allocation16 + $0x60] sm:$0xff]
    %v3846 = vld [vmem:[#allocation16 + $0x68] sm:$0xff]
    %v3847 = vld [vmem:[#allocation16 + $0x70] sm:$0xff]
    %v3848 = vld [vmem:[#allocation16 + $0x78] sm:$0xff]
    %v3849 = vld [vmem:[#allocation16 + $0x80] sm:$0xff]
    %v3850 = vld [vmem:[#allocation16 + $0x88] sm:$0xff]
    %v3851 = vld [vmem:[#allocation16 + $0x90] sm:$0xff]
    %v3852 = vld [vmem:[#allocation16 + $0x98] sm:$0xff]
    %v3853 = vld [vmem:[#allocation16 + $0xa0] sm:$0xff]
    %v3854 = vld [vmem:[#allocation16 + $0xa8] sm:$0xff]
    %v3855 = vld [vmem:[#allocation16 + $0xb0] sm:$0xff]
    %v3856 = vld [vmem:[#allocation16 + $0xb8] sm:$0xff]
    %v3857 = vld [vmem:[#allocation16 + $0xc0] sm:$0xff]
    %v3858 = vld [vmem:[#allocation16 + $0xc8] sm:$0xff]
    %v3859 = vld [vmem:[#allocation16 + $0xd0] sm:$0xff]
    %v3860 = vld [vmem:[#allocation16 + $0xd8] sm:$0xff]
    %v3861 = vld [vmem:[#allocation16 + $0xe0] sm:$0xff]
    %v3862 = vld [vmem:[#allocation16 + $0xe8] sm:$0xff]
    %v3863 = vld [vmem:[#allocation16 + $0xf0] sm:$0xff]
    %v3864 = vld [vmem:[#allocation16 + $0xf8] sm:$0xff]
    %v3865 = vld [vmem:[#allocation16 + $0x100] sm:$0xff]
    %v3866 = vld [vmem:[#allocation16 + $0x108] sm:$0xff]
    %v3867 = vld [vmem:[#allocation16 + $0x110] sm:$0xff]
    %v3868 = vld [vmem:[#allocation16 + $0x118] sm:$0xff]
    %v3869 = vld [vmem:[#allocation16 + $0x120] sm:$0xff]
    %v3870 = vld [vmem:[#allocation16 + $0x128] sm:$0xff]
    %v3871 = vld [vmem:[#allocation16 + $0x130] sm:$0xff]
    %v3872 = vld [vmem:[#allocation16 + $0x138] sm:$0xff]
    %v3873 = vld [vmem:[#allocation16 + $0x140] sm:$0xff]
    %v3874 = vld [vmem:[#allocation16 + $0x148] sm:$0xff]
    %v3875 = vld [vmem:[#allocation16 + $0x150] sm:$0xff]
    %v3876 = vld [vmem:[#allocation16 + $0x158] sm:$0xff]
    %v3877 = vld [vmem:[#allocation16 + $0x160] sm:$0xff]
    %v3878 = vld [vmem:[#allocation16 + $0x168] sm:$0xff]
    %v3879 = vld [vmem:[#allocation16 + $0x170] sm:$0xff]
    %v3880 = vld [vmem:[#allocation16 + $0x178] sm:$0xff]
    %v3881 = vld [vmem:[#allocation16 + $0x180] sm:$0xff]
    %v3882 = vld [vmem:[#allocation16 + $0x188] sm:$0xff]
    %v3883 = vld [vmem:[#allocation16 + $0x190] sm:$0xff]
    %v3884 = vld [vmem:[#allocation16 + $0x198] sm:$0xff]
    %v3885 = vld [vmem:[#allocation16 + $0x1a0] sm:$0xff]
    %v3886 = vld [vmem:[#allocation16 + $0x1a8] sm:$0xff]
    %v3887 = vld [vmem:[#allocation16 + $0x1b0] sm:$0xff]
    %v3888 = vld [vmem:[#allocation16 + $0x1b8] sm:$0xff]
    %v3889 = vld [vmem:[#allocation16 + $0x1c0] sm:$0xff]
    %v3890 = vld [vmem:[#allocation16 + $0x1c8] sm:$0xff]
    %v3891 = vld [vmem:[#allocation16 + $0x1d0] sm:$0xff]
    %v3892 = vld [vmem:[#allocation16 + $0x1d8] sm:$0xff]
    %v3893 = vld [vmem:[#allocation16 + $0x1e0] sm:$0xff]
    %v3894 = vld [vmem:[#allocation16 + $0x1e8] sm:$0xff]
    %v3895 = vld [vmem:[#allocation16 + $0x1f0] sm:$0xff]
    %v3896 = vld [vmem:[#allocation16 + $0x1f8] sm:$0xff]
    %v3897 = vld [vmem:[%s14] sm:$0xf]
    %v3899 = vlaneseq
    %v3900 = vshrl.u32 %v3899, 7
    %v3901 = vsub.s32 0, %v3900
    %v3902 = vrot.slane %v3768, %v3901
    %v3903 = vlaneseq
    %v3904 = vshrl.u32 %v3903, 7
    %v3905 = vsub.s32 1, %v3904
    %v3906 = vrot.slane %v3768, %v3905
    %v3907 = vlaneseq
    %v3908 = vshrl.u32 %v3907, 7
    %v3909 = vsub.s32 2, %v3908
    %v3910 = vrot.slane %v3768, %v3909
    %v3911 = vlaneseq
    %v3912 = vshrl.u32 %v3911, 7
    %v3913 = vsub.s32 3, %v3912
    %v3914 = vrot.slane %v3768, %v3913
    %3919 = vmatprep.subr.mxu0 %v3641
    %3920 = vmatpush1.msra.mxu0 %v3640
    %3921 = vmatprep.subr.mxu0 %v3645
    %3922 = vmatpush1.msra.mxu0 %v3644
    %3923 = vmatprep.subr.mxu0 %v3649
    %3924 = vmatpush1.msra.mxu0 %v3648
    %3925 = vmatprep.subr.mxu0 %v3653
    %3926 = vmatpush1.msra.mxu0 %v3652
    %3927 = vmatprep.subr.mxu0 %v3657
    %3928 = vmatpush1.msra.mxu0 %v3656
    %3929 = vmatprep.subr.mxu0 %v3661
    %3930 = vmatpush1.msra.mxu0 %v3660
    %3931 = vmatprep.subr.mxu0 %v3665
    %3932 = vmatpush1.msra.mxu0 %v3664
    %3933 = vmatprep.subr.mxu0 %v3669
    %3934 = vmatpush1.msra.mxu0 %v3668
    %3935 = vmatprep.subr.mxu0 %v3673
    %3936 = vmatpush1.msra.mxu0 %v3672
    %3937 = vmatprep.subr.mxu0 %v3677
    %3938 = vmatpush1.msra.mxu0 %v3676
    %3939 = vmatprep.subr.mxu0 %v3681
    %3940 = vmatpush1.msra.mxu0 %v3680
    %3941 = vmatprep.subr.mxu0 %v3685
    %3942 = vmatpush1.msra.mxu0 %v3684
    %3943 = vmatprep.subr.mxu0 %v3689
    %3944 = vmatpush1.msra.mxu0 %v3688
    %3945 = vmatprep.subr.mxu0 %v3693
    %3946 = vmatpush1.msra.mxu0 %v3692
    %3947 = vmatprep.subr.mxu0 %v3697
    %3948 = vmatpush1.msra.mxu0 %v3696
    %3949 = vmatprep.subr.mxu0 %v3701
    %3950 = vmatpush1.msra.mxu0 %v3700
    %3951 = vmatprep.subr.mxu0 0.0
    %3952 = vmatpush1.msra.mxu0 0.0
    %3953 = vmatprep.subr.mxu0 0.0
    %3954 = vmatpush1.msra.mxu0 0.0
    %3955 = vmatprep.subr.mxu0 0.0
    %3956 = vmatpush1.msra.mxu0 0.0
    %3957 = vmatprep.subr.mxu0 0.0
    %3958 = vmatpush1.msra.mxu0 0.0
    %3959 = vmatprep.subr.mxu0 0.0
    %3960 = vmatpush1.msra.mxu0 0.0
    %3961 = vmatprep.subr.mxu0 0.0
    %3962 = vmatpush1.msra.mxu0 0.0
    %3963 = vmatprep.subr.mxu0 0.0
    %3964 = vmatpush1.msra.mxu0 0.0
    %3965 = vmatprep.subr.mxu0 0.0
    %3966 = vmatpush1.msra.mxu0 0.0
    %3967 = vmatprep.subr.mxu0 0.0
    %3968 = vmatpush1.msra.mxu0 0.0
    %3969 = vmatprep.subr.mxu0 0.0
    %3970 = vmatpush1.msra.mxu0 0.0
    %3971 = vmatprep.subr.mxu0 0.0
    %3972 = vmatpush1.msra.mxu0 0.0
    %3973 = vmatprep.subr.mxu0 0.0
    %3974 = vmatpush1.msra.mxu0 0.0
    %3975 = vmatprep.subr.mxu0 0.0
    %3976 = vmatpush1.msra.mxu0 0.0
    %3977 = vmatprep.subr.mxu0 0.0
    %3978 = vmatpush1.msra.mxu0 0.0
    %3979 = vmatprep.subr.mxu0 0.0
    %3980 = vmatpush1.msra.mxu0 0.0
    %3981 = vmatprep.subr.mxu0 0.0
    %3982 = vmatpush1.msra.mxu0 0.0
    %3983 = vmatprep.mubr.f32.mxu0 0.0
    %3984 = vmatmul.mubr.f32.gmra.mrb[0].mxu0 %v3611
    %v3985 = vpop.f32.mrb[0].mxu0
    %v3986 = vadd.f32 %v3902, %v3985
    %v3987 = vpop.f32.mrb[0].mxu0
    %v3988 = vadd.f32 %v3906, %v3987
    %3989 = vdwg.mxu0
    %3990 = vmatprep.subr.mxu0 %v3643
    %3991 = vmatpush1.msra.mxu0 %v3642
    %3992 = vmatprep.subr.mxu0 %v3647
    %3993 = vmatpush1.msra.mxu0 %v3646
    %3994 = vmatprep.subr.mxu0 %v3651
    %3995 = vmatpush1.msra.mxu0 %v3650
    %3996 = vmatprep.subr.mxu0 %v3655
    %3997 = vmatpush1.msra.mxu0 %v3654
    %3998 = vmatprep.subr.mxu0 %v3659
    %3999 = vmatpush1.msra.mxu0 %v3658
    %4000 = vmatprep.subr.mxu0 %v3663
    %4001 = vmatpush1.msra.mxu0 %v3662
    %4002 = vmatprep.subr.mxu0 %v3667
    %4003 = vmatpush1.msra.mxu0 %v3666
    %4004 = vmatprep.subr.mxu0 %v3671
    %4005 = vmatpush1.msra.mxu0 %v3670
    %4006 = vmatprep.subr.mxu0 %v3675
    %4007 = vmatpush1.msra.mxu0 %v3674
    %4008 = vmatprep.subr.mxu0 %v3679
    %4009 = vmatpush1.msra.mxu0 %v3678
    %4010 = vmatprep.subr.mxu0 %v3683
    %4011 = vmatpush1.msra.mxu0 %v3682
    %4012 = vmatprep.subr.mxu0 %v3687
    %4013 = vmatpush1.msra.mxu0 %v3686
    %4014 = vmatprep.subr.mxu0 %v3691
    %4015 = vmatpush1.msra.mxu0 %v3690
    %4016 = vmatprep.subr.mxu0 %v3695
    %4017 = vmatpush1.msra.mxu0 %v3694
    %4018 = vmatprep.subr.mxu0 %v3699
    %4019 = vmatpush1.msra.mxu0 %v3698
    %4020 = vmatprep.subr.mxu0 %v3703
    %4021 = vmatpush1.msra.mxu0 %v3702
    %4022 = vmatprep.subr.mxu0 0.0
    %4023 = vmatpush1.msra.mxu0 0.0
    %4024 = vmatprep.subr.mxu0 0.0
    %4025 = vmatpush1.msra.mxu0 0.0
    %4026 = vmatprep.subr.mxu0 0.0
    %4027 = vmatpush1.msra.mxu0 0.0
    %4028 = vmatprep.subr.mxu0 0.0
    %4029 = vmatpush1.msra.mxu0 0.0
    %4030 = vmatprep.subr.mxu0 0.0
    %4031 = vmatpush1.msra.mxu0 0.0
    %4032 = vmatprep.subr.mxu0 0.0
    %4033 = vmatpush1.msra.mxu0 0.0
    %4034 = vmatprep.subr.mxu0 0.0
    %4035 = vmatpush1.msra.mxu0 0.0
    %4036 = vmatprep.subr.mxu0 0.0
    %4037 = vmatpush1.msra.mxu0 0.0
    %4038 = vmatprep.subr.mxu0 0.0
    %4039 = vmatpush1.msra.mxu0 0.0
    %4040 = vmatprep.subr.mxu0 0.0
    %4041 = vmatpush1.msra.mxu0 0.0
    %4042 = vmatprep.subr.mxu0 0.0
    %4043 = vmatpush1.msra.mxu0 0.0
    %4044 = vmatprep.subr.mxu0 0.0
    %4045 = vmatpush1.msra.mxu0 0.0
    %4046 = vmatprep.subr.mxu0 0.0
    %4047 = vmatpush1.msra.mxu0 0.0
    %4048 = vmatprep.subr.mxu0 0.0
    %4049 = vmatpush1.msra.mxu0 0.0
    %4050 = vmatprep.subr.mxu0 0.0
    %4051 = vmatpush1.msra.mxu0 0.0
    %4052 = vmatprep.subr.mxu0 0.0
    %4053 = vmatpush1.msra.mxu0 0.0
    %4054 = vmatprep.mubr.f32.mxu0 0.0
    %4055 = vmatmul.mubr.f32.gmra.mrb[0].mxu0 %v3611
    %v4056 = vpop.f32.mrb[0].mxu0
    %v4057 = vadd.f32 %v3910, %v4056
    %v4058 = vpop.f32.mrb[0].mxu0
    %v4059 = vadd.f32 %v3914, %v4058
    %4060 = vdwg.mxu0
    %v4062 = vlaneseq
    %v4063 = vshrl.u32 %v4062, 7
    %v4064 = vsub.s32 0, %v4063
    %v4065 = vrot.slane %v3897, %v4064
    %v4066 = vlaneseq
    %v4067 = vshrl.u32 %v4066, 7
    %v4068 = vsub.s32 1, %v4067
    %v4069 = vrot.slane %v3897, %v4068
    %v4070 = vlaneseq
    %v4071 = vshrl.u32 %v4070, 7
    %v4072 = vsub.s32 2, %v4071
    %v4073 = vrot.slane %v3897, %v4072
    %v4074 = vlaneseq
    %v4075 = vshrl.u32 %v4074, 7
    %v4076 = vsub.s32 3, %v4075
    %v4077 = vrot.slane %v3897, %v4076
    %4082 = vmatprep.subr.mxu0 %v3770
    %4083 = vmatpush1.msra.mxu0 %v3769
    %4084 = vmatprep.subr.mxu0 %v3774
    %4085 = vmatpush1.msra.mxu0 %v3773
    %4086 = vmatprep.subr.mxu0 %v3778
    %4087 = vmatpush1.msra.mxu0 %v3777
    %4088 = vmatprep.subr.mxu0 %v3782
    %4089 = vmatpush1.msra.mxu0 %v3781
    %4090 = vmatprep.subr.mxu0 %v3786
    %4091 = vmatpush1.msra.mxu0 %v3785
    %4092 = vmatprep.subr.mxu0 %v3790
    %4093 = vmatpush1.msra.mxu0 %v3789
    %4094 = vmatprep.subr.mxu0 %v3794
    %4095 = vmatpush1.msra.mxu0 %v3793
    %4096 = vmatprep.subr.mxu0 %v3798
    %4097 = vmatpush1.msra.mxu0 %v3797
    %4098 = vmatprep.subr.mxu0 %v3802
    %4099 = vmatpush1.msra.mxu0 %v3801
    %4100 = vmatprep.subr.mxu0 %v3806
    %4101 = vmatpush1.msra.mxu0 %v3805
    %4102 = vmatprep.subr.mxu0 %v3810
    %4103 = vmatpush1.msra.mxu0 %v3809
    %4104 = vmatprep.subr.mxu0 %v3814
    %4105 = vmatpush1.msra.mxu0 %v3813
    %4106 = vmatprep.subr.mxu0 %v3818
    %4107 = vmatpush1.msra.mxu0 %v3817
    %4108 = vmatprep.subr.mxu0 %v3822
    %4109 = vmatpush1.msra.mxu0 %v3821
    %4110 = vmatprep.subr.mxu0 %v3826
    %4111 = vmatpush1.msra.mxu0 %v3825
    %4112 = vmatprep.subr.mxu0 %v3830
    %4113 = vmatpush1.msra.mxu0 %v3829
    %4114 = vmatprep.subr.mxu0 0.0
    %4115 = vmatpush1.msra.mxu0 0.0
    %4116 = vmatprep.subr.mxu0 0.0
    %4117 = vmatpush1.msra.mxu0 0.0
    %4118 = vmatprep.subr.mxu0 0.0
    %4119 = vmatpush1.msra.mxu0 0.0
    %4120 = vmatprep.subr.mxu0 0.0
    %4121 = vmatpush1.msra.mxu0 0.0
    %4122 = vmatprep.subr.mxu0 0.0
    %4123 = vmatpush1.msra.mxu0 0.0
    %4124 = vmatprep.subr.mxu0 0.0
    %4125 = vmatpush1.msra.mxu0 0.0
    %4126 = vmatprep.subr.mxu0 0.0
    %4127 = vmatpush1.msra.mxu0 0.0
    %4128 = vmatprep.subr.mxu0 0.0
    %4129 = vmatpush1.msra.mxu0 0.0
    %4130 = vmatprep.subr.mxu0 0.0
    %4131 = vmatpush1.msra.mxu0 0.0
    %4132 = vmatprep.subr.mxu0 0.0
    %4133 = vmatpush1.msra.mxu0 0.0
    %4134 = vmatprep.subr.mxu0 0.0
    %4135 = vmatpush1.msra.mxu0 0.0
    %4136 = vmatprep.subr.mxu0 0.0
    %4137 = vmatpush1.msra.mxu0 0.0
    %4138 = vmatprep.subr.mxu0 0.0
    %4139 = vmatpush1.msra.mxu0 0.0
    %4140 = vmatprep.subr.mxu0 0.0
    %4141 = vmatpush1.msra.mxu0 0.0
    %4142 = vmatprep.subr.mxu0 0.0
    %4143 = vmatpush1.msra.mxu0 0.0
    %4144 = vmatprep.subr.mxu0 0.0
    %4145 = vmatpush1.msra.mxu0 0.0
    %4146 = vmatprep.mubr.f32.mxu0 0.0
    %4147 = vmatmul.mubr.f32.gmra.mrb[0].mxu0 %v3639
    %v4148 = vpop.f32.mrb[0].mxu0
    %v4149 = vadd.f32 %v4065, %v4148
    %v4150 = vpop.f32.mrb[0].mxu0
    %v4151 = vadd.f32 %v4069, %v4150
    %4152 = vdwg.mxu0
    %4153 = vmatprep.subr.mxu0 %v3772
    %4154 = vmatpush1.msra.mxu0 %v3771
    %4155 = vmatprep.subr.mxu0 %v3776
    %4156 = vmatpush1.msra.mxu0 %v3775
    %4157 = vmatprep.subr.mxu0 %v3780
    %4158 = vmatpush1.msra.mxu0 %v3779
    %4159 = vmatprep.subr.mxu0 %v3784
    %4160 = vmatpush1.msra.mxu0 %v3783
    %4161 = vmatprep.subr.mxu0 %v3788
    %4162 = vmatpush1.msra.mxu0 %v3787
    %4163 = vmatprep.subr.mxu0 %v3792
    %4164 = vmatpush1.msra.mxu0 %v3791
    %4165 = vmatprep.subr.mxu0 %v3796
    %4166 = vmatpush1.msra.mxu0 %v3795
    %4167 = vmatprep.subr.mxu0 %v3800
    %4168 = vmatpush1.msra.mxu0 %v3799
    %4169 = vmatprep.subr.mxu0 %v3804
    %4170 = vmatpush1.msra.mxu0 %v3803
    %4171 = vmatprep.subr.mxu0 %v3808
    %4172 = vmatpush1.msra.mxu0 %v3807
    %4173 = vmatprep.subr.mxu0 %v3812
    %4174 = vmatpush1.msra.mxu0 %v3811
    %4175 = vmatprep.subr.mxu0 %v3816
    %4176 = vmatpush1.msra.mxu0 %v3815
    %4177 = vmatprep.subr.mxu0 %v3820
    %4178 = vmatpush1.msra.mxu0 %v3819
    %4179 = vmatprep.subr.mxu0 %v3824
    %4180 = vmatpush1.msra.mxu0 %v3823
    %4181 = vmatprep.subr.mxu0 %v3828
    %4182 = vmatpush1.msra.mxu0 %v3827
    %4183 = vmatprep.subr.mxu0 %v3832
    %4184 = vmatpush1.msra.mxu0 %v3831
    %4185 = vmatprep.subr.mxu0 0.0
    %4186 = vmatpush1.msra.mxu0 0.0
    %4187 = vmatprep.subr.mxu0 0.0
    %4188 = vmatpush1.msra.mxu0 0.0
    %4189 = vmatprep.subr.mxu0 0.0
    %4190 = vmatpush1.msra.mxu0 0.0
    %4191 = vmatprep.subr.mxu0 0.0
    %4192 = vmatpush1.msra.mxu0 0.0
    %4193 = vmatprep.subr.mxu0 0.0
    %4194 = vmatpush1.msra.mxu0 0.0
    %4195 = vmatprep.subr.mxu0 0.0
    %4196 = vmatpush1.msra.mxu0 0.0
    %4197 = vmatprep.subr.mxu0 0.0
    %4198 = vmatpush1.msra.mxu0 0.0
    %4199 = vmatprep.subr.mxu0 0.0
    %4200 = vmatpush1.msra.mxu0 0.0
    %4201 = vmatprep.subr.mxu0 0.0
    %4202 = vmatpush1.msra.mxu0 0.0
    %4203 = vmatprep.subr.mxu0 0.0
    %4204 = vmatpush1.msra.mxu0 0.0
    %4205 = vmatprep.subr.mxu0 0.0
    %4206 = vmatpush1.msra.mxu0 0.0
    %4207 = vmatprep.subr.mxu0 0.0
    %4208 = vmatpush1.msra.mxu0 0.0
    %4209 = vmatprep.subr.mxu0 0.0
    %4210 = vmatpush1.msra.mxu0 0.0
    %4211 = vmatprep.subr.mxu0 0.0
    %4212 = vmatpush1.msra.mxu0 0.0
    %4213 = vmatprep.subr.mxu0 0.0
    %4214 = vmatpush1.msra.mxu0 0.0
    %4215 = vmatprep.subr.mxu0 0.0
    %4216 = vmatpush1.msra.mxu0 0.0
    %4217 = vmatprep.mubr.f32.mxu0 0.0
    %4218 = vmatmul.mubr.f32.gmra.mrb[0].mxu0 %v3639
    %v4219 = vpop.f32.mrb[0].mxu0
    %v4220 = vadd.f32 %v4073, %v4219
    %v4221 = vpop.f32.mrb[0].mxu0
    %v4222 = vadd.f32 %v4077, %v4221
    %4223 = vdwg.mxu0
    %4224 = vmatprep.subr.mxu0 %v3705
    %4225 = vmatpush1.msra.mxu0 %v3704
    %4226 = vmatprep.subr.mxu0 %v3709
    %4227 = vmatpush1.msra.mxu0 %v3708
    %4228 = vmatprep.subr.mxu0 %v3713
    %4229 = vmatpush1.msra.mxu0 %v3712
    %4230 = vmatprep.subr.mxu0 %v3717
    %4231 = vmatpush1.msra.mxu0 %v3716
    %4232 = vmatprep.subr.mxu0 %v3721
    %4233 = vmatpush1.msra.mxu0 %v3720
    %4234 = vmatprep.subr.mxu0 %v3725
    %4235 = vmatpush1.msra.mxu0 %v3724
    %4236 = vmatprep.subr.mxu0 %v3729
    %4237 = vmatpush1.msra.mxu0 %v3728
    %4238 = vmatprep.subr.mxu0 %v3733
    %4239 = vmatpush1.msra.mxu0 %v3732
    %4240 = vmatprep.subr.mxu0 %v3737
    %4241 = vmatpush1.msra.mxu0 %v3736
    %4242 = vmatprep.subr.mxu0 %v3741
    %4243 = vmatpush1.msra.mxu0 %v3740
    %4244 = vmatprep.subr.mxu0 %v3745
    %4245 = vmatpush1.msra.mxu0 %v3744
    %4246 = vmatprep.subr.mxu0 %v3749
    %4247 = vmatpush1.msra.mxu0 %v3748
    %4248 = vmatprep.subr.mxu0 %v3753
    %4249 = vmatpush1.msra.mxu0 %v3752
    %4250 = vmatprep.subr.mxu0 %v3757
    %4251 = vmatpush1.msra.mxu0 %v3756
    %4252 = vmatprep.subr.mxu0 %v3761
    %4253 = vmatpush1.msra.mxu0 %v3760
    %4254 = vmatprep.subr.mxu0 %v3765
    %4255 = vmatpush1.msra.mxu0 %v3764
    %4256 = vmatprep.subr.mxu0 0.0
    %4257 = vmatpush1.msra.mxu0 0.0
    %4258 = vmatprep.subr.mxu0 0.0
    %4259 = vmatpush1.msra.mxu0 0.0
    %4260 = vmatprep.subr.mxu0 0.0
    %4261 = vmatpush1.msra.mxu0 0.0
    %4262 = vmatprep.subr.mxu0 0.0
    %4263 = vmatpush1.msra.mxu0 0.0
    %4264 = vmatprep.subr.mxu0 0.0
    %4265 = vmatpush1.msra.mxu0 0.0
    %4266 = vmatprep.subr.mxu0 0.0
    %4267 = vmatpush1.msra.mxu0 0.0
    %4268 = vmatprep.subr.mxu0 0.0
    %4269 = vmatpush1.msra.mxu0 0.0
    %4270 = vmatprep.subr.mxu0 0.0
    %4271 = vmatpush1.msra.mxu0 0.0
    %4272 = vmatprep.subr.mxu0 0.0
    %4273 = vmatpush1.msra.mxu0 0.0
    %4274 = vmatprep.subr.mxu0 0.0
    %4275 = vmatpush1.msra.mxu0 0.0
    %4276 = vmatprep.subr.mxu0 0.0
    %4277 = vmatpush1.msra.mxu0 0.0
    %4278 = vmatprep.subr.mxu0 0.0
    %4279 = vmatpush1.msra.mxu0 0.0
    %4280 = vmatprep.subr.mxu0 0.0
    %4281 = vmatpush1.msra.mxu0 0.0
    %4282 = vmatprep.subr.mxu0 0.0
    %4283 = vmatpush1.msra.mxu0 0.0
    %4284 = vmatprep.subr.mxu0 0.0
    %4285 = vmatpush1.msra.mxu0 0.0
    %4286 = vmatprep.subr.mxu0 0.0
    %4287 = vmatpush1.msra.mxu0 0.0
    %4288 = vmatprep.mubr.f32.mxu0 0.0
    %4289 = vmatmul.mubr.f32.gmra.mrb[0].mxu0 0.0
    %v4290 = vpop.f32.mrb[0].mxu0
    %v4291 = vadd.f32 %v3986, %v4290
    %v4292 = vpop.f32.mrb[0].mxu0
    %v4293 = vadd.f32 %v3988, %v4292
    %4294 = vdwg.mxu0
    %4295 = vmatprep.subr.mxu0 %v3707
    %4296 = vmatpush1.msra.mxu0 %v3706
    %4297 = vmatprep.subr.mxu0 %v3711
    %4298 = vmatpush1.msra.mxu0 %v3710
    %4299 = vmatprep.subr.mxu0 %v3715
    %4300 = vmatpush1.msra.mxu0 %v3714
    %4301 = vmatprep.subr.mxu0 %v3719
    %4302 = vmatpush1.msra.mxu0 %v3718
    %4303 = vmatprep.subr.mxu0 %v3723
    %4304 = vmatpush1.msra.mxu0 %v3722
    %4305 = vmatprep.subr.mxu0 %v3727
    %4306 = vmatpush1.msra.mxu0 %v3726
    %4307 = vmatprep.subr.mxu0 %v3731
    %4308 = vmatpush1.msra.mxu0 %v3730
    %4309 = vmatprep.subr.mxu0 %v3735
    %4310 = vmatpush1.msra.mxu0 %v3734
    %4311 = vmatprep.subr.mxu0 %v3739
    %4312 = vmatpush1.msra.mxu0 %v3738
    %4313 = vmatprep.subr.mxu0 %v3743
    %4314 = vmatpush1.msra.mxu0 %v3742
    %4315 = vmatprep.subr.mxu0 %v3747
    %4316 = vmatpush1.msra.mxu0 %v3746
    %4317 = vmatprep.subr.mxu0 %v3751
    %4318 = vmatpush1.msra.mxu0 %v3750
    %4319 = vmatprep.subr.mxu0 %v3755
    %4320 = vmatpush1.msra.mxu0 %v3754
    %4321 = vmatprep.subr.mxu0 %v3759
    %4322 = vmatpush1.msra.mxu0 %v3758
    %4323 = vmatprep.subr.mxu0 %v3763
    %4324 = vmatpush1.msra.mxu0 %v3762
    %4325 = vmatprep.subr.mxu0 %v3767
    %4326 = vmatpush1.msra.mxu0 %v3766
    %4327 = vmatprep.subr.mxu0 0.0
    %4328 = vmatpush1.msra.mxu0 0.0
    %4329 = vmatprep.subr.mxu0 0.0
    %4330 = vmatpush1.msra.mxu0 0.0
    %4331 = vmatprep.subr.mxu0 0.0
    %4332 = vmatpush1.msra.mxu0 0.0
    %4333 = vmatprep.subr.mxu0 0.0
    %4334 = vmatpush1.msra.mxu0 0.0
    %4335 = vmatprep.subr.mxu0 0.0
    %4336 = vmatpush1.msra.mxu0 0.0
    %4337 = vmatprep.subr.mxu0 0.0
    %4338 = vmatpush1.msra.mxu0 0.0
    %4339 = vmatprep.subr.mxu0 0.0
    %4340 = vmatpush1.msra.mxu0 0.0
    %4341 = vmatprep.subr.mxu0 0.0
    %4342 = vmatpush1.msra.mxu0 0.0
    %4343 = vmatprep.subr.mxu0 0.0
    %4344 = vmatpush1.msra.mxu0 0.0
    %4345 = vmatprep.subr.mxu0 0.0
    %4346 = vmatpush1.msra.mxu0 0.0
    %4347 = vmatprep.subr.mxu0 0.0
    %4348 = vmatpush1.msra.mxu0 0.0
    %4349 = vmatprep.subr.mxu0 0.0
    %4350 = vmatpush1.msra.mxu0 0.0
    %4351 = vmatprep.subr.mxu0 0.0
    %4352 = vmatpush1.msra.mxu0 0.0
    %4353 = vmatprep.subr.mxu0 0.0
    %4354 = vmatpush1.msra.mxu0 0.0
    %4355 = vmatprep.subr.mxu0 0.0
    %4356 = vmatpush1.msra.mxu0 0.0
    %4357 = vmatprep.subr.mxu0 0.0
    %4358 = vmatpush1.msra.mxu0 0.0
    %4359 = vmatprep.mubr.f32.mxu0 0.0
    %4360 = vmatmul.mubr.f32.gmra.mrb[0].mxu0 0.0
    %v4361 = vpop.f32.mrb[0].mxu0
    %v4362 = vadd.f32 %v4057, %v4361
    %v4363 = vpop.f32.mrb[0].mxu0
    %v4364 = vadd.f32 %v4059, %v4363
    %4365 = vdwg.mxu0
    %v4366 = vxor.u32 %v4291, 2147483648
    %v4367 = vmul.f32 %v4366, 1.442695
    %v4368 = vpow.pop %v4367
    %v4369 = vadd.f32 %v4368, 1.0
    %v4370 = vrcp.pop %v4369
    %v4371 = vmul.f32 1.0, %v4370
    %v4372 = vxor.u32 %v4293, 2147483648
    %v4373 = vmul.f32 %v4372, 1.442695
    %v4374 = vpow.pop %v4373
    %v4375 = vadd.f32 %v4374, 1.0
    %v4376 = vrcp.pop %v4375
    %v4377 = vmul.f32 1.0, %v4376
    %v4378 = vtanh.pop %v4362
    %v4379 = vxor.u32 %v4364, 2147483648
    %v4380 = vmul.f32 %v4379, 1.442695
    %v4381 = vpow.pop %v4380
    %v4382 = vadd.f32 %v4381, 1.0
    %v4383 = vrcp.pop %v4382
    %v4384 = vmul.f32 1.0, %v4383
    %v4385 = vmul.f32 %v4377, 0.0
    %v4386 = vmul.f32 %v4371, %v4378
    %v4387 = vadd.f32 %v4385, %v4386
    %v4388 = vtanh.pop %v4387
    %v4389 = vmul.f32 %v4384, %v4388
    %4390 = vmatprep.subr.mxu0 %v3834
    %4391 = vmatpush1.msra.mxu0 %v3833
    %4392 = vmatprep.subr.mxu0 %v3838
    %4393 = vmatpush1.msra.mxu0 %v3837
    %4394 = vmatprep.subr.mxu0 %v3842
    %4395 = vmatpush1.msra.mxu0 %v3841
    %4396 = vmatprep.subr.mxu0 %v3846
    %4397 = vmatpush1.msra.mxu0 %v3845
    %4398 = vmatprep.subr.mxu0 %v3850
    %4399 = vmatpush1.msra.mxu0 %v3849
    %4400 = vmatprep.subr.mxu0 %v3854
    %4401 = vmatpush1.msra.mxu0 %v3853
    %4402 = vmatprep.subr.mxu0 %v3858
    %4403 = vmatpush1.msra.mxu0 %v3857
    %4404 = vmatprep.subr.mxu0 %v3862
    %4405 = vmatpush1.msra.mxu0 %v3861
    %4406 = vmatprep.subr.mxu0 %v3866
    %4407 = vmatpush1.msra.mxu0 %v3865
    %4408 = vmatprep.subr.mxu0 %v3870
    %4409 = vmatpush1.msra.mxu0 %v3869
    %4410 = vmatprep.subr.mxu0 %v3874
    %4411 = vmatpush1.msra.mxu0 %v3873
    %4412 = vmatprep.subr.mxu0 %v3878
    %4413 = vmatpush1.msra.mxu0 %v3877
    %4414 = vmatprep.subr.mxu0 %v3882
    %4415 = vmatpush1.msra.mxu0 %v3881
    %4416 = vmatprep.subr.mxu0 %v3886
    %4417 = vmatpush1.msra.mxu0 %v3885
    %4418 = vmatprep.subr.mxu0 %v3890
    %4419 = vmatpush1.msra.mxu0 %v3889
    %4420 = vmatprep.subr.mxu0 %v3894
    %4421 = vmatpush1.msra.mxu0 %v3893
    %4422 = vmatprep.subr.mxu0 0.0
    %4423 = vmatpush1.msra.mxu0 0.0
    %4424 = vmatprep.subr.mxu0 0.0
    %4425 = vmatpush1.msra.mxu0 0.0
    %4426 = vmatprep.subr.mxu0 0.0
    %4427 = vmatpush1.msra.mxu0 0.0
    %4428 = vmatprep.subr.mxu0 0.0
    %4429 = vmatpush1.msra.mxu0 0.0
    %4430 = vmatprep.subr.mxu0 0.0
    %4431 = vmatpush1.msra.mxu0 0.0
    %4432 = vmatprep.subr.mxu0 0.0
    %4433 = vmatpush1.msra.mxu0 0.0
    %4434 = vmatprep.subr.mxu0 0.0
    %4435 = vmatpush1.msra.mxu0 0.0
    %4436 = vmatprep.subr.mxu0 0.0
    %4437 = vmatpush1.msra.mxu0 0.0
    %4438 = vmatprep.subr.mxu0 0.0
    %4439 = vmatpush1.msra.mxu0 0.0
    %4440 = vmatprep.subr.mxu0 0.0
    %4441 = vmatpush1.msra.mxu0 0.0
    %4442 = vmatprep.subr.mxu0 0.0
    %4443 = vmatpush1.msra.mxu0 0.0
    %4444 = vmatprep.subr.mxu0 0.0
    %4445 = vmatpush1.msra.mxu0 0.0
    %4446 = vmatprep.subr.mxu0 0.0
    %4447 = vmatpush1.msra.mxu0 0.0
    %4448 = vmatprep.subr.mxu0 0.0
    %4449 = vmatpush1.msra.mxu0 0.0
    %4450 = vmatprep.subr.mxu0 0.0
    %4451 = vmatpush1.msra.mxu0 0.0
    %4452 = vmatprep.subr.mxu0 0.0
    %4453 = vmatpush1.msra.mxu0 0.0
    %4454 = vmatprep.mubr.f32.mxu0 0.0
    %4455 = vmatmul.mubr.f32.gmra.mrb[0].mxu0 0.0
    %v4456 = vpop.f32.mrb[0].mxu0
    %v4457 = vadd.f32 %v4149, %v4456
    %v4458 = vpop.f32.mrb[0].mxu0
    %v4459 = vadd.f32 %v4151, %v4458
    %4460 = vdwg.mxu0
    %4461 = vmatprep.subr.mxu0 %v3836
    %4462 = vmatpush1.msra.mxu0 %v3835
    %4463 = vmatprep.subr.mxu0 %v3840
    %4464 = vmatpush1.msra.mxu0 %v3839
    %4465 = vmatprep.subr.mxu0 %v3844
    %4466 = vmatpush1.msra.mxu0 %v3843
    %4467 = vmatprep.subr.mxu0 %v3848
    %4468 = vmatpush1.msra.mxu0 %v3847
    %4469 = vmatprep.subr.mxu0 %v3852
    %4470 = vmatpush1.msra.mxu0 %v3851
    %4471 = vmatprep.subr.mxu0 %v3856
    %4472 = vmatpush1.msra.mxu0 %v3855
    %4473 = vmatprep.subr.mxu0 %v3860
    %4474 = vmatpush1.msra.mxu0 %v3859
    %4475 = vmatprep.subr.mxu0 %v3864
    %4476 = vmatpush1.msra.mxu0 %v3863
    %4477 = vmatprep.subr.mxu0 %v3868
    %4478 = vmatpush1.msra.mxu0 %v3867
    %4479 = vmatprep.subr.mxu0 %v3872
    %4480 = vmatpush1.msra.mxu0 %v3871
    %4481 = vmatprep.subr.mxu0 %v3876
    %4482 = vmatpush1.msra.mxu0 %v3875
    %4483 = vmatprep.subr.mxu0 %v3880
    %4484 = vmatpush1.msra.mxu0 %v3879
    %4485 = vmatprep.subr.mxu0 %v3884
    %4486 = vmatpush1.msra.mxu0 %v3883
    %4487 = vmatprep.subr.mxu0 %v3888
    %4488 = vmatpush1.msra.mxu0 %v3887
    %4489 = vmatprep.subr.mxu0 %v3892
    %4490 = vmatpush1.msra.mxu0 %v3891
    %4491 = vmatprep.subr.mxu0 %v3896
    %4492 = vmatpush1.msra.mxu0 %v3895
    %4493 = vmatprep.subr.mxu0 0.0
    %4494 = vmatpush1.msra.mxu0 0.0
    %4495 = vmatprep.subr.mxu0 0.0
    %4496 = vmatpush1.msra.mxu0 0.0
    %4497 = vmatprep.subr.mxu0 0.0
    %4498 = vmatpush1.msra.mxu0 0.0
    %4499 = vmatprep.subr.mxu0 0.0
    %4500 = vmatpush1.msra.mxu0 0.0
    %4501 = vmatprep.subr.mxu0 0.0
    %4502 = vmatpush1.msra.mxu0 0.0
    %4503 = vmatprep.subr.mxu0 0.0
    %4504 = vmatpush1.msra.mxu0 0.0
    %4505 = vmatprep.subr.mxu0 0.0
    %4506 = vmatpush1.msra.mxu0 0.0
    %4507 = vmatprep.subr.mxu0 0.0
    %4508 = vmatpush1.msra.mxu0 0.0
    %4509 = vmatprep.subr.mxu0 0.0
    %4510 = vmatpush1.msra.mxu0 0.0
    %4511 = vmatprep.subr.mxu0 0.0
    %4512 = vmatpush1.msra.mxu0 0.0
    %4513 = vmatprep.subr.mxu0 0.0
    %4514 = vmatpush1.msra.mxu0 0.0
    %4515 = vmatprep.subr.mxu0 0.0
    %4516 = vmatpush1.msra.mxu0 0.0
    %4517 = vmatprep.subr.mxu0 0.0
    %4518 = vmatpush1.msra.mxu0 0.0
    %4519 = vmatprep.subr.mxu0 0.0
    %4520 = vmatpush1.msra.mxu0 0.0
    %4521 = vmatprep.subr.mxu0 0.0
    %4522 = vmatpush1.msra.mxu0 0.0
    %4523 = vmatprep.subr.mxu0 0.0
    %4524 = vmatpush1.msra.mxu0 0.0
    %4525 = vmatprep.mubr.f32.mxu0 0.0
    %4526 = vmatmul.mubr.f32.gmra.mrb[0].mxu0 0.0
    %v4527 = vpop.f32.mrb[0].mxu0
    %v4528 = vadd.f32 %v4220, %v4527
    %v4529 = vpop.f32.mrb[0].mxu0
    %v4530 = vadd.f32 %v4222, %v4529
    %4531 = vdwg.mxu0
    %v4532 = vxor.u32 %v4457, 2147483648
    %v4533 = vmul.f32 %v4532, 1.442695
    %v4534 = vpow.pop %v4533
    %v4535 = vadd.f32 %v4534, 1.0
    %v4536 = vrcp.pop %v4535
    %v4537 = vmul.f32 1.0, %v4536
    %v4538 = vxor.u32 %v4459, 2147483648
    %v4539 = vmul.f32 %v4538, 1.442695
    %v4540 = vpow.pop %v4539
    %v4541 = vadd.f32 %v4540, 1.0
    %v4542 = vrcp.pop %v4541
    %v4543 = vmul.f32 1.0, %v4542
    %v4544 = vtanh.pop %v4528
    %v4545 = vxor.u32 %v4530, 2147483648
    %v4546 = vmul.f32 %v4545, 1.442695
    %v4547 = vpow.pop %v4546
    %v4548 = vadd.f32 %v4547, 1.0
    %v4549 = vrcp.pop %v4548
    %v4550 = vmul.f32 1.0, %v4549
    %v4551 = vmul.f32 %v4543, 0.0
    %v4552 = vmul.f32 %v4537, %v4544
    %v4553 = vadd.f32 %v4551, %v4552
    %v4554 = vtanh.pop %v4553
    %v4555 = vmul.f32 %v4550, %v4554
    %v4560 = vrot.slane %v3986, 1
    %v4561 = vrot.slane %v3988, 1
    %v4562 = vrot.slane %v4057, 1
    %v4563 = vrot.slane %v4059, 1
    %4568 = vmatprep.subr.mxu0 %v3705
    %4569 = vmatpush1.msra.mxu0 %v3704
    %4570 = vmatprep.subr.mxu0 %v3709
    %4571 = vmatpush1.msra.mxu0 %v3708
    %4572 = vmatprep.subr.mxu0 %v3713
    %4573 = vmatpush1.msra.mxu0 %v3712
    %4574 = vmatprep.subr.mxu0 %v3717
    %4575 = vmatpush1.msra.mxu0 %v3716
    %4576 = vmatprep.subr.mxu0 %v3721
    %4577 = vmatpush1.msra.mxu0 %v3720
    %4578 = vmatprep.subr.mxu0 %v3725
    %4579 = vmatpush1.msra.mxu0 %v3724
    %4580 = vmatprep.subr.mxu0 %v3729
    %4581 = vmatpush1.msra.mxu0 %v3728
    %4582 = vmatprep.subr.mxu0 %v3733
    %4583 = vmatpush1.msra.mxu0 %v3732
    %4584 = vmatprep.subr.mxu0 %v3737
    %4585 = vmatpush1.msra.mxu0 %v3736
    %4586 = vmatprep.subr.mxu0 %v3741
    %4587 = vmatpush1.msra.mxu0 %v3740
    %4588 = vmatprep.subr.mxu0 %v3745
    %4589 = vmatpush1.msra.mxu0 %v3744
    %4590 = vmatprep.subr.mxu0 %v3749
    %4591 = vmatpush1.msra.mxu0 %v3748
    %4592 = vmatprep.subr.mxu0 %v3753
    %4593 = vmatpush1.msra.mxu0 %v3752
    %4594 = vmatprep.subr.mxu0 %v3757
    %4595 = vmatpush1.msra.mxu0 %v3756
    %4596 = vmatprep.subr.mxu0 %v3761
    %4597 = vmatpush1.msra.mxu0 %v3760
    %4598 = vmatprep.subr.mxu0 %v3765
    %4599 = vmatpush1.msra.mxu0 %v3764
    %4600 = vmatprep.subr.mxu0 0.0
    %4601 = vmatpush1.msra.mxu0 0.0
    %4602 = vmatprep.subr.mxu0 0.0
    %4603 = vmatpush1.msra.mxu0 0.0
    %4604 = vmatprep.subr.mxu0 0.0
    %4605 = vmatpush1.msra.mxu0 0.0
    %4606 = vmatprep.subr.mxu0 0.0
    %4607 = vmatpush1.msra.mxu0 0.0
    %4608 = vmatprep.subr.mxu0 0.0
    %4609 = vmatpush1.msra.mxu0 0.0
    %4610 = vmatprep.subr.mxu0 0.0
    %4611 = vmatpush1.msra.mxu0 0.0
    %4612 = vmatprep.subr.mxu0 0.0
    %4613 = vmatpush1.msra.mxu0 0.0
    %4614 = vmatprep.subr.mxu0 0.0
    %4615 = vmatpush1.msra.mxu0 0.0
    %4616 = vmatprep.subr.mxu0 0.0
    %4617 = vmatpush1.msra.mxu0 0.0
    %4618 = vmatprep.subr.mxu0 0.0
    %4619 = vmatpush1.msra.mxu0 0.0
    %4620 = vmatprep.subr.mxu0 0.0
    %4621 = vmatpush1.msra.mxu0 0.0
    %4622 = vmatprep.subr.mxu0 0.0
    %4623 = vmatpush1.msra.mxu0 0.0
    %4624 = vmatprep.subr.mxu0 0.0
    %4625 = vmatpush1.msra.mxu0 0.0
    %4626 = vmatprep.subr.mxu0 0.0
    %4627 = vmatpush1.msra.mxu0 0.0
    %4628 = vmatprep.subr.mxu0 0.0
    %4629 = vmatpush1.msra.mxu0 0.0
    %4630 = vmatprep.subr.mxu0 0.0
    %4631 = vmatpush1.msra.mxu0 0.0
    %4632 = vmatprep.mubr.f32.mxu0 0.0
    %4633 = vmatmul.mubr.f32.gmra.mrb[0].mxu0 %v4389
    %v4634 = vpop.f32.mrb[0].mxu0
    %v4635 = vadd.f32 %v4560, %v4634
    %v4636 = vpop.f32.mrb[0].mxu0
    %v4637 = vadd.f32 %v4561, %v4636
    %4638 = vdwg.mxu0
    %4639 = vmatprep.subr.mxu0 %v3707
    %4640 = vmatpush1.msra.mxu0 %v3706
    %4641 = vmatprep.subr.mxu0 %v3711
    %4642 = vmatpush1.msra.mxu0 %v3710
    %4643 = vmatprep.subr.mxu0 %v3715
    %4644 = vmatpush1.msra.mxu0 %v3714
    %4645 = vmatprep.subr.mxu0 %v3719
    %4646 = vmatpush1.msra.mxu0 %v3718
    %4647 = vmatprep.subr.mxu0 %v3723
    %4648 = vmatpush1.msra.mxu0 %v3722
    %4649 = vmatprep.subr.mxu0 %v3727
    %4650 = vmatpush1.msra.mxu0 %v3726
    %4651 = vmatprep.subr.mxu0 %v3731
    %4652 = vmatpush1.msra.mxu0 %v3730
    %4653 = vmatprep.subr.mxu0 %v3735
    %4654 = vmatpush1.msra.mxu0 %v3734
    %4655 = vmatprep.subr.mxu0 %v3739
    %4656 = vmatpush1.msra.mxu0 %v3738
    %4657 = vmatprep.subr.mxu0 %v3743
    %4658 = vmatpush1.msra.mxu0 %v3742
    %4659 = vmatprep.subr.mxu0 %v3747
    %4660 = vmatpush1.msra.mxu0 %v3746
    %4661 = vmatprep.subr.mxu0 %v3751
    %4662 = vmatpush1.msra.mxu0 %v3750
    %4663 = vmatprep.subr.mxu0 %v3755
    %4664 = vmatpush1.msra.mxu0 %v3754
    %4665 = vmatprep.subr.mxu0 %v3759
    %4666 = vmatpush1.msra.mxu0 %v3758
    %4667 = vmatprep.subr.mxu0 %v3763
    %4668 = vmatpush1.msra.mxu0 %v3762
    %4669 = vmatprep.subr.mxu0 %v3767
    %4670 = vmatpush1.msra.mxu0 %v3766
    %4671 = vmatprep.subr.mxu0 0.0
    %4672 = vmatpush1.msra.mxu0 0.0
    %4673 = vmatprep.subr.mxu0 0.0
    %4674 = vmatpush1.msra.mxu0 0.0
    %4675 = vmatprep.subr.mxu0 0.0
    %4676 = vmatpush1.msra.mxu0 0.0
    %4677 = vmatprep.subr.mxu0 0.0
    %4678 = vmatpush1.msra.mxu0 0.0
    %4679 = vmatprep.subr.mxu0 0.0
    %4680 = vmatpush1.msra.mxu0 0.0
    %4681 = vmatprep.subr.mxu0 0.0
    %4682 = vmatpush1.msra.mxu0 0.0
    %4683 = vmatprep.subr.mxu0 0.0
    %4684 = vmatpush1.msra.mxu0 0.0
    %4685 = vmatprep.subr.mxu0 0.0
    %4686 = vmatpush1.msra.mxu0 0.0
    %4687 = vmatprep.subr.mxu0 0.0
    %4688 = vmatpush1.msra.mxu0 0.0
    %4689 = vmatprep.subr.mxu0 0.0
    %4690 = vmatpush1.msra.mxu0 0.0
    %4691 = vmatprep.subr.mxu0 0.0
    %4692 = vmatpush1.msra.mxu0 0.0
    %4693 = vmatprep.subr.mxu0 0.0
    %4694 = vmatpush1.msra.mxu0 0.0
    %4695 = vmatprep.subr.mxu0 0.0
    %4696 = vmatpush1.msra.mxu0 0.0
    %4697 = vmatprep.subr.mxu0 0.0
    %4698 = vmatpush1.msra.mxu0 0.0
    %4699 = vmatprep.subr.mxu0 0.0
    %4700 = vmatpush1.msra.mxu0 0.0
    %4701 = vmatprep.subr.mxu0 0.0
    %4702 = vmatpush1.msra.mxu0 0.0
    %4703 = vmatprep.mubr.f32.mxu0 0.0
    %4704 = vmatmul.mubr.f32.gmra.mrb[0].mxu0 %v4389
    %v4705 = vpop.f32.mrb[0].mxu0
    %v4706 = vadd.f32 %v4562, %v4705
    %v4707 = vpop.f32.mrb[0].mxu0
    %v4708 = vadd.f32 %v4563, %v4707
    %4709 = vdwg.mxu0
    %v4710 = vxor.u32 %v4635, 2147483648
    %v4711 = vmul.f32 %v4710, 1.442695
    %v4712 = vpow.pop %v4711
    %v4713 = vadd.f32 %v4712, 1.0
    %v4714 = vrcp.pop %v4713
    %v4715 = vmul.f32 1.0, %v4714
    %v4716 = vxor.u32 %v4637, 2147483648
    %v4717 = vmul.f32 %v4716, 1.442695
    %v4718 = vpow.pop %v4717
    %v4719 = vadd.f32 %v4718, 1.0
    %v4720 = vrcp.pop %v4719
    %v4721 = vmul.f32 1.0, %v4720
    %v4722 = vtanh.pop %v4706
    %v4723 = vxor.u32 %v4708, 2147483648
    %v4724 = vmul.f32 %v4723, 1.442695
    %v4725 = vpow.pop %v4724
    %v4726 = vadd.f32 %v4725, 1.0
    %v4727 = vrcp.pop %v4726
    %v4728 = vmul.f32 1.0, %v4727
    %v4729 = vmul.f32 %v4721, %v4387
    %v4730 = vmul.f32 %v4715, %v4722
    %v4731 = vadd.f32 %v4729, %v4730
    %v4732 = vtanh.pop %v4731
    %v4733 = vmul.f32 %v4728, %v4732
    %v4738 = vrot.slane %v4149, 1
    %v4739 = vrot.slane %v4151, 1
    %v4740 = vrot.slane %v4220, 1
    %v4741 = vrot.slane %v4222, 1
    %4746 = vmatprep.subr.mxu0 %v3834
    %4747 = vmatpush1.msra.mxu0 %v3833
    %4748 = vmatprep.subr.mxu0 %v3838
    %4749 = vmatpush1.msra.mxu0 %v3837
    %4750 = vmatprep.subr.mxu0 %v3842
    %4751 = vmatpush1.msra.mxu0 %v3841
    %4752 = vmatprep.subr.mxu0 %v3846
    %4753 = vmatpush1.msra.mxu0 %v3845
    %4754 = vmatprep.subr.mxu0 %v3850
    %4755 = vmatpush1.msra.mxu0 %v3849
    %4756 = vmatprep.subr.mxu0 %v3854
    %4757 = vmatpush1.msra.mxu0 %v3853
    %4758 = vmatprep.subr.mxu0 %v3858
    %4759 = vmatpush1.msra.mxu0 %v3857
    %4760 = vmatprep.subr.mxu0 %v3862
    %4761 = vmatpush1.msra.mxu0 %v3861
    %4762 = vmatprep.subr.mxu0 %v3866
    %4763 = vmatpush1.msra.mxu0 %v3865
    %4764 = vmatprep.subr.mxu0 %v3870
    %4765 = vmatpush1.msra.mxu0 %v3869
    %4766 = vmatprep.subr.mxu0 %v3874
    %4767 = vmatpush1.msra.mxu0 %v3873
    %4768 = vmatprep.subr.mxu0 %v3878
    %4769 = vmatpush1.msra.mxu0 %v3877
    %4770 = vmatprep.subr.mxu0 %v3882
    %4771 = vmatpush1.msra.mxu0 %v3881
    %4772 = vmatprep.subr.mxu0 %v3886
    %4773 = vmatpush1.msra.mxu0 %v3885
    %4774 = vmatprep.subr.mxu0 %v3890
    %4775 = vmatpush1.msra.mxu0 %v3889
    %4776 = vmatprep.subr.mxu0 %v3894
    %4777 = vmatpush1.msra.mxu0 %v3893
    %4778 = vmatprep.subr.mxu0 0.0
    %4779 = vmatpush1.msra.mxu0 0.0
    %4780 = vmatprep.subr.mxu0 0.0
    %4781 = vmatpush1.msra.mxu0 0.0
    %4782 = vmatprep.subr.mxu0 0.0
    %4783 = vmatpush1.msra.mxu0 0.0
    %4784 = vmatprep.subr.mxu0 0.0
    %4785 = vmatpush1.msra.mxu0 0.0
    %4786 = vmatprep.subr.mxu0 0.0
    %4787 = vmatpush1.msra.mxu0 0.0
    %4788 = vmatprep.subr.mxu0 0.0
    %4789 = vmatpush1.msra.mxu0 0.0
    %4790 = vmatprep.subr.mxu0 0.0
    %4791 = vmatpush1.msra.mxu0 0.0
    %4792 = vmatprep.subr.mxu0 0.0
    %4793 = vmatpush1.msra.mxu0 0.0
    %4794 = vmatprep.subr.mxu0 0.0
    %4795 = vmatpush1.msra.mxu0 0.0
    %4796 = vmatprep.subr.mxu0 0.0
    %4797 = vmatpush1.msra.mxu0 0.0
    %4798 = vmatprep.subr.mxu0 0.0
    %4799 = vmatpush1.msra.mxu0 0.0
    %4800 = vmatprep.subr.mxu0 0.0
    %4801 = vmatpush1.msra.mxu0 0.0
    %4802 = vmatprep.subr.mxu0 0.0
    %4803 = vmatpush1.msra.mxu0 0.0
    %4804 = vmatprep.subr.mxu0 0.0
    %4805 = vmatpush1.msra.mxu0 0.0
    %4806 = vmatprep.subr.mxu0 0.0
    %4807 = vmatpush1.msra.mxu0 0.0
    %4808 = vmatprep.subr.mxu0 0.0
    %4809 = vmatpush1.msra.mxu0 0.0
    %4810 = vmatprep.mubr.f32.mxu0 0.0
    %4811 = vmatmul.mubr.f32.gmra.mrb[0].mxu0 %v4555
    %v4812 = vpop.f32.mrb[0].mxu0
    %v4813 = vadd.f32 %v4738, %v4812
    %v4814 = vpop.f32.mrb[0].mxu0
    %v4815 = vadd.f32 %v4739, %v4814
    %4816 = vdwg.mxu0
    %4817 = vmatprep.subr.mxu0 %v3836
    %4818 = vmatpush1.msra.mxu0 %v3835
    %4819 = vmatprep.subr.mxu0 %v3840
    %4820 = vmatpush1.msra.mxu0 %v3839
    %4821 = vmatprep.subr.mxu0 %v3844
    %4822 = vmatpush1.msra.mxu0 %v3843
    %4823 = vmatprep.subr.mxu0 %v3848
    %4824 = vmatpush1.msra.mxu0 %v3847
    %4825 = vmatprep.subr.mxu0 %v3852
    %4826 = vmatpush1.msra.mxu0 %v3851
    %4827 = vmatprep.subr.mxu0 %v3856
    %4828 = vmatpush1.msra.mxu0 %v3855
    %4829 = vmatprep.subr.mxu0 %v3860
    %4830 = vmatpush1.msra.mxu0 %v3859
    %4831 = vmatprep.subr.mxu0 %v3864
    %4832 = vmatpush1.msra.mxu0 %v3863
    %4833 = vmatprep.subr.mxu0 %v3868
    %4834 = vmatpush1.msra.mxu0 %v3867
    %4835 = vmatprep.subr.mxu0 %v3872
    %4836 = vmatpush1.msra.mxu0 %v3871
    %4837 = vmatprep.subr.mxu0 %v3876
    %4838 = vmatpush1.msra.mxu0 %v3875
    %4839 = vmatprep.subr.mxu0 %v3880
    %4840 = vmatpush1.msra.mxu0 %v3879
    %4841 = vmatprep.subr.mxu0 %v3884
    %4842 = vmatpush1.msra.mxu0 %v3883
    %4843 = vmatprep.subr.mxu0 %v3888
    %4844 = vmatpush1.msra.mxu0 %v3887
    %4845 = vmatprep.subr.mxu0 %v3892
    %4846 = vmatpush1.msra.mxu0 %v3891
    %4847 = vmatprep.subr.mxu0 %v3896
    %4848 = vmatpush1.msra.mxu0 %v3895
    %4849 = vmatprep.subr.mxu0 0.0
    %4850 = vmatpush1.msra.mxu0 0.0
    %4851 = vmatprep.subr.mxu0 0.0
    %4852 = vmatpush1.msra.mxu0 0.0
    %4853 = vmatprep.subr.mxu0 0.0
    %4854 = vmatpush1.msra.mxu0 0.0
    %4855 = vmatprep.subr.mxu0 0.0
    %4856 = vmatpush1.msra.mxu0 0.0
    %4857 = vmatprep.subr.mxu0 0.0
    %4858 = vmatpush1.msra.mxu0 0.0
    %4859 = vmatprep.subr.mxu0 0.0
    %4860 = vmatpush1.msra.mxu0 0.0
    %4861 = vmatprep.subr.mxu0 0.0
    %4862 = vmatpush1.msra.mxu0 0.0
    %4863 = vmatprep.subr.mxu0 0.0
    %4864 = vmatpush1.msra.mxu0 0.0
    %4865 = vmatprep.subr.mxu0 0.0
    %4866 = vmatpush1.msra.mxu0 0.0
    %4867 = vmatprep.subr.mxu0 0.0
    %4868 = vmatpush1.msra.mxu0 0.0
    %4869 = vmatprep.subr.mxu0 0.0
    %4870 = vmatpush1.msra.mxu0 0.0
    %4871 = vmatprep.subr.mxu0 0.0
    %4872 = vmatpush1.msra.mxu0 0.0
    %4873 = vmatprep.subr.mxu0 0.0
    %4874 = vmatpush1.msra.mxu0 0.0
    %4875 = vmatprep.subr.mxu0 0.0
    %4876 = vmatpush1.msra.mxu0 0.0
    %4877 = vmatprep.subr.mxu0 0.0
    %4878 = vmatpush1.msra.mxu0 0.0
    %4879 = vmatprep.subr.mxu0 0.0
    %4880 = vmatpush1.msra.mxu0 0.0
    %4881 = vmatprep.mubr.f32.mxu0 0.0
    %4882 = vmatmul.mubr.f32.gmra.mrb[0].mxu0 %v4555
    %v4883 = vpop.f32.mrb[0].mxu0
    %v4884 = vadd.f32 %v4740, %v4883
    %v4885 = vpop.f32.mrb[0].mxu0
    %v4886 = vadd.f32 %v4741, %v4885
    %4887 = vdwg.mxu0
    %v4888 = vxor.u32 %v4813, 2147483648
    %v4889 = vmul.f32 %v4888, 1.442695
    %v4890 = vpow.pop %v4889
    %v4891 = vadd.f32 %v4890, 1.0
    %v4892 = vrcp.pop %v4891
    %v4893 = vmul.f32 1.0, %v4892
    %v4894 = vxor.u32 %v4815, 2147483648
    %v4895 = vmul.f32 %v4894, 1.442695
    %v4896 = vpow.pop %v4895
    %v4897 = vadd.f32 %v4896, 1.0
    %v4898 = vrcp.pop %v4897
    %v4899 = vmul.f32 1.0, %v4898
    %v4900 = vtanh.pop %v4884
    %v4901 = vxor.u32 %v4886, 2147483648
    %v4902 = vmul.f32 %v4901, 1.442695
    %v4903 = vpow.pop %v4902
    %v4904 = vadd.f32 %v4903, 1.0
    %v4905 = vrcp.pop %v4904
    %v4906 = vmul.f32 1.0, %v4905
    %v4907 = vmul.f32 %v4899, %v4553
    %v4908 = vmul.f32 %v4893, %v4900
    %v4909 = vadd.f32 %v4907, %v4908
    %v4910 = vtanh.pop %v4909
    %v4911 = vmul.f32 %v4906, %v4910
    %v4912 = vrot.slane %v3986, 2
    %v4913 = vrot.slane %v3988, 2
    %v4914 = vrot.slane %v4057, 2
    %v4915 = vrot.slane %v4059, 2
    %4920 = vmatprep.subr.mxu0 %v3705
    %4921 = vmatpush1.msra.mxu0 %v3704
    %4922 = vmatprep.subr.mxu0 %v3709
    %4923 = vmatpush1.msra.mxu0 %v3708
    %4924 = vmatprep.subr.mxu0 %v3713
    %4925 = vmatpush1.msra.mxu0 %v3712
    %4926 = vmatprep.subr.mxu0 %v3717
    %4927 = vmatpush1.msra.mxu0 %v3716
    %4928 = vmatprep.subr.mxu0 %v3721
    %4929 = vmatpush1.msra.mxu0 %v3720
    %4930 = vmatprep.subr.mxu0 %v3725
    %4931 = vmatpush1.msra.mxu0 %v3724
    %4932 = vmatprep.subr.mxu0 %v3729
    %4933 = vmatpush1.msra.mxu0 %v3728
    %4934 = vmatprep.subr.mxu0 %v3733
    %4935 = vmatpush1.msra.mxu0 %v3732
    %4936 = vmatprep.subr.mxu0 %v3737
    %4937 = vmatpush1.msra.mxu0 %v3736
    %4938 = vmatprep.subr.mxu0 %v3741
    %4939 = vmatpush1.msra.mxu0 %v3740
    %4940 = vmatprep.subr.mxu0 %v3745
    %4941 = vmatpush1.msra.mxu0 %v3744
    %4942 = vmatprep.subr.mxu0 %v3749
    %4943 = vmatpush1.msra.mxu0 %v3748
    %4944 = vmatprep.subr.mxu0 %v3753
    %4945 = vmatpush1.msra.mxu0 %v3752
    %4946 = vmatprep.subr.mxu0 %v3757
    %4947 = vmatpush1.msra.mxu0 %v3756
    %4948 = vmatprep.subr.mxu0 %v3761
    %4949 = vmatpush1.msra.mxu0 %v3760
    %4950 = vmatprep.subr.mxu0 %v3765
    %4951 = vmatpush1.msra.mxu0 %v3764
    %4952 = vmatprep.subr.mxu0 0.0
    %4953 = vmatpush1.msra.mxu0 0.0
    %4954 = vmatprep.subr.mxu0 0.0
    %4955 = vmatpush1.msra.mxu0 0.0
    %4956 = vmatprep.subr.mxu0 0.0
    %4957 = vmatpush1.msra.mxu0 0.0
    %4958 = vmatprep.subr.mxu0 0.0
    %4959 = vmatpush1.msra.mxu0 0.0
    %4960 = vmatprep.subr.mxu0 0.0
    %4961 = vmatpush1.msra.mxu0 0.0
    %4962 = vmatprep.subr.mxu0 0.0
    %4963 = vmatpush1.msra.mxu0 0.0
    %4964 = vmatprep.subr.mxu0 0.0
    %4965 = vmatpush1.msra.mxu0 0.0
    %4966 = vmatprep.subr.mxu0 0.0
    %4967 = vmatpush1.msra.mxu0 0.0
    %4968 = vmatprep.subr.mxu0 0.0
    %4969 = vmatpush1.msra.mxu0 0.0
    %4970 = vmatprep.subr.mxu0 0.0
    %4971 = vmatpush1.msra.mxu0 0.0
    %4972 = vmatprep.subr.mxu0 0.0
    %4973 = vmatpush1.msra.mxu0 0.0
    %4974 = vmatprep.subr.mxu0 0.0
    %4975 = vmatpush1.msra.mxu0 0.0
    %4976 = vmatprep.subr.mxu0 0.0
    %4977 = vmatpush1.msra.mxu0 0.0
    %4978 = vmatprep.subr.mxu0 0.0
    %4979 = vmatpush1.msra.mxu0 0.0
    %4980 = vmatprep.subr.mxu0 0.0
    %4981 = vmatpush1.msra.mxu0 0.0
    %4982 = vmatprep.subr.mxu0 0.0
    %4983 = vmatpush1.msra.mxu0 0.0
    %4984 = vmatprep.mubr.f32.mxu0 0.0
    %4985 = vmatmul.mubr.f32.gmra.mrb[0].mxu0 %v4733
    %v4986 = vpop.f32.mrb[0].mxu0
    %v4987 = vadd.f32 %v4912, %v4986
    %v4988 = vpop.f32.mrb[0].mxu0
    %v4989 = vadd.f32 %v4913, %v4988
    %4990 = vdwg.mxu0
    %4991 = vmatprep.subr.mxu0 %v3707
    %4992 = vmatpush1.msra.mxu0 %v3706
    %4993 = vmatprep.subr.mxu0 %v3711
    %4994 = vmatpush1.msra.mxu0 %v3710
    %4995 = vmatprep.subr.mxu0 %v3715
    %4996 = vmatpush1.msra.mxu0 %v3714
    %4997 = vmatprep.subr.mxu0 %v3719
    %4998 = vmatpush1.msra.mxu0 %v3718
    %4999 = vmatprep.subr.mxu0 %v3723
    %5000 = vmatpush1.msra.mxu0 %v3722
    %5001 = vmatprep.subr.mxu0 %v3727
    %5002 = vmatpush1.msra.mxu0 %v3726
    %5003 = vmatprep.subr.mxu0 %v3731
    %5004 = vmatpush1.msra.mxu0 %v3730
    %5005 = vmatprep.subr.mxu0 %v3735
    %5006 = vmatpush1.msra.mxu0 %v3734
    %5007 = vmatprep.subr.mxu0 %v3739
    %5008 = vmatpush1.msra.mxu0 %v3738
    %5009 = vmatprep.subr.mxu0 %v3743
    %5010 = vmatpush1.msra.mxu0 %v3742
    %5011 = vmatprep.subr.mxu0 %v3747
    %5012 = vmatpush1.msra.mxu0 %v3746
    %5013 = vmatprep.subr.mxu0 %v3751
    %5014 = vmatpush1.msra.mxu0 %v3750
    %5015 = vmatprep.subr.mxu0 %v3755
    %5016 = vmatpush1.msra.mxu0 %v3754
    %5017 = vmatprep.subr.mxu0 %v3759
    %5018 = vmatpush1.msra.mxu0 %v3758
    %5019 = vmatprep.subr.mxu0 %v3763
    %5020 = vmatpush1.msra.mxu0 %v3762
    %5021 = vmatprep.subr.mxu0 %v3767
    %5022 = vmatpush1.msra.mxu0 %v3766
    %5023 = vmatprep.subr.mxu0 0.0
    %5024 = vmatpush1.msra.mxu0 0.0
    %5025 = vmatprep.subr.mxu0 0.0
    %5026 = vmatpush1.msra.mxu0 0.0
    %5027 = vmatprep.subr.mxu0 0.0
    %5028 = vmatpush1.msra.mxu0 0.0
    %5029 = vmatprep.subr.mxu0 0.0
    %5030 = vmatpush1.msra.mxu0 0.0
    %5031 = vmatprep.subr.mxu0 0.0
    %5032 = vmatpush1.msra.mxu0 0.0
    %5033 = vmatprep.subr.mxu0 0.0
    %5034 = vmatpush1.msra.mxu0 0.0
    %5035 = vmatprep.subr.mxu0 0.0
    %5036 = vmatpush1.msra.mxu0 0.0
    %5037 = vmatprep.subr.mxu0 0.0
    %5038 = vmatpush1.msra.mxu0 0.0
    %5039 = vmatprep.subr.mxu0 0.0
    %5040 = vmatpush1.msra.mxu0 0.0
    %5041 = vmatprep.subr.mxu0 0.0
    %5042 = vmatpush1.msra.mxu0 0.0
    %5043 = vmatprep.subr.mxu0 0.0
    %5044 = vmatpush1.msra.mxu0 0.0
    %5045 = vmatprep.subr.mxu0 0.0
    %5046 = vmatpush1.msra.mxu0 0.0
    %5047 = vmatprep.subr.mxu0 0.0
    %5048 = vmatpush1.msra.mxu0 0.0
    %5049 = vmatprep.subr.mxu0 0.0
    %5050 = vmatpush1.msra.mxu0 0.0
    %5051 = vmatprep.subr.mxu0 0.0
    %5052 = vmatpush1.msra.mxu0 0.0
    %5053 = vmatprep.subr.mxu0 0.0
    %5054 = vmatpush1.msra.mxu0 0.0
    %5055 = vmatprep.mubr.f32.mxu0 0.0
    %5056 = vmatmul.mubr.f32.gmra.mrb[0].mxu0 %v4733
    %v5057 = vpop.f32.mrb[0].mxu0
    %v5058 = vadd.f32 %v4914, %v5057
    %v5059 = vpop.f32.mrb[0].mxu0
    %v5060 = vadd.f32 %v4915, %v5059
    %5061 = vdwg.mxu0
    %v5062 = vxor.u32 %v4987, 2147483648
    %v5063 = vmul.f32 %v5062, 1.442695
    %v5064 = vpow.pop %v5063
    %v5065 = vadd.f32 %v5064, 1.0
    %v5066 = vrcp.pop %v5065
    %v5067 = vmul.f32 1.0, %v5066
    %v5068 = vxor.u32 %v4989, 2147483648
    %v5069 = vmul.f32 %v5068, 1.442695
    %v5070 = vpow.pop %v5069
    %v5071 = vadd.f32 %v5070, 1.0
    %v5072 = vrcp.pop %v5071
    %v5073 = vmul.f32 1.0, %v5072
    %v5074 = vtanh.pop %v5058
    %v5075 = vxor.u32 %v5060, 2147483648
    %v5076 = vmul.f32 %v5075, 1.442695
    %v5077 = vpow.pop %v5076
    %v5078 = vadd.f32 %v5077, 1.0
    %v5079 = vrcp.pop %v5078
    %v5080 = vmul.f32 1.0, %v5079
    %v5081 = vmul.f32 %v5073, %v4731
    %v5082 = vmul.f32 %v5067, %v5074
    %v5083 = vadd.f32 %v5081, %v5082
    %v5084 = vtanh.pop %v5083
    %v5085 = vmul.f32 %v5080, %v5084
    %v5086 = vrot.slane %v4149, 2
    %v5087 = vrot.slane %v4151, 2
    %v5088 = vrot.slane %v4220, 2
    %v5089 = vrot.slane %v4222, 2
    %5094 = vmatprep.subr.mxu0 %v3834
    %5095 = vmatpush1.msra.mxu0 %v3833
    %5096 = vmatprep.subr.mxu0 %v3838
    %5097 = vmatpush1.msra.mxu0 %v3837
    %5098 = vmatprep.subr.mxu0 %v3842
    %5099 = vmatpush1.msra.mxu0 %v3841
    %5100 = vmatprep.subr.mxu0 %v3846
    %5101 = vmatpush1.msra.mxu0 %v3845
    %5102 = vmatprep.subr.mxu0 %v3850
    %5103 = vmatpush1.msra.mxu0 %v3849
    %5104 = vmatprep.subr.mxu0 %v3854
    %5105 = vmatpush1.msra.mxu0 %v3853
    %5106 = vmatprep.subr.mxu0 %v3858
    %5107 = vmatpush1.msra.mxu0 %v3857
    %5108 = vmatprep.subr.mxu0 %v3862
    %5109 = vmatpush1.msra.mxu0 %v3861
    %5110 = vmatprep.subr.mxu0 %v3866
    %5111 = vmatpush1.msra.mxu0 %v3865
    %5112 = vmatprep.subr.mxu0 %v3870
    %5113 = vmatpush1.msra.mxu0 %v3869
    %5114 = vmatprep.subr.mxu0 %v3874
    %5115 = vmatpush1.msra.mxu0 %v3873
    %5116 = vmatprep.subr.mxu0 %v3878
    %5117 = vmatpush1.msra.mxu0 %v3877
    %5118 = vmatprep.subr.mxu0 %v3882
    %5119 = vmatpush1.msra.mxu0 %v3881
    %5120 = vmatprep.subr.mxu0 %v3886
    %5121 = vmatpush1.msra.mxu0 %v3885
    %5122 = vmatprep.subr.mxu0 %v3890
    %5123 = vmatpush1.msra.mxu0 %v3889
    %5124 = vmatprep.subr.mxu0 %v3894
    %5125 = vmatpush1.msra.mxu0 %v3893
    %5126 = vmatprep.subr.mxu0 0.0
    %5127 = vmatpush1.msra.mxu0 0.0
    %5128 = vmatprep.subr.mxu0 0.0
    %5129 = vmatpush1.msra.mxu0 0.0
    %5130 = vmatprep.subr.mxu0 0.0
    %5131 = vmatpush1.msra.mxu0 0.0
    %5132 = vmatprep.subr.mxu0 0.0
    %5133 = vmatpush1.msra.mxu0 0.0
    %5134 = vmatprep.subr.mxu0 0.0
    %5135 = vmatpush1.msra.mxu0 0.0
    %5136 = vmatprep.subr.mxu0 0.0
    %5137 = vmatpush1.msra.mxu0 0.0
    %5138 = vmatprep.subr.mxu0 0.0
    %5139 = vmatpush1.msra.mxu0 0.0
    %5140 = vmatprep.subr.mxu0 0.0
    %5141 = vmatpush1.msra.mxu0 0.0
    %5142 = vmatprep.subr.mxu0 0.0
    %5143 = vmatpush1.msra.mxu0 0.0
    %5144 = vmatprep.subr.mxu0 0.0
    %5145 = vmatpush1.msra.mxu0 0.0
    %5146 = vmatprep.subr.mxu0 0.0
    %5147 = vmatpush1.msra.mxu0 0.0
    %5148 = vmatprep.subr.mxu0 0.0
    %5149 = vmatpush1.msra.mxu0 0.0
    %5150 = vmatprep.subr.mxu0 0.0
    %5151 = vmatpush1.msra.mxu0 0.0
    %5152 = vmatprep.subr.mxu0 0.0
    %5153 = vmatpush1.msra.mxu0 0.0
    %5154 = vmatprep.subr.mxu0 0.0
    %5155 = vmatpush1.msra.mxu0 0.0
    %5156 = vmatprep.subr.mxu0 0.0
    %5157 = vmatpush1.msra.mxu0 0.0
    %5158 = vmatprep.mubr.f32.mxu0 0.0
    %5159 = vmatmul.mubr.f32.gmra.mrb[0].mxu0 %v4911
    %v5160 = vpop.f32.mrb[0].mxu0
    %v5161 = vadd.f32 %v5086, %v5160
    %v5162 = vpop.f32.mrb[0].mxu0
    %v5163 = vadd.f32 %v5087, %v5162
    %5164 = vdwg.mxu0
    %5165 = vmatprep.subr.mxu0 %v3836
    %5166 = vmatpush1.msra.mxu0 %v3835
    %5167 = vmatprep.subr.mxu0 %v3840
    %5168 = vmatpush1.msra.mxu0 %v3839
    %5169 = vmatprep.subr.mxu0 %v3844
    %5170 = vmatpush1.msra.mxu0 %v3843
    %5171 = vmatprep.subr.mxu0 %v3848
    %5172 = vmatpush1.msra.mxu0 %v3847
    %5173 = vmatprep.subr.mxu0 %v3852
    %5174 = vmatpush1.msra.mxu0 %v3851
    %5175 = vmatprep.subr.mxu0 %v3856
    %5176 = vmatpush1.msra.mxu0 %v3855
    %5177 = vmatprep.subr.mxu0 %v3860
    %5178 = vmatpush1.msra.mxu0 %v3859
    %5179 = vmatprep.subr.mxu0 %v3864
    %5180 = vmatpush1.msra.mxu0 %v3863
    %5181 = vmatprep.subr.mxu0 %v3868
    %5182 = vmatpush1.msra.mxu0 %v3867
    %5183 = vmatprep.subr.mxu0 %v3872
    %5184 = vmatpush1.msra.mxu0 %v3871
    %5185 = vmatprep.subr.mxu0 %v3876
    %5186 = vmatpush1.msra.mxu0 %v3875
    %5187 = vmatprep.subr.mxu0 %v3880
    %5188 = vmatpush1.msra.mxu0 %v3879
    %5189 = vmatprep.subr.mxu0 %v3884
    %5190 = vmatpush1.msra.mxu0 %v3883
    %5191 = vmatprep.subr.mxu0 %v3888
    %5192 = vmatpush1.msra.mxu0 %v3887
    %5193 = vmatprep.subr.mxu0 %v3892
    %5194 = vmatpush1.msra.mxu0 %v3891
    %5195 = vmatprep.subr.mxu0 %v3896
    %5196 = vmatpush1.msra.mxu0 %v3895
    %5197 = vmatprep.subr.mxu0 0.0
    %5198 = vmatpush1.msra.mxu0 0.0
    %5199 = vmatprep.subr.mxu0 0.0
    %5200 = vmatpush1.msra.mxu0 0.0
    %5201 = vmatprep.subr.mxu0 0.0
    %5202 = vmatpush1.msra.mxu0 0.0
    %5203 = vmatprep.subr.mxu0 0.0
    %5204 = vmatpush1.msra.mxu0 0.0
    %5205 = vmatprep.subr.mxu0 0.0
    %5206 = vmatpush1.msra.mxu0 0.0
    %5207 = vmatprep.subr.mxu0 0.0
    %5208 = vmatpush1.msra.mxu0 0.0
    %5209 = vmatprep.subr.mxu0 0.0
    %5210 = vmatpush1.msra.mxu0 0.0
    %5211 = vmatprep.subr.mxu0 0.0
    %5212 = vmatpush1.msra.mxu0 0.0
    %5213 = vmatprep.subr.mxu0 0.0
    %5214 = vmatpush1.msra.mxu0 0.0
    %5215 = vmatprep.subr.mxu0 0.0
    %5216 = vmatpush1.msra.mxu0 0.0
    %5217 = vmatprep.subr.mxu0 0.0
    %5218 = vmatpush1.msra.mxu0 0.0
    %5219 = vmatprep.subr.mxu0 0.0
    %5220 = vmatpush1.msra.mxu0 0.0
    %5221 = vmatprep.subr.mxu0 0.0
    %5222 = vmatpush1.msra.mxu0 0.0
    %5223 = vmatprep.subr.mxu0 0.0
    %5224 = vmatpush1.msra.mxu0 0.0
    %5225 = vmatprep.subr.mxu0 0.0
    %5226 = vmatpush1.msra.mxu0 0.0
    %5227 = vmatprep.subr.mxu0 0.0
    %5228 = vmatpush1.msra.mxu0 0.0
    %5229 = vmatprep.mubr.f32.mxu0 0.0
    %5230 = vmatmul.mubr.f32.gmra.mrb[0].mxu0 %v4911
    %v5231 = vpop.f32.mrb[0].mxu0
    %v5232 = vadd.f32 %v5088, %v5231
    %v5233 = vpop.f32.mrb[0].mxu0
    %v5234 = vadd.f32 %v5089, %v5233
    %5235 = vdwg.mxu0
    %v5236 = vxor.u32 %v5161, 2147483648
    %v5237 = vmul.f32 %v5236, 1.442695
    %v5238 = vpow.pop %v5237
    %v5239 = vadd.f32 %v5238, 1.0
    %v5240 = vrcp.pop %v5239
    %v5241 = vmul.f32 1.0, %v5240
    %v5242 = vxor.u32 %v5163, 2147483648
    %v5243 = vmul.f32 %v5242, 1.442695
    %v5244 = vpow.pop %v5243
    %v5245 = vadd.f32 %v5244, 1.0
    %v5246 = vrcp.pop %v5245
    %v5247 = vmul.f32 1.0, %v5246
    %v5248 = vtanh.pop %v5232
    %v5249 = vxor.u32 %v5234, 2147483648
    %v5250 = vmul.f32 %v5249, 1.442695
    %v5251 = vpow.pop %v5250
    %v5252 = vadd.f32 %v5251, 1.0
    %v5253 = vrcp.pop %v5252
    %v5254 = vmul.f32 1.0, %v5253
    %v5255 = vmul.f32 %v5247, %v4909
    %v5256 = vmul.f32 %v5241, %v5248
    %v5257 = vadd.f32 %v5255, %v5256
    %v5258 = vtanh.pop %v5257
    %v5259 = vmul.f32 %v5254, %v5258
    %v5260 = vrot.slane %v3986, 3
    %v5261 = vrot.slane %v3988, 3
    %v5262 = vrot.slane %v4057, 3
    %v5263 = vrot.slane %v4059, 3
    %5268 = vmatprep.subr.mxu0 %v3705
    %5269 = vmatpush1.msra.mxu0 %v3704
    %5270 = vmatprep.subr.mxu0 %v3709
    %5271 = vmatpush1.msra.mxu0 %v3708
    %5272 = vmatprep.subr.mxu0 %v3713
    %5273 = vmatpush1.msra.mxu0 %v3712
    %5274 = vmatprep.subr.mxu0 %v3717
    %5275 = vmatpush1.msra.mxu0 %v3716
    %5276 = vmatprep.subr.mxu0 %v3721
    %5277 = vmatpush1.msra.mxu0 %v3720
    %5278 = vmatprep.subr.mxu0 %v3725
    %5279 = vmatpush1.msra.mxu0 %v3724
    %5280 = vmatprep.subr.mxu0 %v3729
    %5281 = vmatpush1.msra.mxu0 %v3728
    %5282 = vmatprep.subr.mxu0 %v3733
    %5283 = vmatpush1.msra.mxu0 %v3732
    %5284 = vmatprep.subr.mxu0 %v3737
    %5285 = vmatpush1.msra.mxu0 %v3736
    %5286 = vmatprep.subr.mxu0 %v3741
    %5287 = vmatpush1.msra.mxu0 %v3740
    %5288 = vmatprep.subr.mxu0 %v3745
    %5289 = vmatpush1.msra.mxu0 %v3744
    %5290 = vmatprep.subr.mxu0 %v3749
    %5291 = vmatpush1.msra.mxu0 %v3748
    %5292 = vmatprep.subr.mxu0 %v3753
    %5293 = vmatpush1.msra.mxu0 %v3752
    %5294 = vmatprep.subr.mxu0 %v3757
    %5295 = vmatpush1.msra.mxu0 %v3756
    %5296 = vmatprep.subr.mxu0 %v3761
    %5297 = vmatpush1.msra.mxu0 %v3760
    %5298 = vmatprep.subr.mxu0 %v3765
    %5299 = vmatpush1.msra.mxu0 %v3764
    %5300 = vmatprep.subr.mxu0 0.0
    %5301 = vmatpush1.msra.mxu0 0.0
    %5302 = vmatprep.subr.mxu0 0.0
    %5303 = vmatpush1.msra.mxu0 0.0
    %5304 = vmatprep.subr.mxu0 0.0
    %5305 = vmatpush1.msra.mxu0 0.0
    %5306 = vmatprep.subr.mxu0 0.0
    %5307 = vmatpush1.msra.mxu0 0.0
    %5308 = vmatprep.subr.mxu0 0.0
    %5309 = vmatpush1.msra.mxu0 0.0
    %5310 = vmatprep.subr.mxu0 0.0
    %5311 = vmatpush1.msra.mxu0 0.0
    %5312 = vmatprep.subr.mxu0 0.0
    %5313 = vmatpush1.msra.mxu0 0.0
    %5314 = vmatprep.subr.mxu0 0.0
    %5315 = vmatpush1.msra.mxu0 0.0
    %5316 = vmatprep.subr.mxu0 0.0
    %5317 = vmatpush1.msra.mxu0 0.0
    %5318 = vmatprep.subr.mxu0 0.0
    %5319 = vmatpush1.msra.mxu0 0.0
    %5320 = vmatprep.subr.mxu0 0.0
    %5321 = vmatpush1.msra.mxu0 0.0
    %5322 = vmatprep.subr.mxu0 0.0
    %5323 = vmatpush1.msra.mxu0 0.0
    %5324 = vmatprep.subr.mxu0 0.0
    %5325 = vmatpush1.msra.mxu0 0.0
    %5326 = vmatprep.subr.mxu0 0.0
    %5327 = vmatpush1.msra.mxu0 0.0
    %5328 = vmatprep.subr.mxu0 0.0
    %5329 = vmatpush1.msra.mxu0 0.0
    %5330 = vmatprep.subr.mxu0 0.0
    %5331 = vmatpush1.msra.mxu0 0.0
    %5332 = vmatprep.mubr.f32.mxu0 0.0
    %5333 = vmatmul.mubr.f32.gmra.mrb[0].mxu0 %v5085
    %v5334 = vpop.f32.mrb[0].mxu0
    %v5335 = vadd.f32 %v5260, %v5334
    %v5336 = vpop.f32.mrb[0].mxu0
    %v5337 = vadd.f32 %v5261, %v5336
    %5338 = vdwg.mxu0
    %5339 = vmatprep.subr.mxu0 %v3707
    %5340 = vmatpush1.msra.mxu0 %v3706
    %5341 = vmatprep.subr.mxu0 %v3711
    %5342 = vmatpush1.msra.mxu0 %v3710
    %5343 = vmatprep.subr.mxu0 %v3715
    %5344 = vmatpush1.msra.mxu0 %v3714
    %5345 = vmatprep.subr.mxu0 %v3719
    %5346 = vmatpush1.msra.mxu0 %v3718
    %5347 = vmatprep.subr.mxu0 %v3723
    %5348 = vmatpush1.msra.mxu0 %v3722
    %5349 = vmatprep.subr.mxu0 %v3727
    %5350 = vmatpush1.msra.mxu0 %v3726
    %5351 = vmatprep.subr.mxu0 %v3731
    %5352 = vmatpush1.msra.mxu0 %v3730
    %5353 = vmatprep.subr.mxu0 %v3735
    %5354 = vmatpush1.msra.mxu0 %v3734
    %5355 = vmatprep.subr.mxu0 %v3739
    %5356 = vmatpush1.msra.mxu0 %v3738
    %5357 = vmatprep.subr.mxu0 %v3743
    %5358 = vmatpush1.msra.mxu0 %v3742
    %5359 = vmatprep.subr.mxu0 %v3747
    %5360 = vmatpush1.msra.mxu0 %v3746
    %5361 = vmatprep.subr.mxu0 %v3751
    %5362 = vmatpush1.msra.mxu0 %v3750
    %5363 = vmatprep.subr.mxu0 %v3755
    %5364 = vmatpush1.msra.mxu0 %v3754
    %5365 = vmatprep.subr.mxu0 %v3759
    %5366 = vmatpush1.msra.mxu0 %v3758
    %5367 = vmatprep.subr.mxu0 %v3763
    %5368 = vmatpush1.msra.mxu0 %v3762
    %5369 = vmatprep.subr.mxu0 %v3767
    %5370 = vmatpush1.msra.mxu0 %v3766
    %5371 = vmatprep.subr.mxu0 0.0
    %5372 = vmatpush1.msra.mxu0 0.0
    %5373 = vmatprep.subr.mxu0 0.0
    %5374 = vmatpush1.msra.mxu0 0.0
    %5375 = vmatprep.subr.mxu0 0.0
    %5376 = vmatpush1.msra.mxu0 0.0
    %5377 = vmatprep.subr.mxu0 0.0
    %5378 = vmatpush1.msra.mxu0 0.0
    %5379 = vmatprep.subr.mxu0 0.0
    %5380 = vmatpush1.msra.mxu0 0.0
    %5381 = vmatprep.subr.mxu0 0.0
    %5382 = vmatpush1.msra.mxu0 0.0
    %5383 = vmatprep.subr.mxu0 0.0
    %5384 = vmatpush1.msra.mxu0 0.0
    %5385 = vmatprep.subr.mxu0 0.0
    %5386 = vmatpush1.msra.mxu0 0.0
    %5387 = vmatprep.subr.mxu0 0.0
    %5388 = vmatpush1.msra.mxu0 0.0
    %5389 = vmatprep.subr.mxu0 0.0
    %5390 = vmatpush1.msra.mxu0 0.0
    %5391 = vmatprep.subr.mxu0 0.0
    %5392 = vmatpush1.msra.mxu0 0.0
    %5393 = vmatprep.subr.mxu0 0.0
    %5394 = vmatpush1.msra.mxu0 0.0
    %5395 = vmatprep.subr.mxu0 0.0
    %5396 = vmatpush1.msra.mxu0 0.0
    %5397 = vmatprep.subr.mxu0 0.0
    %5398 = vmatpush1.msra.mxu0 0.0
    %5399 = vmatprep.subr.mxu0 0.0
    %5400 = vmatpush1.msra.mxu0 0.0
    %5401 = vmatprep.subr.mxu0 0.0
    %5402 = vmatpush1.msra.mxu0 0.0
    %5403 = vmatprep.mubr.f32.mxu0 0.0
    %5404 = vmatmul.mubr.f32.gmra.mrb[0].mxu0 %v5085
    %v5405 = vpop.f32.mrb[0].mxu0
    %v5406 = vadd.f32 %v5262, %v5405
    %v5407 = vpop.f32.mrb[0].mxu0
    %v5408 = vadd.f32 %v5263, %v5407
    %5409 = vdwg.mxu0
    %v5410 = vxor.u32 %v5335, 2147483648
    %v5411 = vmul.f32 %v5410, 1.442695
    %v5412 = vpow.pop %v5411
    %v5413 = vadd.f32 %v5412, 1.0
    %v5414 = vrcp.pop %v5413
    %v5415 = vmul.f32 1.0, %v5414
    %v5416 = vxor.u32 %v5337, 2147483648
    %v5417 = vmul.f32 %v5416, 1.442695
    %v5418 = vpow.pop %v5417
    %v5419 = vadd.f32 %v5418, 1.0
    %v5420 = vrcp.pop %v5419
    %v5421 = vmul.f32 1.0, %v5420
    %v5422 = vtanh.pop %v5406
    %v5423 = vxor.u32 %v5408, 2147483648
    %v5424 = vmul.f32 %v5423, 1.442695
    %v5425 = vpow.pop %v5424
    %v5426 = vadd.f32 %v5425, 1.0
    %v5427 = vrcp.pop %v5426
    %v5428 = vmul.f32 1.0, %v5427
    %v5429 = vmul.f32 %v5421, %v5083
    %v5430 = vmul.f32 %v5415, %v5422
    %v5431 = vadd.f32 %v5429, %v5430
    %v5432 = vtanh.pop %v5431
    %v5433 = vmul.f32 %v5428, %v5432
    %v5434 = vrot.slane %v4149, 3
    %v5435 = vrot.slane %v4151, 3
    %v5436 = vrot.slane %v4220, 3
    %v5437 = vrot.slane %v4222, 3
    %5442 = vmatprep.subr.mxu0 %v3834
    %5443 = vmatpush1.msra.mxu0 %v3833
    %5444 = vmatprep.subr.mxu0 %v3838
    %5445 = vmatpush1.msra.mxu0 %v3837
    %5446 = vmatprep.subr.mxu0 %v3842
    %5447 = vmatpush1.msra.mxu0 %v3841
    %5448 = vmatprep.subr.mxu0 %v3846
    %5449 = vmatpush1.msra.mxu0 %v3845
    %5450 = vmatprep.subr.mxu0 %v3850
    %5451 = vmatpush1.msra.mxu0 %v3849
    %5452 = vmatprep.subr.mxu0 %v3854
    %5453 = vmatpush1.msra.mxu0 %v3853
    %5454 = vmatprep.subr.mxu0 %v3858
    %5455 = vmatpush1.msra.mxu0 %v3857
    %5456 = vmatprep.subr.mxu0 %v3862
    %5457 = vmatpush1.msra.mxu0 %v3861
    %5458 = vmatprep.subr.mxu0 %v3866
    %5459 = vmatpush1.msra.mxu0 %v3865
    %5460 = vmatprep.subr.mxu0 %v3870
    %5461 = vmatpush1.msra.mxu0 %v3869
    %5462 = vmatprep.subr.mxu0 %v3874
    %5463 = vmatpush1.msra.mxu0 %v3873
    %5464 = vmatprep.subr.mxu0 %v3878
    %5465 = vmatpush1.msra.mxu0 %v3877
    %5466 = vmatprep.subr.mxu0 %v3882
    %5467 = vmatpush1.msra.mxu0 %v3881
    %5468 = vmatprep.subr.mxu0 %v3886
    %5469 = vmatpush1.msra.mxu0 %v3885
    %5470 = vmatprep.subr.mxu0 %v3890
    %5471 = vmatpush1.msra.mxu0 %v3889
    %5472 = vmatprep.subr.mxu0 %v3894
    %5473 = vmatpush1.msra.mxu0 %v3893
    %5474 = vmatprep.subr.mxu0 0.0
    %5475 = vmatpush1.msra.mxu0 0.0
    %5476 = vmatprep.subr.mxu0 0.0
    %5477 = vmatpush1.msra.mxu0 0.0
    %5478 = vmatprep.subr.mxu0 0.0
    %5479 = vmatpush1.msra.mxu0 0.0
    %5480 = vmatprep.subr.mxu0 0.0
    %5481 = vmatpush1.msra.mxu0 0.0
    %5482 = vmatprep.subr.mxu0 0.0
    %5483 = vmatpush1.msra.mxu0 0.0
    %5484 = vmatprep.subr.mxu0 0.0
    %5485 = vmatpush1.msra.mxu0 0.0
    %5486 = vmatprep.subr.mxu0 0.0
    %5487 = vmatpush1.msra.mxu0 0.0
    %5488 = vmatprep.subr.mxu0 0.0
    %5489 = vmatpush1.msra.mxu0 0.0
    %5490 = vmatprep.subr.mxu0 0.0
    %5491 = vmatpush1.msra.mxu0 0.0
    %5492 = vmatprep.subr.mxu0 0.0
    %5493 = vmatpush1.msra.mxu0 0.0
    %5494 = vmatprep.subr.mxu0 0.0
    %5495 = vmatpush1.msra.mxu0 0.0
    %5496 = vmatprep.subr.mxu0 0.0
    %5497 = vmatpush1.msra.mxu0 0.0
    %5498 = vmatprep.subr.mxu0 0.0
    %5499 = vmatpush1.msra.mxu0 0.0
    %5500 = vmatprep.subr.mxu0 0.0
    %5501 = vmatpush1.msra.mxu0 0.0
    %5502 = vmatprep.subr.mxu0 0.0
    %5503 = vmatpush1.msra.mxu0 0.0
    %5504 = vmatprep.subr.mxu0 0.0
    %5505 = vmatpush1.msra.mxu0 0.0
    %5506 = vmatprep.mubr.f32.mxu0 0.0
    %5507 = vmatmul.mubr.f32.gmra.mrb[0].mxu0 %v5259
    %v5508 = vpop.f32.mrb[0].mxu0
    %v5509 = vadd.f32 %v5434, %v5508
    %v5510 = vpop.f32.mrb[0].mxu0
    %v5511 = vadd.f32 %v5435, %v5510
    %5512 = vdwg.mxu0
    %5513 = vmatprep.subr.mxu0 %v3836
    %5514 = vmatpush1.msra.mxu0 %v3835
    %5515 = vmatprep.subr.mxu0 %v3840
    %5516 = vmatpush1.msra.mxu0 %v3839
    %5517 = vmatprep.subr.mxu0 %v3844
    %5518 = vmatpush1.msra.mxu0 %v3843
    %5519 = vmatprep.subr.mxu0 %v3848
    %5520 = vmatpush1.msra.mxu0 %v3847
    %5521 = vmatprep.subr.mxu0 %v3852
    %5522 = vmatpush1.msra.mxu0 %v3851
    %5523 = vmatprep.subr.mxu0 %v3856
    %5524 = vmatpush1.msra.mxu0 %v3855
    %5525 = vmatprep.subr.mxu0 %v3860
    %5526 = vmatpush1.msra.mxu0 %v3859
    %5527 = vmatprep.subr.mxu0 %v3864
    %5528 = vmatpush1.msra.mxu0 %v3863
    %5529 = vmatprep.subr.mxu0 %v3868
    %5530 = vmatpush1.msra.mxu0 %v3867
    %5531 = vmatprep.subr.mxu0 %v3872
    %5532 = vmatpush1.msra.mxu0 %v3871
    %5533 = vmatprep.subr.mxu0 %v3876
    %5534 = vmatpush1.msra.mxu0 %v3875
    %5535 = vmatprep.subr.mxu0 %v3880
    %5536 = vmatpush1.msra.mxu0 %v3879
    %5537 = vmatprep.subr.mxu0 %v3884
    %5538 = vmatpush1.msra.mxu0 %v3883
    %5539 = vmatprep.subr.mxu0 %v3888
    %5540 = vmatpush1.msra.mxu0 %v3887
    %5541 = vmatprep.subr.mxu0 %v3892
    %5542 = vmatpush1.msra.mxu0 %v3891
    %5543 = vmatprep.subr.mxu0 %v3896
    %5544 = vmatpush1.msra.mxu0 %v3895
    %5545 = vmatprep.subr.mxu0 0.0
    %5546 = vmatpush1.msra.mxu0 0.0
    %5547 = vmatprep.subr.mxu0 0.0
    %5548 = vmatpush1.msra.mxu0 0.0
    %5549 = vmatprep.subr.mxu0 0.0
    %5550 = vmatpush1.msra.mxu0 0.0
    %5551 = vmatprep.subr.mxu0 0.0
    %5552 = vmatpush1.msra.mxu0 0.0
    %5553 = vmatprep.subr.mxu0 0.0
    %5554 = vmatpush1.msra.mxu0 0.0
    %5555 = vmatprep.subr.mxu0 0.0
    %5556 = vmatpush1.msra.mxu0 0.0
    %5557 = vmatprep.subr.mxu0 0.0
    %5558 = vmatpush1.msra.mxu0 0.0
    %5559 = vmatprep.subr.mxu0 0.0
    %5560 = vmatpush1.msra.mxu0 0.0
    %5561 = vmatprep.subr.mxu0 0.0
    %5562 = vmatpush1.msra.mxu0 0.0
    %5563 = vmatprep.subr.mxu0 0.0
    %5564 = vmatpush1.msra.mxu0 0.0
    %5565 = vmatprep.subr.mxu0 0.0
    %5566 = vmatpush1.msra.mxu0 0.0
    %5567 = vmatprep.subr.mxu0 0.0
    %5568 = vmatpush1.msra.mxu0 0.0
    %5569 = vmatprep.subr.mxu0 0.0
    %5570 = vmatpush1.msra.mxu0 0.0
    %5571 = vmatprep.subr.mxu0 0.0
    %5572 = vmatpush1.msra.mxu0 0.0
    %5573 = vmatprep.subr.mxu0 0.0
    %5574 = vmatpush1.msra.mxu0 0.0
    %5575 = vmatprep.subr.mxu0 0.0
    %5576 = vmatpush1.msra.mxu0 0.0
    %5577 = vmatprep.mubr.f32.mxu0 0.0
    %5578 = vmatmul.mubr.f32.gmra.mrb[0].mxu0 %v5259
    %v5579 = vpop.f32.mrb[0].mxu0
    %v5580 = vadd.f32 %v5436, %v5579
    %v5581 = vpop.f32.mrb[0].mxu0
    %v5582 = vadd.f32 %v5437, %v5581
    %5583 = vdwg.mxu0
    %v5584 = vxor.u32 %v5509, 2147483648
    %v5585 = vmul.f32 %v5584, 1.442695
    %v5586 = vpow.pop %v5585
    %v5587 = vadd.f32 %v5586, 1.0
    %v5588 = vrcp.pop %v5587
    %v5589 = vmul.f32 1.0, %v5588
    %v5590 = vxor.u32 %v5511, 2147483648
    %v5591 = vmul.f32 %v5590, 1.442695
    %v5592 = vpow.pop %v5591
    %v5593 = vadd.f32 %v5592, 1.0
    %v5594 = vrcp.pop %v5593
    %v5595 = vmul.f32 1.0, %v5594
    %v5596 = vtanh.pop %v5580
    %v5597 = vxor.u32 %v5582, 2147483648
    %v5598 = vmul.f32 %v5597, 1.442695
    %v5599 = vpow.pop %v5598
    %v5600 = vadd.f32 %v5599, 1.0
    %v5601 = vrcp.pop %v5600
    %v5602 = vmul.f32 1.0, %v5601
    %v5603 = vmul.f32 %v5595, %v5257
    %v5604 = vmul.f32 %v5589, %v5596
    %v5605 = vadd.f32 %v5603, %v5604
    %v5606 = vtanh.pop %v5605
    %v5607 = vmul.f32 %v5602, %v5606
    %v5608 = vrot.slane %v3986, 4
    %v5609 = vrot.slane %v3988, 4
    %v5610 = vrot.slane %v4057, 4
    %v5611 = vrot.slane %v4059, 4
    %5616 = vmatprep.subr.mxu0 %v3705
    %5617 = vmatpush1.msra.mxu0 %v3704
    %5618 = vmatprep.subr.mxu0 %v3709
    %5619 = vmatpush1.msra.mxu0 %v3708
    %5620 = vmatprep.subr.mxu0 %v3713
    %5621 = vmatpush1.msra.mxu0 %v3712
    %5622 = vmatprep.subr.mxu0 %v3717
    %5623 = vmatpush1.msra.mxu0 %v3716
    %5624 = vmatprep.subr.mxu0 %v3721
    %5625 = vmatpush1.msra.mxu0 %v3720
    %5626 = vmatprep.subr.mxu0 %v3725
    %5627 = vmatpush1.msra.mxu0 %v3724
    %5628 = vmatprep.subr.mxu0 %v3729
    %5629 = vmatpush1.msra.mxu0 %v3728
    %5630 = vmatprep.subr.mxu0 %v3733
    %5631 = vmatpush1.msra.mxu0 %v3732
    %5632 = vmatprep.subr.mxu0 %v3737
    %5633 = vmatpush1.msra.mxu0 %v3736
    %5634 = vmatprep.subr.mxu0 %v3741
    %5635 = vmatpush1.msra.mxu0 %v3740
    %5636 = vmatprep.subr.mxu0 %v3745
    %5637 = vmatpush1.msra.mxu0 %v3744
    %5638 = vmatprep.subr.mxu0 %v3749
    %5639 = vmatpush1.msra.mxu0 %v3748
    %5640 = vmatprep.subr.mxu0 %v3753
    %5641 = vmatpush1.msra.mxu0 %v3752
    %5642 = vmatprep.subr.mxu0 %v3757
    %5643 = vmatpush1.msra.mxu0 %v3756
    %5644 = vmatprep.subr.mxu0 %v3761
    %5645 = vmatpush1.msra.mxu0 %v3760
    %5646 = vmatprep.subr.mxu0 %v3765
    %5647 = vmatpush1.msra.mxu0 %v3764
    %5648 = vmatprep.subr.mxu0 0.0
    %5649 = vmatpush1.msra.mxu0 0.0
    %5650 = vmatprep.subr.mxu0 0.0
    %5651 = vmatpush1.msra.mxu0 0.0
    %5652 = vmatprep.subr.mxu0 0.0
    %5653 = vmatpush1.msra.mxu0 0.0
    %5654 = vmatprep.subr.mxu0 0.0
    %5655 = vmatpush1.msra.mxu0 0.0
    %5656 = vmatprep.subr.mxu0 0.0
    %5657 = vmatpush1.msra.mxu0 0.0
    %5658 = vmatprep.subr.mxu0 0.0
    %5659 = vmatpush1.msra.mxu0 0.0
    %5660 = vmatprep.subr.mxu0 0.0
    %5661 = vmatpush1.msra.mxu0 0.0
    %5662 = vmatprep.subr.mxu0 0.0
    %5663 = vmatpush1.msra.mxu0 0.0
    %5664 = vmatprep.subr.mxu0 0.0
    %5665 = vmatpush1.msra.mxu0 0.0
    %5666 = vmatprep.subr.mxu0 0.0
    %5667 = vmatpush1.msra.mxu0 0.0
    %5668 = vmatprep.subr.mxu0 0.0
    %5669 = vmatpush1.msra.mxu0 0.0
    %5670 = vmatprep.subr.mxu0 0.0
    %5671 = vmatpush1.msra.mxu0 0.0
    %5672 = vmatprep.subr.mxu0 0.0
    %5673 = vmatpush1.msra.mxu0 0.0
    %5674 = vmatprep.subr.mxu0 0.0
    %5675 = vmatpush1.msra.mxu0 0.0
    %5676 = vmatprep.subr.mxu0 0.0
    %5677 = vmatpush1.msra.mxu0 0.0
    %5678 = vmatprep.subr.mxu0 0.0
    %5679 = vmatpush1.msra.mxu0 0.0
    %5680 = vmatprep.mubr.f32.mxu0 0.0
    %5681 = vmatmul.mubr.f32.gmra.mrb[0].mxu0 %v5433
    %v5682 = vpop.f32.mrb[0].mxu0
    %v5683 = vadd.f32 %v5608, %v5682
    %v5684 = vpop.f32.mrb[0].mxu0
    %v5685 = vadd.f32 %v5609, %v5684
    %5686 = vdwg.mxu0
    %5687 = vmatprep.subr.mxu0 %v3707
    %5688 = vmatpush1.msra.mxu0 %v3706
    %5689 = vmatprep.subr.mxu0 %v3711
    %5690 = vmatpush1.msra.mxu0 %v3710
    %5691 = vmatprep.subr.mxu0 %v3715
    %5692 = vmatpush1.msra.mxu0 %v3714
    %5693 = vmatprep.subr.mxu0 %v3719
    %5694 = vmatpush1.msra.mxu0 %v3718
    %5695 = vmatprep.subr.mxu0 %v3723
    %5696 = vmatpush1.msra.mxu0 %v3722
    %5697 = vmatprep.subr.mxu0 %v3727
    %5698 = vmatpush1.msra.mxu0 %v3726
    %5699 = vmatprep.subr.mxu0 %v3731
    %5700 = vmatpush1.msra.mxu0 %v3730
    %5701 = vmatprep.subr.mxu0 %v3735
    %5702 = vmatpush1.msra.mxu0 %v3734
    %5703 = vmatprep.subr.mxu0 %v3739
    %5704 = vmatpush1.msra.mxu0 %v3738
    %5705 = vmatprep.subr.mxu0 %v3743
    %5706 = vmatpush1.msra.mxu0 %v3742
    %5707 = vmatprep.subr.mxu0 %v3747
    %5708 = vmatpush1.msra.mxu0 %v3746
    %5709 = vmatprep.subr.mxu0 %v3751
    %5710 = vmatpush1.msra.mxu0 %v3750
    %5711 = vmatprep.subr.mxu0 %v3755
    %5712 = vmatpush1.msra.mxu0 %v3754
    %5713 = vmatprep.subr.mxu0 %v3759
    %5714 = vmatpush1.msra.mxu0 %v3758
    %5715 = vmatprep.subr.mxu0 %v3763
    %5716 = vmatpush1.msra.mxu0 %v3762
    %5717 = vmatprep.subr.mxu0 %v3767
    %5718 = vmatpush1.msra.mxu0 %v3766
    %5719 = vmatprep.subr.mxu0 0.0
    %5720 = vmatpush1.msra.mxu0 0.0
    %5721 = vmatprep.subr.mxu0 0.0
    %5722 = vmatpush1.msra.mxu0 0.0
    %5723 = vmatprep.subr.mxu0 0.0
    %5724 = vmatpush1.msra.mxu0 0.0
    %5725 = vmatprep.subr.mxu0 0.0
    %5726 = vmatpush1.msra.mxu0 0.0
    %5727 = vmatprep.subr.mxu0 0.0
    %5728 = vmatpush1.msra.mxu0 0.0
    %5729 = vmatprep.subr.mxu0 0.0
    %5730 = vmatpush1.msra.mxu0 0.0
    %5731 = vmatprep.subr.mxu0 0.0
    %5732 = vmatpush1.msra.mxu0 0.0
    %5733 = vmatprep.subr.mxu0 0.0
    %5734 = vmatpush1.msra.mxu0 0.0
    %5735 = vmatprep.subr.mxu0 0.0
    %5736 = vmatpush1.msra.mxu0 0.0
    %5737 = vmatprep.subr.mxu0 0.0
    %5738 = vmatpush1.msra.mxu0 0.0
    %5739 = vmatprep.subr.mxu0 0.0
    %5740 = vmatpush1.msra.mxu0 0.0
    %5741 = vmatprep.subr.mxu0 0.0
    %5742 = vmatpush1.msra.mxu0 0.0
    %5743 = vmatprep.subr.mxu0 0.0
    %5744 = vmatpush1.msra.mxu0 0.0
    %5745 = vmatprep.subr.mxu0 0.0
    %5746 = vmatpush1.msra.mxu0 0.0
    %5747 = vmatprep.subr.mxu0 0.0
    %5748 = vmatpush1.msra.mxu0 0.0
    %5749 = vmatprep.subr.mxu0 0.0
    %5750 = vmatpush1.msra.mxu0 0.0
    %5751 = vmatprep.mubr.f32.mxu0 0.0
    %5752 = vmatmul.mubr.f32.gmra.mrb[0].mxu0 %v5433
    %v5753 = vpop.f32.mrb[0].mxu0
    %v5754 = vadd.f32 %v5610, %v5753
    %v5755 = vpop.f32.mrb[0].mxu0
    %v5756 = vadd.f32 %v5611, %v5755
    %5757 = vdwg.mxu0
    %v5758 = vxor.u32 %v5683, 2147483648
    %v5759 = vmul.f32 %v5758, 1.442695
    %v5760 = vpow.pop %v5759
    %v5761 = vadd.f32 %v5760, 1.0
    %v5762 = vrcp.pop %v5761
    %v5763 = vmul.f32 1.0, %v5762
    %v5764 = vxor.u32 %v5685, 2147483648
    %v5765 = vmul.f32 %v5764, 1.442695
    %v5766 = vpow.pop %v5765
    %v5767 = vadd.f32 %v5766, 1.0
    %v5768 = vrcp.pop %v5767
    %v5769 = vmul.f32 1.0, %v5768
    %v5770 = vtanh.pop %v5754
    %v5771 = vxor.u32 %v5756, 2147483648
    %v5772 = vmul.f32 %v5771, 1.442695
    %v5773 = vpow.pop %v5772
    %v5774 = vadd.f32 %v5773, 1.0
    %v5775 = vrcp.pop %v5774
    %v5776 = vmul.f32 1.0, %v5775
    %v5777 = vmul.f32 %v5769, %v5431
    %v5778 = vmul.f32 %v5763, %v5770
    %v5779 = vadd.f32 %v5777, %v5778
    %v5780 = vtanh.pop %v5779
    %v5781 = vmul.f32 %v5776, %v5780
    %v5782 = vrot.slane %v4149, 4
    %v5783 = vrot.slane %v4151, 4
    %v5784 = vrot.slane %v4220, 4
    %v5785 = vrot.slane %v4222, 4
    %5790 = vmatprep.subr.mxu0 %v3834
    %5791 = vmatpush1.msra.mxu0 %v3833
    %5792 = vmatprep.subr.mxu0 %v3838
    %5793 = vmatpush1.msra.mxu0 %v3837
    %5794 = vmatprep.subr.mxu0 %v3842
    %5795 = vmatpush1.msra.mxu0 %v3841
    %5796 = vmatprep.subr.mxu0 %v3846
    %5797 = vmatpush1.msra.mxu0 %v3845
    %5798 = vmatprep.subr.mxu0 %v3850
    %5799 = vmatpush1.msra.mxu0 %v3849
    %5800 = vmatprep.subr.mxu0 %v3854
    %5801 = vmatpush1.msra.mxu0 %v3853
    %5802 = vmatprep.subr.mxu0 %v3858
    %5803 = vmatpush1.msra.mxu0 %v3857
    %5804 = vmatprep.subr.mxu0 %v3862
    %5805 = vmatpush1.msra.mxu0 %v3861
    %5806 = vmatprep.subr.mxu0 %v3866
    %5807 = vmatpush1.msra.mxu0 %v3865
    %5808 = vmatprep.subr.mxu0 %v3870
    %5809 = vmatpush1.msra.mxu0 %v3869
    %5810 = vmatprep.subr.mxu0 %v3874
    %5811 = vmatpush1.msra.mxu0 %v3873
    %5812 = vmatprep.subr.mxu0 %v3878
    %5813 = vmatpush1.msra.mxu0 %v3877
    %5814 = vmatprep.subr.mxu0 %v3882
    %5815 = vmatpush1.msra.mxu0 %v3881
    %5816 = vmatprep.subr.mxu0 %v3886
    %5817 = vmatpush1.msra.mxu0 %v3885
    %5818 = vmatprep.subr.mxu0 %v3890
    %5819 = vmatpush1.msra.mxu0 %v3889
    %5820 = vmatprep.subr.mxu0 %v3894
    %5821 = vmatpush1.msra.mxu0 %v3893
    %5822 = vmatprep.subr.mxu0 0.0
    %5823 = vmatpush1.msra.mxu0 0.0
    %5824 = vmatprep.subr.mxu0 0.0
    %5825 = vmatpush1.msra.mxu0 0.0
    %5826 = vmatprep.subr.mxu0 0.0
    %5827 = vmatpush1.msra.mxu0 0.0
    %5828 = vmatprep.subr.mxu0 0.0
    %5829 = vmatpush1.msra.mxu0 0.0
    %5830 = vmatprep.subr.mxu0 0.0
    %5831 = vmatpush1.msra.mxu0 0.0
    %5832 = vmatprep.subr.mxu0 0.0
    %5833 = vmatpush1.msra.mxu0 0.0
    %5834 = vmatprep.subr.mxu0 0.0
    %5835 = vmatpush1.msra.mxu0 0.0
    %5836 = vmatprep.subr.mxu0 0.0
    %5837 = vmatpush1.msra.mxu0 0.0
    %5838 = vmatprep.subr.mxu0 0.0
    %5839 = vmatpush1.msra.mxu0 0.0
    %5840 = vmatprep.subr.mxu0 0.0
    %5841 = vmatpush1.msra.mxu0 0.0
    %5842 = vmatprep.subr.mxu0 0.0
    %5843 = vmatpush1.msra.mxu0 0.0
    %5844 = vmatprep.subr.mxu0 0.0
    %5845 = vmatpush1.msra.mxu0 0.0
    %5846 = vmatprep.subr.mxu0 0.0
    %5847 = vmatpush1.msra.mxu0 0.0
    %5848 = vmatprep.subr.mxu0 0.0
    %5849 = vmatpush1.msra.mxu0 0.0
    %5850 = vmatprep.subr.mxu0 0.0
    %5851 = vmatpush1.msra.mxu0 0.0
    %5852 = vmatprep.subr.mxu0 0.0
    %5853 = vmatpush1.msra.mxu0 0.0
    %5854 = vmatprep.mubr.f32.mxu0 0.0
    %5855 = vmatmul.mubr.f32.gmra.mrb[0].mxu0 %v5607
    %v5856 = vpop.f32.mrb[0].mxu0
    %v5857 = vadd.f32 %v5782, %v5856
    %v5858 = vpop.f32.mrb[0].mxu0
    %v5859 = vadd.f32 %v5783, %v5858
    %5860 = vdwg.mxu0
    %5861 = vmatprep.subr.mxu0 %v3836
    %5862 = vmatpush1.msra.mxu0 %v3835
    %5863 = vmatprep.subr.mxu0 %v3840
    %5864 = vmatpush1.msra.mxu0 %v3839
    %5865 = vmatprep.subr.mxu0 %v3844
    %5866 = vmatpush1.msra.mxu0 %v3843
    %5867 = vmatprep.subr.mxu0 %v3848
    %5868 = vmatpush1.msra.mxu0 %v3847
    %5869 = vmatprep.subr.mxu0 %v3852
    %5870 = vmatpush1.msra.mxu0 %v3851
    %5871 = vmatprep.subr.mxu0 %v3856
    %5872 = vmatpush1.msra.mxu0 %v3855
    %5873 = vmatprep.subr.mxu0 %v3860
    %5874 = vmatpush1.msra.mxu0 %v3859
    %5875 = vmatprep.subr.mxu0 %v3864
    %5876 = vmatpush1.msra.mxu0 %v3863
    %5877 = vmatprep.subr.mxu0 %v3868
    %5878 = vmatpush1.msra.mxu0 %v3867
    %5879 = vmatprep.subr.mxu0 %v3872
    %5880 = vmatpush1.msra.mxu0 %v3871
    %5881 = vmatprep.subr.mxu0 %v3876
    %5882 = vmatpush1.msra.mxu0 %v3875
    %5883 = vmatprep.subr.mxu0 %v3880
    %5884 = vmatpush1.msra.mxu0 %v3879
    %5885 = vmatprep.subr.mxu0 %v3884
    %5886 = vmatpush1.msra.mxu0 %v3883
    %5887 = vmatprep.subr.mxu0 %v3888
    %5888 = vmatpush1.msra.mxu0 %v3887
    %5889 = vmatprep.subr.mxu0 %v3892
    %5890 = vmatpush1.msra.mxu0 %v3891
    %5891 = vmatprep.subr.mxu0 %v3896
    %5892 = vmatpush1.msra.mxu0 %v3895
    %5893 = vmatprep.subr.mxu0 0.0
    %5894 = vmatpush1.msra.mxu0 0.0
    %5895 = vmatprep.subr.mxu0 0.0
    %5896 = vmatpush1.msra.mxu0 0.0
    %5897 = vmatprep.subr.mxu0 0.0
    %5898 = vmatpush1.msra.mxu0 0.0
    %5899 = vmatprep.subr.mxu0 0.0
    %5900 = vmatpush1.msra.mxu0 0.0
    %5901 = vmatprep.subr.mxu0 0.0
    %5902 = vmatpush1.msra.mxu0 0.0
    %5903 = vmatprep.subr.mxu0 0.0
    %5904 = vmatpush1.msra.mxu0 0.0
    %5905 = vmatprep.subr.mxu0 0.0
    %5906 = vmatpush1.msra.mxu0 0.0
    %5907 = vmatprep.subr.mxu0 0.0
    %5908 = vmatpush1.msra.mxu0 0.0
    %5909 = vmatprep.subr.mxu0 0.0
    %5910 = vmatpush1.msra.mxu0 0.0
    %5911 = vmatprep.subr.mxu0 0.0
    %5912 = vmatpush1.msra.mxu0 0.0
    %5913 = vmatprep.subr.mxu0 0.0
    %5914 = vmatpush1.msra.mxu0 0.0
    %5915 = vmatprep.subr.mxu0 0.0
    %5916 = vmatpush1.msra.mxu0 0.0
    %5917 = vmatprep.subr.mxu0 0.0
    %5918 = vmatpush1.msra.mxu0 0.0
    %5919 = vmatprep.subr.mxu0 0.0
    %5920 = vmatpush1.msra.mxu0 0.0
    %5921 = vmatprep.subr.mxu0 0.0
    %5922 = vmatpush1.msra.mxu0 0.0
    %5923 = vmatprep.subr.mxu0 0.0
    %5924 = vmatpush1.msra.mxu0 0.0
    %5925 = vmatprep.mubr.f32.mxu0 0.0
    %5926 = vmatmul.mubr.f32.gmra.mrb[0].mxu0 %v5607
    %v5927 = vpop.f32.mrb[0].mxu0
    %v5928 = vadd.f32 %v5784, %v5927
    %v5929 = vpop.f32.mrb[0].mxu0
    %v5930 = vadd.f32 %v5785, %v5929
    %5931 = vdwg.mxu0
    %v5932 = vxor.u32 %v5857, 2147483648
    %v5933 = vmul.f32 %v5932, 1.442695
    %v5934 = vpow.pop %v5933
    %v5935 = vadd.f32 %v5934, 1.0
    %v5936 = vrcp.pop %v5935
    %v5937 = vmul.f32 1.0, %v5936
    %v5938 = vxor.u32 %v5859, 2147483648
    %v5939 = vmul.f32 %v5938, 1.442695
    %v5940 = vpow.pop %v5939
    %v5941 = vadd.f32 %v5940, 1.0
    %v5942 = vrcp.pop %v5941
    %v5943 = vmul.f32 1.0, %v5942
    %v5944 = vtanh.pop %v5928
    %v5945 = vxor.u32 %v5930, 2147483648
    %v5946 = vmul.f32 %v5945, 1.442695
    %v5947 = vpow.pop %v5946
    %v5948 = vadd.f32 %v5947, 1.0
    %v5949 = vrcp.pop %v5948
    %v5950 = vmul.f32 1.0, %v5949
    %v5951 = vmul.f32 %v5943, %v5605
    %v5952 = vmul.f32 %v5937, %v5944
    %v5953 = vadd.f32 %v5951, %v5952
    %v5954 = vtanh.pop %v5953
    %v5955 = vmul.f32 %v5950, %v5954
    %v5956 = vrot.slane %v3986, 5
    %v5957 = vrot.slane %v3988, 5
    %v5958 = vrot.slane %v4057, 5
    %v5959 = vrot.slane %v4059, 5
    %5964 = vmatprep.subr.mxu0 %v3705
    %5965 = vmatpush1.msra.mxu0 %v3704
    %5966 = vmatprep.subr.mxu0 %v3709
    %5967 = vmatpush1.msra.mxu0 %v3708
    %5968 = vmatprep.subr.mxu0 %v3713
    %5969 = vmatpush1.msra.mxu0 %v3712
    %5970 = vmatprep.subr.mxu0 %v3717
    %5971 = vmatpush1.msra.mxu0 %v3716
    %5972 = vmatprep.subr.mxu0 %v3721
    %5973 = vmatpush1.msra.mxu0 %v3720
    %5974 = vmatprep.subr.mxu0 %v3725
    %5975 = vmatpush1.msra.mxu0 %v3724
    %5976 = vmatprep.subr.mxu0 %v3729
    %5977 = vmatpush1.msra.mxu0 %v3728
    %5978 = vmatprep.subr.mxu0 %v3733
    %5979 = vmatpush1.msra.mxu0 %v3732
    %5980 = vmatprep.subr.mxu0 %v3737
    %5981 = vmatpush1.msra.mxu0 %v3736
    %5982 = vmatprep.subr.mxu0 %v3741
    %5983 = vmatpush1.msra.mxu0 %v3740
    %5984 = vmatprep.subr.mxu0 %v3745
    %5985 = vmatpush1.msra.mxu0 %v3744
    %5986 = vmatprep.subr.mxu0 %v3749
    %5987 = vmatpush1.msra.mxu0 %v3748
    %5988 = vmatprep.subr.mxu0 %v3753
    %5989 = vmatpush1.msra.mxu0 %v3752
    %5990 = vmatprep.subr.mxu0 %v3757
    %5991 = vmatpush1.msra.mxu0 %v3756
    %5992 = vmatprep.subr.mxu0 %v3761
    %5993 = vmatpush1.msra.mxu0 %v3760
    %5994 = vmatprep.subr.mxu0 %v3765
    %5995 = vmatpush1.msra.mxu0 %v3764
    %5996 = vmatprep.subr.mxu0 0.0
    %5997 = vmatpush1.msra.mxu0 0.0
    %5998 = vmatprep.subr.mxu0 0.0
    %5999 = vmatpush1.msra.mxu0 0.0
    %6000 = vmatprep.subr.mxu0 0.0
    %6001 = vmatpush1.msra.mxu0 0.0
    %6002 = vmatprep.subr.mxu0 0.0
    %6003 = vmatpush1.msra.mxu0 0.0
    %6004 = vmatprep.subr.mxu0 0.0
    %6005 = vmatpush1.msra.mxu0 0.0
    %6006 = vmatprep.subr.mxu0 0.0
    %6007 = vmatpush1.msra.mxu0 0.0
    %6008 = vmatprep.subr.mxu0 0.0
    %6009 = vmatpush1.msra.mxu0 0.0
    %6010 = vmatprep.subr.mxu0 0.0
    %6011 = vmatpush1.msra.mxu0 0.0
    %6012 = vmatprep.subr.mxu0 0.0
    %6013 = vmatpush1.msra.mxu0 0.0
    %6014 = vmatprep.subr.mxu0 0.0
    %6015 = vmatpush1.msra.mxu0 0.0
    %6016 = vmatprep.subr.mxu0 0.0
    %6017 = vmatpush1.msra.mxu0 0.0
    %6018 = vmatprep.subr.mxu0 0.0
    %6019 = vmatpush1.msra.mxu0 0.0
    %6020 = vmatprep.subr.mxu0 0.0
    %6021 = vmatpush1.msra.mxu0 0.0
    %6022 = vmatprep.subr.mxu0 0.0
    %6023 = vmatpush1.msra.mxu0 0.0
    %6024 = vmatprep.subr.mxu0 0.0
    %6025 = vmatpush1.msra.mxu0 0.0
    %6026 = vmatprep.subr.mxu0 0.0
    %6027 = vmatpush1.msra.mxu0 0.0
    %6028 = vmatprep.mubr.f32.mxu0 0.0
    %6029 = vmatmul.mubr.f32.gmra.mrb[0].mxu0 %v5781
    %v6030 = vpop.f32.mrb[0].mxu0
    %v6031 = vadd.f32 %v5956, %v6030
    %v6032 = vpop.f32.mrb[0].mxu0
    %v6033 = vadd.f32 %v5957, %v6032
    %6034 = vdwg.mxu0
    %6035 = vmatprep.subr.mxu0 %v3707
    %6036 = vmatpush1.msra.mxu0 %v3706
    %6037 = vmatprep.subr.mxu0 %v3711
    %6038 = vmatpush1.msra.mxu0 %v3710
    %6039 = vmatprep.subr.mxu0 %v3715
    %6040 = vmatpush1.msra.mxu0 %v3714
    %6041 = vmatprep.subr.mxu0 %v3719
    %6042 = vmatpush1.msra.mxu0 %v3718
    %6043 = vmatprep.subr.mxu0 %v3723
    %6044 = vmatpush1.msra.mxu0 %v3722
    %6045 = vmatprep.subr.mxu0 %v3727
    %6046 = vmatpush1.msra.mxu0 %v3726
    %6047 = vmatprep.subr.mxu0 %v3731
    %6048 = vmatpush1.msra.mxu0 %v3730
    %6049 = vmatprep.subr.mxu0 %v3735
    %6050 = vmatpush1.msra.mxu0 %v3734
    %6051 = vmatprep.subr.mxu0 %v3739
    %6052 = vmatpush1.msra.mxu0 %v3738
    %6053 = vmatprep.subr.mxu0 %v3743
    %6054 = vmatpush1.msra.mxu0 %v3742
    %6055 = vmatprep.subr.mxu0 %v3747
    %6056 = vmatpush1.msra.mxu0 %v3746
    %6057 = vmatprep.subr.mxu0 %v3751
    %6058 = vmatpush1.msra.mxu0 %v3750
    %6059 = vmatprep.subr.mxu0 %v3755
    %6060 = vmatpush1.msra.mxu0 %v3754
    %6061 = vmatprep.subr.mxu0 %v3759
    %6062 = vmatpush1.msra.mxu0 %v3758
    %6063 = vmatprep.subr.mxu0 %v3763
    %6064 = vmatpush1.msra.mxu0 %v3762
    %6065 = vmatprep.subr.mxu0 %v3767
    %6066 = vmatpush1.msra.mxu0 %v3766
    %6067 = vmatprep.subr.mxu0 0.0
    %6068 = vmatpush1.msra.mxu0 0.0
    %6069 = vmatprep.subr.mxu0 0.0
    %6070 = vmatpush1.msra.mxu0 0.0
    %6071 = vmatprep.subr.mxu0 0.0
    %6072 = vmatpush1.msra.mxu0 0.0
    %6073 = vmatprep.subr.mxu0 0.0
    %6074 = vmatpush1.msra.mxu0 0.0
    %6075 = vmatprep.subr.mxu0 0.0
    %6076 = vmatpush1.msra.mxu0 0.0
    %6077 = vmatprep.subr.mxu0 0.0
    %6078 = vmatpush1.msra.mxu0 0.0
    %6079 = vmatprep.subr.mxu0 0.0
    %6080 = vmatpush1.msra.mxu0 0.0
    %6081 = vmatprep.subr.mxu0 0.0
    %6082 = vmatpush1.msra.mxu0 0.0
    %6083 = vmatprep.subr.mxu0 0.0
    %6084 = vmatpush1.msra.mxu0 0.0
    %6085 = vmatprep.subr.mxu0 0.0
    %6086 = vmatpush1.msra.mxu0 0.0
    %6087 = vmatprep.subr.mxu0 0.0
    %6088 = vmatpush1.msra.mxu0 0.0
    %6089 = vmatprep.subr.mxu0 0.0
    %6090 = vmatpush1.msra.mxu0 0.0
    %6091 = vmatprep.subr.mxu0 0.0
    %6092 = vmatpush1.msra.mxu0 0.0
    %6093 = vmatprep.subr.mxu0 0.0
    %6094 = vmatpush1.msra.mxu0 0.0
    %6095 = vmatprep.subr.mxu0 0.0
    %6096 = vmatpush1.msra.mxu0 0.0
    %6097 = vmatprep.subr.mxu0 0.0
    %6098 = vmatpush1.msra.mxu0 0.0
    %6099 = vmatprep.mubr.f32.mxu0 0.0
    %6100 = vmatmul.mubr.f32.gmra.mrb[0].mxu0 %v5781
    %v6101 = vpop.f32.mrb[0].mxu0
    %v6102 = vadd.f32 %v5958, %v6101
    %v6103 = vpop.f32.mrb[0].mxu0
    %v6104 = vadd.f32 %v5959, %v6103
    %6105 = vdwg.mxu0
    %v6106 = vxor.u32 %v6031, 2147483648
    %v6107 = vmul.f32 %v6106, 1.442695
    %v6108 = vpow.pop %v6107
    %v6109 = vadd.f32 %v6108, 1.0
    %v6110 = vrcp.pop %v6109
    %v6111 = vmul.f32 1.0, %v6110
    %v6112 = vxor.u32 %v6033, 2147483648
    %v6113 = vmul.f32 %v6112, 1.442695
    %v6114 = vpow.pop %v6113
    %v6115 = vadd.f32 %v6114, 1.0
    %v6116 = vrcp.pop %v6115
    %v6117 = vmul.f32 1.0, %v6116
    %v6118 = vtanh.pop %v6102
    %v6119 = vxor.u32 %v6104, 2147483648
    %v6120 = vmul.f32 %v6119, 1.442695
    %v6121 = vpow.pop %v6120
    %v6122 = vadd.f32 %v6121, 1.0
    %v6123 = vrcp.pop %v6122
    %v6124 = vmul.f32 1.0, %v6123
    %v6125 = vmul.f32 %v6117, %v5779
    %v6126 = vmul.f32 %v6111, %v6118
    %v6127 = vadd.f32 %v6125, %v6126
    %v6128 = vtanh.pop %v6127
    %v6129 = vmul.f32 %v6124, %v6128
    %v6130 = vrot.slane %v4149, 5
    %v6131 = vrot.slane %v4151, 5
    %v6132 = vrot.slane %v4220, 5
    %v6133 = vrot.slane %v4222, 5
    %6138 = vmatprep.subr.mxu0 %v3834
    %6139 = vmatpush1.msra.mxu0 %v3833
    %6140 = vmatprep.subr.mxu0 %v3838
    %6141 = vmatpush1.msra.mxu0 %v3837
    %6142 = vmatprep.subr.mxu0 %v3842
    %6143 = vmatpush1.msra.mxu0 %v3841
    %6144 = vmatprep.subr.mxu0 %v3846
    %6145 = vmatpush1.msra.mxu0 %v3845
    %6146 = vmatprep.subr.mxu0 %v3850
    %6147 = vmatpush1.msra.mxu0 %v3849
    %6148 = vmatprep.subr.mxu0 %v3854
    %6149 = vmatpush1.msra.mxu0 %v3853
    %6150 = vmatprep.subr.mxu0 %v3858
    %6151 = vmatpush1.msra.mxu0 %v3857
    %6152 = vmatprep.subr.mxu0 %v3862
    %6153 = vmatpush1.msra.mxu0 %v3861
    %6154 = vmatprep.subr.mxu0 %v3866
    %6155 = vmatpush1.msra.mxu0 %v3865
    %6156 = vmatprep.subr.mxu0 %v3870
    %6157 = vmatpush1.msra.mxu0 %v3869
    %6158 = vmatprep.subr.mxu0 %v3874
    %6159 = vmatpush1.msra.mxu0 %v3873
    %6160 = vmatprep.subr.mxu0 %v3878
    %6161 = vmatpush1.msra.mxu0 %v3877
    %6162 = vmatprep.subr.mxu0 %v3882
    %6163 = vmatpush1.msra.mxu0 %v3881
    %6164 = vmatprep.subr.mxu0 %v3886
    %6165 = vmatpush1.msra.mxu0 %v3885
    %6166 = vmatprep.subr.mxu0 %v3890
    %6167 = vmatpush1.msra.mxu0 %v3889
    %6168 = vmatprep.subr.mxu0 %v3894
    %6169 = vmatpush1.msra.mxu0 %v3893
    %6170 = vmatprep.subr.mxu0 0.0
    %6171 = vmatpush1.msra.mxu0 0.0
    %6172 = vmatprep.subr.mxu0 0.0
    %6173 = vmatpush1.msra.mxu0 0.0
    %6174 = vmatprep.subr.mxu0 0.0
    %6175 = vmatpush1.msra.mxu0 0.0
    %6176 = vmatprep.subr.mxu0 0.0
    %6177 = vmatpush1.msra.mxu0 0.0
    %6178 = vmatprep.subr.mxu0 0.0
    %6179 = vmatpush1.msra.mxu0 0.0
    %6180 = vmatprep.subr.mxu0 0.0
    %6181 = vmatpush1.msra.mxu0 0.0
    %6182 = vmatprep.subr.mxu0 0.0
    %6183 = vmatpush1.msra.mxu0 0.0
    %6184 = vmatprep.subr.mxu0 0.0
    %6185 = vmatpush1.msra.mxu0 0.0
    %6186 = vmatprep.subr.mxu0 0.0
    %6187 = vmatpush1.msra.mxu0 0.0
    %6188 = vmatprep.subr.mxu0 0.0
    %6189 = vmatpush1.msra.mxu0 0.0
    %6190 = vmatprep.subr.mxu0 0.0
    %6191 = vmatpush1.msra.mxu0 0.0
    %6192 = vmatprep.subr.mxu0 0.0
    %6193 = vmatpush1.msra.mxu0 0.0
    %6194 = vmatprep.subr.mxu0 0.0
    %6195 = vmatpush1.msra.mxu0 0.0
    %6196 = vmatprep.subr.mxu0 0.0
    %6197 = vmatpush1.msra.mxu0 0.0
    %6198 = vmatprep.subr.mxu0 0.0
    %6199 = vmatpush1.msra.mxu0 0.0
    %6200 = vmatprep.subr.mxu0 0.0
    %6201 = vmatpush1.msra.mxu0 0.0
    %6202 = vmatprep.mubr.f32.mxu0 0.0
    %6203 = vmatmul.mubr.f32.gmra.mrb[0].mxu0 %v5955
    %v6204 = vpop.f32.mrb[0].mxu0
    %v6205 = vadd.f32 %v6130, %v6204
    %v6206 = vpop.f32.mrb[0].mxu0
    %v6207 = vadd.f32 %v6131, %v6206
    %6208 = vdwg.mxu0
    %6209 = vmatprep.subr.mxu0 %v3836
    %6210 = vmatpush1.msra.mxu0 %v3835
    %6211 = vmatprep.subr.mxu0 %v3840
    %6212 = vmatpush1.msra.mxu0 %v3839
    %6213 = vmatprep.subr.mxu0 %v3844
    %6214 = vmatpush1.msra.mxu0 %v3843
    %6215 = vmatprep.subr.mxu0 %v3848
    %6216 = vmatpush1.msra.mxu0 %v3847
    %6217 = vmatprep.subr.mxu0 %v3852
    %6218 = vmatpush1.msra.mxu0 %v3851
    %6219 = vmatprep.subr.mxu0 %v3856
    %6220 = vmatpush1.msra.mxu0 %v3855
    %6221 = vmatprep.subr.mxu0 %v3860
    %6222 = vmatpush1.msra.mxu0 %v3859
    %6223 = vmatprep.subr.mxu0 %v3864
    %6224 = vmatpush1.msra.mxu0 %v3863
    %6225 = vmatprep.subr.mxu0 %v3868
    %6226 = vmatpush1.msra.mxu0 %v3867
    %6227 = vmatprep.subr.mxu0 %v3872
    %6228 = vmatpush1.msra.mxu0 %v3871
    %6229 = vmatprep.subr.mxu0 %v3876
    %6230 = vmatpush1.msra.mxu0 %v3875
    %6231 = vmatprep.subr.mxu0 %v3880
    %6232 = vmatpush1.msra.mxu0 %v3879
    %6233 = vmatprep.subr.mxu0 %v3884
    %6234 = vmatpush1.msra.mxu0 %v3883
    %6235 = vmatprep.subr.mxu0 %v3888
    %6236 = vmatpush1.msra.mxu0 %v3887
    %6237 = vmatprep.subr.mxu0 %v3892
    %6238 = vmatpush1.msra.mxu0 %v3891
    %6239 = vmatprep.subr.mxu0 %v3896
    %6240 = vmatpush1.msra.mxu0 %v3895
    %6241 = vmatprep.subr.mxu0 0.0
    %6242 = vmatpush1.msra.mxu0 0.0
    %6243 = vmatprep.subr.mxu0 0.0
    %6244 = vmatpush1.msra.mxu0 0.0
    %6245 = vmatprep.subr.mxu0 0.0
    %6246 = vmatpush1.msra.mxu0 0.0
    %6247 = vmatprep.subr.mxu0 0.0
    %6248 = vmatpush1.msra.mxu0 0.0
    %6249 = vmatprep.subr.mxu0 0.0
    %6250 = vmatpush1.msra.mxu0 0.0
    %6251 = vmatprep.subr.mxu0 0.0
    %6252 = vmatpush1.msra.mxu0 0.0
    %6253 = vmatprep.subr.mxu0 0.0
    %6254 = vmatpush1.msra.mxu0 0.0
    %6255 = vmatprep.subr.mxu0 0.0
    %6256 = vmatpush1.msra.mxu0 0.0
    %6257 = vmatprep.subr.mxu0 0.0
    %6258 = vmatpush1.msra.mxu0 0.0
    %6259 = vmatprep.subr.mxu0 0.0
    %6260 = vmatpush1.msra.mxu0 0.0
    %6261 = vmatprep.subr.mxu0 0.0
    %6262 = vmatpush1.msra.mxu0 0.0
    %6263 = vmatprep.subr.mxu0 0.0
    %6264 = vmatpush1.msra.mxu0 0.0
    %6265 = vmatprep.subr.mxu0 0.0
    %6266 = vmatpush1.msra.mxu0 0.0
    %6267 = vmatprep.subr.mxu0 0.0
    %6268 = vmatpush1.msra.mxu0 0.0
    %6269 = vmatprep.subr.mxu0 0.0
    %6270 = vmatpush1.msra.mxu0 0.0
    %6271 = vmatprep.subr.mxu0 0.0
    %6272 = vmatpush1.msra.mxu0 0.0
    %6273 = vmatprep.mubr.f32.mxu0 0.0
    %6274 = vmatmul.mubr.f32.gmra.mrb[0].mxu0 %v5955
    %v6275 = vpop.f32.mrb[0].mxu0
    %v6276 = vadd.f32 %v6132, %v6275
    %v6277 = vpop.f32.mrb[0].mxu0
    %v6278 = vadd.f32 %v6133, %v6277
    %6279 = vdwg.mxu0
    %v6280 = vxor.u32 %v6205, 2147483648
    %v6281 = vmul.f32 %v6280, 1.442695
    %v6282 = vpow.pop %v6281
    %v6283 = vadd.f32 %v6282, 1.0
    %v6284 = vrcp.pop %v6283
    %v6285 = vmul.f32 1.0, %v6284
    %v6286 = vxor.u32 %v6207, 2147483648
    %v6287 = vmul.f32 %v6286, 1.442695
    %v6288 = vpow.pop %v6287
    %v6289 = vadd.f32 %v6288, 1.0
    %v6290 = vrcp.pop %v6289
    %v6291 = vmul.f32 1.0, %v6290
    %v6292 = vtanh.pop %v6276
    %v6293 = vxor.u32 %v6278, 2147483648
    %v6294 = vmul.f32 %v6293, 1.442695
    %v6295 = vpow.pop %v6294
    %v6296 = vadd.f32 %v6295, 1.0
    %v6297 = vrcp.pop %v6296
    %v6298 = vmul.f32 1.0, %v6297
    %v6299 = vmul.f32 %v6291, %v5953
    %v6300 = vmul.f32 %v6285, %v6292
    %v6301 = vadd.f32 %v6299, %v6300
    %v6302 = vtanh.pop %v6301
    %v6303 = vmul.f32 %v6298, %v6302
    %v6304 = vrot.slane %v3986, 6
    %v6305 = vrot.slane %v3988, 6
    %v6306 = vrot.slane %v4057, 6
    %v6307 = vrot.slane %v4059, 6
    %6312 = vmatprep.subr.mxu0 %v3705
    %6313 = vmatpush1.msra.mxu0 %v3704
    %6314 = vmatprep.subr.mxu0 %v3709
    %6315 = vmatpush1.msra.mxu0 %v3708
    %6316 = vmatprep.subr.mxu0 %v3713
    %6317 = vmatpush1.msra.mxu0 %v3712
    %6318 = vmatprep.subr.mxu0 %v3717
    %6319 = vmatpush1.msra.mxu0 %v3716
    %6320 = vmatprep.subr.mxu0 %v3721
    %6321 = vmatpush1.msra.mxu0 %v3720
    %6322 = vmatprep.subr.mxu0 %v3725
    %6323 = vmatpush1.msra.mxu0 %v3724
    %6324 = vmatprep.subr.mxu0 %v3729
    %6325 = vmatpush1.msra.mxu0 %v3728
    %6326 = vmatprep.subr.mxu0 %v3733
    %6327 = vmatpush1.msra.mxu0 %v3732
    %6328 = vmatprep.subr.mxu0 %v3737
    %6329 = vmatpush1.msra.mxu0 %v3736
    %6330 = vmatprep.subr.mxu0 %v3741
    %6331 = vmatpush1.msra.mxu0 %v3740
    %6332 = vmatprep.subr.mxu0 %v3745
    %6333 = vmatpush1.msra.mxu0 %v3744
    %6334 = vmatprep.subr.mxu0 %v3749
    %6335 = vmatpush1.msra.mxu0 %v3748
    %6336 = vmatprep.subr.mxu0 %v3753
    %6337 = vmatpush1.msra.mxu0 %v3752
    %6338 = vmatprep.subr.mxu0 %v3757
    %6339 = vmatpush1.msra.mxu0 %v3756
    %6340 = vmatprep.subr.mxu0 %v3761
    %6341 = vmatpush1.msra.mxu0 %v3760
    %6342 = vmatprep.subr.mxu0 %v3765
    %6343 = vmatpush1.msra.mxu0 %v3764
    %6344 = vmatprep.subr.mxu0 0.0
    %6345 = vmatpush1.msra.mxu0 0.0
    %6346 = vmatprep.subr.mxu0 0.0
    %6347 = vmatpush1.msra.mxu0 0.0
    %6348 = vmatprep.subr.mxu0 0.0
    %6349 = vmatpush1.msra.mxu0 0.0
    %6350 = vmatprep.subr.mxu0 0.0
    %6351 = vmatpush1.msra.mxu0 0.0
    %6352 = vmatprep.subr.mxu0 0.0
    %6353 = vmatpush1.msra.mxu0 0.0
    %6354 = vmatprep.subr.mxu0 0.0
    %6355 = vmatpush1.msra.mxu0 0.0
    %6356 = vmatprep.subr.mxu0 0.0
    %6357 = vmatpush1.msra.mxu0 0.0
    %6358 = vmatprep.subr.mxu0 0.0
    %6359 = vmatpush1.msra.mxu0 0.0
    %6360 = vmatprep.subr.mxu0 0.0
    %6361 = vmatpush1.msra.mxu0 0.0
    %6362 = vmatprep.subr.mxu0 0.0
    %6363 = vmatpush1.msra.mxu0 0.0
    %6364 = vmatprep.subr.mxu0 0.0
    %6365 = vmatpush1.msra.mxu0 0.0
    %6366 = vmatprep.subr.mxu0 0.0
    %6367 = vmatpush1.msra.mxu0 0.0
    %6368 = vmatprep.subr.mxu0 0.0
    %6369 = vmatpush1.msra.mxu0 0.0
    %6370 = vmatprep.subr.mxu0 0.0
    %6371 = vmatpush1.msra.mxu0 0.0
    %6372 = vmatprep.subr.mxu0 0.0
    %6373 = vmatpush1.msra.mxu0 0.0
    %6374 = vmatprep.subr.mxu0 0.0
    %6375 = vmatpush1.msra.mxu0 0.0
    %6376 = vmatprep.mubr.f32.mxu0 0.0
    %6377 = vmatmul.mubr.f32.gmra.mrb[0].mxu0 %v6129
    %v6378 = vpop.f32.mrb[0].mxu0
    %v6379 = vadd.f32 %v6304, %v6378
    %v6380 = vpop.f32.mrb[0].mxu0
    %v6381 = vadd.f32 %v6305, %v6380
    %6382 = vdwg.mxu0
    %6383 = vmatprep.subr.mxu0 %v3707
    %6384 = vmatpush1.msra.mxu0 %v3706
    %6385 = vmatprep.subr.mxu0 %v3711
    %6386 = vmatpush1.msra.mxu0 %v3710
    %6387 = vmatprep.subr.mxu0 %v3715
    %6388 = vmatpush1.msra.mxu0 %v3714
    %6389 = vmatprep.subr.mxu0 %v3719
    %6390 = vmatpush1.msra.mxu0 %v3718
    %6391 = vmatprep.subr.mxu0 %v3723
    %6392 = vmatpush1.msra.mxu0 %v3722
    %6393 = vmatprep.subr.mxu0 %v3727
    %6394 = vmatpush1.msra.mxu0 %v3726
    %6395 = vmatprep.subr.mxu0 %v3731
    %6396 = vmatpush1.msra.mxu0 %v3730
    %6397 = vmatprep.subr.mxu0 %v3735
    %6398 = vmatpush1.msra.mxu0 %v3734
    %6399 = vmatprep.subr.mxu0 %v3739
    %6400 = vmatpush1.msra.mxu0 %v3738
    %6401 = vmatprep.subr.mxu0 %v3743
    %6402 = vmatpush1.msra.mxu0 %v3742
    %6403 = vmatprep.subr.mxu0 %v3747
    %6404 = vmatpush1.msra.mxu0 %v3746
    %6405 = vmatprep.subr.mxu0 %v3751
    %6406 = vmatpush1.msra.mxu0 %v3750
    %6407 = vmatprep.subr.mxu0 %v3755
    %6408 = vmatpush1.msra.mxu0 %v3754
    %6409 = vmatprep.subr.mxu0 %v3759
    %6410 = vmatpush1.msra.mxu0 %v3758
    %6411 = vmatprep.subr.mxu0 %v3763
    %6412 = vmatpush1.msra.mxu0 %v3762
    %6413 = vmatprep.subr.mxu0 %v3767
    %6414 = vmatpush1.msra.mxu0 %v3766
    %6415 = vmatprep.subr.mxu0 0.0
    %6416 = vmatpush1.msra.mxu0 0.0
    %6417 = vmatprep.subr.mxu0 0.0
    %6418 = vmatpush1.msra.mxu0 0.0
    %6419 = vmatprep.subr.mxu0 0.0
    %6420 = vmatpush1.msra.mxu0 0.0
    %6421 = vmatprep.subr.mxu0 0.0
    %6422 = vmatpush1.msra.mxu0 0.0
    %6423 = vmatprep.subr.mxu0 0.0
    %6424 = vmatpush1.msra.mxu0 0.0
    %6425 = vmatprep.subr.mxu0 0.0
    %6426 = vmatpush1.msra.mxu0 0.0
    %6427 = vmatprep.subr.mxu0 0.0
    %6428 = vmatpush1.msra.mxu0 0.0
    %6429 = vmatprep.subr.mxu0 0.0
    %6430 = vmatpush1.msra.mxu0 0.0
    %6431 = vmatprep.subr.mxu0 0.0
    %6432 = vmatpush1.msra.mxu0 0.0
    %6433 = vmatprep.subr.mxu0 0.0
    %6434 = vmatpush1.msra.mxu0 0.0
    %6435 = vmatprep.subr.mxu0 0.0
    %6436 = vmatpush1.msra.mxu0 0.0
    %6437 = vmatprep.subr.mxu0 0.0
    %6438 = vmatpush1.msra.mxu0 0.0
    %6439 = vmatprep.subr.mxu0 0.0
    %6440 = vmatpush1.msra.mxu0 0.0
    %6441 = vmatprep.subr.mxu0 0.0
    %6442 = vmatpush1.msra.mxu0 0.0
    %6443 = vmatprep.subr.mxu0 0.0
    %6444 = vmatpush1.msra.mxu0 0.0
    %6445 = vmatprep.subr.mxu0 0.0
    %6446 = vmatpush1.msra.mxu0 0.0
    %6447 = vmatprep.mubr.f32.mxu0 0.0
    %6448 = vmatmul.mubr.f32.gmra.mrb[0].mxu0 %v6129
    %v6449 = vpop.f32.mrb[0].mxu0
    %v6450 = vadd.f32 %v6306, %v6449
    %v6451 = vpop.f32.mrb[0].mxu0
    %v6452 = vadd.f32 %v6307, %v6451
    %6453 = vdwg.mxu0
    %v6454 = vxor.u32 %v6379, 2147483648
    %v6455 = vmul.f32 %v6454, 1.442695
    %v6456 = vpow.pop %v6455
    %v6457 = vadd.f32 %v6456, 1.0
    %v6458 = vrcp.pop %v6457
    %v6459 = vmul.f32 1.0, %v6458
    %v6460 = vxor.u32 %v6381, 2147483648
    %v6461 = vmul.f32 %v6460, 1.442695
    %v6462 = vpow.pop %v6461
    %v6463 = vadd.f32 %v6462, 1.0
    %v6464 = vrcp.pop %v6463
    %v6465 = vmul.f32 1.0, %v6464
    %v6466 = vtanh.pop %v6450
    %v6467 = vxor.u32 %v6452, 2147483648
    %v6468 = vmul.f32 %v6467, 1.442695
    %v6469 = vpow.pop %v6468
    %v6470 = vadd.f32 %v6469, 1.0
    %v6471 = vrcp.pop %v6470
    %v6472 = vmul.f32 1.0, %v6471
    %v6473 = vmul.f32 %v6465, %v6127
    %v6474 = vmul.f32 %v6459, %v6466
    %v6475 = vadd.f32 %v6473, %v6474
    %v6476 = vtanh.pop %v6475
    %v6477 = vmul.f32 %v6472, %v6476
    %v6478 = vrot.slane %v4149, 6
    %v6479 = vrot.slane %v4151, 6
    %v6480 = vrot.slane %v4220, 6
    %v6481 = vrot.slane %v4222, 6
    %6486 = vmatprep.subr.mxu0 %v3834
    %6487 = vmatpush1.msra.mxu0 %v3833
    %6488 = vmatprep.subr.mxu0 %v3838
    %6489 = vmatpush1.msra.mxu0 %v3837
    %6490 = vmatprep.subr.mxu0 %v3842
    %6491 = vmatpush1.msra.mxu0 %v3841
    %6492 = vmatprep.subr.mxu0 %v3846
    %6493 = vmatpush1.msra.mxu0 %v3845
    %6494 = vmatprep.subr.mxu0 %v3850
    %6495 = vmatpush1.msra.mxu0 %v3849
    %6496 = vmatprep.subr.mxu0 %v3854
    %6497 = vmatpush1.msra.mxu0 %v3853
    %6498 = vmatprep.subr.mxu0 %v3858
    %6499 = vmatpush1.msra.mxu0 %v3857
    %6500 = vmatprep.subr.mxu0 %v3862
    %6501 = vmatpush1.msra.mxu0 %v3861
    %6502 = vmatprep.subr.mxu0 %v3866
    %6503 = vmatpush1.msra.mxu0 %v3865
    %6504 = vmatprep.subr.mxu0 %v3870
    %6505 = vmatpush1.msra.mxu0 %v3869
    %6506 = vmatprep.subr.mxu0 %v3874
    %6507 = vmatpush1.msra.mxu0 %v3873
    %6508 = vmatprep.subr.mxu0 %v3878
    %6509 = vmatpush1.msra.mxu0 %v3877
    %6510 = vmatprep.subr.mxu0 %v3882
    %6511 = vmatpush1.msra.mxu0 %v3881
    %6512 = vmatprep.subr.mxu0 %v3886
    %6513 = vmatpush1.msra.mxu0 %v3885
    %6514 = vmatprep.subr.mxu0 %v3890
    %6515 = vmatpush1.msra.mxu0 %v3889
    %6516 = vmatprep.subr.mxu0 %v3894
    %6517 = vmatpush1.msra.mxu0 %v3893
    %6518 = vmatprep.subr.mxu0 0.0
    %6519 = vmatpush1.msra.mxu0 0.0
    %6520 = vmatprep.subr.mxu0 0.0
    %6521 = vmatpush1.msra.mxu0 0.0
    %6522 = vmatprep.subr.mxu0 0.0
    %6523 = vmatpush1.msra.mxu0 0.0
    %6524 = vmatprep.subr.mxu0 0.0
    %6525 = vmatpush1.msra.mxu0 0.0
    %6526 = vmatprep.subr.mxu0 0.0
    %6527 = vmatpush1.msra.mxu0 0.0
    %6528 = vmatprep.subr.mxu0 0.0
    %6529 = vmatpush1.msra.mxu0 0.0
    %6530 = vmatprep.subr.mxu0 0.0
    %6531 = vmatpush1.msra.mxu0 0.0
    %6532 = vmatprep.subr.mxu0 0.0
    %6533 = vmatpush1.msra.mxu0 0.0
    %6534 = vmatprep.subr.mxu0 0.0
    %6535 = vmatpush1.msra.mxu0 0.0
    %6536 = vmatprep.subr.mxu0 0.0
    %6537 = vmatpush1.msra.mxu0 0.0
    %6538 = vmatprep.subr.mxu0 0.0
    %6539 = vmatpush1.msra.mxu0 0.0
    %6540 = vmatprep.subr.mxu0 0.0
    %6541 = vmatpush1.msra.mxu0 0.0
    %6542 = vmatprep.subr.mxu0 0.0
    %6543 = vmatpush1.msra.mxu0 0.0
    %6544 = vmatprep.subr.mxu0 0.0
    %6545 = vmatpush1.msra.mxu0 0.0
    %6546 = vmatprep.subr.mxu0 0.0
    %6547 = vmatpush1.msra.mxu0 0.0
    %6548 = vmatprep.subr.mxu0 0.0
    %6549 = vmatpush1.msra.mxu0 0.0
    %6550 = vmatprep.mubr.f32.mxu0 0.0
    %6551 = vmatmul.mubr.f32.gmra.mrb[0].mxu0 %v6303
    %v6552 = vpop.f32.mrb[0].mxu0
    %v6553 = vadd.f32 %v6478, %v6552
    %v6554 = vpop.f32.mrb[0].mxu0
    %v6555 = vadd.f32 %v6479, %v6554
    %6556 = vdwg.mxu0
    %6557 = vmatprep.subr.mxu0 %v3836
    %6558 = vmatpush1.msra.mxu0 %v3835
    %6559 = vmatprep.subr.mxu0 %v3840
    %6560 = vmatpush1.msra.mxu0 %v3839
    %6561 = vmatprep.subr.mxu0 %v3844
    %6562 = vmatpush1.msra.mxu0 %v3843
    %6563 = vmatprep.subr.mxu0 %v3848
    %6564 = vmatpush1.msra.mxu0 %v3847
    %6565 = vmatprep.subr.mxu0 %v3852
    %6566 = vmatpush1.msra.mxu0 %v3851
    %6567 = vmatprep.subr.mxu0 %v3856
    %6568 = vmatpush1.msra.mxu0 %v3855
    %6569 = vmatprep.subr.mxu0 %v3860
    %6570 = vmatpush1.msra.mxu0 %v3859
    %6571 = vmatprep.subr.mxu0 %v3864
    %6572 = vmatpush1.msra.mxu0 %v3863
    %6573 = vmatprep.subr.mxu0 %v3868
    %6574 = vmatpush1.msra.mxu0 %v3867
    %6575 = vmatprep.subr.mxu0 %v3872
    %6576 = vmatpush1.msra.mxu0 %v3871
    %6577 = vmatprep.subr.mxu0 %v3876
    %6578 = vmatpush1.msra.mxu0 %v3875
    %6579 = vmatprep.subr.mxu0 %v3880
    %6580 = vmatpush1.msra.mxu0 %v3879
    %6581 = vmatprep.subr.mxu0 %v3884
    %6582 = vmatpush1.msra.mxu0 %v3883
    %6583 = vmatprep.subr.mxu0 %v3888
    %6584 = vmatpush1.msra.mxu0 %v3887
    %6585 = vmatprep.subr.mxu0 %v3892
    %6586 = vmatpush1.msra.mxu0 %v3891
    %6587 = vmatprep.subr.mxu0 %v3896
    %6588 = vmatpush1.msra.mxu0 %v3895
    %6589 = vmatprep.subr.mxu0 0.0
    %6590 = vmatpush1.msra.mxu0 0.0
    %6591 = vmatprep.subr.mxu0 0.0
    %6592 = vmatpush1.msra.mxu0 0.0
    %6593 = vmatprep.subr.mxu0 0.0
    %6594 = vmatpush1.msra.mxu0 0.0
    %6595 = vmatprep.subr.mxu0 0.0
    %6596 = vmatpush1.msra.mxu0 0.0
    %6597 = vmatprep.subr.mxu0 0.0
    %6598 = vmatpush1.msra.mxu0 0.0
    %6599 = vmatprep.subr.mxu0 0.0
    %6600 = vmatpush1.msra.mxu0 0.0
    %6601 = vmatprep.subr.mxu0 0.0
    %6602 = vmatpush1.msra.mxu0 0.0
    %6603 = vmatprep.subr.mxu0 0.0
    %6604 = vmatpush1.msra.mxu0 0.0
    %6605 = vmatprep.subr.mxu0 0.0
    %6606 = vmatpush1.msra.mxu0 0.0
    %6607 = vmatprep.subr.mxu0 0.0
    %6608 = vmatpush1.msra.mxu0 0.0
    %6609 = vmatprep.subr.mxu0 0.0
    %6610 = vmatpush1.msra.mxu0 0.0
    %6611 = vmatprep.subr.mxu0 0.0
    %6612 = vmatpush1.msra.mxu0 0.0
    %6613 = vmatprep.subr.mxu0 0.0
    %6614 = vmatpush1.msra.mxu0 0.0
    %6615 = vmatprep.subr.mxu0 0.0
    %6616 = vmatpush1.msra.mxu0 0.0
    %6617 = vmatprep.subr.mxu0 0.0
    %6618 = vmatpush1.msra.mxu0 0.0
    %6619 = vmatprep.subr.mxu0 0.0
    %6620 = vmatpush1.msra.mxu0 0.0
    %6621 = vmatprep.mubr.f32.mxu0 0.0
    %6622 = vmatmul.mubr.f32.gmra.mrb[0].mxu0 %v6303
    %v6623 = vpop.f32.mrb[0].mxu0
    %v6624 = vadd.f32 %v6480, %v6623
    %v6625 = vpop.f32.mrb[0].mxu0
    %v6626 = vadd.f32 %v6481, %v6625
    %6627 = vdwg.mxu0
    %v6628 = vxor.u32 %v6553, 2147483648
    %v6629 = vmul.f32 %v6628, 1.442695
    %v6630 = vpow.pop %v6629
    %v6631 = vadd.f32 %v6630, 1.0
    %v6632 = vrcp.pop %v6631
    %v6633 = vmul.f32 1.0, %v6632
    %v6634 = vxor.u32 %v6555, 2147483648
    %v6635 = vmul.f32 %v6634, 1.442695
    %v6636 = vpow.pop %v6635
    %v6637 = vadd.f32 %v6636, 1.0
    %v6638 = vrcp.pop %v6637
    %v6639 = vmul.f32 1.0, %v6638
    %v6640 = vtanh.pop %v6624
    %v6641 = vxor.u32 %v6626, 2147483648
    %v6642 = vmul.f32 %v6641, 1.442695
    %v6643 = vpow.pop %v6642
    %v6644 = vadd.f32 %v6643, 1.0
    %v6645 = vrcp.pop %v6644
    %v6646 = vmul.f32 1.0, %v6645
    %v6647 = vmul.f32 %v6639, %v6301
    %v6648 = vmul.f32 %v6633, %v6640
    %v6649 = vadd.f32 %v6647, %v6648
    %v6650 = vtanh.pop %v6649
    %v6651 = vmul.f32 %v6646, %v6650
    %v6652 = vrot.slane %v3986, 7
    %v6653 = vrot.slane %v3988, 7
    %v6654 = vrot.slane %v4057, 7
    %v6655 = vrot.slane %v4059, 7
    %6660 = vmatprep.subr.mxu0 %v3705
    %6661 = vmatpush1.msra.mxu0 %v3704
    %6662 = vmatprep.subr.mxu0 %v3709
    %6663 = vmatpush1.msra.mxu0 %v3708
    %6664 = vmatprep.subr.mxu0 %v3713
    %6665 = vmatpush1.msra.mxu0 %v3712
    %6666 = vmatprep.subr.mxu0 %v3717
    %6667 = vmatpush1.msra.mxu0 %v3716
    %6668 = vmatprep.subr.mxu0 %v3721
    %6669 = vmatpush1.msra.mxu0 %v3720
    %6670 = vmatprep.subr.mxu0 %v3725
    %6671 = vmatpush1.msra.mxu0 %v3724
    %6672 = vmatprep.subr.mxu0 %v3729
    %6673 = vmatpush1.msra.mxu0 %v3728
    %6674 = vmatprep.subr.mxu0 %v3733
    %6675 = vmatpush1.msra.mxu0 %v3732
    %6676 = vmatprep.subr.mxu0 %v3737
    %6677 = vmatpush1.msra.mxu0 %v3736
    %6678 = vmatprep.subr.mxu0 %v3741
    %6679 = vmatpush1.msra.mxu0 %v3740
    %6680 = vmatprep.subr.mxu0 %v3745
    %6681 = vmatpush1.msra.mxu0 %v3744
    %6682 = vmatprep.subr.mxu0 %v3749
    %6683 = vmatpush1.msra.mxu0 %v3748
    %6684 = vmatprep.subr.mxu0 %v3753
    %6685 = vmatpush1.msra.mxu0 %v3752
    %6686 = vmatprep.subr.mxu0 %v3757
    %6687 = vmatpush1.msra.mxu0 %v3756
    %6688 = vmatprep.subr.mxu0 %v3761
    %6689 = vmatpush1.msra.mxu0 %v3760
    %6690 = vmatprep.subr.mxu0 %v3765
    %6691 = vmatpush1.msra.mxu0 %v3764
    %6692 = vmatprep.subr.mxu0 0.0
    %6693 = vmatpush1.msra.mxu0 0.0
    %6694 = vmatprep.subr.mxu0 0.0
    %6695 = vmatpush1.msra.mxu0 0.0
    %6696 = vmatprep.subr.mxu0 0.0
    %6697 = vmatpush1.msra.mxu0 0.0
    %6698 = vmatprep.subr.mxu0 0.0
    %6699 = vmatpush1.msra.mxu0 0.0
    %6700 = vmatprep.subr.mxu0 0.0
    %6701 = vmatpush1.msra.mxu0 0.0
    %6702 = vmatprep.subr.mxu0 0.0
    %6703 = vmatpush1.msra.mxu0 0.0
    %6704 = vmatprep.subr.mxu0 0.0
    %6705 = vmatpush1.msra.mxu0 0.0
    %6706 = vmatprep.subr.mxu0 0.0
    %6707 = vmatpush1.msra.mxu0 0.0
    %6708 = vmatprep.subr.mxu0 0.0
    %6709 = vmatpush1.msra.mxu0 0.0
    %6710 = vmatprep.subr.mxu0 0.0
    %6711 = vmatpush1.msra.mxu0 0.0
    %6712 = vmatprep.subr.mxu0 0.0
    %6713 = vmatpush1.msra.mxu0 0.0
    %6714 = vmatprep.subr.mxu0 0.0
    %6715 = vmatpush1.msra.mxu0 0.0
    %6716 = vmatprep.subr.mxu0 0.0
    %6717 = vmatpush1.msra.mxu0 0.0
    %6718 = vmatprep.subr.mxu0 0.0
    %6719 = vmatpush1.msra.mxu0 0.0
    %6720 = vmatprep.subr.mxu0 0.0
    %6721 = vmatpush1.msra.mxu0 0.0
    %6722 = vmatprep.subr.mxu0 0.0
    %6723 = vmatpush1.msra.mxu0 0.0
    %6724 = vmatprep.mubr.f32.mxu0 0.0
    %6725 = vmatmul.mubr.f32.gmra.mrb[0].mxu0 %v6477
    %v6726 = vpop.f32.mrb[0].mxu0
    %v6727 = vadd.f32 %v6652, %v6726
    %v6728 = vpop.f32.mrb[0].mxu0
    %v6729 = vadd.f32 %v6653, %v6728
    %6730 = vdwg.mxu0
    %6731 = vmatprep.subr.mxu0 %v3707
    %6732 = vmatpush1.msra.mxu0 %v3706
    %6733 = vmatprep.subr.mxu0 %v3711
    %6734 = vmatpush1.msra.mxu0 %v3710
    %6735 = vmatprep.subr.mxu0 %v3715
    %6736 = vmatpush1.msra.mxu0 %v3714
    %6737 = vmatprep.subr.mxu0 %v3719
    %6738 = vmatpush1.msra.mxu0 %v3718
    %6739 = vmatprep.subr.mxu0 %v3723
    %6740 = vmatpush1.msra.mxu0 %v3722
    %6741 = vmatprep.subr.mxu0 %v3727
    %6742 = vmatpush1.msra.mxu0 %v3726
    %6743 = vmatprep.subr.mxu0 %v3731
    %6744 = vmatpush1.msra.mxu0 %v3730
    %6745 = vmatprep.subr.mxu0 %v3735
    %6746 = vmatpush1.msra.mxu0 %v3734
    %6747 = vmatprep.subr.mxu0 %v3739
    %6748 = vmatpush1.msra.mxu0 %v3738
    %6749 = vmatprep.subr.mxu0 %v3743
    %6750 = vmatpush1.msra.mxu0 %v3742
    %6751 = vmatprep.subr.mxu0 %v3747
    %6752 = vmatpush1.msra.mxu0 %v3746
    %6753 = vmatprep.subr.mxu0 %v3751
    %6754 = vmatpush1.msra.mxu0 %v3750
    %6755 = vmatprep.subr.mxu0 %v3755
    %6756 = vmatpush1.msra.mxu0 %v3754
    %6757 = vmatprep.subr.mxu0 %v3759
    %6758 = vmatpush1.msra.mxu0 %v3758
    %6759 = vmatprep.subr.mxu0 %v3763
    %6760 = vmatpush1.msra.mxu0 %v3762
    %6761 = vmatprep.subr.mxu0 %v3767
    %6762 = vmatpush1.msra.mxu0 %v3766
    %6763 = vmatprep.subr.mxu0 0.0
    %6764 = vmatpush1.msra.mxu0 0.0
    %6765 = vmatprep.subr.mxu0 0.0
    %6766 = vmatpush1.msra.mxu0 0.0
    %6767 = vmatprep.subr.mxu0 0.0
    %6768 = vmatpush1.msra.mxu0 0.0
    %6769 = vmatprep.subr.mxu0 0.0
    %6770 = vmatpush1.msra.mxu0 0.0
    %6771 = vmatprep.subr.mxu0 0.0
    %6772 = vmatpush1.msra.mxu0 0.0
    %6773 = vmatprep.subr.mxu0 0.0
    %6774 = vmatpush1.msra.mxu0 0.0
    %6775 = vmatprep.subr.mxu0 0.0
    %6776 = vmatpush1.msra.mxu0 0.0
    %6777 = vmatprep.subr.mxu0 0.0
    %6778 = vmatpush1.msra.mxu0 0.0
    %6779 = vmatprep.subr.mxu0 0.0
    %6780 = vmatpush1.msra.mxu0 0.0
    %6781 = vmatprep.subr.mxu0 0.0
    %6782 = vmatpush1.msra.mxu0 0.0
    %6783 = vmatprep.subr.mxu0 0.0
    %6784 = vmatpush1.msra.mxu0 0.0
    %6785 = vmatprep.subr.mxu0 0.0
    %6786 = vmatpush1.msra.mxu0 0.0
    %6787 = vmatprep.subr.mxu0 0.0
    %6788 = vmatpush1.msra.mxu0 0.0
    %6789 = vmatprep.subr.mxu0 0.0
    %6790 = vmatpush1.msra.mxu0 0.0
    %6791 = vmatprep.subr.mxu0 0.0
    %6792 = vmatpush1.msra.mxu0 0.0
    %6793 = vmatprep.subr.mxu0 0.0
    %6794 = vmatpush1.msra.mxu0 0.0
    %6795 = vmatprep.mubr.f32.mxu0 0.0
    %6796 = vmatmul.mubr.f32.gmra.mrb[0].mxu0 %v6477
    %v6797 = vpop.f32.mrb[0].mxu0
    %v6798 = vadd.f32 %v6654, %v6797
    %v6799 = vpop.f32.mrb[0].mxu0
    %v6800 = vadd.f32 %v6655, %v6799
    %6801 = vdwg.mxu0
    %v6802 = vxor.u32 %v6727, 2147483648
    %v6803 = vmul.f32 %v6802, 1.442695
    %v6804 = vpow.pop %v6803
    %v6805 = vadd.f32 %v6804, 1.0
    %v6806 = vrcp.pop %v6805
    %v6807 = vmul.f32 1.0, %v6806
    %v6808 = vxor.u32 %v6729, 2147483648
    %v6809 = vmul.f32 %v6808, 1.442695
    %v6810 = vpow.pop %v6809
    %v6811 = vadd.f32 %v6810, 1.0
    %v6812 = vrcp.pop %v6811
    %v6813 = vmul.f32 1.0, %v6812
    %v6814 = vtanh.pop %v6798
    %v6815 = vxor.u32 %v6800, 2147483648
    %v6816 = vmul.f32 %v6815, 1.442695
    %v6817 = vpow.pop %v6816
    %v6818 = vadd.f32 %v6817, 1.0
    %v6819 = vrcp.pop %v6818
    %v6820 = vmul.f32 1.0, %v6819
    %v6821 = vmul.f32 %v6813, %v6475
    %v6822 = vmul.f32 %v6807, %v6814
    %v6823 = vadd.f32 %v6821, %v6822
    %v6824 = vtanh.pop %v6823
    %v6825 = vmul.f32 %v6820, %v6824
    %v6826 = vrot.slane %v4149, 7
    %v6827 = vrot.slane %v4151, 7
    %v6828 = vrot.slane %v4220, 7
    %v6829 = vrot.slane %v4222, 7
    %6834 = vmatprep.subr.mxu0 %v3834
    %6835 = vmatpush1.msra.mxu0 %v3833
    %6836 = vmatprep.subr.mxu0 %v3838
    %6837 = vmatpush1.msra.mxu0 %v3837
    %6838 = vmatprep.subr.mxu0 %v3842
    %6839 = vmatpush1.msra.mxu0 %v3841
    %6840 = vmatprep.subr.mxu0 %v3846
    %6841 = vmatpush1.msra.mxu0 %v3845
    %6842 = vmatprep.subr.mxu0 %v3850
    %6843 = vmatpush1.msra.mxu0 %v3849
    %6844 = vmatprep.subr.mxu0 %v3854
    %6845 = vmatpush1.msra.mxu0 %v3853
    %6846 = vmatprep.subr.mxu0 %v3858
    %6847 = vmatpush1.msra.mxu0 %v3857
    %6848 = vmatprep.subr.mxu0 %v3862
    %6849 = vmatpush1.msra.mxu0 %v3861
    %6850 = vmatprep.subr.mxu0 %v3866
    %6851 = vmatpush1.msra.mxu0 %v3865
    %6852 = vmatprep.subr.mxu0 %v3870
    %6853 = vmatpush1.msra.mxu0 %v3869
    %6854 = vmatprep.subr.mxu0 %v3874
    %6855 = vmatpush1.msra.mxu0 %v3873
    %6856 = vmatprep.subr.mxu0 %v3878
    %6857 = vmatpush1.msra.mxu0 %v3877
    %6858 = vmatprep.subr.mxu0 %v3882
    %6859 = vmatpush1.msra.mxu0 %v3881
    %6860 = vmatprep.subr.mxu0 %v3886
    %6861 = vmatpush1.msra.mxu0 %v3885
    %6862 = vmatprep.subr.mxu0 %v3890
    %6863 = vmatpush1.msra.mxu0 %v3889
    %6864 = vmatprep.subr.mxu0 %v3894
    %6865 = vmatpush1.msra.mxu0 %v3893
    %6866 = vmatprep.subr.mxu0 0.0
    %6867 = vmatpush1.msra.mxu0 0.0
    %6868 = vmatprep.subr.mxu0 0.0
    %6869 = vmatpush1.msra.mxu0 0.0
    %6870 = vmatprep.subr.mxu0 0.0
    %6871 = vmatpush1.msra.mxu0 0.0
    %6872 = vmatprep.subr.mxu0 0.0
    %6873 = vmatpush1.msra.mxu0 0.0
    %6874 = vmatprep.subr.mxu0 0.0
    %6875 = vmatpush1.msra.mxu0 0.0
    %6876 = vmatprep.subr.mxu0 0.0
    %6877 = vmatpush1.msra.mxu0 0.0
    %6878 = vmatprep.subr.mxu0 0.0
    %6879 = vmatpush1.msra.mxu0 0.0
    %6880 = vmatprep.subr.mxu0 0.0
    %6881 = vmatpush1.msra.mxu0 0.0
    %6882 = vmatprep.subr.mxu0 0.0
    %6883 = vmatpush1.msra.mxu0 0.0
    %6884 = vmatprep.subr.mxu0 0.0
    %6885 = vmatpush1.msra.mxu0 0.0
    %6886 = vmatprep.subr.mxu0 0.0
    %6887 = vmatpush1.msra.mxu0 0.0
    %6888 = vmatprep.subr.mxu0 0.0
    %6889 = vmatpush1.msra.mxu0 0.0
    %6890 = vmatprep.subr.mxu0 0.0
    %6891 = vmatpush1.msra.mxu0 0.0
    %6892 = vmatprep.subr.mxu0 0.0
    %6893 = vmatpush1.msra.mxu0 0.0
    %6894 = vmatprep.subr.mxu0 0.0
    %6895 = vmatpush1.msra.mxu0 0.0
    %6896 = vmatprep.subr.mxu0 0.0
    %6897 = vmatpush1.msra.mxu0 0.0
    %6898 = vmatprep.mubr.f32.mxu0 0.0
    %6899 = vmatmul.mubr.f32.gmra.mrb[0].mxu0 %v6651
    %v6900 = vpop.f32.mrb[0].mxu0
    %v6901 = vadd.f32 %v6826, %v6900
    %v6902 = vpop.f32.mrb[0].mxu0
    %v6903 = vadd.f32 %v6827, %v6902
    %6904 = vdwg.mxu0
    %6905 = vmatprep.subr.mxu0 %v3836
    %6906 = vmatpush1.msra.mxu0 %v3835
    %6907 = vmatprep.subr.mxu0 %v3840
    %6908 = vmatpush1.msra.mxu0 %v3839
    %6909 = vmatprep.subr.mxu0 %v3844
    %6910 = vmatpush1.msra.mxu0 %v3843
    %6911 = vmatprep.subr.mxu0 %v3848
    %6912 = vmatpush1.msra.mxu0 %v3847
    %6913 = vmatprep.subr.mxu0 %v3852
    %6914 = vmatpush1.msra.mxu0 %v3851
    %6915 = vmatprep.subr.mxu0 %v3856
    %6916 = vmatpush1.msra.mxu0 %v3855
    %6917 = vmatprep.subr.mxu0 %v3860
    %6918 = vmatpush1.msra.mxu0 %v3859
    %6919 = vmatprep.subr.mxu0 %v3864
    %6920 = vmatpush1.msra.mxu0 %v3863
    %6921 = vmatprep.subr.mxu0 %v3868
    %6922 = vmatpush1.msra.mxu0 %v3867
    %6923 = vmatprep.subr.mxu0 %v3872
    %6924 = vmatpush1.msra.mxu0 %v3871
    %6925 = vmatprep.subr.mxu0 %v3876
    %6926 = vmatpush1.msra.mxu0 %v3875
    %6927 = vmatprep.subr.mxu0 %v3880
    %6928 = vmatpush1.msra.mxu0 %v3879
    %6929 = vmatprep.subr.mxu0 %v3884
    %6930 = vmatpush1.msra.mxu0 %v3883
    %6931 = vmatprep.subr.mxu0 %v3888
    %6932 = vmatpush1.msra.mxu0 %v3887
    %6933 = vmatprep.subr.mxu0 %v3892
    %6934 = vmatpush1.msra.mxu0 %v3891
    %6935 = vmatprep.subr.mxu0 %v3896
    %6936 = vmatpush1.msra.mxu0 %v3895
    %6937 = vmatprep.subr.mxu0 0.0
    %6938 = vmatpush1.msra.mxu0 0.0
    %6939 = vmatprep.subr.mxu0 0.0
    %6940 = vmatpush1.msra.mxu0 0.0
    %6941 = vmatprep.subr.mxu0 0.0
    %6942 = vmatpush1.msra.mxu0 0.0
    %6943 = vmatprep.subr.mxu0 0.0
    %6944 = vmatpush1.msra.mxu0 0.0
    %6945 = vmatprep.subr.mxu0 0.0
    %6946 = vmatpush1.msra.mxu0 0.0
    %6947 = vmatprep.subr.mxu0 0.0
    %6948 = vmatpush1.msra.mxu0 0.0
    %6949 = vmatprep.subr.mxu0 0.0
    %6950 = vmatpush1.msra.mxu0 0.0
    %6951 = vmatprep.subr.mxu0 0.0
    %6952 = vmatpush1.msra.mxu0 0.0
    %6953 = vmatprep.subr.mxu0 0.0
    %6954 = vmatpush1.msra.mxu0 0.0
    %6955 = vmatprep.subr.mxu0 0.0
    %6956 = vmatpush1.msra.mxu0 0.0
    %6957 = vmatprep.subr.mxu0 0.0
    %6958 = vmatpush1.msra.mxu0 0.0
    %6959 = vmatprep.subr.mxu0 0.0
    %6960 = vmatpush1.msra.mxu0 0.0
    %6961 = vmatprep.subr.mxu0 0.0
    %6962 = vmatpush1.msra.mxu0 0.0
    %6963 = vmatprep.subr.mxu0 0.0
    %6964 = vmatpush1.msra.mxu0 0.0
    %6965 = vmatprep.subr.mxu0 0.0
    %6966 = vmatpush1.msra.mxu0 0.0
    %6967 = vmatprep.subr.mxu0 0.0
    %6968 = vmatpush1.msra.mxu0 0.0
    %6969 = vmatprep.mubr.f32.mxu0 0.0
    %6970 = vmatmul.mubr.f32.gmra.mrb[0].mxu0 %v6651
    %v6971 = vpop.f32.mrb[0].mxu0
    %v6972 = vadd.f32 %v6828, %v6971
    %v6973 = vpop.f32.mrb[0].mxu0
    %v6974 = vadd.f32 %v6829, %v6973
    %6975 = vdwg.mxu0
    %v6976 = vxor.u32 %v6901, 2147483648
    %v6977 = vmul.f32 %v6976, 1.442695
    %v6978 = vpow.pop %v6977
    %v6979 = vadd.f32 %v6978, 1.0
    %v6980 = vrcp.pop %v6979
    %v6981 = vmul.f32 1.0, %v6980
    %v6982 = vxor.u32 %v6903, 2147483648
    %v6983 = vmul.f32 %v6982, 1.442695
    %v6984 = vpow.pop %v6983
    %v6985 = vadd.f32 %v6984, 1.0
    %v6986 = vrcp.pop %v6985
    %v6987 = vmul.f32 1.0, %v6986
    %v6988 = vtanh.pop %v6972
    %v6989 = vxor.u32 %v6974, 2147483648
    %v6990 = vmul.f32 %v6989, 1.442695
    %v6991 = vpow.pop %v6990
    %v6992 = vadd.f32 %v6991, 1.0
    %v6993 = vrcp.pop %v6992
    %v6994 = vmul.f32 1.0, %v6993
    %v6995 = vmul.f32 %v6987, %v6649
    %v6996 = vmul.f32 %v6981, %v6988
    %v6997 = vadd.f32 %v6995, %v6996
    %v6998 = vtanh.pop %v6997
    %v6999 = vmul.f32 %v6994, %v6998
    %v7001 = vrot.slane %v4733, 7
    %v7004 = vrot.slane %v5085, 6
    %v7007 = vrot.slane %v5433, 5
    %v7010 = vrot.slane %v5781, 4
    %v7013 = vrot.slane %v6129, 3
    %v7016 = vrot.slane %v6477, 2
    %v7019 = vrot.slane %v6825, 1
    %v7021 = vsel %vm3598, %v4389, %v7001
    %v7022 = vsel %vm3600, %v7021, %v7004
    %v7023 = vsel %vm3602, %v7022, %v7007
    %v7024 = vsel %vm3604, %v7023, %v7010
    %v7025 = vsel %vm3606, %v7024, %v7013
    %v7026 = vsel %vm3608, %v7025, %v7016
    %v7027 = vsel %vm3610, %v7026, %v7019
    %v7029 = vrot.slane %v6651, 7
    %v7032 = vrot.slane %v6303, 6
    %v7035 = vrot.slane %v5955, 5
    %v7038 = vrot.slane %v5607, 4
    %v7041 = vrot.slane %v5259, 3
    %v7044 = vrot.slane %v4911, 2
    %v7047 = vrot.slane %v4555, 1
    %v7049 = vsel %vm3598, %v6999, %v7029
    %v7050 = vsel %vm3600, %v7049, %v7032
    %v7051 = vsel %vm3602, %v7050, %v7035
    %v7052 = vsel %vm3604, %v7051, %v7038
    %v7053 = vsel %vm3606, %v7052, %v7041
    %v7054 = vsel %vm3608, %v7053, %v7044
    %v7055 = vsel %vm3610, %v7054, %v7047
    %s7056 = sld [smem:[#allocation2]]
    %s7057 = sld [smem:[#allocation2 + $0x1]]
    %v7058 = vstv %s7056
    %v7059 = vmul.f32 %v7058, %v3611
    %v7060 = vmul.f32 %v7058, %v3639
    %v7061 = vstv %s7057
    %v7062 = vmul.f32 %v7061, %v7027
    %v7063 = vmul.f32 %v7061, %v7055
    %v7064 = vadd.f32 %v7059, %v7062
    %v7065 = vadd.f32 %v7060, %v7063
    %v7066 = vld [vmem:[#allocation18] sm:$0xff]
    %v7067 = vld [vmem:[#allocation18 + $0x8] sm:$0xff]
    %v7068 = vld [vmem:[#allocation18 + $0x10] sm:$0xff]
    %v7069 = vld [vmem:[#allocation18 + $0x18] sm:$0xff]
    %v7070 = vld [vmem:[#allocation18 + $0x20] sm:$0xff]
    %v7071 = vld [vmem:[#allocation18 + $0x28] sm:$0xff]
    %v7072 = vld [vmem:[#allocation18 + $0x30] sm:$0xff]
    %v7073 = vld [vmem:[#allocation18 + $0x38] sm:$0xff]
    %v7074 = vld [vmem:[#allocation18 + $0x40] sm:$0xff]
    %v7075 = vld [vmem:[#allocation18 + $0x48] sm:$0xff]
    %v7076 = vld [vmem:[#allocation18 + $0x50] sm:$0xff]
    %v7077 = vld [vmem:[#allocation18 + $0x58] sm:$0xff]
    %v7078 = vld [vmem:[#allocation18 + $0x60] sm:$0xff]
    %v7079 = vld [vmem:[#allocation18 + $0x68] sm:$0xff]
    %v7080 = vld [vmem:[#allocation18 + $0x70] sm:$0xff]
    %v7081 = vld [vmem:[#allocation18 + $0x78] sm:$0xff]
    %v7082 = vld [vmem:[#allocation18 + $0x80] sm:$0xff]
    %v7083 = vld [vmem:[#allocation18 + $0x88] sm:$0xff]
    %v7084 = vld [vmem:[#allocation18 + $0x90] sm:$0xff]
    %v7085 = vld [vmem:[#allocation18 + $0x98] sm:$0xff]
    %v7086 = vld [vmem:[#allocation18 + $0xa0] sm:$0xff]
    %v7087 = vld [vmem:[#allocation18 + $0xa8] sm:$0xff]
    %v7088 = vld [vmem:[#allocation18 + $0xb0] sm:$0xff]
    %v7089 = vld [vmem:[#allocation18 + $0xb8] sm:$0xff]
    %v7090 = vld [vmem:[#allocation18 + $0xc0] sm:$0xff]
    %v7091 = vld [vmem:[#allocation18 + $0xc8] sm:$0xff]
    %v7092 = vld [vmem:[#allocation18 + $0xd0] sm:$0xff]
    %v7093 = vld [vmem:[#allocation18 + $0xd8] sm:$0xff]
    %v7094 = vld [vmem:[#allocation18 + $0xe0] sm:$0xff]
    %v7095 = vld [vmem:[#allocation18 + $0xe8] sm:$0xff]
    %v7096 = vld [vmem:[#allocation18 + $0xf0] sm:$0xff]
    %v7097 = vld [vmem:[#allocation18 + $0xf8] sm:$0xff]
    %v7098 = vld [vmem:[#allocation18 + $0x100] sm:$0xff]
    %v7099 = vld [vmem:[#allocation18 + $0x108] sm:$0xff]
    %v7100 = vld [vmem:[#allocation18 + $0x110] sm:$0xff]
    %v7101 = vld [vmem:[#allocation18 + $0x118] sm:$0xff]
    %v7102 = vld [vmem:[#allocation18 + $0x120] sm:$0xff]
    %v7103 = vld [vmem:[#allocation18 + $0x128] sm:$0xff]
    %v7104 = vld [vmem:[#allocation18 + $0x130] sm:$0xff]
    %v7105 = vld [vmem:[#allocation18 + $0x138] sm:$0xff]
    %v7106 = vld [vmem:[#allocation18 + $0x140] sm:$0xff]
    %v7107 = vld [vmem:[#allocation18 + $0x148] sm:$0xff]
    %v7108 = vld [vmem:[#allocation18 + $0x150] sm:$0xff]
    %v7109 = vld [vmem:[#allocation18 + $0x158] sm:$0xff]
    %v7110 = vld [vmem:[#allocation18 + $0x160] sm:$0xff]
    %v7111 = vld [vmem:[#allocation18 + $0x168] sm:$0xff]
    %v7112 = vld [vmem:[#allocation18 + $0x170] sm:$0xff]
    %v7113 = vld [vmem:[#allocation18 + $0x178] sm:$0xff]
    %v7114 = vld [vmem:[#allocation18 + $0x180] sm:$0xff]
    %v7115 = vld [vmem:[#allocation18 + $0x188] sm:$0xff]
    %v7116 = vld [vmem:[#allocation18 + $0x190] sm:$0xff]
    %v7117 = vld [vmem:[#allocation18 + $0x198] sm:$0xff]
    %v7118 = vld [vmem:[#allocation18 + $0x1a0] sm:$0xff]
    %v7119 = vld [vmem:[#allocation18 + $0x1a8] sm:$0xff]
    %v7120 = vld [vmem:[#allocation18 + $0x1b0] sm:$0xff]
    %v7121 = vld [vmem:[#allocation18 + $0x1b8] sm:$0xff]
    %v7122 = vld [vmem:[#allocation18 + $0x1c0] sm:$0xff]
    %v7123 = vld [vmem:[#allocation18 + $0x1c8] sm:$0xff]
    %v7124 = vld [vmem:[#allocation18 + $0x1d0] sm:$0xff]
    %v7125 = vld [vmem:[#allocation18 + $0x1d8] sm:$0xff]
    %v7126 = vld [vmem:[#allocation18 + $0x1e0] sm:$0xff]
    %v7127 = vld [vmem:[#allocation18 + $0x1e8] sm:$0xff]
    %v7128 = vld [vmem:[#allocation18 + $0x1f0] sm:$0xff]
    %v7129 = vld [vmem:[#allocation18 + $0x1f8] sm:$0xff]
    %v7130 = vld [vmem:[#allocation18 + $0x200] sm:$0xff]
    %v7131 = vld [vmem:[#allocation18 + $0x208] sm:$0xff]
    %v7132 = vld [vmem:[#allocation18 + $0x210] sm:$0xff]
    %v7133 = vld [vmem:[#allocation18 + $0x218] sm:$0xff]
    %v7134 = vld [vmem:[#allocation18 + $0x220] sm:$0xff]
    %v7135 = vld [vmem:[#allocation18 + $0x228] sm:$0xff]
    %v7136 = vld [vmem:[#allocation18 + $0x230] sm:$0xff]
    %v7137 = vld [vmem:[#allocation18 + $0x238] sm:$0xff]
    %v7138 = vld [vmem:[#allocation18 + $0x240] sm:$0xff]
    %v7139 = vld [vmem:[#allocation18 + $0x248] sm:$0xff]
    %v7140 = vld [vmem:[#allocation18 + $0x250] sm:$0xff]
    %v7141 = vld [vmem:[#allocation18 + $0x258] sm:$0xff]
    %v7142 = vld [vmem:[#allocation18 + $0x260] sm:$0xff]
    %v7143 = vld [vmem:[#allocation18 + $0x268] sm:$0xff]
    %v7144 = vld [vmem:[#allocation18 + $0x270] sm:$0xff]
    %v7145 = vld [vmem:[#allocation18 + $0x278] sm:$0xff]
    %v7146 = vld [vmem:[#allocation18 + $0x280] sm:$0xff]
    %v7147 = vld [vmem:[#allocation18 + $0x288] sm:$0xff]
    %v7148 = vld [vmem:[#allocation18 + $0x290] sm:$0xff]
    %v7149 = vld [vmem:[#allocation18 + $0x298] sm:$0xff]
    %v7150 = vld [vmem:[#allocation18 + $0x2a0] sm:$0xff]
    %v7151 = vld [vmem:[#allocation18 + $0x2a8] sm:$0xff]
    %v7152 = vld [vmem:[#allocation18 + $0x2b0] sm:$0xff]
    %v7153 = vld [vmem:[#allocation18 + $0x2b8] sm:$0xff]
    %v7154 = vld [vmem:[#allocation18 + $0x2c0] sm:$0xff]
    %v7155 = vld [vmem:[#allocation18 + $0x2c8] sm:$0xff]
    %v7156 = vld [vmem:[#allocation18 + $0x2d0] sm:$0xff]
    %v7157 = vld [vmem:[#allocation18 + $0x2d8] sm:$0xff]
    %v7158 = vld [vmem:[#allocation18 + $0x2e0] sm:$0xff]
    %v7159 = vld [vmem:[#allocation18 + $0x2e8] sm:$0xff]
    %v7160 = vld [vmem:[#allocation18 + $0x2f0] sm:$0xff]
    %v7161 = vld [vmem:[#allocation18 + $0x2f8] sm:$0xff]
    %v7162 = vld [vmem:[#allocation18 + $0x300] sm:$0xff]
    %v7163 = vld [vmem:[#allocation18 + $0x308] sm:$0xff]
    %v7164 = vld [vmem:[#allocation18 + $0x310] sm:$0xff]
    %v7165 = vld [vmem:[#allocation18 + $0x318] sm:$0xff]
    %v7166 = vld [vmem:[#allocation18 + $0x320] sm:$0xff]
    %v7167 = vld [vmem:[#allocation18 + $0x328] sm:$0xff]
    %v7168 = vld [vmem:[#allocation18 + $0x330] sm:$0xff]
    %v7169 = vld [vmem:[#allocation18 + $0x338] sm:$0xff]
    %v7170 = vld [vmem:[#allocation18 + $0x340] sm:$0xff]
    %v7171 = vld [vmem:[#allocation18 + $0x348] sm:$0xff]
    %v7172 = vld [vmem:[#allocation18 + $0x350] sm:$0xff]
    %v7173 = vld [vmem:[#allocation18 + $0x358] sm:$0xff]
    %v7174 = vld [vmem:[#allocation18 + $0x360] sm:$0xff]
    %v7175 = vld [vmem:[#allocation18 + $0x368] sm:$0xff]
    %v7176 = vld [vmem:[#allocation18 + $0x370] sm:$0xff]
    %v7177 = vld [vmem:[#allocation18 + $0x378] sm:$0xff]
    %v7178 = vld [vmem:[#allocation18 + $0x380] sm:$0xff]
    %v7179 = vld [vmem:[#allocation18 + $0x388] sm:$0xff]
    %v7180 = vld [vmem:[#allocation18 + $0x390] sm:$0xff]
    %v7181 = vld [vmem:[#allocation18 + $0x398] sm:$0xff]
    %v7182 = vld [vmem:[#allocation18 + $0x3a0] sm:$0xff]
    %v7183 = vld [vmem:[#allocation18 + $0x3a8] sm:$0xff]
    %v7184 = vld [vmem:[#allocation18 + $0x3b0] sm:$0xff]
    %v7185 = vld [vmem:[#allocation18 + $0x3b8] sm:$0xff]
    %v7186 = vld [vmem:[#allocation18 + $0x3c0] sm:$0xff]
    %v7187 = vld [vmem:[#allocation18 + $0x3c8] sm:$0xff]
    %v7188 = vld [vmem:[#allocation18 + $0x3d0] sm:$0xff]
    %v7189 = vld [vmem:[#allocation18 + $0x3d8] sm:$0xff]
    %v7190 = vld [vmem:[#allocation18 + $0x3e0] sm:$0xff]
    %v7191 = vld [vmem:[#allocation18 + $0x3e8] sm:$0xff]
    %v7192 = vld [vmem:[#allocation18 + $0x3f0] sm:$0xff]
    %v7193 = vld [vmem:[#allocation18 + $0x3f8] sm:$0xff]
    %v7194 = vld [vmem:[%s17] sm:$0xf]
    %v7196 = vlaneseq
    %v7197 = vshrl.u32 %v7196, 7
    %v7198 = vsub.s32 0, %v7197
    %v7199 = vrot.slane %v7194, %v7198
    %v7200 = vlaneseq
    %v7201 = vshrl.u32 %v7200, 7
    %v7202 = vsub.s32 1, %v7201
    %v7203 = vrot.slane %v7194, %v7202
    %v7204 = vlaneseq
    %v7205 = vshrl.u32 %v7204, 7
    %v7206 = vsub.s32 2, %v7205
    %v7207 = vrot.slane %v7194, %v7206
    %v7208 = vlaneseq
    %v7209 = vshrl.u32 %v7208, 7
    %v7210 = vsub.s32 3, %v7209
    %v7211 = vrot.slane %v7194, %v7210
    %7216 = vmatprep.subr.mxu0 %v7067
    %7217 = vmatpush1.msra.mxu0 %v7066
    %7218 = vmatprep.subr.mxu0 %v7071
    %7219 = vmatpush1.msra.mxu0 %v7070
    %7220 = vmatprep.subr.mxu0 %v7075
    %7221 = vmatpush1.msra.mxu0 %v7074
    %7222 = vmatprep.subr.mxu0 %v7079
    %7223 = vmatpush1.msra.mxu0 %v7078
    %7224 = vmatprep.subr.mxu0 %v7083
    %7225 = vmatpush1.msra.mxu0 %v7082
    %7226 = vmatprep.subr.mxu0 %v7087
    %7227 = vmatpush1.msra.mxu0 %v7086
    %7228 = vmatprep.subr.mxu0 %v7091
    %7229 = vmatpush1.msra.mxu0 %v7090
    %7230 = vmatprep.subr.mxu0 %v7095
    %7231 = vmatpush1.msra.mxu0 %v7094
    %7232 = vmatprep.subr.mxu0 %v7099
    %7233 = vmatpush1.msra.mxu0 %v7098
    %7234 = vmatprep.subr.mxu0 %v7103
    %7235 = vmatpush1.msra.mxu0 %v7102
    %7236 = vmatprep.subr.mxu0 %v7107
    %7237 = vmatpush1.msra.mxu0 %v7106
    %7238 = vmatprep.subr.mxu0 %v7111
    %7239 = vmatpush1.msra.mxu0 %v7110
    %7240 = vmatprep.subr.mxu0 %v7115
    %7241 = vmatpush1.msra.mxu0 %v7114
    %7242 = vmatprep.subr.mxu0 %v7119
    %7243 = vmatpush1.msra.mxu0 %v7118
    %7244 = vmatprep.subr.mxu0 %v7123
    %7245 = vmatpush1.msra.mxu0 %v7122
    %7246 = vmatprep.subr.mxu0 %v7127
    %7247 = vmatpush1.msra.mxu0 %v7126
    %7248 = vmatprep.subr.mxu0 %v7131
    %7249 = vmatpush1.msra.mxu0 %v7130
    %7250 = vmatprep.subr.mxu0 %v7135
    %7251 = vmatpush1.msra.mxu0 %v7134
    %7252 = vmatprep.subr.mxu0 %v7139
    %7253 = vmatpush1.msra.mxu0 %v7138
    %7254 = vmatprep.subr.mxu0 %v7143
    %7255 = vmatpush1.msra.mxu0 %v7142
    %7256 = vmatprep.subr.mxu0 %v7147
    %7257 = vmatpush1.msra.mxu0 %v7146
    %7258 = vmatprep.subr.mxu0 %v7151
    %7259 = vmatpush1.msra.mxu0 %v7150
    %7260 = vmatprep.subr.mxu0 %v7155
    %7261 = vmatpush1.msra.mxu0 %v7154
    %7262 = vmatprep.subr.mxu0 %v7159
    %7263 = vmatpush1.msra.mxu0 %v7158
    %7264 = vmatprep.subr.mxu0 %v7163
    %7265 = vmatpush1.msra.mxu0 %v7162
    %7266 = vmatprep.subr.mxu0 %v7167
    %7267 = vmatpush1.msra.mxu0 %v7166
    %7268 = vmatprep.subr.mxu0 %v7171
    %7269 = vmatpush1.msra.mxu0 %v7170
    %7270 = vmatprep.subr.mxu0 %v7175
    %7271 = vmatpush1.msra.mxu0 %v7174
    %7272 = vmatprep.subr.mxu0 %v7179
    %7273 = vmatpush1.msra.mxu0 %v7178
    %7274 = vmatprep.subr.mxu0 %v7183
    %7275 = vmatpush1.msra.mxu0 %v7182
    %7276 = vmatprep.subr.mxu0 %v7187
    %7277 = vmatpush1.msra.mxu0 %v7186
    %7278 = vmatprep.subr.mxu0 %v7191
    %7279 = vmatpush1.msra.mxu0 %v7190
    %7280 = vmatprep.mubr.f32.mxu0 %v7065
    %7281 = vmatmul.mubr.f32.gmra.mrb[0].mxu0 %v7064
    %v7282 = vpop.f32.mrb[0].mxu0
    %v7283 = vadd.f32 %v7199, %v7282
    %v7284 = vpop.f32.mrb[0].mxu0
    %v7285 = vadd.f32 %v7203, %v7284
    %7286 = vdwg.mxu0
    %7287 = vmatprep.subr.mxu0 %v7069
    %7288 = vmatpush1.msra.mxu0 %v7068
    %7289 = vmatprep.subr.mxu0 %v7073
    %7290 = vmatpush1.msra.mxu0 %v7072
    %7291 = vmatprep.subr.mxu0 %v7077
    %7292 = vmatpush1.msra.mxu0 %v7076
    %7293 = vmatprep.subr.mxu0 %v7081
    %7294 = vmatpush1.msra.mxu0 %v7080
    %7295 = vmatprep.subr.mxu0 %v7085
    %7296 = vmatpush1.msra.mxu0 %v7084
    %7297 = vmatprep.subr.mxu0 %v7089
    %7298 = vmatpush1.msra.mxu0 %v7088
    %7299 = vmatprep.subr.mxu0 %v7093
    %7300 = vmatpush1.msra.mxu0 %v7092
    %7301 = vmatprep.subr.mxu0 %v7097
    %7302 = vmatpush1.msra.mxu0 %v7096
    %7303 = vmatprep.subr.mxu0 %v7101
    %7304 = vmatpush1.msra.mxu0 %v7100
    %7305 = vmatprep.subr.mxu0 %v7105
    %7306 = vmatpush1.msra.mxu0 %v7104
    %7307 = vmatprep.subr.mxu0 %v7109
    %7308 = vmatpush1.msra.mxu0 %v7108
    %7309 = vmatprep.subr.mxu0 %v7113
    %7310 = vmatpush1.msra.mxu0 %v7112
    %7311 = vmatprep.subr.mxu0 %v7117
    %7312 = vmatpush1.msra.mxu0 %v7116
    %7313 = vmatprep.subr.mxu0 %v7121
    %7314 = vmatpush1.msra.mxu0 %v7120
    %7315 = vmatprep.subr.mxu0 %v7125
    %7316 = vmatpush1.msra.mxu0 %v7124
    %7317 = vmatprep.subr.mxu0 %v7129
    %7318 = vmatpush1.msra.mxu0 %v7128
    %7319 = vmatprep.subr.mxu0 %v7133
    %7320 = vmatpush1.msra.mxu0 %v7132
    %7321 = vmatprep.subr.mxu0 %v7137
    %7322 = vmatpush1.msra.mxu0 %v7136
    %7323 = vmatprep.subr.mxu0 %v7141
    %7324 = vmatpush1.msra.mxu0 %v7140
    %7325 = vmatprep.subr.mxu0 %v7145
    %7326 = vmatpush1.msra.mxu0 %v7144
    %7327 = vmatprep.subr.mxu0 %v7149
    %7328 = vmatpush1.msra.mxu0 %v7148
    %7329 = vmatprep.subr.mxu0 %v7153
    %7330 = vmatpush1.msra.mxu0 %v7152
    %7331 = vmatprep.subr.mxu0 %v7157
    %7332 = vmatpush1.msra.mxu0 %v7156
    %7333 = vmatprep.subr.mxu0 %v7161
    %7334 = vmatpush1.msra.mxu0 %v7160
    %7335 = vmatprep.subr.mxu0 %v7165
    %7336 = vmatpush1.msra.mxu0 %v7164
    %7337 = vmatprep.subr.mxu0 %v7169
    %7338 = vmatpush1.msra.mxu0 %v7168
    %7339 = vmatprep.subr.mxu0 %v7173
    %7340 = vmatpush1.msra.mxu0 %v7172
    %7341 = vmatprep.subr.mxu0 %v7177
    %7342 = vmatpush1.msra.mxu0 %v7176
    %7343 = vmatprep.subr.mxu0 %v7181
    %7344 = vmatpush1.msra.mxu0 %v7180
    %7345 = vmatprep.subr.mxu0 %v7185
    %7346 = vmatpush1.msra.mxu0 %v7184
    %7347 = vmatprep.subr.mxu0 %v7189
    %7348 = vmatpush1.msra.mxu0 %v7188
    %7349 = vmatprep.subr.mxu0 %v7193
    %7350 = vmatpush1.msra.mxu0 %v7192
    %7351 = vmatprep.mubr.f32.mxu0 %v7065
    %7352 = vmatmul.mubr.f32.gmra.mrb[0].mxu0 %v7064
    %v7353 = vpop.f32.mrb[0].mxu0
    %v7354 = vadd.f32 %v7207, %v7353
    %v7355 = vpop.f32.mrb[0].mxu0
    %v7356 = vadd.f32 %v7211, %v7355
    %7357 = vdwg.mxu0
    %v7358 = vld [vmem:[#allocation19] sm:$0xff]
    %v7359 = vld [vmem:[#allocation19 + $0x8] sm:$0xff]
    %v7360 = vld [vmem:[#allocation19 + $0x10] sm:$0xff]
    %v7361 = vld [vmem:[#allocation19 + $0x18] sm:$0xff]
    %v7362 = vld [vmem:[#allocation19 + $0x20] sm:$0xff]
    %v7363 = vld [vmem:[#allocation19 + $0x28] sm:$0xff]
    %v7364 = vld [vmem:[#allocation19 + $0x30] sm:$0xff]
    %v7365 = vld [vmem:[#allocation19 + $0x38] sm:$0xff]
    %v7366 = vld [vmem:[#allocation19 + $0x40] sm:$0xff]
    %v7367 = vld [vmem:[#allocation19 + $0x48] sm:$0xff]
    %v7368 = vld [vmem:[#allocation19 + $0x50] sm:$0xff]
    %v7369 = vld [vmem:[#allocation19 + $0x58] sm:$0xff]
    %v7370 = vld [vmem:[#allocation19 + $0x60] sm:$0xff]
    %v7371 = vld [vmem:[#allocation19 + $0x68] sm:$0xff]
    %v7372 = vld [vmem:[#allocation19 + $0x70] sm:$0xff]
    %v7373 = vld [vmem:[#allocation19 + $0x78] sm:$0xff]
    %v7374 = vld [vmem:[#allocation19 + $0x80] sm:$0xff]
    %v7375 = vld [vmem:[#allocation19 + $0x88] sm:$0xff]
    %v7376 = vld [vmem:[#allocation19 + $0x90] sm:$0xff]
    %v7377 = vld [vmem:[#allocation19 + $0x98] sm:$0xff]
    %v7378 = vld [vmem:[#allocation19 + $0xa0] sm:$0xff]
    %v7379 = vld [vmem:[#allocation19 + $0xa8] sm:$0xff]
    %v7380 = vld [vmem:[#allocation19 + $0xb0] sm:$0xff]
    %v7381 = vld [vmem:[#allocation19 + $0xb8] sm:$0xff]
    %v7382 = vld [vmem:[#allocation19 + $0xc0] sm:$0xff]
    %v7383 = vld [vmem:[#allocation19 + $0xc8] sm:$0xff]
    %v7384 = vld [vmem:[#allocation19 + $0xd0] sm:$0xff]
    %v7385 = vld [vmem:[#allocation19 + $0xd8] sm:$0xff]
    %v7386 = vld [vmem:[#allocation19 + $0xe0] sm:$0xff]
    %v7387 = vld [vmem:[#allocation19 + $0xe8] sm:$0xff]
    %v7388 = vld [vmem:[#allocation19 + $0xf0] sm:$0xff]
    %v7389 = vld [vmem:[#allocation19 + $0xf8] sm:$0xff]
    %v7390 = vld [vmem:[#allocation19 + $0x100] sm:$0xff]
    %v7391 = vld [vmem:[#allocation19 + $0x108] sm:$0xff]
    %v7392 = vld [vmem:[#allocation19 + $0x110] sm:$0xff]
    %v7393 = vld [vmem:[#allocation19 + $0x118] sm:$0xff]
    %v7394 = vld [vmem:[#allocation19 + $0x120] sm:$0xff]
    %v7395 = vld [vmem:[#allocation19 + $0x128] sm:$0xff]
    %v7396 = vld [vmem:[#allocation19 + $0x130] sm:$0xff]
    %v7397 = vld [vmem:[#allocation19 + $0x138] sm:$0xff]
    %v7398 = vld [vmem:[#allocation19 + $0x140] sm:$0xff]
    %v7399 = vld [vmem:[#allocation19 + $0x148] sm:$0xff]
    %v7400 = vld [vmem:[#allocation19 + $0x150] sm:$0xff]
    %v7401 = vld [vmem:[#allocation19 + $0x158] sm:$0xff]
    %v7402 = vld [vmem:[#allocation19 + $0x160] sm:$0xff]
    %v7403 = vld [vmem:[#allocation19 + $0x168] sm:$0xff]
    %v7404 = vld [vmem:[#allocation19 + $0x170] sm:$0xff]
    %v7405 = vld [vmem:[#allocation19 + $0x178] sm:$0xff]
    %v7406 = vld [vmem:[#allocation19 + $0x180] sm:$0xff]
    %v7407 = vld [vmem:[#allocation19 + $0x188] sm:$0xff]
    %v7408 = vld [vmem:[#allocation19 + $0x190] sm:$0xff]
    %v7409 = vld [vmem:[#allocation19 + $0x198] sm:$0xff]
    %v7410 = vld [vmem:[#allocation19 + $0x1a0] sm:$0xff]
    %v7411 = vld [vmem:[#allocation19 + $0x1a8] sm:$0xff]
    %v7412 = vld [vmem:[#allocation19 + $0x1b0] sm:$0xff]
    %v7413 = vld [vmem:[#allocation19 + $0x1b8] sm:$0xff]
    %v7414 = vld [vmem:[#allocation19 + $0x1c0] sm:$0xff]
    %v7415 = vld [vmem:[#allocation19 + $0x1c8] sm:$0xff]
    %v7416 = vld [vmem:[#allocation19 + $0x1d0] sm:$0xff]
    %v7417 = vld [vmem:[#allocation19 + $0x1d8] sm:$0xff]
    %v7418 = vld [vmem:[#allocation19 + $0x1e0] sm:$0xff]
    %v7419 = vld [vmem:[#allocation19 + $0x1e8] sm:$0xff]
    %v7420 = vld [vmem:[#allocation19 + $0x1f0] sm:$0xff]
    %v7421 = vld [vmem:[#allocation19 + $0x1f8] sm:$0xff]
    %7422 = vmatprep.subr.mxu0 %v7359
    %7423 = vmatpush1.msra.mxu0 %v7358
    %7424 = vmatprep.subr.mxu0 %v7363
    %7425 = vmatpush1.msra.mxu0 %v7362
    %7426 = vmatprep.subr.mxu0 %v7367
    %7427 = vmatpush1.msra.mxu0 %v7366
    %7428 = vmatprep.subr.mxu0 %v7371
    %7429 = vmatpush1.msra.mxu0 %v7370
    %7430 = vmatprep.subr.mxu0 %v7375
    %7431 = vmatpush1.msra.mxu0 %v7374
    %7432 = vmatprep.subr.mxu0 %v7379
    %7433 = vmatpush1.msra.mxu0 %v7378
    %7434 = vmatprep.subr.mxu0 %v7383
    %7435 = vmatpush1.msra.mxu0 %v7382
    %7436 = vmatprep.subr.mxu0 %v7387
    %7437 = vmatpush1.msra.mxu0 %v7386
    %7438 = vmatprep.subr.mxu0 %v7391
    %7439 = vmatpush1.msra.mxu0 %v7390
    %7440 = vmatprep.subr.mxu0 %v7395
    %7441 = vmatpush1.msra.mxu0 %v7394
    %7442 = vmatprep.subr.mxu0 %v7399
    %7443 = vmatpush1.msra.mxu0 %v7398
    %7444 = vmatprep.subr.mxu0 %v7403
    %7445 = vmatpush1.msra.mxu0 %v7402
    %7446 = vmatprep.subr.mxu0 %v7407
    %7447 = vmatpush1.msra.mxu0 %v7406
    %7448 = vmatprep.subr.mxu0 %v7411
    %7449 = vmatpush1.msra.mxu0 %v7410
    %7450 = vmatprep.subr.mxu0 %v7415
    %7451 = vmatpush1.msra.mxu0 %v7414
    %7452 = vmatprep.subr.mxu0 %v7419
    %7453 = vmatpush1.msra.mxu0 %v7418
    %7454 = vmatprep.subr.mxu0 0.0
    %7455 = vmatpush1.msra.mxu0 0.0
    %7456 = vmatprep.subr.mxu0 0.0
    %7457 = vmatpush1.msra.mxu0 0.0
    %7458 = vmatprep.subr.mxu0 0.0
    %7459 = vmatpush1.msra.mxu0 0.0
    %7460 = vmatprep.subr.mxu0 0.0
    %7461 = vmatpush1.msra.mxu0 0.0
    %7462 = vmatprep.subr.mxu0 0.0
    %7463 = vmatpush1.msra.mxu0 0.0
    %7464 = vmatprep.subr.mxu0 0.0
    %7465 = vmatpush1.msra.mxu0 0.0
    %7466 = vmatprep.subr.mxu0 0.0
    %7467 = vmatpush1.msra.mxu0 0.0
    %7468 = vmatprep.subr.mxu0 0.0
    %7469 = vmatpush1.msra.mxu0 0.0
    %7470 = vmatprep.subr.mxu0 0.0
    %7471 = vmatpush1.msra.mxu0 0.0
    %7472 = vmatprep.subr.mxu0 0.0
    %7473 = vmatpush1.msra.mxu0 0.0
    %7474 = vmatprep.subr.mxu0 0.0
    %7475 = vmatpush1.msra.mxu0 0.0
    %7476 = vmatprep.subr.mxu0 0.0
    %7477 = vmatpush1.msra.mxu0 0.0
    %7478 = vmatprep.subr.mxu0 0.0
    %7479 = vmatpush1.msra.mxu0 0.0
    %7480 = vmatprep.subr.mxu0 0.0
    %7481 = vmatpush1.msra.mxu0 0.0
    %7482 = vmatprep.subr.mxu0 0.0
    %7483 = vmatpush1.msra.mxu0 0.0
    %7484 = vmatprep.subr.mxu0 0.0
    %7485 = vmatpush1.msra.mxu0 0.0
    %7486 = vmatprep.mubr.f32.mxu0 0.0
    %7487 = vmatmul.mubr.f32.gmra.mrb[0].mxu0 0.0
    %v7488 = vpop.f32.mrb[0].mxu0
    %v7489 = vadd.f32 %v7283, %v7488
    %v7490 = vpop.f32.mrb[0].mxu0
    %v7491 = vadd.f32 %v7285, %v7490
    %7492 = vdwg.mxu0
    %7493 = vmatprep.subr.mxu0 %v7361
    %7494 = vmatpush1.msra.mxu0 %v7360
    %7495 = vmatprep.subr.mxu0 %v7365
    %7496 = vmatpush1.msra.mxu0 %v7364
    %7497 = vmatprep.subr.mxu0 %v7369
    %7498 = vmatpush1.msra.mxu0 %v7368
    %7499 = vmatprep.subr.mxu0 %v7373
    %7500 = vmatpush1.msra.mxu0 %v7372
    %7501 = vmatprep.subr.mxu0 %v7377
    %7502 = vmatpush1.msra.mxu0 %v7376
    %7503 = vmatprep.subr.mxu0 %v7381
    %7504 = vmatpush1.msra.mxu0 %v7380
    %7505 = vmatprep.subr.mxu0 %v7385
    %7506 = vmatpush1.msra.mxu0 %v7384
    %7507 = vmatprep.subr.mxu0 %v7389
    %7508 = vmatpush1.msra.mxu0 %v7388
    %7509 = vmatprep.subr.mxu0 %v7393
    %7510 = vmatpush1.msra.mxu0 %v7392
    %7511 = vmatprep.subr.mxu0 %v7397
    %7512 = vmatpush1.msra.mxu0 %v7396
    %7513 = vmatprep.subr.mxu0 %v7401
    %7514 = vmatpush1.msra.mxu0 %v7400
    %7515 = vmatprep.subr.mxu0 %v7405
    %7516 = vmatpush1.msra.mxu0 %v7404
    %7517 = vmatprep.subr.mxu0 %v7409
    %7518 = vmatpush1.msra.mxu0 %v7408
    %7519 = vmatprep.subr.mxu0 %v7413
    %7520 = vmatpush1.msra.mxu0 %v7412
    %7521 = vmatprep.subr.mxu0 %v7417
    %7522 = vmatpush1.msra.mxu0 %v7416
    %7523 = vmatprep.subr.mxu0 %v7421
    %7524 = vmatpush1.msra.mxu0 %v7420
    %7525 = vmatprep.subr.mxu0 0.0
    %7526 = vmatpush1.msra.mxu0 0.0
    %7527 = vmatprep.subr.mxu0 0.0
    %7528 = vmatpush1.msra.mxu0 0.0
    %7529 = vmatprep.subr.mxu0 0.0
    %7530 = vmatpush1.msra.mxu0 0.0
    %7531 = vmatprep.subr.mxu0 0.0
    %7532 = vmatpush1.msra.mxu0 0.0
    %7533 = vmatprep.subr.mxu0 0.0
    %7534 = vmatpush1.msra.mxu0 0.0
    %7535 = vmatprep.subr.mxu0 0.0
    %7536 = vmatpush1.msra.mxu0 0.0
    %7537 = vmatprep.subr.mxu0 0.0
    %7538 = vmatpush1.msra.mxu0 0.0
    %7539 = vmatprep.subr.mxu0 0.0
    %7540 = vmatpush1.msra.mxu0 0.0
    %7541 = vmatprep.subr.mxu0 0.0
    %7542 = vmatpush1.msra.mxu0 0.0
    %7543 = vmatprep.subr.mxu0 0.0
    %7544 = vmatpush1.msra.mxu0 0.0
    %7545 = vmatprep.subr.mxu0 0.0
    %7546 = vmatpush1.msra.mxu0 0.0
    %7547 = vmatprep.subr.mxu0 0.0
    %7548 = vmatpush1.msra.mxu0 0.0
    %7549 = vmatprep.subr.mxu0 0.0
    %7550 = vmatpush1.msra.mxu0 0.0
    %7551 = vmatprep.subr.mxu0 0.0
    %7552 = vmatpush1.msra.mxu0 0.0
    %7553 = vmatprep.subr.mxu0 0.0
    %7554 = vmatpush1.msra.mxu0 0.0
    %7555 = vmatprep.subr.mxu0 0.0
    %7556 = vmatpush1.msra.mxu0 0.0
    %7557 = vmatprep.mubr.f32.mxu0 0.0
    %7558 = vmatmul.mubr.f32.gmra.mrb[0].mxu0 0.0
    %v7559 = vpop.f32.mrb[0].mxu0
    %v7560 = vadd.f32 %v7354, %v7559
    %v7561 = vpop.f32.mrb[0].mxu0
    %v7562 = vadd.f32 %v7356, %v7561
    %7563 = vdwg.mxu0
    %v7564 = vxor.u32 %v7489, 2147483648
    %v7565 = vmul.f32 %v7564, 1.442695
    %v7566 = vpow.pop %v7565
    %v7567 = vadd.f32 %v7566, 1.0
    %v7568 = vrcp.pop %v7567
    %v7569 = vmul.f32 1.0, %v7568
    %v7570 = vxor.u32 %v7491, 2147483648
    %v7571 = vmul.f32 %v7570, 1.442695
    %v7572 = vpow.pop %v7571
    %v7573 = vadd.f32 %v7572, 1.0
    %v7574 = vrcp.pop %v7573
    %v7575 = vmul.f32 1.0, %v7574
    %v7576 = vtanh.pop %v7560
    %v7577 = vxor.u32 %v7562, 2147483648
    %v7578 = vmul.f32 %v7577, 1.442695
    %v7579 = vpow.pop %v7578
    %v7580 = vadd.f32 %v7579, 1.0
    %v7581 = vrcp.pop %v7580
    %v7582 = vmul.f32 1.0, %v7581
    %v7583 = vmul.f32 %v7575, 0.0
    %v7584 = vmul.f32 %v7569, %v7576
    %v7585 = vadd.f32 %v7583, %v7584
    %v7586 = vtanh.pop %v7585
    %v7587 = vmul.f32 %v7582, %v7586
    %v7592 = vrot.slane %v7283, 1
    %v7593 = vrot.slane %v7285, 1
    %v7594 = vrot.slane %v7354, 1
    %v7595 = vrot.slane %v7356, 1
    %7600 = vmatprep.subr.mxu0 %v7359
    %7601 = vmatpush1.msra.mxu0 %v7358
    %7602 = vmatprep.subr.mxu0 %v7363
    %7603 = vmatpush1.msra.mxu0 %v7362
    %7604 = vmatprep.subr.mxu0 %v7367
    %7605 = vmatpush1.msra.mxu0 %v7366
    %7606 = vmatprep.subr.mxu0 %v7371
    %7607 = vmatpush1.msra.mxu0 %v7370
    %7608 = vmatprep.subr.mxu0 %v7375
    %7609 = vmatpush1.msra.mxu0 %v7374
    %7610 = vmatprep.subr.mxu0 %v7379
    %7611 = vmatpush1.msra.mxu0 %v7378
    %7612 = vmatprep.subr.mxu0 %v7383
    %7613 = vmatpush1.msra.mxu0 %v7382
    %7614 = vmatprep.subr.mxu0 %v7387
    %7615 = vmatpush1.msra.mxu0 %v7386
    %7616 = vmatprep.subr.mxu0 %v7391
    %7617 = vmatpush1.msra.mxu0 %v7390
    %7618 = vmatprep.subr.mxu0 %v7395
    %7619 = vmatpush1.msra.mxu0 %v7394
    %7620 = vmatprep.subr.mxu0 %v7399
    %7621 = vmatpush1.msra.mxu0 %v7398
    %7622 = vmatprep.subr.mxu0 %v7403
    %7623 = vmatpush1.msra.mxu0 %v7402
    %7624 = vmatprep.subr.mxu0 %v7407
    %7625 = vmatpush1.msra.mxu0 %v7406
    %7626 = vmatprep.subr.mxu0 %v7411
    %7627 = vmatpush1.msra.mxu0 %v7410
    %7628 = vmatprep.subr.mxu0 %v7415
    %7629 = vmatpush1.msra.mxu0 %v7414
    %7630 = vmatprep.subr.mxu0 %v7419
    %7631 = vmatpush1.msra.mxu0 %v7418
    %7632 = vmatprep.subr.mxu0 0.0
    %7633 = vmatpush1.msra.mxu0 0.0
    %7634 = vmatprep.subr.mxu0 0.0
    %7635 = vmatpush1.msra.mxu0 0.0
    %7636 = vmatprep.subr.mxu0 0.0
    %7637 = vmatpush1.msra.mxu0 0.0
    %7638 = vmatprep.subr.mxu0 0.0
    %7639 = vmatpush1.msra.mxu0 0.0
    %7640 = vmatprep.subr.mxu0 0.0
    %7641 = vmatpush1.msra.mxu0 0.0
    %7642 = vmatprep.subr.mxu0 0.0
    %7643 = vmatpush1.msra.mxu0 0.0
    %7644 = vmatprep.subr.mxu0 0.0
    %7645 = vmatpush1.msra.mxu0 0.0
    %7646 = vmatprep.subr.mxu0 0.0
    %7647 = vmatpush1.msra.mxu0 0.0
    %7648 = vmatprep.subr.mxu0 0.0
    %7649 = vmatpush1.msra.mxu0 0.0
    %7650 = vmatprep.subr.mxu0 0.0
    %7651 = vmatpush1.msra.mxu0 0.0
    %7652 = vmatprep.subr.mxu0 0.0
    %7653 = vmatpush1.msra.mxu0 0.0
    %7654 = vmatprep.subr.mxu0 0.0
    %7655 = vmatpush1.msra.mxu0 0.0
    %7656 = vmatprep.subr.mxu0 0.0
    %7657 = vmatpush1.msra.mxu0 0.0
    %7658 = vmatprep.subr.mxu0 0.0
    %7659 = vmatpush1.msra.mxu0 0.0
    %7660 = vmatprep.subr.mxu0 0.0
    %7661 = vmatpush1.msra.mxu0 0.0
    %7662 = vmatprep.subr.mxu0 0.0
    %7663 = vmatpush1.msra.mxu0 0.0
    %7664 = vmatprep.mubr.f32.mxu0 0.0
    %7665 = vmatmul.mubr.f32.gmra.mrb[0].mxu0 %v7587
    %v7666 = vpop.f32.mrb[0].mxu0
    %v7667 = vadd.f32 %v7592, %v7666
    %v7668 = vpop.f32.mrb[0].mxu0
    %v7669 = vadd.f32 %v7593, %v7668
    %7670 = vdwg.mxu0
    %7671 = vmatprep.subr.mxu0 %v7361
    %7672 = vmatpush1.msra.mxu0 %v7360
    %7673 = vmatprep.subr.mxu0 %v7365
    %7674 = vmatpush1.msra.mxu0 %v7364
    %7675 = vmatprep.subr.mxu0 %v7369
    %7676 = vmatpush1.msra.mxu0 %v7368
    %7677 = vmatprep.subr.mxu0 %v7373
    %7678 = vmatpush1.msra.mxu0 %v7372
    %7679 = vmatprep.subr.mxu0 %v7377
    %7680 = vmatpush1.msra.mxu0 %v7376
    %7681 = vmatprep.subr.mxu0 %v7381
    %7682 = vmatpush1.msra.mxu0 %v7380
    %7683 = vmatprep.subr.mxu0 %v7385
    %7684 = vmatpush1.msra.mxu0 %v7384
    %7685 = vmatprep.subr.mxu0 %v7389
    %7686 = vmatpush1.msra.mxu0 %v7388
    %7687 = vmatprep.subr.mxu0 %v7393
    %7688 = vmatpush1.msra.mxu0 %v7392
    %7689 = vmatprep.subr.mxu0 %v7397
    %7690 = vmatpush1.msra.mxu0 %v7396
    %7691 = vmatprep.subr.mxu0 %v7401
    %7692 = vmatpush1.msra.mxu0 %v7400
    %7693 = vmatprep.subr.mxu0 %v7405
    %7694 = vmatpush1.msra.mxu0 %v7404
    %7695 = vmatprep.subr.mxu0 %v7409
    %7696 = vmatpush1.msra.mxu0 %v7408
    %7697 = vmatprep.subr.mxu0 %v7413
    %7698 = vmatpush1.msra.mxu0 %v7412
    %7699 = vmatprep.subr.mxu0 %v7417
    %7700 = vmatpush1.msra.mxu0 %v7416
    %7701 = vmatprep.subr.mxu0 %v7421
    %7702 = vmatpush1.msra.mxu0 %v7420
    %7703 = vmatprep.subr.mxu0 0.0
    %7704 = vmatpush1.msra.mxu0 0.0
    %7705 = vmatprep.subr.mxu0 0.0
    %7706 = vmatpush1.msra.mxu0 0.0
    %7707 = vmatprep.subr.mxu0 0.0
    %7708 = vmatpush1.msra.mxu0 0.0
    %7709 = vmatprep.subr.mxu0 0.0
    %7710 = vmatpush1.msra.mxu0 0.0
    %7711 = vmatprep.subr.mxu0 0.0
    %7712 = vmatpush1.msra.mxu0 0.0
    %7713 = vmatprep.subr.mxu0 0.0
    %7714 = vmatpush1.msra.mxu0 0.0
    %7715 = vmatprep.subr.mxu0 0.0
    %7716 = vmatpush1.msra.mxu0 0.0
    %7717 = vmatprep.subr.mxu0 0.0
    %7718 = vmatpush1.msra.mxu0 0.0
    %7719 = vmatprep.subr.mxu0 0.0
    %7720 = vmatpush1.msra.mxu0 0.0
    %7721 = vmatprep.subr.mxu0 0.0
    %7722 = vmatpush1.msra.mxu0 0.0
    %7723 = vmatprep.subr.mxu0 0.0
    %7724 = vmatpush1.msra.mxu0 0.0
    %7725 = vmatprep.subr.mxu0 0.0
    %7726 = vmatpush1.msra.mxu0 0.0
    %7727 = vmatprep.subr.mxu0 0.0
    %7728 = vmatpush1.msra.mxu0 0.0
    %7729 = vmatprep.subr.mxu0 0.0
    %7730 = vmatpush1.msra.mxu0 0.0
    %7731 = vmatprep.subr.mxu0 0.0
    %7732 = vmatpush1.msra.mxu0 0.0
    %7733 = vmatprep.subr.mxu0 0.0
    %7734 = vmatpush1.msra.mxu0 0.0
    %7735 = vmatprep.mubr.f32.mxu0 0.0
    %7736 = vmatmul.mubr.f32.gmra.mrb[0].mxu0 %v7587
    %v7737 = vpop.f32.mrb[0].mxu0
    %v7738 = vadd.f32 %v7594, %v7737
    %v7739 = vpop.f32.mrb[0].mxu0
    %v7740 = vadd.f32 %v7595, %v7739
    %7741 = vdwg.mxu0
    %v7742 = vxor.u32 %v7667, 2147483648
    %v7743 = vmul.f32 %v7742, 1.442695
    %v7744 = vpow.pop %v7743
    %v7745 = vadd.f32 %v7744, 1.0
    %v7746 = vrcp.pop %v7745
    %v7747 = vmul.f32 1.0, %v7746
    %v7748 = vxor.u32 %v7669, 2147483648
    %v7749 = vmul.f32 %v7748, 1.442695
    %v7750 = vpow.pop %v7749
    %v7751 = vadd.f32 %v7750, 1.0
    %v7752 = vrcp.pop %v7751
    %v7753 = vmul.f32 1.0, %v7752
    %v7754 = vtanh.pop %v7738
    %v7755 = vxor.u32 %v7740, 2147483648
    %v7756 = vmul.f32 %v7755, 1.442695
    %v7757 = vpow.pop %v7756
    %v7758 = vadd.f32 %v7757, 1.0
    %v7759 = vrcp.pop %v7758
    %v7760 = vmul.f32 1.0, %v7759
    %v7761 = vmul.f32 %v7753, %v7585
    %v7762 = vmul.f32 %v7747, %v7754
    %v7763 = vadd.f32 %v7761, %v7762
    %v7764 = vtanh.pop %v7763
    %v7765 = vmul.f32 %v7760, %v7764
    %v7766 = vrot.slane %v7283, 2
    %v7767 = vrot.slane %v7285, 2
    %v7768 = vrot.slane %v7354, 2
    %v7769 = vrot.slane %v7356, 2
    %7774 = vmatprep.subr.mxu0 %v7359
    %7775 = vmatpush1.msra.mxu0 %v7358
    %7776 = vmatprep.subr.mxu0 %v7363
    %7777 = vmatpush1.msra.mxu0 %v7362
    %7778 = vmatprep.subr.mxu0 %v7367
    %7779 = vmatpush1.msra.mxu0 %v7366
    %7780 = vmatprep.subr.mxu0 %v7371
    %7781 = vmatpush1.msra.mxu0 %v7370
    %7782 = vmatprep.subr.mxu0 %v7375
    %7783 = vmatpush1.msra.mxu0 %v7374
    %7784 = vmatprep.subr.mxu0 %v7379
    %7785 = vmatpush1.msra.mxu0 %v7378
    %7786 = vmatprep.subr.mxu0 %v7383
    %7787 = vmatpush1.msra.mxu0 %v7382
    %7788 = vmatprep.subr.mxu0 %v7387
    %7789 = vmatpush1.msra.mxu0 %v7386
    %7790 = vmatprep.subr.mxu0 %v7391
    %7791 = vmatpush1.msra.mxu0 %v7390
    %7792 = vmatprep.subr.mxu0 %v7395
    %7793 = vmatpush1.msra.mxu0 %v7394
    %7794 = vmatprep.subr.mxu0 %v7399
    %7795 = vmatpush1.msra.mxu0 %v7398
    %7796 = vmatprep.subr.mxu0 %v7403
    %7797 = vmatpush1.msra.mxu0 %v7402
    %7798 = vmatprep.subr.mxu0 %v7407
    %7799 = vmatpush1.msra.mxu0 %v7406
    %7800 = vmatprep.subr.mxu0 %v7411
    %7801 = vmatpush1.msra.mxu0 %v7410
    %7802 = vmatprep.subr.mxu0 %v7415
    %7803 = vmatpush1.msra.mxu0 %v7414
    %7804 = vmatprep.subr.mxu0 %v7419
    %7805 = vmatpush1.msra.mxu0 %v7418
    %7806 = vmatprep.subr.mxu0 0.0
    %7807 = vmatpush1.msra.mxu0 0.0
    %7808 = vmatprep.subr.mxu0 0.0
    %7809 = vmatpush1.msra.mxu0 0.0
    %7810 = vmatprep.subr.mxu0 0.0
    %7811 = vmatpush1.msra.mxu0 0.0
    %7812 = vmatprep.subr.mxu0 0.0
    %7813 = vmatpush1.msra.mxu0 0.0
    %7814 = vmatprep.subr.mxu0 0.0
    %7815 = vmatpush1.msra.mxu0 0.0
    %7816 = vmatprep.subr.mxu0 0.0
    %7817 = vmatpush1.msra.mxu0 0.0
    %7818 = vmatprep.subr.mxu0 0.0
    %7819 = vmatpush1.msra.mxu0 0.0
    %7820 = vmatprep.subr.mxu0 0.0
    %7821 = vmatpush1.msra.mxu0 0.0
    %7822 = vmatprep.subr.mxu0 0.0
    %7823 = vmatpush1.msra.mxu0 0.0
    %7824 = vmatprep.subr.mxu0 0.0
    %7825 = vmatpush1.msra.mxu0 0.0
    %7826 = vmatprep.subr.mxu0 0.0
    %7827 = vmatpush1.msra.mxu0 0.0
    %7828 = vmatprep.subr.mxu0 0.0
    %7829 = vmatpush1.msra.mxu0 0.0
    %7830 = vmatprep.subr.mxu0 0.0
    %7831 = vmatpush1.msra.mxu0 0.0
    %7832 = vmatprep.subr.mxu0 0.0
    %7833 = vmatpush1.msra.mxu0 0.0
    %7834 = vmatprep.subr.mxu0 0.0
    %7835 = vmatpush1.msra.mxu0 0.0
    %7836 = vmatprep.subr.mxu0 0.0
    %7837 = vmatpush1.msra.mxu0 0.0
    %7838 = vmatprep.mubr.f32.mxu0 0.0
    %7839 = vmatmul.mubr.f32.gmra.mrb[0].mxu0 %v7765
    %v7840 = vpop.f32.mrb[0].mxu0
    %v7841 = vadd.f32 %v7766, %v7840
    %v7842 = vpop.f32.mrb[0].mxu0
    %v7843 = vadd.f32 %v7767, %v7842
    %7844 = vdwg.mxu0
    %7845 = vmatprep.subr.mxu0 %v7361
    %7846 = vmatpush1.msra.mxu0 %v7360
    %7847 = vmatprep.subr.mxu0 %v7365
    %7848 = vmatpush1.msra.mxu0 %v7364
    %7849 = vmatprep.subr.mxu0 %v7369
    %7850 = vmatpush1.msra.mxu0 %v7368
    %7851 = vmatprep.subr.mxu0 %v7373
    %7852 = vmatpush1.msra.mxu0 %v7372
    %7853 = vmatprep.subr.mxu0 %v7377
    %7854 = vmatpush1.msra.mxu0 %v7376
    %7855 = vmatprep.subr.mxu0 %v7381
    %7856 = vmatpush1.msra.mxu0 %v7380
    %7857 = vmatprep.subr.mxu0 %v7385
    %7858 = vmatpush1.msra.mxu0 %v7384
    %7859 = vmatprep.subr.mxu0 %v7389
    %7860 = vmatpush1.msra.mxu0 %v7388
    %7861 = vmatprep.subr.mxu0 %v7393
    %7862 = vmatpush1.msra.mxu0 %v7392
    %7863 = vmatprep.subr.mxu0 %v7397
    %7864 = vmatpush1.msra.mxu0 %v7396
    %7865 = vmatprep.subr.mxu0 %v7401
    %7866 = vmatpush1.msra.mxu0 %v7400
    %7867 = vmatprep.subr.mxu0 %v7405
    %7868 = vmatpush1.msra.mxu0 %v7404
    %7869 = vmatprep.subr.mxu0 %v7409
    %7870 = vmatpush1.msra.mxu0 %v7408
    %7871 = vmatprep.subr.mxu0 %v7413
    %7872 = vmatpush1.msra.mxu0 %v7412
    %7873 = vmatprep.subr.mxu0 %v7417
    %7874 = vmatpush1.msra.mxu0 %v7416
    %7875 = vmatprep.subr.mxu0 %v7421
    %7876 = vmatpush1.msra.mxu0 %v7420
    %7877 = vmatprep.subr.mxu0 0.0
    %7878 = vmatpush1.msra.mxu0 0.0
    %7879 = vmatprep.subr.mxu0 0.0
    %7880 = vmatpush1.msra.mxu0 0.0
    %7881 = vmatprep.subr.mxu0 0.0
    %7882 = vmatpush1.msra.mxu0 0.0
    %7883 = vmatprep.subr.mxu0 0.0
    %7884 = vmatpush1.msra.mxu0 0.0
    %7885 = vmatprep.subr.mxu0 0.0
    %7886 = vmatpush1.msra.mxu0 0.0
    %7887 = vmatprep.subr.mxu0 0.0
    %7888 = vmatpush1.msra.mxu0 0.0
    %7889 = vmatprep.subr.mxu0 0.0
    %7890 = vmatpush1.msra.mxu0 0.0
    %7891 = vmatprep.subr.mxu0 0.0
    %7892 = vmatpush1.msra.mxu0 0.0
    %7893 = vmatprep.subr.mxu0 0.0
    %7894 = vmatpush1.msra.mxu0 0.0
    %7895 = vmatprep.subr.mxu0 0.0
    %7896 = vmatpush1.msra.mxu0 0.0
    %7897 = vmatprep.subr.mxu0 0.0
    %7898 = vmatpush1.msra.mxu0 0.0
    %7899 = vmatprep.subr.mxu0 0.0
    %7900 = vmatpush1.msra.mxu0 0.0
    %7901 = vmatprep.subr.mxu0 0.0
    %7902 = vmatpush1.msra.mxu0 0.0
    %7903 = vmatprep.subr.mxu0 0.0
    %7904 = vmatpush1.msra.mxu0 0.0
    %7905 = vmatprep.subr.mxu0 0.0
    %7906 = vmatpush1.msra.mxu0 0.0
    %7907 = vmatprep.subr.mxu0 0.0
    %7908 = vmatpush1.msra.mxu0 0.0
    %7909 = vmatprep.mubr.f32.mxu0 0.0
    %7910 = vmatmul.mubr.f32.gmra.mrb[0].mxu0 %v7765
    %v7911 = vpop.f32.mrb[0].mxu0
    %v7912 = vadd.f32 %v7768, %v7911
    %v7913 = vpop.f32.mrb[0].mxu0
    %v7914 = vadd.f32 %v7769, %v7913
    %7915 = vdwg.mxu0
    %v7916 = vxor.u32 %v7841, 2147483648
    %v7917 = vmul.f32 %v7916, 1.442695
    %v7918 = vpow.pop %v7917
    %v7919 = vadd.f32 %v7918, 1.0
    %v7920 = vrcp.pop %v7919
    %v7921 = vmul.f32 1.0, %v7920
    %v7922 = vxor.u32 %v7843, 2147483648
    %v7923 = vmul.f32 %v7922, 1.442695
    %v7924 = vpow.pop %v7923
    %v7925 = vadd.f32 %v7924, 1.0
    %v7926 = vrcp.pop %v7925
    %v7927 = vmul.f32 1.0, %v7926
    %v7928 = vtanh.pop %v7912
    %v7929 = vxor.u32 %v7914, 2147483648
    %v7930 = vmul.f32 %v7929, 1.442695
    %v7931 = vpow.pop %v7930
    %v7932 = vadd.f32 %v7931, 1.0
    %v7933 = vrcp.pop %v7932
    %v7934 = vmul.f32 1.0, %v7933
    %v7935 = vmul.f32 %v7927, %v7763
    %v7936 = vmul.f32 %v7921, %v7928
    %v7937 = vadd.f32 %v7935, %v7936
    %v7938 = vtanh.pop %v7937
    %v7939 = vmul.f32 %v7934, %v7938
    %v7940 = vrot.slane %v7283, 3
    %v7941 = vrot.slane %v7285, 3
    %v7942 = vrot.slane %v7354, 3
    %v7943 = vrot.slane %v7356, 3
    %7948 = vmatprep.subr.mxu0 %v7359
    %7949 = vmatpush1.msra.mxu0 %v7358
    %7950 = vmatprep.subr.mxu0 %v7363
    %7951 = vmatpush1.msra.mxu0 %v7362
    %7952 = vmatprep.subr.mxu0 %v7367
    %7953 = vmatpush1.msra.mxu0 %v7366
    %7954 = vmatprep.subr.mxu0 %v7371
    %7955 = vmatpush1.msra.mxu0 %v7370
    %7956 = vmatprep.subr.mxu0 %v7375
    %7957 = vmatpush1.msra.mxu0 %v7374
    %7958 = vmatprep.subr.mxu0 %v7379
    %7959 = vmatpush1.msra.mxu0 %v7378
    %7960 = vmatprep.subr.mxu0 %v7383
    %7961 = vmatpush1.msra.mxu0 %v7382
    %7962 = vmatprep.subr.mxu0 %v7387
    %7963 = vmatpush1.msra.mxu0 %v7386
    %7964 = vmatprep.subr.mxu0 %v7391
    %7965 = vmatpush1.msra.mxu0 %v7390
    %7966 = vmatprep.subr.mxu0 %v7395
    %7967 = vmatpush1.msra.mxu0 %v7394
    %7968 = vmatprep.subr.mxu0 %v7399
    %7969 = vmatpush1.msra.mxu0 %v7398
    %7970 = vmatprep.subr.mxu0 %v7403
    %7971 = vmatpush1.msra.mxu0 %v7402
    %7972 = vmatprep.subr.mxu0 %v7407
    %7973 = vmatpush1.msra.mxu0 %v7406
    %7974 = vmatprep.subr.mxu0 %v7411
    %7975 = vmatpush1.msra.mxu0 %v7410
    %7976 = vmatprep.subr.mxu0 %v7415
    %7977 = vmatpush1.msra.mxu0 %v7414
    %7978 = vmatprep.subr.mxu0 %v7419
    %7979 = vmatpush1.msra.mxu0 %v7418
    %7980 = vmatprep.subr.mxu0 0.0
    %7981 = vmatpush1.msra.mxu0 0.0
    %7982 = vmatprep.subr.mxu0 0.0
    %7983 = vmatpush1.msra.mxu0 0.0
    %7984 = vmatprep.subr.mxu0 0.0
    %7985 = vmatpush1.msra.mxu0 0.0
    %7986 = vmatprep.subr.mxu0 0.0
    %7987 = vmatpush1.msra.mxu0 0.0
    %7988 = vmatprep.subr.mxu0 0.0
    %7989 = vmatpush1.msra.mxu0 0.0
    %7990 = vmatprep.subr.mxu0 0.0
    %7991 = vmatpush1.msra.mxu0 0.0
    %7992 = vmatprep.subr.mxu0 0.0
    %7993 = vmatpush1.msra.mxu0 0.0
    %7994 = vmatprep.subr.mxu0 0.0
    %7995 = vmatpush1.msra.mxu0 0.0
    %7996 = vmatprep.subr.mxu0 0.0
    %7997 = vmatpush1.msra.mxu0 0.0
    %7998 = vmatprep.subr.mxu0 0.0
    %7999 = vmatpush1.msra.mxu0 0.0
    %8000 = vmatprep.subr.mxu0 0.0
    %8001 = vmatpush1.msra.mxu0 0.0
    %8002 = vmatprep.subr.mxu0 0.0
    %8003 = vmatpush1.msra.mxu0 0.0
    %8004 = vmatprep.subr.mxu0 0.0
    %8005 = vmatpush1.msra.mxu0 0.0
    %8006 = vmatprep.subr.mxu0 0.0
    %8007 = vmatpush1.msra.mxu0 0.0
    %8008 = vmatprep.subr.mxu0 0.0
    %8009 = vmatpush1.msra.mxu0 0.0
    %8010 = vmatprep.subr.mxu0 0.0
    %8011 = vmatpush1.msra.mxu0 0.0
    %8012 = vmatprep.mubr.f32.mxu0 0.0
    %8013 = vmatmul.mubr.f32.gmra.mrb[0].mxu0 %v7939
    %v8014 = vpop.f32.mrb[0].mxu0
    %v8015 = vadd.f32 %v7940, %v8014
    %v8016 = vpop.f32.mrb[0].mxu0
    %v8017 = vadd.f32 %v7941, %v8016
    %8018 = vdwg.mxu0
    %8019 = vmatprep.subr.mxu0 %v7361
    %8020 = vmatpush1.msra.mxu0 %v7360
    %8021 = vmatprep.subr.mxu0 %v7365
    %8022 = vmatpush1.msra.mxu0 %v7364
    %8023 = vmatprep.subr.mxu0 %v7369
    %8024 = vmatpush1.msra.mxu0 %v7368
    %8025 = vmatprep.subr.mxu0 %v7373
    %8026 = vmatpush1.msra.mxu0 %v7372
    %8027 = vmatprep.subr.mxu0 %v7377
    %8028 = vmatpush1.msra.mxu0 %v7376
    %8029 = vmatprep.subr.mxu0 %v7381
    %8030 = vmatpush1.msra.mxu0 %v7380
    %8031 = vmatprep.subr.mxu0 %v7385
    %8032 = vmatpush1.msra.mxu0 %v7384
    %8033 = vmatprep.subr.mxu0 %v7389
    %8034 = vmatpush1.msra.mxu0 %v7388
    %8035 = vmatprep.subr.mxu0 %v7393
    %8036 = vmatpush1.msra.mxu0 %v7392
    %8037 = vmatprep.subr.mxu0 %v7397
    %8038 = vmatpush1.msra.mxu0 %v7396
    %8039 = vmatprep.subr.mxu0 %v7401
    %8040 = vmatpush1.msra.mxu0 %v7400
    %8041 = vmatprep.subr.mxu0 %v7405
    %8042 = vmatpush1.msra.mxu0 %v7404
    %8043 = vmatprep.subr.mxu0 %v7409
    %8044 = vmatpush1.msra.mxu0 %v7408
    %8045 = vmatprep.subr.mxu0 %v7413
    %8046 = vmatpush1.msra.mxu0 %v7412
    %8047 = vmatprep.subr.mxu0 %v7417
    %8048 = vmatpush1.msra.mxu0 %v7416
    %8049 = vmatprep.subr.mxu0 %v7421
    %8050 = vmatpush1.msra.mxu0 %v7420
    %8051 = vmatprep.subr.mxu0 0.0
    %8052 = vmatpush1.msra.mxu0 0.0
    %8053 = vmatprep.subr.mxu0 0.0
    %8054 = vmatpush1.msra.mxu0 0.0
    %8055 = vmatprep.subr.mxu0 0.0
    %8056 = vmatpush1.msra.mxu0 0.0
    %8057 = vmatprep.subr.mxu0 0.0
    %8058 = vmatpush1.msra.mxu0 0.0
    %8059 = vmatprep.subr.mxu0 0.0
    %8060 = vmatpush1.msra.mxu0 0.0
    %8061 = vmatprep.subr.mxu0 0.0
    %8062 = vmatpush1.msra.mxu0 0.0
    %8063 = vmatprep.subr.mxu0 0.0
    %8064 = vmatpush1.msra.mxu0 0.0
    %8065 = vmatprep.subr.mxu0 0.0
    %8066 = vmatpush1.msra.mxu0 0.0
    %8067 = vmatprep.subr.mxu0 0.0
    %8068 = vmatpush1.msra.mxu0 0.0
    %8069 = vmatprep.subr.mxu0 0.0
    %8070 = vmatpush1.msra.mxu0 0.0
    %8071 = vmatprep.subr.mxu0 0.0
    %8072 = vmatpush1.msra.mxu0 0.0
    %8073 = vmatprep.subr.mxu0 0.0
    %8074 = vmatpush1.msra.mxu0 0.0
    %8075 = vmatprep.subr.mxu0 0.0
    %8076 = vmatpush1.msra.mxu0 0.0
    %8077 = vmatprep.subr.mxu0 0.0
    %8078 = vmatpush1.msra.mxu0 0.0
    %8079 = vmatprep.subr.mxu0 0.0
    %8080 = vmatpush1.msra.mxu0 0.0
    %8081 = vmatprep.subr.mxu0 0.0
    %8082 = vmatpush1.msra.mxu0 0.0
    %8083 = vmatprep.mubr.f32.mxu0 0.0
    %8084 = vmatmul.mubr.f32.gmra.mrb[0].mxu0 %v7939
    %v8085 = vpop.f32.mrb[0].mxu0
    %v8086 = vadd.f32 %v7942, %v8085
    %v8087 = vpop.f32.mrb[0].mxu0
    %v8088 = vadd.f32 %v7943, %v8087
    %8089 = vdwg.mxu0
    %v8090 = vxor.u32 %v8015, 2147483648
    %v8091 = vmul.f32 %v8090, 1.442695
    %v8092 = vpow.pop %v8091
    %v8093 = vadd.f32 %v8092, 1.0
    %v8094 = vrcp.pop %v8093
    %v8095 = vmul.f32 1.0, %v8094
    %v8096 = vxor.u32 %v8017, 2147483648
    %v8097 = vmul.f32 %v8096, 1.442695
    %v8098 = vpow.pop %v8097
    %v8099 = vadd.f32 %v8098, 1.0
    %v8100 = vrcp.pop %v8099
    %v8101 = vmul.f32 1.0, %v8100
    %v8102 = vtanh.pop %v8086
    %v8103 = vxor.u32 %v8088, 2147483648
    %v8104 = vmul.f32 %v8103, 1.442695
    %v8105 = vpow.pop %v8104
    %v8106 = vadd.f32 %v8105, 1.0
    %v8107 = vrcp.pop %v8106
    %v8108 = vmul.f32 1.0, %v8107
    %v8109 = vmul.f32 %v8101, %v7937
    %v8110 = vmul.f32 %v8095, %v8102
    %v8111 = vadd.f32 %v8109, %v8110
    %v8112 = vtanh.pop %v8111
    %v8113 = vmul.f32 %v8108, %v8112
    %v8114 = vrot.slane %v7283, 4
    %v8115 = vrot.slane %v7285, 4
    %v8116 = vrot.slane %v7354, 4
    %v8117 = vrot.slane %v7356, 4
    %8122 = vmatprep.subr.mxu0 %v7359
    %8123 = vmatpush1.msra.mxu0 %v7358
    %8124 = vmatprep.subr.mxu0 %v7363
    %8125 = vmatpush1.msra.mxu0 %v7362
    %8126 = vmatprep.subr.mxu0 %v7367
    %8127 = vmatpush1.msra.mxu0 %v7366
    %8128 = vmatprep.subr.mxu0 %v7371
    %8129 = vmatpush1.msra.mxu0 %v7370
    %8130 = vmatprep.subr.mxu0 %v7375
    %8131 = vmatpush1.msra.mxu0 %v7374
    %8132 = vmatprep.subr.mxu0 %v7379
    %8133 = vmatpush1.msra.mxu0 %v7378
    %8134 = vmatprep.subr.mxu0 %v7383
    %8135 = vmatpush1.msra.mxu0 %v7382
    %8136 = vmatprep.subr.mxu0 %v7387
    %8137 = vmatpush1.msra.mxu0 %v7386
    %8138 = vmatprep.subr.mxu0 %v7391
    %8139 = vmatpush1.msra.mxu0 %v7390
    %8140 = vmatprep.subr.mxu0 %v7395
    %8141 = vmatpush1.msra.mxu0 %v7394
    %8142 = vmatprep.subr.mxu0 %v7399
    %8143 = vmatpush1.msra.mxu0 %v7398
    %8144 = vmatprep.subr.mxu0 %v7403
    %8145 = vmatpush1.msra.mxu0 %v7402
    %8146 = vmatprep.subr.mxu0 %v7407
    %8147 = vmatpush1.msra.mxu0 %v7406
    %8148 = vmatprep.subr.mxu0 %v7411
    %8149 = vmatpush1.msra.mxu0 %v7410
    %8150 = vmatprep.subr.mxu0 %v7415
    %8151 = vmatpush1.msra.mxu0 %v7414
    %8152 = vmatprep.subr.mxu0 %v7419
    %8153 = vmatpush1.msra.mxu0 %v7418
    %8154 = vmatprep.subr.mxu0 0.0
    %8155 = vmatpush1.msra.mxu0 0.0
    %8156 = vmatprep.subr.mxu0 0.0
    %8157 = vmatpush1.msra.mxu0 0.0
    %8158 = vmatprep.subr.mxu0 0.0
    %8159 = vmatpush1.msra.mxu0 0.0
    %8160 = vmatprep.subr.mxu0 0.0
    %8161 = vmatpush1.msra.mxu0 0.0
    %8162 = vmatprep.subr.mxu0 0.0
    %8163 = vmatpush1.msra.mxu0 0.0
    %8164 = vmatprep.subr.mxu0 0.0
    %8165 = vmatpush1.msra.mxu0 0.0
    %8166 = vmatprep.subr.mxu0 0.0
    %8167 = vmatpush1.msra.mxu0 0.0
    %8168 = vmatprep.subr.mxu0 0.0
    %8169 = vmatpush1.msra.mxu0 0.0
    %8170 = vmatprep.subr.mxu0 0.0
    %8171 = vmatpush1.msra.mxu0 0.0
    %8172 = vmatprep.subr.mxu0 0.0
    %8173 = vmatpush1.msra.mxu0 0.0
    %8174 = vmatprep.subr.mxu0 0.0
    %8175 = vmatpush1.msra.mxu0 0.0
    %8176 = vmatprep.subr.mxu0 0.0
    %8177 = vmatpush1.msra.mxu0 0.0
    %8178 = vmatprep.subr.mxu0 0.0
    %8179 = vmatpush1.msra.mxu0 0.0
    %8180 = vmatprep.subr.mxu0 0.0
    %8181 = vmatpush1.msra.mxu0 0.0
    %8182 = vmatprep.subr.mxu0 0.0
    %8183 = vmatpush1.msra.mxu0 0.0
    %8184 = vmatprep.subr.mxu0 0.0
    %8185 = vmatpush1.msra.mxu0 0.0
    %8186 = vmatprep.mubr.f32.mxu0 0.0
    %8187 = vmatmul.mubr.f32.gmra.mrb[0].mxu0 %v8113
    %v8188 = vpop.f32.mrb[0].mxu0
    %v8189 = vadd.f32 %v8114, %v8188
    %v8190 = vpop.f32.mrb[0].mxu0
    %v8191 = vadd.f32 %v8115, %v8190
    %8192 = vdwg.mxu0
    %8193 = vmatprep.subr.mxu0 %v7361
    %8194 = vmatpush1.msra.mxu0 %v7360
    %8195 = vmatprep.subr.mxu0 %v7365
    %8196 = vmatpush1.msra.mxu0 %v7364
    %8197 = vmatprep.subr.mxu0 %v7369
    %8198 = vmatpush1.msra.mxu0 %v7368
    %8199 = vmatprep.subr.mxu0 %v7373
    %8200 = vmatpush1.msra.mxu0 %v7372
    %8201 = vmatprep.subr.mxu0 %v7377
    %8202 = vmatpush1.msra.mxu0 %v7376
    %8203 = vmatprep.subr.mxu0 %v7381
    %8204 = vmatpush1.msra.mxu0 %v7380
    %8205 = vmatprep.subr.mxu0 %v7385
    %8206 = vmatpush1.msra.mxu0 %v7384
    %8207 = vmatprep.subr.mxu0 %v7389
    %8208 = vmatpush1.msra.mxu0 %v7388
    %8209 = vmatprep.subr.mxu0 %v7393
    %8210 = vmatpush1.msra.mxu0 %v7392
    %8211 = vmatprep.subr.mxu0 %v7397
    %8212 = vmatpush1.msra.mxu0 %v7396
    %8213 = vmatprep.subr.mxu0 %v7401
    %8214 = vmatpush1.msra.mxu0 %v7400
    %8215 = vmatprep.subr.mxu0 %v7405
    %8216 = vmatpush1.msra.mxu0 %v7404
    %8217 = vmatprep.subr.mxu0 %v7409
    %8218 = vmatpush1.msra.mxu0 %v7408
    %8219 = vmatprep.subr.mxu0 %v7413
    %8220 = vmatpush1.msra.mxu0 %v7412
    %8221 = vmatprep.subr.mxu0 %v7417
    %8222 = vmatpush1.msra.mxu0 %v7416
    %8223 = vmatprep.subr.mxu0 %v7421
    %8224 = vmatpush1.msra.mxu0 %v7420
    %8225 = vmatprep.subr.mxu0 0.0
    %8226 = vmatpush1.msra.mxu0 0.0
    %8227 = vmatprep.subr.mxu0 0.0
    %8228 = vmatpush1.msra.mxu0 0.0
    %8229 = vmatprep.subr.mxu0 0.0
    %8230 = vmatpush1.msra.mxu0 0.0
    %8231 = vmatprep.subr.mxu0 0.0
    %8232 = vmatpush1.msra.mxu0 0.0
    %8233 = vmatprep.subr.mxu0 0.0
    %8234 = vmatpush1.msra.mxu0 0.0
    %8235 = vmatprep.subr.mxu0 0.0
    %8236 = vmatpush1.msra.mxu0 0.0
    %8237 = vmatprep.subr.mxu0 0.0
    %8238 = vmatpush1.msra.mxu0 0.0
    %8239 = vmatprep.subr.mxu0 0.0
    %8240 = vmatpush1.msra.mxu0 0.0
    %8241 = vmatprep.subr.mxu0 0.0
    %8242 = vmatpush1.msra.mxu0 0.0
    %8243 = vmatprep.subr.mxu0 0.0
    %8244 = vmatpush1.msra.mxu0 0.0
    %8245 = vmatprep.subr.mxu0 0.0
    %8246 = vmatpush1.msra.mxu0 0.0
    %8247 = vmatprep.subr.mxu0 0.0
    %8248 = vmatpush1.msra.mxu0 0.0
    %8249 = vmatprep.subr.mxu0 0.0
    %8250 = vmatpush1.msra.mxu0 0.0
    %8251 = vmatprep.subr.mxu0 0.0
    %8252 = vmatpush1.msra.mxu0 0.0
    %8253 = vmatprep.subr.mxu0 0.0
    %8254 = vmatpush1.msra.mxu0 0.0
    %8255 = vmatprep.subr.mxu0 0.0
    %8256 = vmatpush1.msra.mxu0 0.0
    %8257 = vmatprep.mubr.f32.mxu0 0.0
    %8258 = vmatmul.mubr.f32.gmra.mrb[0].mxu0 %v8113
    %v8259 = vpop.f32.mrb[0].mxu0
    %v8260 = vadd.f32 %v8116, %v8259
    %v8261 = vpop.f32.mrb[0].mxu0
    %v8262 = vadd.f32 %v8117, %v8261
    %8263 = vdwg.mxu0
    %v8264 = vxor.u32 %v8189, 2147483648
    %v8265 = vmul.f32 %v8264, 1.442695
    %v8266 = vpow.pop %v8265
    %v8267 = vadd.f32 %v8266, 1.0
    %v8268 = vrcp.pop %v8267
    %v8269 = vmul.f32 1.0, %v8268
    %v8270 = vxor.u32 %v8191, 2147483648
    %v8271 = vmul.f32 %v8270, 1.442695
    %v8272 = vpow.pop %v8271
    %v8273 = vadd.f32 %v8272, 1.0
    %v8274 = vrcp.pop %v8273
    %v8275 = vmul.f32 1.0, %v8274
    %v8276 = vtanh.pop %v8260
    %v8277 = vxor.u32 %v8262, 2147483648
    %v8278 = vmul.f32 %v8277, 1.442695
    %v8279 = vpow.pop %v8278
    %v8280 = vadd.f32 %v8279, 1.0
    %v8281 = vrcp.pop %v8280
    %v8282 = vmul.f32 1.0, %v8281
    %v8283 = vmul.f32 %v8275, %v8111
    %v8284 = vmul.f32 %v8269, %v8276
    %v8285 = vadd.f32 %v8283, %v8284
    %v8286 = vtanh.pop %v8285
    %v8287 = vmul.f32 %v8282, %v8286
    %v8288 = vrot.slane %v7283, 5
    %v8289 = vrot.slane %v7285, 5
    %v8290 = vrot.slane %v7354, 5
    %v8291 = vrot.slane %v7356, 5
    %8296 = vmatprep.subr.mxu0 %v7359
    %8297 = vmatpush1.msra.mxu0 %v7358
    %8298 = vmatprep.subr.mxu0 %v7363
    %8299 = vmatpush1.msra.mxu0 %v7362
    %8300 = vmatprep.subr.mxu0 %v7367
    %8301 = vmatpush1.msra.mxu0 %v7366
    %8302 = vmatprep.subr.mxu0 %v7371
    %8303 = vmatpush1.msra.mxu0 %v7370
    %8304 = vmatprep.subr.mxu0 %v7375
    %8305 = vmatpush1.msra.mxu0 %v7374
    %8306 = vmatprep.subr.mxu0 %v7379
    %8307 = vmatpush1.msra.mxu0 %v7378
    %8308 = vmatprep.subr.mxu0 %v7383
    %8309 = vmatpush1.msra.mxu0 %v7382
    %8310 = vmatprep.subr.mxu0 %v7387
    %8311 = vmatpush1.msra.mxu0 %v7386
    %8312 = vmatprep.subr.mxu0 %v7391
    %8313 = vmatpush1.msra.mxu0 %v7390
    %8314 = vmatprep.subr.mxu0 %v7395
    %8315 = vmatpush1.msra.mxu0 %v7394
    %8316 = vmatprep.subr.mxu0 %v7399
    %8317 = vmatpush1.msra.mxu0 %v7398
    %8318 = vmatprep.subr.mxu0 %v7403
    %8319 = vmatpush1.msra.mxu0 %v7402
    %8320 = vmatprep.subr.mxu0 %v7407
    %8321 = vmatpush1.msra.mxu0 %v7406
    %8322 = vmatprep.subr.mxu0 %v7411
    %8323 = vmatpush1.msra.mxu0 %v7410
    %8324 = vmatprep.subr.mxu0 %v7415
    %8325 = vmatpush1.msra.mxu0 %v7414
    %8326 = vmatprep.subr.mxu0 %v7419
    %8327 = vmatpush1.msra.mxu0 %v7418
    %8328 = vmatprep.subr.mxu0 0.0
    %8329 = vmatpush1.msra.mxu0 0.0
    %8330 = vmatprep.subr.mxu0 0.0
    %8331 = vmatpush1.msra.mxu0 0.0
    %8332 = vmatprep.subr.mxu0 0.0
    %8333 = vmatpush1.msra.mxu0 0.0
    %8334 = vmatprep.subr.mxu0 0.0
    %8335 = vmatpush1.msra.mxu0 0.0
    %8336 = vmatprep.subr.mxu0 0.0
    %8337 = vmatpush1.msra.mxu0 0.0
    %8338 = vmatprep.subr.mxu0 0.0
    %8339 = vmatpush1.msra.mxu0 0.0
    %8340 = vmatprep.subr.mxu0 0.0
    %8341 = vmatpush1.msra.mxu0 0.0
    %8342 = vmatprep.subr.mxu0 0.0
    %8343 = vmatpush1.msra.mxu0 0.0
    %8344 = vmatprep.subr.mxu0 0.0
    %8345 = vmatpush1.msra.mxu0 0.0
    %8346 = vmatprep.subr.mxu0 0.0
    %8347 = vmatpush1.msra.mxu0 0.0
    %8348 = vmatprep.subr.mxu0 0.0
    %8349 = vmatpush1.msra.mxu0 0.0
    %8350 = vmatprep.subr.mxu0 0.0
    %8351 = vmatpush1.msra.mxu0 0.0
    %8352 = vmatprep.subr.mxu0 0.0
    %8353 = vmatpush1.msra.mxu0 0.0
    %8354 = vmatprep.subr.mxu0 0.0
    %8355 = vmatpush1.msra.mxu0 0.0
    %8356 = vmatprep.subr.mxu0 0.0
    %8357 = vmatpush1.msra.mxu0 0.0
    %8358 = vmatprep.subr.mxu0 0.0
    %8359 = vmatpush1.msra.mxu0 0.0
    %8360 = vmatprep.mubr.f32.mxu0 0.0
    %8361 = vmatmul.mubr.f32.gmra.mrb[0].mxu0 %v8287
    %v8362 = vpop.f32.mrb[0].mxu0
    %v8363 = vadd.f32 %v8288, %v8362
    %v8364 = vpop.f32.mrb[0].mxu0
    %v8365 = vadd.f32 %v8289, %v8364
    %8366 = vdwg.mxu0
    %8367 = vmatprep.subr.mxu0 %v7361
    %8368 = vmatpush1.msra.mxu0 %v7360
    %8369 = vmatprep.subr.mxu0 %v7365
    %8370 = vmatpush1.msra.mxu0 %v7364
    %8371 = vmatprep.subr.mxu0 %v7369
    %8372 = vmatpush1.msra.mxu0 %v7368
    %8373 = vmatprep.subr.mxu0 %v7373
    %8374 = vmatpush1.msra.mxu0 %v7372
    %8375 = vmatprep.subr.mxu0 %v7377
    %8376 = vmatpush1.msra.mxu0 %v7376
    %8377 = vmatprep.subr.mxu0 %v7381
    %8378 = vmatpush1.msra.mxu0 %v7380
    %8379 = vmatprep.subr.mxu0 %v7385
    %8380 = vmatpush1.msra.mxu0 %v7384
    %8381 = vmatprep.subr.mxu0 %v7389
    %8382 = vmatpush1.msra.mxu0 %v7388
    %8383 = vmatprep.subr.mxu0 %v7393
    %8384 = vmatpush1.msra.mxu0 %v7392
    %8385 = vmatprep.subr.mxu0 %v7397
    %8386 = vmatpush1.msra.mxu0 %v7396
    %8387 = vmatprep.subr.mxu0 %v7401
    %8388 = vmatpush1.msra.mxu0 %v7400
    %8389 = vmatprep.subr.mxu0 %v7405
    %8390 = vmatpush1.msra.mxu0 %v7404
    %8391 = vmatprep.subr.mxu0 %v7409
    %8392 = vmatpush1.msra.mxu0 %v7408
    %8393 = vmatprep.subr.mxu0 %v7413
    %8394 = vmatpush1.msra.mxu0 %v7412
    %8395 = vmatprep.subr.mxu0 %v7417
    %8396 = vmatpush1.msra.mxu0 %v7416
    %8397 = vmatprep.subr.mxu0 %v7421
    %8398 = vmatpush1.msra.mxu0 %v7420
    %8399 = vmatprep.subr.mxu0 0.0
    %8400 = vmatpush1.msra.mxu0 0.0
    %8401 = vmatprep.subr.mxu0 0.0
    %8402 = vmatpush1.msra.mxu0 0.0
    %8403 = vmatprep.subr.mxu0 0.0
    %8404 = vmatpush1.msra.mxu0 0.0
    %8405 = vmatprep.subr.mxu0 0.0
    %8406 = vmatpush1.msra.mxu0 0.0
    %8407 = vmatprep.subr.mxu0 0.0
    %8408 = vmatpush1.msra.mxu0 0.0
    %8409 = vmatprep.subr.mxu0 0.0
    %8410 = vmatpush1.msra.mxu0 0.0
    %8411 = vmatprep.subr.mxu0 0.0
    %8412 = vmatpush1.msra.mxu0 0.0
    %8413 = vmatprep.subr.mxu0 0.0
    %8414 = vmatpush1.msra.mxu0 0.0
    %8415 = vmatprep.subr.mxu0 0.0
    %8416 = vmatpush1.msra.mxu0 0.0
    %8417 = vmatprep.subr.mxu0 0.0
    %8418 = vmatpush1.msra.mxu0 0.0
    %8419 = vmatprep.subr.mxu0 0.0
    %8420 = vmatpush1.msra.mxu0 0.0
    %8421 = vmatprep.subr.mxu0 0.0
    %8422 = vmatpush1.msra.mxu0 0.0
    %8423 = vmatprep.subr.mxu0 0.0
    %8424 = vmatpush1.msra.mxu0 0.0
    %8425 = vmatprep.subr.mxu0 0.0
    %8426 = vmatpush1.msra.mxu0 0.0
    %8427 = vmatprep.subr.mxu0 0.0
    %8428 = vmatpush1.msra.mxu0 0.0
    %8429 = vmatprep.subr.mxu0 0.0
    %8430 = vmatpush1.msra.mxu0 0.0
    %8431 = vmatprep.mubr.f32.mxu0 0.0
    %8432 = vmatmul.mubr.f32.gmra.mrb[0].mxu0 %v8287
    %v8433 = vpop.f32.mrb[0].mxu0
    %v8434 = vadd.f32 %v8290, %v8433
    %v8435 = vpop.f32.mrb[0].mxu0
    %v8436 = vadd.f32 %v8291, %v8435
    %8437 = vdwg.mxu0
    %v8438 = vxor.u32 %v8363, 2147483648
    %v8439 = vmul.f32 %v8438, 1.442695
    %v8440 = vpow.pop %v8439
    %v8441 = vadd.f32 %v8440, 1.0
    %v8442 = vrcp.pop %v8441
    %v8443 = vmul.f32 1.0, %v8442
    %v8444 = vxor.u32 %v8365, 2147483648
    %v8445 = vmul.f32 %v8444, 1.442695
    %v8446 = vpow.pop %v8445
    %v8447 = vadd.f32 %v8446, 1.0
    %v8448 = vrcp.pop %v8447
    %v8449 = vmul.f32 1.0, %v8448
    %v8450 = vtanh.pop %v8434
    %v8451 = vxor.u32 %v8436, 2147483648
    %v8452 = vmul.f32 %v8451, 1.442695
    %v8453 = vpow.pop %v8452
    %v8454 = vadd.f32 %v8453, 1.0
    %v8455 = vrcp.pop %v8454
    %v8456 = vmul.f32 1.0, %v8455
    %v8457 = vmul.f32 %v8449, %v8285
    %v8458 = vmul.f32 %v8443, %v8450
    %v8459 = vadd.f32 %v8457, %v8458
    %v8460 = vtanh.pop %v8459
    %v8461 = vmul.f32 %v8456, %v8460
    %v8462 = vrot.slane %v7283, 6
    %v8463 = vrot.slane %v7285, 6
    %v8464 = vrot.slane %v7354, 6
    %v8465 = vrot.slane %v7356, 6
    %8470 = vmatprep.subr.mxu0 %v7359
    %8471 = vmatpush1.msra.mxu0 %v7358
    %8472 = vmatprep.subr.mxu0 %v7363
    %8473 = vmatpush1.msra.mxu0 %v7362
    %8474 = vmatprep.subr.mxu0 %v7367
    %8475 = vmatpush1.msra.mxu0 %v7366
    %8476 = vmatprep.subr.mxu0 %v7371
    %8477 = vmatpush1.msra.mxu0 %v7370
    %8478 = vmatprep.subr.mxu0 %v7375
    %8479 = vmatpush1.msra.mxu0 %v7374
    %8480 = vmatprep.subr.mxu0 %v7379
    %8481 = vmatpush1.msra.mxu0 %v7378
    %8482 = vmatprep.subr.mxu0 %v7383
    %8483 = vmatpush1.msra.mxu0 %v7382
    %8484 = vmatprep.subr.mxu0 %v7387
    %8485 = vmatpush1.msra.mxu0 %v7386
    %8486 = vmatprep.subr.mxu0 %v7391
    %8487 = vmatpush1.msra.mxu0 %v7390
    %8488 = vmatprep.subr.mxu0 %v7395
    %8489 = vmatpush1.msra.mxu0 %v7394
    %8490 = vmatprep.subr.mxu0 %v7399
    %8491 = vmatpush1.msra.mxu0 %v7398
    %8492 = vmatprep.subr.mxu0 %v7403
    %8493 = vmatpush1.msra.mxu0 %v7402
    %8494 = vmatprep.subr.mxu0 %v7407
    %8495 = vmatpush1.msra.mxu0 %v7406
    %8496 = vmatprep.subr.mxu0 %v7411
    %8497 = vmatpush1.msra.mxu0 %v7410
    %8498 = vmatprep.subr.mxu0 %v7415
    %8499 = vmatpush1.msra.mxu0 %v7414
    %8500 = vmatprep.subr.mxu0 %v7419
    %8501 = vmatpush1.msra.mxu0 %v7418
    %8502 = vmatprep.subr.mxu0 0.0
    %8503 = vmatpush1.msra.mxu0 0.0
    %8504 = vmatprep.subr.mxu0 0.0
    %8505 = vmatpush1.msra.mxu0 0.0
    %8506 = vmatprep.subr.mxu0 0.0
    %8507 = vmatpush1.msra.mxu0 0.0
    %8508 = vmatprep.subr.mxu0 0.0
    %8509 = vmatpush1.msra.mxu0 0.0
    %8510 = vmatprep.subr.mxu0 0.0
    %8511 = vmatpush1.msra.mxu0 0.0
    %8512 = vmatprep.subr.mxu0 0.0
    %8513 = vmatpush1.msra.mxu0 0.0
    %8514 = vmatprep.subr.mxu0 0.0
    %8515 = vmatpush1.msra.mxu0 0.0
    %8516 = vmatprep.subr.mxu0 0.0
    %8517 = vmatpush1.msra.mxu0 0.0
    %8518 = vmatprep.subr.mxu0 0.0
    %8519 = vmatpush1.msra.mxu0 0.0
    %8520 = vmatprep.subr.mxu0 0.0
    %8521 = vmatpush1.msra.mxu0 0.0
    %8522 = vmatprep.subr.mxu0 0.0
    %8523 = vmatpush1.msra.mxu0 0.0
    %8524 = vmatprep.subr.mxu0 0.0
    %8525 = vmatpush1.msra.mxu0 0.0
    %8526 = vmatprep.subr.mxu0 0.0
    %8527 = vmatpush1.msra.mxu0 0.0
    %8528 = vmatprep.subr.mxu0 0.0
    %8529 = vmatpush1.msra.mxu0 0.0
    %8530 = vmatprep.subr.mxu0 0.0
    %8531 = vmatpush1.msra.mxu0 0.0
    %8532 = vmatprep.subr.mxu0 0.0
    %8533 = vmatpush1.msra.mxu0 0.0
    %8534 = vmatprep.mubr.f32.mxu0 0.0
    %8535 = vmatmul.mubr.f32.gmra.mrb[0].mxu0 %v8461
    %v8536 = vpop.f32.mrb[0].mxu0
    %v8537 = vadd.f32 %v8462, %v8536
    %v8538 = vpop.f32.mrb[0].mxu0
    %v8539 = vadd.f32 %v8463, %v8538
    %8540 = vdwg.mxu0
    %8541 = vmatprep.subr.mxu0 %v7361
    %8542 = vmatpush1.msra.mxu0 %v7360
    %8543 = vmatprep.subr.mxu0 %v7365
    %8544 = vmatpush1.msra.mxu0 %v7364
    %8545 = vmatprep.subr.mxu0 %v7369
    %8546 = vmatpush1.msra.mxu0 %v7368
    %8547 = vmatprep.subr.mxu0 %v7373
    %8548 = vmatpush1.msra.mxu0 %v7372
    %8549 = vmatprep.subr.mxu0 %v7377
    %8550 = vmatpush1.msra.mxu0 %v7376
    %8551 = vmatprep.subr.mxu0 %v7381
    %8552 = vmatpush1.msra.mxu0 %v7380
    %8553 = vmatprep.subr.mxu0 %v7385
    %8554 = vmatpush1.msra.mxu0 %v7384
    %8555 = vmatprep.subr.mxu0 %v7389
    %8556 = vmatpush1.msra.mxu0 %v7388
    %8557 = vmatprep.subr.mxu0 %v7393
    %8558 = vmatpush1.msra.mxu0 %v7392
    %8559 = vmatprep.subr.mxu0 %v7397
    %8560 = vmatpush1.msra.mxu0 %v7396
    %8561 = vmatprep.subr.mxu0 %v7401
    %8562 = vmatpush1.msra.mxu0 %v7400
    %8563 = vmatprep.subr.mxu0 %v7405
    %8564 = vmatpush1.msra.mxu0 %v7404
    %8565 = vmatprep.subr.mxu0 %v7409
    %8566 = vmatpush1.msra.mxu0 %v7408
    %8567 = vmatprep.subr.mxu0 %v7413
    %8568 = vmatpush1.msra.mxu0 %v7412
    %8569 = vmatprep.subr.mxu0 %v7417
    %8570 = vmatpush1.msra.mxu0 %v7416
    %8571 = vmatprep.subr.mxu0 %v7421
    %8572 = vmatpush1.msra.mxu0 %v7420
    %8573 = vmatprep.subr.mxu0 0.0
    %8574 = vmatpush1.msra.mxu0 0.0
    %8575 = vmatprep.subr.mxu0 0.0
    %8576 = vmatpush1.msra.mxu0 0.0
    %8577 = vmatprep.subr.mxu0 0.0
    %8578 = vmatpush1.msra.mxu0 0.0
    %8579 = vmatprep.subr.mxu0 0.0
    %8580 = vmatpush1.msra.mxu0 0.0
    %8581 = vmatprep.subr.mxu0 0.0
    %8582 = vmatpush1.msra.mxu0 0.0
    %8583 = vmatprep.subr.mxu0 0.0
    %8584 = vmatpush1.msra.mxu0 0.0
    %8585 = vmatprep.subr.mxu0 0.0
    %8586 = vmatpush1.msra.mxu0 0.0
    %8587 = vmatprep.subr.mxu0 0.0
    %8588 = vmatpush1.msra.mxu0 0.0
    %8589 = vmatprep.subr.mxu0 0.0
    %8590 = vmatpush1.msra.mxu0 0.0
    %8591 = vmatprep.subr.mxu0 0.0
    %8592 = vmatpush1.msra.mxu0 0.0
    %8593 = vmatprep.subr.mxu0 0.0
    %8594 = vmatpush1.msra.mxu0 0.0
    %8595 = vmatprep.subr.mxu0 0.0
    %8596 = vmatpush1.msra.mxu0 0.0
    %8597 = vmatprep.subr.mxu0 0.0
    %8598 = vmatpush1.msra.mxu0 0.0
    %8599 = vmatprep.subr.mxu0 0.0
    %8600 = vmatpush1.msra.mxu0 0.0
    %8601 = vmatprep.subr.mxu0 0.0
    %8602 = vmatpush1.msra.mxu0 0.0
    %8603 = vmatprep.subr.mxu0 0.0
    %8604 = vmatpush1.msra.mxu0 0.0
    %8605 = vmatprep.mubr.f32.mxu0 0.0
    %8606 = vmatmul.mubr.f32.gmra.mrb[0].mxu0 %v8461
    %v8607 = vpop.f32.mrb[0].mxu0
    %v8608 = vadd.f32 %v8464, %v8607
    %v8609 = vpop.f32.mrb[0].mxu0
    %v8610 = vadd.f32 %v8465, %v8609
    %8611 = vdwg.mxu0
    %v8612 = vxor.u32 %v8537, 2147483648
    %v8613 = vmul.f32 %v8612, 1.442695
    %v8614 = vpow.pop %v8613
    %v8615 = vadd.f32 %v8614, 1.0
    %v8616 = vrcp.pop %v8615
    %v8617 = vmul.f32 1.0, %v8616
    %v8618 = vxor.u32 %v8539, 2147483648
    %v8619 = vmul.f32 %v8618, 1.442695
    %v8620 = vpow.pop %v8619
    %v8621 = vadd.f32 %v8620, 1.0
    %v8622 = vrcp.pop %v8621
    %v8623 = vmul.f32 1.0, %v8622
    %v8624 = vtanh.pop %v8608
    %v8625 = vxor.u32 %v8610, 2147483648
    %v8626 = vmul.f32 %v8625, 1.442695
    %v8627 = vpow.pop %v8626
    %v8628 = vadd.f32 %v8627, 1.0
    %v8629 = vrcp.pop %v8628
    %v8630 = vmul.f32 1.0, %v8629
    %v8631 = vmul.f32 %v8623, %v8459
    %v8632 = vmul.f32 %v8617, %v8624
    %v8633 = vadd.f32 %v8631, %v8632
    %v8634 = vtanh.pop %v8633
    %v8635 = vmul.f32 %v8630, %v8634
    %v8636 = vrot.slane %v7283, 7
    %v8637 = vrot.slane %v7285, 7
    %v8638 = vrot.slane %v7354, 7
    %v8639 = vrot.slane %v7356, 7
    %8644 = vmatprep.subr.mxu0 %v7359
    %8645 = vmatpush1.msra.mxu0 %v7358
    %8646 = vmatprep.subr.mxu0 %v7363
    %8647 = vmatpush1.msra.mxu0 %v7362
    %8648 = vmatprep.subr.mxu0 %v7367
    %8649 = vmatpush1.msra.mxu0 %v7366
    %8650 = vmatprep.subr.mxu0 %v7371
    %8651 = vmatpush1.msra.mxu0 %v7370
    %8652 = vmatprep.subr.mxu0 %v7375
    %8653 = vmatpush1.msra.mxu0 %v7374
    %8654 = vmatprep.subr.mxu0 %v7379
    %8655 = vmatpush1.msra.mxu0 %v7378
    %8656 = vmatprep.subr.mxu0 %v7383
    %8657 = vmatpush1.msra.mxu0 %v7382
    %8658 = vmatprep.subr.mxu0 %v7387
    %8659 = vmatpush1.msra.mxu0 %v7386
    %8660 = vmatprep.subr.mxu0 %v7391
    %8661 = vmatpush1.msra.mxu0 %v7390
    %8662 = vmatprep.subr.mxu0 %v7395
    %8663 = vmatpush1.msra.mxu0 %v7394
    %8664 = vmatprep.subr.mxu0 %v7399
    %8665 = vmatpush1.msra.mxu0 %v7398
    %8666 = vmatprep.subr.mxu0 %v7403
    %8667 = vmatpush1.msra.mxu0 %v7402
    %8668 = vmatprep.subr.mxu0 %v7407
    %8669 = vmatpush1.msra.mxu0 %v7406
    %8670 = vmatprep.subr.mxu0 %v7411
    %8671 = vmatpush1.msra.mxu0 %v7410
    %8672 = vmatprep.subr.mxu0 %v7415
    %8673 = vmatpush1.msra.mxu0 %v7414
    %8674 = vmatprep.subr.mxu0 %v7419
    %8675 = vmatpush1.msra.mxu0 %v7418
    %8676 = vmatprep.subr.mxu0 0.0
    %8677 = vmatpush1.msra.mxu0 0.0
    %8678 = vmatprep.subr.mxu0 0.0
    %8679 = vmatpush1.msra.mxu0 0.0
    %8680 = vmatprep.subr.mxu0 0.0
    %8681 = vmatpush1.msra.mxu0 0.0
    %8682 = vmatprep.subr.mxu0 0.0
    %8683 = vmatpush1.msra.mxu0 0.0
    %8684 = vmatprep.subr.mxu0 0.0
    %8685 = vmatpush1.msra.mxu0 0.0
    %8686 = vmatprep.subr.mxu0 0.0
    %8687 = vmatpush1.msra.mxu0 0.0
    %8688 = vmatprep.subr.mxu0 0.0
    %8689 = vmatpush1.msra.mxu0 0.0
    %8690 = vmatprep.subr.mxu0 0.0
    %8691 = vmatpush1.msra.mxu0 0.0
    %8692 = vmatprep.subr.mxu0 0.0
    %8693 = vmatpush1.msra.mxu0 0.0
    %8694 = vmatprep.subr.mxu0 0.0
    %8695 = vmatpush1.msra.mxu0 0.0
    %8696 = vmatprep.subr.mxu0 0.0
    %8697 = vmatpush1.msra.mxu0 0.0
    %8698 = vmatprep.subr.mxu0 0.0
    %8699 = vmatpush1.msra.mxu0 0.0
    %8700 = vmatprep.subr.mxu0 0.0
    %8701 = vmatpush1.msra.mxu0 0.0
    %8702 = vmatprep.subr.mxu0 0.0
    %8703 = vmatpush1.msra.mxu0 0.0
    %8704 = vmatprep.subr.mxu0 0.0
    %8705 = vmatpush1.msra.mxu0 0.0
    %8706 = vmatprep.subr.mxu0 0.0
    %8707 = vmatpush1.msra.mxu0 0.0
    %8708 = vmatprep.mubr.f32.mxu0 0.0
    %8709 = vmatmul.mubr.f32.gmra.mrb[0].mxu0 %v8635
    %v8710 = vpop.f32.mrb[0].mxu0
    %v8711 = vadd.f32 %v8636, %v8710
    %v8712 = vpop.f32.mrb[0].mxu0
    %v8713 = vadd.f32 %v8637, %v8712
    %8714 = vdwg.mxu0
    %8715 = vmatprep.subr.mxu0 %v7361
    %8716 = vmatpush1.msra.mxu0 %v7360
    %8717 = vmatprep.subr.mxu0 %v7365
    %8718 = vmatpush1.msra.mxu0 %v7364
    %8719 = vmatprep.subr.mxu0 %v7369
    %8720 = vmatpush1.msra.mxu0 %v7368
    %8721 = vmatprep.subr.mxu0 %v7373
    %8722 = vmatpush1.msra.mxu0 %v7372
    %8723 = vmatprep.subr.mxu0 %v7377
    %8724 = vmatpush1.msra.mxu0 %v7376
    %8725 = vmatprep.subr.mxu0 %v7381
    %8726 = vmatpush1.msra.mxu0 %v7380
    %8727 = vmatprep.subr.mxu0 %v7385
    %8728 = vmatpush1.msra.mxu0 %v7384
    %8729 = vmatprep.subr.mxu0 %v7389
    %8730 = vmatpush1.msra.mxu0 %v7388
    %8731 = vmatprep.subr.mxu0 %v7393
    %8732 = vmatpush1.msra.mxu0 %v7392
    %8733 = vmatprep.subr.mxu0 %v7397
    %8734 = vmatpush1.msra.mxu0 %v7396
    %8735 = vmatprep.subr.mxu0 %v7401
    %8736 = vmatpush1.msra.mxu0 %v7400
    %8737 = vmatprep.subr.mxu0 %v7405
    %8738 = vmatpush1.msra.mxu0 %v7404
    %8739 = vmatprep.subr.mxu0 %v7409
    %8740 = vmatpush1.msra.mxu0 %v7408
    %8741 = vmatprep.subr.mxu0 %v7413
    %8742 = vmatpush1.msra.mxu0 %v7412
    %8743 = vmatprep.subr.mxu0 %v7417
    %8744 = vmatpush1.msra.mxu0 %v7416
    %8745 = vmatprep.subr.mxu0 %v7421
    %8746 = vmatpush1.msra.mxu0 %v7420
    %8747 = vmatprep.subr.mxu0 0.0
    %8748 = vmatpush1.msra.mxu0 0.0
    %8749 = vmatprep.subr.mxu0 0.0
    %8750 = vmatpush1.msra.mxu0 0.0
    %8751 = vmatprep.subr.mxu0 0.0
    %8752 = vmatpush1.msra.mxu0 0.0
    %8753 = vmatprep.subr.mxu0 0.0
    %8754 = vmatpush1.msra.mxu0 0.0
    %8755 = vmatprep.subr.mxu0 0.0
    %8756 = vmatpush1.msra.mxu0 0.0
    %8757 = vmatprep.subr.mxu0 0.0
    %8758 = vmatpush1.msra.mxu0 0.0
    %8759 = vmatprep.subr.mxu0 0.0
    %8760 = vmatpush1.msra.mxu0 0.0
    %8761 = vmatprep.subr.mxu0 0.0
    %8762 = vmatpush1.msra.mxu0 0.0
    %8763 = vmatprep.subr.mxu0 0.0
    %8764 = vmatpush1.msra.mxu0 0.0
    %8765 = vmatprep.subr.mxu0 0.0
    %8766 = vmatpush1.msra.mxu0 0.0
    %8767 = vmatprep.subr.mxu0 0.0
    %8768 = vmatpush1.msra.mxu0 0.0
    %8769 = vmatprep.subr.mxu0 0.0
    %8770 = vmatpush1.msra.mxu0 0.0
    %8771 = vmatprep.subr.mxu0 0.0
    %8772 = vmatpush1.msra.mxu0 0.0
    %8773 = vmatprep.subr.mxu0 0.0
    %8774 = vmatpush1.msra.mxu0 0.0
    %8775 = vmatprep.subr.mxu0 0.0
    %8776 = vmatpush1.msra.mxu0 0.0
    %8777 = vmatprep.subr.mxu0 0.0
    %8778 = vmatpush1.msra.mxu0 0.0
    %8779 = vmatprep.mubr.f32.mxu0 0.0
    %8780 = vmatmul.mubr.f32.gmra.mrb[0].mxu0 %v8635
    %v8781 = vpop.f32.mrb[0].mxu0
    %v8782 = vadd.f32 %v8638, %v8781
    %v8783 = vpop.f32.mrb[0].mxu0
    %v8784 = vadd.f32 %v8639, %v8783
    %8785 = vdwg.mxu0
    %v8786 = vxor.u32 %v8711, 2147483648
    %v8787 = vmul.f32 %v8786, 1.442695
    %v8788 = vpow.pop %v8787
    %v8789 = vadd.f32 %v8788, 1.0
    %v8790 = vrcp.pop %v8789
    %v8791 = vmul.f32 1.0, %v8790
    %v8792 = vxor.u32 %v8713, 2147483648
    %v8793 = vmul.f32 %v8792, 1.442695
    %v8794 = vpow.pop %v8793
    %v8795 = vadd.f32 %v8794, 1.0
    %v8796 = vrcp.pop %v8795
    %v8797 = vmul.f32 1.0, %v8796
    %v8798 = vtanh.pop %v8782
    %v8799 = vxor.u32 %v8784, 2147483648
    %v8800 = vmul.f32 %v8799, 1.442695
    %v8801 = vpow.pop %v8800
    %v8802 = vadd.f32 %v8801, 1.0
    %v8803 = vrcp.pop %v8802
    %v8804 = vmul.f32 1.0, %v8803
    %v8805 = vmul.f32 %v8797, %v8633
    %v8806 = vmul.f32 %v8791, %v8798
    %v8807 = vadd.f32 %v8805, %v8806
    %v8808 = vtanh.pop %v8807
    %v8809 = vmul.f32 %v8804, %v8808
    %v8810 = vld [vmem:[%s18] sm:$0xff]
    %v8811 = vld [vmem:[%s18 + $0x8] sm:$0xff]
    %v8812 = vld [vmem:[%s18 + $0x10] sm:$0xff]
    %v8813 = vld [vmem:[%s18 + $0x18] sm:$0xff]
    %v8814 = vld [vmem:[%s18 + $0x20] sm:$0xff]
    %v8815 = vld [vmem:[%s18 + $0x28] sm:$0xff]
    %v8816 = vld [vmem:[%s18 + $0x30] sm:$0xff]
    %v8817 = vld [vmem:[%s18 + $0x38] sm:$0xff]
    %v8818 = vld [vmem:[%s18 + $0x40] sm:$0xff]
    %v8819 = vld [vmem:[%s18 + $0x48] sm:$0xff]
    %v8820 = vld [vmem:[%s18 + $0x50] sm:$0xff]
    %v8821 = vld [vmem:[%s18 + $0x58] sm:$0xff]
    %v8822 = vld [vmem:[%s18 + $0x60] sm:$0xff]
    %v8823 = vld [vmem:[%s18 + $0x68] sm:$0xff]
    %v8824 = vld [vmem:[%s18 + $0x70] sm:$0xff]
    %v8825 = vld [vmem:[%s18 + $0x78] sm:$0xff]
    %v8826 = vld [vmem:[%s19] sm:$0x1]
    %8827 = vmatprep.subr.mxu0 0.0
    %8828 = vmatpush1.msra.mxu0 %v8810
    %8829 = vmatprep.subr.mxu0 0.0
    %8830 = vmatpush1.msra.mxu0 %v8811
    %8831 = vmatprep.subr.mxu0 0.0
    %8832 = vmatpush1.msra.mxu0 %v8812
    %8833 = vmatprep.subr.mxu0 0.0
    %8834 = vmatpush1.msra.mxu0 %v8813
    %8835 = vmatprep.subr.mxu0 0.0
    %8836 = vmatpush1.msra.mxu0 %v8814
    %8837 = vmatprep.subr.mxu0 0.0
    %8838 = vmatpush1.msra.mxu0 %v8815
    %8839 = vmatprep.subr.mxu0 0.0
    %8840 = vmatpush1.msra.mxu0 %v8816
    %8841 = vmatprep.subr.mxu0 0.0
    %8842 = vmatpush1.msra.mxu0 %v8817
    %8843 = vmatprep.subr.mxu0 0.0
    %8844 = vmatpush1.msra.mxu0 %v8818
    %8845 = vmatprep.subr.mxu0 0.0
    %8846 = vmatpush1.msra.mxu0 %v8819
    %8847 = vmatprep.subr.mxu0 0.0
    %8848 = vmatpush1.msra.mxu0 %v8820
    %8849 = vmatprep.subr.mxu0 0.0
    %8850 = vmatpush1.msra.mxu0 %v8821
    %8851 = vmatprep.subr.mxu0 0.0
    %8852 = vmatpush1.msra.mxu0 %v8822
    %8853 = vmatprep.subr.mxu0 0.0
    %8854 = vmatpush1.msra.mxu0 %v8823
    %8855 = vmatprep.subr.mxu0 0.0
    %8856 = vmatpush1.msra.mxu0 %v8824
    %8857 = vmatprep.subr.mxu0 0.0
    %8858 = vmatpush1.msra.mxu0 %v8825
    %8859 = vmatprep.subr.mxu0 0.0
    %8860 = vmatpush1.msra.mxu0 0.0
    %8861 = vmatprep.subr.mxu0 0.0
    %8862 = vmatpush1.msra.mxu0 0.0
    %8863 = vmatprep.subr.mxu0 0.0
    %8864 = vmatpush1.msra.mxu0 0.0
    %8865 = vmatprep.subr.mxu0 0.0
    %8866 = vmatpush1.msra.mxu0 0.0
    %8867 = vmatprep.subr.mxu0 0.0
    %8868 = vmatpush1.msra.mxu0 0.0
    %8869 = vmatprep.subr.mxu0 0.0
    %8870 = vmatpush1.msra.mxu0 0.0
    %8871 = vmatprep.subr.mxu0 0.0
    %8872 = vmatpush1.msra.mxu0 0.0
    %8873 = vmatprep.subr.mxu0 0.0
    %8874 = vmatpush1.msra.mxu0 0.0
    %8875 = vmatprep.subr.mxu0 0.0
    %8876 = vmatpush1.msra.mxu0 0.0
    %8877 = vmatprep.subr.mxu0 0.0
    %8878 = vmatpush1.msra.mxu0 0.0
    %8879 = vmatprep.subr.mxu0 0.0
    %8880 = vmatpush1.msra.mxu0 0.0
    %8881 = vmatprep.subr.mxu0 0.0
    %8882 = vmatpush1.msra.mxu0 0.0
    %8883 = vmatprep.subr.mxu0 0.0
    %8884 = vmatpush1.msra.mxu0 0.0
    %8885 = vmatprep.subr.mxu0 0.0
    %8886 = vmatpush1.msra.mxu0 0.0
    %8887 = vmatprep.subr.mxu0 0.0
    %8888 = vmatpush1.msra.mxu0 0.0
    %8889 = vmatprep.subr.mxu0 0.0
    %8890 = vmatpush1.msra.mxu0 0.0
    %8891 = vmatprep.mubr.f32.mxu0 0.0
    %8892 = vmatmul.mubr.f32.gmra.mrb[0].mxu0 %v8809
    %v8893 = vpop.f32.mrb[0].mxu0
    %v8894 = vadd.f32 %v8826, %v8893
    %v8895 = vpop.f32.mrb[0].mxu0
    %8896 = vdwg.mxu0
    %vm8897 = vcmask 32768
    %8898 = vst.msk [vmem:[#allocation21] sm:$0x1] %vm8897, %v8894
    // Predicated region
    $region126: #{tpu_custom_call.1} parent=1 // pred_check
      _
    $region127: #{tpu_custom_call.1} parent=1 // pred_check_branch
      %8900 = sbr.rel (0) target = $region129
    $region128: #{tpu_custom_call.1} parent=1 // pred_region
      %s8902 = ssub.s32 16, 16
      %8903 = vsyncadd [#allocation4], %s8902
      %s8905 = sshll.u32 [#allocation21], 4
      %s8906 = int_to_ptr.vmem [resolvable:$true] %s8905
      %8908 = dma.vmem_to_hbm [thread:$0]  %s8906, 16, %s20, [#allocation4]
    $region129: #{tpu_custom_call.1} parent=1 // pred_fallthru
      _
    // Predicated region
    $region130: #{tpu_custom_call.1} parent=1 // pred_check
      _
    $region131: #{tpu_custom_call.1} parent=1 // pred_check_branch
      %8910 = sbr.rel (0) target = $region133
    $region132: #{tpu_custom_call.1} parent=1 // pred_region
      %8911 = dma.done [#allocation4], 16
    $region133: #{tpu_custom_call.1} parent=1 // pred_fallthru
      _
    %8912 = vsyncpa [#allocation3], 1
    %8913 = vsyncpa [#allocation8], 1
    %8914 = vsyncpa [#allocation11], 1
    %8915 = vsyncpa [#allocation14], 1
    %8916 = vsyncpa [#allocation17], 1
    %8917 = vsyncpa [#allocation20], 1
    %8918 = vsyncpa [#allocation4], 1
    %8919 = vsyncpa [#allocation5], 1

</llo_original>
